<compile_context>
chip_gen: v7x
topology: tpu7x:2x2x1
jax: 0.10.0
libtpu: 0.0.40
codegen_flags: <defaults>
</compile_context>

<pallas_src>
import functools

import jax
import jax.numpy as jnp
from jax.experimental import pallas as pl
from jax.experimental.pallas import tpu as pltpu


# ------------------------------ model geometry ------------------------------

_K3 = (1, 8, 8)        # compress_activations kernel
_STRIDE = (1, 4, 4)
_PAD = (1, 2, 2)
_PROJ_CH = 64          # pretrained-activation channels (stub)
_CONV_CH = 24          # compress_activations out channels


def _conv_out_geom(spatial):
    D, H, W = spatial
    kd, kh, kw = _K3
    sd, sh, sw = _STRIDE
    pd, ph, pw = _PAD
    Do = (D + 2 * pd - kd) // sd + 1
    Ho = (H + 2 * ph - kh) // sh + 1
    Wo = (W + 2 * pw - kw) // sw + 1
    return Do, Ho, Wo


def _nbytes(a):
    return int(a.size) * a.dtype.itemsize


def _tensorcores_per_chip():
    """2 only on v7x (2 TCs/chip); v5e/v6e have 1 -> collapse the conv grid."""
    try:
        kind = jax.devices()[0].device_kind.lower()
    except Exception:
        return 1
    return 2 if "7" in kind else 1


# ----------------------------- Pallas kernels -------------------------------

def _conv_im2col_kernel(p_ref, wproj_ref, wconv_ref, b_ref, o_ref):
    """relu( Conv3d( relu(stub_projection(x)) ) ) on one tile of chunked patches.

    p_ref:     (NCHUNK, TP, kw*Cin)   bf16  raw-input patches, chunk = (kd,kh) tap row
    wproj_ref: (kw*Cin, kw*64)        bf16  block-diagonal 1x1x1 projection (stub),
                                            identical for every chunk -> stored once
    wconv_ref: (NCHUNK, kw*64, Cout)  bf16  compress_activations weight per chunk
    b_ref:     (1, Cout)              f32
    o_ref:     (TP, Cout)             bf16

    relu(0)=0 on zero-padded taps matches Conv3d's zero padding of relu(activations)
    ONLY because the stub projection has no bias/affine term (see caveat in header).
    """
    nchunk, tp, _ = p_ref.shape
    cout = o_ref.shape[1]
    wproj = wproj_ref[...]
    bias = b_ref[...]

    def body(j, acc):
        # K=32 contraction: a single MXU pass even on v5e's 128-wide MXU.
        act = jnp.dot(p_ref[j], wproj, preferred_element_type=jnp.float32)
        act = jnp.maximum(act, 0.0).astype(jnp.bfloat16)        # relu(pretrained acts)
        return acc + jnp.dot(act, wconv_ref[j], preferred_element_type=jnp.float32)

    acc = jax.lax.fori_loop(0, nchunk, body,
                            jnp.zeros((tp, cout), jnp.float32), unroll=True)
    o_ref[...] = jnp.maximum(acc + bias, 0.0).astype(o_ref.dtype)


def _mlp_kernel(x_ref, w1_ref, b1_ref, w2_ref, b2_ref, w3_ref, b3_ref,
                w4_ref, b4_ref, o_ref):
    """relu(fc1) -> relu(fc2) -> relu(fc3) -> fc4, fused; bf16 MXU, f32 bias/ReLU."""
    h = jnp.dot(x_ref[...], w1_ref[...], preferred_element_type=jnp.float32) + b1_ref[...]
    h = jnp.maximum(h, 0.0).astype(jnp.bfloat16)
    h = jnp.dot(h, w2_ref[...], preferred_element_type=jnp.float32) + b2_ref[...]
    h = jnp.maximum(h, 0.0).astype(jnp.bfloat16)
    h = jnp.dot(h, w3_ref[...], preferred_element_type=jnp.float32) + b3_ref[...]
    h = jnp.maximum(h, 0.0).astype(jnp.bfloat16)
    o_ref[...] = (jnp.dot(h, w4_ref[...], preferred_element_type=jnp.float32)
                  + b4_ref[...]).astype(o_ref.dtype)


# ------------------------------ pallas wrappers ------------------------------

def _conv_pallas(patches3, params, num_tc):
    NCH, P, CK = patches3.shape
    CKO = params["wproj"].shape[1]
    CO = params["wconv"].shape[2]
    # One grid step per TensorCore: grid=(1,) on v5e/v6e (serial grid only adds
    # ~0.35us/step + weight revisits); 2-way 'parallel' split only on v7x.
    if num_tc > 1 and P % num_tc == 0 and (P // num_tc) % 8 == 0:
        TP = P // num_tc
    else:
        TP = P
    grid = (P // TP,)
    cost = pl.CostEstimate(
        # Executed chunked-matmul FLOPs (block-diagonal projection is compacted,
        # no longer the 64x-dense count).
        flops=2 * P * NCH * CK * CKO + 2 * P * NCH * CKO * CO,
        transcendentals=0,
        bytes_accessed=_nbytes(patches3) + _nbytes(params["wproj"])
        + _nbytes(params["wconv"]) + _nbytes(params["bconv"]) + P * CO * 2,
    )
    return pl.pallas_call(
        _conv_im2col_kernel,
        out_shape=jax.ShapeDtypeStruct((P, CO), jnp.bfloat16),
        grid=grid,
        in_specs=[
            pl.BlockSpec((NCH, TP, CK), lambda i: (0, i, 0)),
            pl.BlockSpec((CK, CKO), lambda i: (0, 0)),
            pl.BlockSpec((NCH, CKO, CO), lambda i: (0, 0, 0)),
            pl.BlockSpec((1, CO), lambda i: (0, 0)),
        ],
        # Cout=24 -> lane-masked stores; padding to 128 would blow up w1, and at this
        # size the store path is noise.  If it ever shows in the bundle, emit
        # (Cout, TP) tiles and fold the (c,q) order into w1 instead.
        out_specs=pl.BlockSpec((TP, CO), lambda i: (i, 0)),
        compiler_params=pltpu.CompilerParams(
            dimension_semantics=("parallel",),
            vmem_limit_bytes=32 * 1024 * 1024,
        ),
        cost_estimate=cost,
    )(patches3, params["wproj"], params["wconv"], params["bconv"])


def _mlp_pallas(x, params):
    N = x.shape[0]
    ws = (params["w1"], params["b1"], params["w2"], params["b2"],
          params["w3"], params["b3"], params["w4"], params["b4"])
    flops = 2 * N * sum(int(w.shape[0]) * int(w.shape[1])
                        for w in (params["w1"], params["w2"], params["w3"], params["w4"]))
    cost = pl.CostEstimate(
        flops=flops, transcendentals=0,
        bytes_accessed=_nbytes(x) + sum(_nbytes(a) for a in ws) + N * 4,
    )
    vmem = pl.BlockSpec(memory_space=pltpu.MemorySpace.VMEM)
    # Real-scale (flat_dim=641424) path: K-tile fc1 with a grid 'arbitrary' reduction
    # axis + f32 VMEM accumulator, generation-specific tile_k (v7x ~4096 for 64 MiB
    # VMEM, v5e/v6e 8-16K with a raised vmem_limit), w1 quantized (fp8 on v7x, int8
    # on v5e/v6e), and the K dim sharded across v7x's two TensorCores.
    return pl.pallas_call(
        _mlp_kernel,
        out_shape=jax.ShapeDtypeStruct((N, 1), jnp.float32),
        in_specs=[vmem] * 9,
        out_specs=pl.BlockSpec(memory_space=pltpu.MemorySpace.VMEM),
        compiler_params=pltpu.CompilerParams(vmem_limit_bytes=32 * 1024 * 1024),
        cost_estimate=cost,
    )(x, *ws)


# ------------------------------- XLA glue ------------------------------------

def _im2col_chunked(x):
    """Gather (1,8,8)/(1,4,4)/pad(1,2,2) patches of the RAW C=4 input (bf16).

    Returns (kd*kh, N*Do*Ho*Wo, kw*C): chunk axis = kernel tap row (kd,kh), rows
    n-major then (do,ho,wo), columns ordered (kw, C) -- matching the compact
    block-diagonal projection weight and the per-chunk conv weight.
    """
    N, C, D, H, W = x.shape
    kd, kh, kw = _K3
    sd, sh, sw = _STRIDE
    pd, ph, pw = _PAD
    xp = jnp.pad(x, ((0, 0), (0, 0), (pd, pd), (ph, ph), (pw, pw)))
    Do, Ho, Wo = _conv_out_geom((D, H, W))
    d_idx = jnp.arange(Do)[:, None] * sd + jnp.arange(kd)[None, :]
    h_idx = jnp.arange(Ho)[:, None] * sh + jnp.arange(kh)[None, :]
    w_idx = jnp.arange(Wo)[:, None] * sw + jnp.arange(kw)[None, :]
    p = xp[:, :, d_idx[:, :, None, None, None, None],
              h_idx[None, None, :, :, None, None],
              w_idx[None, None, None, None, :, :]]          # (N,C,Do,kd,Ho,kh,Wo,kw)
    p = p.transpose(3, 5, 0, 2, 4, 6, 7, 1)                  # (kd,kh,N,Do,Ho,Wo,kw,C)
    return p.reshape(kd * kh, N * Do * Ho * Wo, kw * C)


@functools.partial(jax.jit, static_argnames=("num_tc",))
def small_data_classifier_forward(x, params, num_tc=1):
    # TODO(synk): pretrained_cnn.get_activations is an external, unspecified
    # submodule; stubbed as a fixed bias-free 1x1x1 projection to 64 channels whose
    # compact weight (params['wproj']) is applied inside the conv kernel.  If the
    # real submodule has a bias/BatchNorm/non-ReLU nonlinearity, zero-padding the
    # raw input is no longer equivalent to padding the projected activations.
    patches3 = _im2col_chunked(x.astype(jnp.bfloat16))   # bf16 BEFORE pad/gather
    conv = _conv_pallas(patches3, params, num_tc)        # (N*Q, 24) bf16
    feats = conv.reshape(x.shape[0], -1)                 # contiguous -> free reshape
    return _mlp_pallas(feats, params)                    # (N, 1) f32


# --------------------------- parameter preparation ---------------------------

def _make_raw_params(key, cin_x, conv_geom):
    """Raw parameters in PyTorch layouts (weights (out, in), conv (Cout,Cin,kd,kh,kw))."""
    Do, Ho, Wo = conv_geom
    flat_dim = _CONV_CH * Do * Ho * Wo
    ks = jax.random.split(key, 11)

    def lin(kw_, kb_, fan_in, fan_out):
        s = 1.0 / jnp.sqrt(jnp.float32(fan_in))
        w = jax.random.uniform(kw_, (fan_out, fan_in), jnp.float32, -s, s)
        b = jax.random.uniform(kb_, (fan_out,), jnp.float32, -s, s)
        return w, b

    w_stub = jax.random.normal(ks[0], (_PROJ_CH, cin_x), jnp.float32) * 0.1
    fan_conv = _PROJ_CH * _K3[0] * _K3[1] * _K3[2]
    sc = 1.0 / jnp.sqrt(jnp.float32(fan_conv))
    w_conv = jax.random.uniform(ks[1], (_CONV_CH, _PROJ_CH, *_K3), jnp.float32, -sc, sc)
    b_conv = jax.random.uniform(ks[2], (_CONV_CH,), jnp.float32, -sc, sc)
    w1, b1 = lin(ks[3], ks[4], flat_dim, 1000)
    w2, b2 = lin(ks[5], ks[6], 1000, 100)
    w3, b3 = lin(ks[7], ks[8], 100, 20)
    w4, b4 = lin(ks[9], ks[10], 20, 1)
    return dict(w_stub=w_stub, w_conv=w_conv, b_conv=b_conv,
                w1=w1, b1=b1, w2=w2, b2=b2, w3=w3, b3=b3, w4=w4, b4=b4)


def prepare_params(raw, conv_geom):
    """One-time reshaping/permutation/padding/casting of weights for the kernels."""
    Do, Ho, Wo = conv_geom
    Q = Do * Ho * Wo
    Cout, Kp, kd, kh, kw = raw["w_conv"].shape            # (24, 64, 1, 8, 8)
    Cin = raw["w_stub"].shape[1]

    # Compact block-diagonal stub projection: the same (Cin -> Kp) 1x1x1 projection
    # applies at every tap, so a single (kw*Cin, kw*Kp) = (32, 512) block (shared by
    # all kd*kh chunks) replaces the old dense (S*Cin, S*Kp) 2 MB matrix.
    eye_kw = jnp.eye(kw, dtype=jnp.float32)
    wproj = jnp.einsum("xy,kc->xcyk", eye_kw, raw["w_stub"]).reshape(kw * Cin, kw * Kp)

    # Conv weight -> (kd*kh, kw*Kp, Cout): chunk = kernel tap row, rows within a
    # chunk ordered (kw, k) to match the projection output columns.
    wconv = raw["w_conv"].transpose(2, 3, 4, 1, 0).reshape(kd * kh, kw * Kp, Cout)

    # fc1: fold torch.flatten's NCDHW feature order into the weight (permute its
    # in-features to the kernel's (d,h,w,c) order), transpose to (in, out),
    # lane-pad 1000 -> 1024.  Later layers padded 100 -> 128, 20 -> 128 (zero
    # weights/biases keep the math exact through the ReLU chain).
    H1, H2, H3 = 1000, 100, 20
    H1p, H2p, H3p = 1024, 128, 128
    w1 = raw["w1"].reshape(H1, Cout, Do, Ho, Wo).transpose(2, 3, 4, 1, 0)
    w1 = w1.reshape(Q * Cout, H1)
    w1 = jnp.pad(w1, ((0, 0), (0, H1p - H1)))
    b1 = jnp.pad(raw["b1"], (0, H1p - H1)).reshape(1, H1p)
    w2 = jnp.pad(raw["w2"].T, ((0, H1p - H1), (0, H2p - H2)))
    b2 = jnp.pad(raw["b2"], (0, H2p - H2)).reshape(1, H2p)
    w3 = jnp.pad(raw["w3"].T, ((0, H2p - H2), (0, H3p - H3)))
    b3 = jnp.pad(raw["b3"], (0, H3p - H3)).reshape(1, H3p)
    w4 = jnp.pad(raw["w4"].T, ((0, H3p - H3), (0, 0)))
    b4 = raw["b4"].reshape(1, 1)

    bf = lambda a: a.astype(jnp.bfloat16)
    f32 = lambda a: a.astype(jnp.float32)
    # bf16 operands everywhere (f32 accumulation) is a deliberate accuracy trade vs
    # the f32 PyTorch reference (expect ~1e-2 rel diff at the real 641424-wide fc1).
    return dict(
        wproj=bf(wproj), wconv=bf(wconv),
        bconv=f32(raw["b_conv"].reshape(1, Cout)),
        w1=bf(w1), b1=f32(b1),
        w2=bf(w2), b2=f32(b2),
        w3=bf(w3), b3=f32(b3),
        w4=bf(w4), b4=f32(b4),
    )


# ---------------------------------- main --------------------------------------

if __name__ == "__main__":
    # Small shapes: x is (N, Cin, D, H, W) = (2, 4, 2, 16, 16).
    # Conv3d(64->24, k=(1,8,8), s=(1,4,4), p=(1,2,2)) output: (2, 24, 4, 4, 4)
    # -> flattened features = 24*4*4*4 = 1536 (stands in for the real 641424).
    N, Cx, D, H, W = 2, 4, 2, 16, 16
    geom = _conv_out_geom((D, H, W))                       # (4, 4, 4)

    root = jax.random.PRNGKey(0)
    kx, kp = jax.random.split(root)
    x = jax.random.normal(kx, (N, Cx, D, H, W), jnp.float32)
    raw = _make_raw_params(kp, Cx, geom)
    params = prepare_params(raw, geom)

    num_tc = _tensorcores_per_chip()                       # 2 only on v7x
    out = small_data_classifier_forward(x, params, num_tc=num_tc)
    out = jax.block_until_ready(out)
    assert out.shape == (N, 1) and out.dtype == jnp.float32
    assert bool(jnp.all(jnp.isfinite(out)))
    print("KERNEL_OK")
</pallas_src>

<mosaic_0001>
module attributes {stable_mosaic.version = 11 : i64} {
  func.func @_conv_im2col_kernel(%arg0: i32, %arg1: memref<8x128x32xbf16, #tpu.memory_space<vmem>>, %arg2: memref<32x512xbf16, #tpu.memory_space<vmem>>, %arg3: memref<8x512x24xbf16, #tpu.memory_space<vmem>>, %arg4: memref<1x24xf32, #tpu.memory_space<vmem>>, %arg5: memref<128x24xbf16, #tpu.memory_space<vmem>>) attributes {dimension_semantics = [#tpu.dimension_semantics<parallel>], iteration_bounds = array<i64: 1>, scalar_prefetch = 0 : i64, scratch_operands = 0 : i64, tpu.core_type = #tpu.core_type<tc>, window_params = [{transform_indices = @transform_0, window_bounds = array<i64: 8, 128, 32>}, {pipeline_mode = #tpu.pipeline_mode<synchronous>, transform_indices = @transform_1, window_bounds = array<i64: 32, 512>}, {pipeline_mode = #tpu.pipeline_mode<synchronous>, transform_indices = @transform_2, window_bounds = array<i64: 8, 512, 24>}, {pipeline_mode = #tpu.pipeline_mode<synchronous>, transform_indices = @transform_3, window_bounds = array<i64: 1, 24>}, {transform_indices = @transform_4, window_bounds = array<i64: 128, 24>}]} {
    %c0 = arith.constant 0 : index
    %c0_0 = arith.constant 0 : index
    %0 = vector.load %arg2[%c0, %c0_0] : memref<32x512xbf16, #tpu.memory_space<vmem>>, vector<32x512xbf16>
    %c0_1 = arith.constant 0 : index
    %c0_2 = arith.constant 0 : index
    %1 = vector.load %arg4[%c0_1, %c0_2] : memref<1x24xf32, #tpu.memory_space<vmem>>, vector<1x24xf32>
    %cst = arith.constant 0.000000e+00 : f32
    %2 = vector.broadcast %cst : f32 to vector<128x24xf32>
    %c0_i32 = arith.constant 0 : i32
    %3 = arith.index_cast %c0_i32 : i32 to index
    %c0_3 = arith.constant 0 : index
    %c0_4 = arith.constant 0 : index
    %4 = vector.load %arg1[%3, %c0_3, %c0_4] : memref<8x128x32xbf16, #tpu.memory_space<vmem>>, vector<1x128x32xbf16>
    %5 = vector.shape_cast %4 : vector<1x128x32xbf16> to vector<128x32xbf16>
    %cst_5 = arith.constant dense<0.000000e+00> : vector<128x512xf32>
    %6 = tpu.matmul %5, %0, %cst_5 {dimension_numbers = #tpu.dot_dimension_numbers<[1], [0], [0], [1], [0, 0, 1, 1], [], []>} : vector<128x32xbf16>, vector<32x512xbf16>, vector<128x512xf32> -> vector<128x512xf32>
    %cst_6 = arith.constant 0.000000e+00 : f32
    %7 = vector.broadcast %cst_6 : f32 to vector<128x512xf32>
    %8 = arith.maximumf %6, %7 : vector<128x512xf32>
    %9 = arith.truncf %8 : vector<128x512xf32> to vector<128x512xbf16>
    %10 = arith.index_cast %c0_i32 : i32 to index
    %c0_7 = arith.constant 0 : index
    %c0_8 = arith.constant 0 : index
    %11 = vector.load %arg3[%10, %c0_7, %c0_8] : memref<8x512x24xbf16, #tpu.memory_space<vmem>>, vector<1x512x24xbf16>
    %12 = vector.shape_cast %11 : vector<1x512x24xbf16> to vector<512x24xbf16>
    %cst_9 = arith.constant dense<0.000000e+00> : vector<128x24xf32>
    %13 = tpu.matmul %9, %12, %cst_9 {dimension_numbers = #tpu.dot_dimension_numbers<[1], [0], [0], [1], [0, 0, 1, 1], [], []>} : vector<128x512xbf16>, vector<512x24xbf16>, vector<128x24xf32> -> vector<128x24xf32>
    %14 = arith.addf %2, %13 : vector<128x24xf32>
    %c1_i32 = arith.constant 1 : i32
    %15 = arith.index_cast %c1_i32 : i32 to index
    %c0_10 = arith.constant 0 : index
    %c0_11 = arith.constant 0 : index
    %16 = vector.load %arg1[%15, %c0_10, %c0_11] : memref<8x128x32xbf16, #tpu.memory_space<vmem>>, vector<1x128x32xbf16>
    %17 = vector.shape_cast %16 : vector<1x128x32xbf16> to vector<128x32xbf16>
    %cst_12 = arith.constant dense<0.000000e+00> : vector<128x512xf32>
    %18 = tpu.matmul %17, %0, %cst_12 {dimension_numbers = #tpu.dot_dimension_numbers<[1], [0], [0], [1], [0, 0, 1, 1], [], []>} : vector<128x32xbf16>, vector<32x512xbf16>, vector<128x512xf32> -> vector<128x512xf32>
    %cst_13 = arith.constant 0.000000e+00 : f32
    %19 = vector.broadcast %cst_13 : f32 to vector<128x512xf32>
    %20 = arith.maximumf %18, %19 : vector<128x512xf32>
    %21 = arith.truncf %20 : vector<128x512xf32> to vector<128x512xbf16>
    %22 = arith.index_cast %c1_i32 : i32 to index
    %c0_14 = arith.constant 0 : index
    %c0_15 = arith.constant 0 : index
    %23 = vector.load %arg3[%22, %c0_14, %c0_15] : memref<8x512x24xbf16, #tpu.memory_space<vmem>>, vector<1x512x24xbf16>
    %24 = vector.shape_cast %23 : vector<1x512x24xbf16> to vector<512x24xbf16>
    %cst_16 = arith.constant dense<0.000000e+00> : vector<128x24xf32>
    %25 = tpu.matmul %21, %24, %cst_16 {dimension_numbers = #tpu.dot_dimension_numbers<[1], [0], [0], [1], [0, 0, 1, 1], [], []>} : vector<128x512xbf16>, vector<512x24xbf16>, vector<128x24xf32> -> vector<128x24xf32>
    %26 = arith.addf %14, %25 : vector<128x24xf32>
    %c2_i32 = arith.constant 2 : i32
    %27 = arith.index_cast %c2_i32 : i32 to index
    %c0_17 = arith.constant 0 : index
    %c0_18 = arith.constant 0 : index
    %28 = vector.load %arg1[%27, %c0_17, %c0_18] : memref<8x128x32xbf16, #tpu.memory_space<vmem>>, vector<1x128x32xbf16>
    %29 = vector.shape_cast %28 : vector<1x128x32xbf16> to vector<128x32xbf16>
    %cst_19 = arith.constant dense<0.000000e+00> : vector<128x512xf32>
    %30 = tpu.matmul %29, %0, %cst_19 {dimension_numbers = #tpu.dot_dimension_numbers<[1], [0], [0], [1], [0, 0, 1, 1], [], []>} : vector<128x32xbf16>, vector<32x512xbf16>, vector<128x512xf32> -> vector<128x512xf32>
    %cst_20 = arith.constant 0.000000e+00 : f32
    %31 = vector.broadcast %cst_20 : f32 to vector<128x512xf32>
    %32 = arith.maximumf %30, %31 : vector<128x512xf32>
    %33 = arith.truncf %32 : vector<128x512xf32> to vector<128x512xbf16>
    %34 = arith.index_cast %c2_i32 : i32 to index
    %c0_21 = arith.constant 0 : index
    %c0_22 = arith.constant 0 : index
    %35 = vector.load %arg3[%34, %c0_21, %c0_22] : memref<8x512x24xbf16, #tpu.memory_space<vmem>>, vector<1x512x24xbf16>
    %36 = vector.shape_cast %35 : vector<1x512x24xbf16> to vector<512x24xbf16>
    %cst_23 = arith.constant dense<0.000000e+00> : vector<128x24xf32>
    %37 = tpu.matmul %33, %36, %cst_23 {dimension_numbers = #tpu.dot_dimension_numbers<[1], [0], [0], [1], [0, 0, 1, 1], [], []>} : vector<128x512xbf16>, vector<512x24xbf16>, vector<128x24xf32> -> vector<128x24xf32>
    %38 = arith.addf %26, %37 : vector<128x24xf32>
    %c3_i32 = arith.constant 3 : i32
    %39 = arith.index_cast %c3_i32 : i32 to index
    %c0_24 = arith.constant 0 : index
    %c0_25 = arith.constant 0 : index
    %40 = vector.load %arg1[%39, %c0_24, %c0_25] : memref<8x128x32xbf16, #tpu.memory_space<vmem>>, vector<1x128x32xbf16>
    %41 = vector.shape_cast %40 : vector<1x128x32xbf16> to vector<128x32xbf16>
    %cst_26 = arith.constant dense<0.000000e+00> : vector<128x512xf32>
    %42 = tpu.matmul %41, %0, %cst_26 {dimension_numbers = #tpu.dot_dimension_numbers<[1], [0], [0], [1], [0, 0, 1, 1], [], []>} : vector<128x32xbf16>, vector<32x512xbf16>, vector<128x512xf32> -> vector<128x512xf32>
    %cst_27 = arith.constant 0.000000e+00 : f32
    %43 = vector.broadcast %cst_27 : f32 to vector<128x512xf32>
    %44 = arith.maximumf %42, %43 : vector<128x512xf32>
    %45 = arith.truncf %44 : vector<128x512xf32> to vector<128x512xbf16>
    %46 = arith.index_cast %c3_i32 : i32 to index
    %c0_28 = arith.constant 0 : index
    %c0_29 = arith.constant 0 : index
    %47 = vector.load %arg3[%46, %c0_28, %c0_29] : memref<8x512x24xbf16, #tpu.memory_space<vmem>>, vector<1x512x24xbf16>
    %48 = vector.shape_cast %47 : vector<1x512x24xbf16> to vector<512x24xbf16>
    %cst_30 = arith.constant dense<0.000000e+00> : vector<128x24xf32>
    %49 = tpu.matmul %45, %48, %cst_30 {dimension_numbers = #tpu.dot_dimension_numbers<[1], [0], [0], [1], [0, 0, 1, 1], [], []>} : vector<128x512xbf16>, vector<512x24xbf16>, vector<128x24xf32> -> vector<128x24xf32>
    %50 = arith.addf %38, %49 : vector<128x24xf32>
    %c4_i32 = arith.constant 4 : i32
    %51 = arith.index_cast %c4_i32 : i32 to index
    %c0_31 = arith.constant 0 : index
    %c0_32 = arith.constant 0 : index
    %52 = vector.load %arg1[%51, %c0_31, %c0_32] : memref<8x128x32xbf16, #tpu.memory_space<vmem>>, vector<1x128x32xbf16>
    %53 = vector.shape_cast %52 : vector<1x128x32xbf16> to vector<128x32xbf16>
    %cst_33 = arith.constant dense<0.000000e+00> : vector<128x512xf32>
    %54 = tpu.matmul %53, %0, %cst_33 {dimension_numbers = #tpu.dot_dimension_numbers<[1], [0], [0], [1], [0, 0, 1, 1], [], []>} : vector<128x32xbf16>, vector<32x512xbf16>, vector<128x512xf32> -> vector<128x512xf32>
    %cst_34 = arith.constant 0.000000e+00 : f32
    %55 = vector.broadcast %cst_34 : f32 to vector<128x512xf32>
    %56 = arith.maximumf %54, %55 : vector<128x512xf32>
    %57 = arith.truncf %56 : vector<128x512xf32> to vector<128x512xbf16>
    %58 = arith.index_cast %c4_i32 : i32 to index
    %c0_35 = arith.constant 0 : index
    %c0_36 = arith.constant 0 : index
    %59 = vector.load %arg3[%58, %c0_35, %c0_36] : memref<8x512x24xbf16, #tpu.memory_space<vmem>>, vector<1x512x24xbf16>
    %60 = vector.shape_cast %59 : vector<1x512x24xbf16> to vector<512x24xbf16>
    %cst_37 = arith.constant dense<0.000000e+00> : vector<128x24xf32>
    %61 = tpu.matmul %57, %60, %cst_37 {dimension_numbers = #tpu.dot_dimension_numbers<[1], [0], [0], [1], [0, 0, 1, 1], [], []>} : vector<128x512xbf16>, vector<512x24xbf16>, vector<128x24xf32> -> vector<128x24xf32>
    %62 = arith.addf %50, %61 : vector<128x24xf32>
    %c5_i32 = arith.constant 5 : i32
    %63 = arith.index_cast %c5_i32 : i32 to index
    %c0_38 = arith.constant 0 : index
    %c0_39 = arith.constant 0 : index
    %64 = vector.load %arg1[%63, %c0_38, %c0_39] : memref<8x128x32xbf16, #tpu.memory_space<vmem>>, vector<1x128x32xbf16>
    %65 = vector.shape_cast %64 : vector<1x128x32xbf16> to vector<128x32xbf16>
    %cst_40 = arith.constant dense<0.000000e+00> : vector<128x512xf32>
    %66 = tpu.matmul %65, %0, %cst_40 {dimension_numbers = #tpu.dot_dimension_numbers<[1], [0], [0], [1], [0, 0, 1, 1], [], []>} : vector<128x32xbf16>, vector<32x512xbf16>, vector<128x512xf32> -> vector<128x512xf32>
    %cst_41 = arith.constant 0.000000e+00 : f32
    %67 = vector.broadcast %cst_41 : f32 to vector<128x512xf32>
    %68 = arith.maximumf %66, %67 : vector<128x512xf32>
    %69 = arith.truncf %68 : vector<128x512xf32> to vector<128x512xbf16>
    %70 = arith.index_cast %c5_i32 : i32 to index
    %c0_42 = arith.constant 0 : index
    %c0_43 = arith.constant 0 : index
    %71 = vector.load %arg3[%70, %c0_42, %c0_43] : memref<8x512x24xbf16, #tpu.memory_space<vmem>>, vector<1x512x24xbf16>
    %72 = vector.shape_cast %71 : vector<1x512x24xbf16> to vector<512x24xbf16>
    %cst_44 = arith.constant dense<0.000000e+00> : vector<128x24xf32>
    %73 = tpu.matmul %69, %72, %cst_44 {dimension_numbers = #tpu.dot_dimension_numbers<[1], [0], [0], [1], [0, 0, 1, 1], [], []>} : vector<128x512xbf16>, vector<512x24xbf16>, vector<128x24xf32> -> vector<128x24xf32>
    %74 = arith.addf %62, %73 : vector<128x24xf32>
    %c6_i32 = arith.constant 6 : i32
    %75 = arith.index_cast %c6_i32 : i32 to index
    %c0_45 = arith.constant 0 : index
    %c0_46 = arith.constant 0 : index
    %76 = vector.load %arg1[%75, %c0_45, %c0_46] : memref<8x128x32xbf16, #tpu.memory_space<vmem>>, vector<1x128x32xbf16>
    %77 = vector.shape_cast %76 : vector<1x128x32xbf16> to vector<128x32xbf16>
    %cst_47 = arith.constant dense<0.000000e+00> : vector<128x512xf32>
    %78 = tpu.matmul %77, %0, %cst_47 {dimension_numbers = #tpu.dot_dimension_numbers<[1], [0], [0], [1], [0, 0, 1, 1], [], []>} : vector<128x32xbf16>, vector<32x512xbf16>, vector<128x512xf32> -> vector<128x512xf32>
    %cst_48 = arith.constant 0.000000e+00 : f32
    %79 = vector.broadcast %cst_48 : f32 to vector<128x512xf32>
    %80 = arith.maximumf %78, %79 : vector<128x512xf32>
    %81 = arith.truncf %80 : vector<128x512xf32> to vector<128x512xbf16>
    %82 = arith.index_cast %c6_i32 : i32 to index
    %c0_49 = arith.constant 0 : index
    %c0_50 = arith.constant 0 : index
    %83 = vector.load %arg3[%82, %c0_49, %c0_50] : memref<8x512x24xbf16, #tpu.memory_space<vmem>>, vector<1x512x24xbf16>
    %84 = vector.shape_cast %83 : vector<1x512x24xbf16> to vector<512x24xbf16>
    %cst_51 = arith.constant dense<0.000000e+00> : vector<128x24xf32>
    %85 = tpu.matmul %81, %84, %cst_51 {dimension_numbers = #tpu.dot_dimension_numbers<[1], [0], [0], [1], [0, 0, 1, 1], [], []>} : vector<128x512xbf16>, vector<512x24xbf16>, vector<128x24xf32> -> vector<128x24xf32>
    %86 = arith.addf %74, %85 : vector<128x24xf32>
    %c7_i32 = arith.constant 7 : i32
    %87 = arith.index_cast %c7_i32 : i32 to index
    %c0_52 = arith.constant 0 : index
    %c0_53 = arith.constant 0 : index
    %88 = vector.load %arg1[%87, %c0_52, %c0_53] : memref<8x128x32xbf16, #tpu.memory_space<vmem>>, vector<1x128x32xbf16>
    %89 = vector.shape_cast %88 : vector<1x128x32xbf16> to vector<128x32xbf16>
    %cst_54 = arith.constant dense<0.000000e+00> : vector<128x512xf32>
    %90 = tpu.matmul %89, %0, %cst_54 {dimension_numbers = #tpu.dot_dimension_numbers<[1], [0], [0], [1], [0, 0, 1, 1], [], []>} : vector<128x32xbf16>, vector<32x512xbf16>, vector<128x512xf32> -> vector<128x512xf32>
    %cst_55 = arith.constant 0.000000e+00 : f32
    %91 = vector.broadcast %cst_55 : f32 to vector<128x512xf32>
    %92 = arith.maximumf %90, %91 : vector<128x512xf32>
    %93 = arith.truncf %92 : vector<128x512xf32> to vector<128x512xbf16>
    %94 = arith.index_cast %c7_i32 : i32 to index
    %c0_56 = arith.constant 0 : index
    %c0_57 = arith.constant 0 : index
    %95 = vector.load %arg3[%94, %c0_56, %c0_57] : memref<8x512x24xbf16, #tpu.memory_space<vmem>>, vector<1x512x24xbf16>
    %96 = vector.shape_cast %95 : vector<1x512x24xbf16> to vector<512x24xbf16>
    %cst_58 = arith.constant dense<0.000000e+00> : vector<128x24xf32>
    %97 = tpu.matmul %93, %96, %cst_58 {dimension_numbers = #tpu.dot_dimension_numbers<[1], [0], [0], [1], [0, 0, 1, 1], [], []>} : vector<128x512xbf16>, vector<512x24xbf16>, vector<128x24xf32> -> vector<128x24xf32>
    %98 = arith.addf %86, %97 : vector<128x24xf32>
    %c8_i32 = arith.constant 8 : i32
    %99 = vector.broadcast %1 : vector<1x24xf32> to vector<128x24xf32>
    %100 = arith.addf %98, %99 : vector<128x24xf32>
    %cst_59 = arith.constant 0.000000e+00 : f32
    %101 = vector.broadcast %cst_59 : f32 to vector<128x24xf32>
    %102 = arith.maximumf %100, %101 : vector<128x24xf32>
    %103 = arith.truncf %102 : vector<128x24xf32> to vector<128x24xbf16>
    %c0_60 = arith.constant 0 : index
    %c0_61 = arith.constant 0 : index
    %104 = vector.load %arg5[%c0_60, %c0_61] : memref<128x24xbf16, #tpu.memory_space<vmem>>, vector<128x24xbf16>
    tpu.vector_store %arg5[%c0_60, %c0_61], %103 {strides = array<i32>} : memref<128x24xbf16, #tpu.memory_space<vmem>>, vector<128x24xbf16>,
    return
  }
  func.func @transform_0(%arg0: i32) -> (i32, i32, i32) {
    %c0_i32 = arith.constant 0 : i32
    %c0_i32_0 = arith.constant 0 : i32
    %c0_i32_1 = arith.constant 0 : i32
    return %c0_i32, %arg0, %c0_i32_0 : i32, i32, i32
  }
  func.func @transform_1(%arg0: i32) -> (i32, i32) {
    %c0_i32 = arith.constant 0 : i32
    %c0_i32_0 = arith.constant 0 : i32
    %c0_i32_1 = arith.constant 0 : i32
    return %c0_i32, %c0_i32_0 : i32, i32
  }
  func.func @transform_2(%arg0: i32) -> (i32, i32, i32) {
    %c0_i32 = arith.constant 0 : i32
    %c0_i32_0 = arith.constant 0 : i32
    %c0_i32_1 = arith.constant 0 : i32
    %c0_i32_2 = arith.constant 0 : i32
    return %c0_i32, %c0_i32_0, %c0_i32_1 : i32, i32, i32
  }
  func.func @transform_3(%arg0: i32) -> (i32, i32) {
    %c0_i32 = arith.constant 0 : i32
    %c0_i32_0 = arith.constant 0 : i32
    %c0_i32_1 = arith.constant 0 : i32
    return %c0_i32, %c0_i32_0 : i32, i32
  }
  func.func @transform_4(%arg0: i32) -> (i32, i32) {
    %c0_i32 = arith.constant 0 : i32
    %c0_i32_0 = arith.constant 0 : i32
    return %arg0, %c0_i32 : i32, i32
  }
}

module attributes {stable_mosaic.version = 11 : i64} {
  func.func @_mlp_kernel(%arg0: memref<2x1536xbf16, #tpu.memory_space<vmem>>, %arg1: memref<1536x1024xbf16, #tpu.memory_space<vmem>>, %arg2: memref<1x1024xf32, #tpu.memory_space<vmem>>, %arg3: memref<1024x128xbf16, #tpu.memory_space<vmem>>, %arg4: memref<1x128xf32, #tpu.memory_space<vmem>>, %arg5: memref<128x128xbf16, #tpu.memory_space<vmem>>, %arg6: memref<1x128xf32, #tpu.memory_space<vmem>>, %arg7: memref<128x1xbf16, #tpu.memory_space<vmem>>, %arg8: memref<1x1xf32, #tpu.memory_space<vmem>>, %arg9: memref<2x1xf32, #tpu.memory_space<vmem>>) attributes {dimension_semantics = [], scalar_prefetch = 0 : i64, scratch_operands = 0 : i64, tpu.core_type = #tpu.core_type<tc>} {
    %c0 = arith.constant 0 : index
    %c0_0 = arith.constant 0 : index
    %0 = vector.load %arg0[%c0, %c0_0] : memref<2x1536xbf16, #tpu.memory_space<vmem>>, vector<2x1536xbf16>
    %c0_1 = arith.constant 0 : index
    %c0_2 = arith.constant 0 : index
    %1 = vector.load %arg1[%c0_1, %c0_2] : memref<1536x1024xbf16, #tpu.memory_space<vmem>>, vector<1536x1024xbf16>
    %cst = arith.constant dense<0.000000e+00> : vector<2x1024xf32>
    %2 = tpu.matmul %0, %1, %cst {dimension_numbers = #tpu.dot_dimension_numbers<[1], [0], [0], [1], [0, 0, 1, 1], [], []>} : vector<2x1536xbf16>, vector<1536x1024xbf16>, vector<2x1024xf32> -> vector<2x1024xf32>
    %c0_3 = arith.constant 0 : index
    %c0_4 = arith.constant 0 : index
    %3 = vector.load %arg2[%c0_3, %c0_4] : memref<1x1024xf32, #tpu.memory_space<vmem>>, vector<1x1024xf32>
    %4 = vector.broadcast %3 : vector<1x1024xf32> to vector<2x1024xf32>
    %5 = arith.addf %2, %4 : vector<2x1024xf32>
    %cst_5 = arith.constant 0.000000e+00 : f32
    %6 = vector.broadcast %cst_5 : f32 to vector<2x1024xf32>
    %7 = arith.maximumf %5, %6 : vector<2x1024xf32>
    %8 = arith.truncf %7 : vector<2x1024xf32> to vector<2x1024xbf16>
    %c0_6 = arith.constant 0 : index
    %c0_7 = arith.constant 0 : index
    %9 = vector.load %arg3[%c0_6, %c0_7] : memref<1024x128xbf16, #tpu.memory_space<vmem>>, vector<1024x128xbf16>
    %cst_8 = arith.constant dense<0.000000e+00> : vector<2x128xf32>
    %10 = tpu.matmul %8, %9, %cst_8 {dimension_numbers = #tpu.dot_dimension_numbers<[1], [0], [0], [1], [0, 0, 1, 1], [], []>} : vector<2x1024xbf16>, vector<1024x128xbf16>, vector<2x128xf32> -> vector<2x128xf32>
    %c0_9 = arith.constant 0 : index
    %c0_10 = arith.constant 0 : index
    %11 = vector.load %arg4[%c0_9, %c0_10] : memref<1x128xf32, #tpu.memory_space<vmem>>, vector<1x128xf32>
    %12 = vector.broadcast %11 : vector<1x128xf32> to vector<2x128xf32>
    %13 = arith.addf %10, %12 : vector<2x128xf32>
    %cst_11 = arith.constant 0.000000e+00 : f32
    %14 = vector.broadcast %cst_11 : f32 to vector<2x128xf32>
    %15 = arith.maximumf %13, %14 : vector<2x128xf32>
    %16 = arith.truncf %15 : vector<2x128xf32> to vector<2x128xbf16>
    %c0_12 = arith.constant 0 : index
    %c0_13 = arith.constant 0 : index
    %17 = vector.load %arg5[%c0_12, %c0_13] : memref<128x128xbf16, #tpu.memory_space<vmem>>, vector<128x128xbf16>
    %cst_14 = arith.constant dense<0.000000e+00> : vector<2x128xf32>
    %18 = tpu.matmul %16, %17, %cst_14 {dimension_numbers = #tpu.dot_dimension_numbers<[1], [0], [0], [1], [0, 0, 1, 1], [], []>} : vector<2x128xbf16>, vector<128x128xbf16>, vector<2x128xf32> -> vector<2x128xf32>
    %c0_15 = arith.constant 0 : index
    %c0_16 = arith.constant 0 : index
    %19 = vector.load %arg6[%c0_15, %c0_16] : memref<1x128xf32, #tpu.memory_space<vmem>>, vector<1x128xf32>
    %20 = vector.broadcast %19 : vector<1x128xf32> to vector<2x128xf32>
    %21 = arith.addf %18, %20 : vector<2x128xf32>
    %cst_17 = arith.constant 0.000000e+00 : f32
    %22 = vector.broadcast %cst_17 : f32 to vector<2x128xf32>
    %23 = arith.maximumf %21, %22 : vector<2x128xf32>
    %24 = arith.truncf %23 : vector<2x128xf32> to vector<2x128xbf16>
    %c0_18 = arith.constant 0 : index
    %c0_19 = arith.constant 0 : index
    %25 = vector.load %arg7[%c0_18, %c0_19] : memref<128x1xbf16, #tpu.memory_space<vmem>>, vector<128x1xbf16>
    %cst_20 = arith.constant dense<0.000000e+00> : vector<2x1xf32>
    %26 = tpu.matmul %24, %25, %cst_20 {dimension_numbers = #tpu.dot_dimension_numbers<[1], [0], [0], [1], [0, 0, 1, 1], [], []>} : vector<2x128xbf16>, vector<128x1xbf16>, vector<2x1xf32> -> vector<2x1xf32>
    %c0_21 = arith.constant 0 : index
    %c0_22 = arith.constant 0 : index
    %27 = vector.load %arg8[%c0_21, %c0_22] : memref<1x1xf32, #tpu.memory_space<vmem>>, vector<1x1xf32>
    %28 = vector.broadcast %27 : vector<1x1xf32> to vector<2x1xf32>
    %29 = arith.addf %26, %28 : vector<2x1xf32>
    %c0_23 = arith.constant 0 : index
    %c0_24 = arith.constant 0 : index
    %30 = vector.load %arg9[%c0_23, %c0_24] : memref<2x1xf32, #tpu.memory_space<vmem>>, vector<2x1xf32>
    tpu.vector_store %arg9[%c0_23, %c0_24], %29 {strides = array<i32>} : memref<2x1xf32, #tpu.memory_space<vmem>>, vector<2x1xf32>,
    return
  }
}

</mosaic_0001>

<llo_original>
// kernel: small_data_classifier_forward.2
$region0: #{small_data_classifier_forward.2}
  #allocation0 [shape = 'u32[]', space=smem, size = 0x4, offset = 0x4, fixed_abs, tag = 'smem constant byte address 0x4 - core index']
  #allocation1 [shape = 'u32[144,128]{1,0:T(1,128)}', space=vmem, size = 0x12000, scoped, tag = 'internal scratch']
  %s0 = inlined_call_operand.vmem [shape: bf16[8,128,32], index: 0, kind: input, shape index: {}]
  %s1 = inlined_call_operand.vmem [shape: bf16[32,512], index: 1, kind: input, shape index: {}]
  %s2 = inlined_call_operand.vmem [shape: bf16[8,512,24], index: 2, kind: input, shape index: {}]
  %s3 = inlined_call_operand.vmem [shape: f32[1,24], index: 3, kind: input, shape index: {}]
  %s4 = inlined_call_operand.vmem [shape: bf16[128,24], index: 4, kind: output, shape index: {}]
  %s5 = sld [smem:[#allocation0]]
  $region26: #{small_data_classifier_forward.2} parent=0
    _
  %s7 = ssub.s32 1, %s5
  %s8 = scalar_select 0, %s7, %s5
  // Predicated region
  $region2: #{small_data_classifier_forward.2} parent=0 // pred_check
    _
  $region3: #{small_data_classifier_forward.2} parent=0 // pred_check_branch
    %10 = sbr.rel (0) target = $region5
  $region4: #{small_data_classifier_forward.2} parent=0 // pred_region
    _
  $region5: #{small_data_classifier_forward.2} parent=0 // pred_fallthru
    _
  // Predicated region
  $region6: #{small_data_classifier_forward.2} parent=0 // pred_check
    _
  $region7: #{small_data_classifier_forward.2} parent=0 // pred_check_branch
    %12 = sbr.rel (0) target = $region9
  $region8: #{small_data_classifier_forward.2} parent=0 // pred_region
    _
  $region9: #{small_data_classifier_forward.2} parent=0 // pred_fallthru
    _
  // Predicated region
  $region10: #{small_data_classifier_forward.2} parent=0 // pred_check
    _
  $region11: #{small_data_classifier_forward.2} parent=0 // pred_check_branch
    %14 = sbr.rel (0) target = $region13
  $region12: #{small_data_classifier_forward.2} parent=0 // pred_region
    _
  $region13: #{small_data_classifier_forward.2} parent=0 // pred_fallthru
    _
  // Predicated region
  $region14: #{small_data_classifier_forward.2} parent=0 // pred_check
    _
  $region15: #{small_data_classifier_forward.2} parent=0 // pred_check_branch
    %16 = sbr.rel (0) target = $region17
  $region16: #{small_data_classifier_forward.2} parent=0 // pred_region
    _
  $region17: #{small_data_classifier_forward.2} parent=0 // pred_fallthru
    _
  %v18 = vld [vmem:[%s1] sm:$0xff]
  %v19 = vld [vmem:[%s1 + $0x8] sm:$0xff]
  %v20 = vld [vmem:[%s1 + $0x10] sm:$0xff]
  %v21 = vld [vmem:[%s1 + $0x18] sm:$0xff]
  %v22 = vld [vmem:[%s1 + $0x20] sm:$0xff]
  %v23 = vld [vmem:[%s1 + $0x28] sm:$0xff]
  %v24 = vld [vmem:[%s1 + $0x30] sm:$0xff]
  %v25 = vld [vmem:[%s1 + $0x38] sm:$0xff]
  %v26 = vld [vmem:[%s3] sm:$0x1]
  %v27 = vld [vmem:[%s0] sm:$0xf]
  %v28 = vld [vmem:[%s0 + $0x4] sm:$0xf]
  %v29 = vld [vmem:[%s0 + $0x8] sm:$0xf]
  %v30 = vld [vmem:[%s0 + $0xc] sm:$0xf]
  %v31 = vld [vmem:[%s0 + $0x10] sm:$0xf]
  %v32 = vld [vmem:[%s0 + $0x14] sm:$0xf]
  %v33 = vld [vmem:[%s0 + $0x18] sm:$0xf]
  %v34 = vld [vmem:[%s0 + $0x1c] sm:$0xf]
  %v35 = vld [vmem:[%s0 + $0x20] sm:$0xf]
  %v36 = vld [vmem:[%s0 + $0x24] sm:$0xf]
  %v37 = vld [vmem:[%s0 + $0x28] sm:$0xf]
  %v38 = vld [vmem:[%s0 + $0x2c] sm:$0xf]
  %v39 = vld [vmem:[%s0 + $0x30] sm:$0xf]
  %v40 = vld [vmem:[%s0 + $0x34] sm:$0xf]
  %v41 = vld [vmem:[%s0 + $0x38] sm:$0xf]
  %v42 = vld [vmem:[%s0 + $0x3c] sm:$0xf]
  %v59 = vunpack.c.l.b16 %v27
  %v60 = vunpack.c.l.b16 %v28
  %v61 = vunpack.c.l.b16 %v29
  %v62 = vunpack.c.l.b16 %v30
  %v63 = vunpack.c.l.b16 %v31
  %v64 = vunpack.c.l.b16 %v32
  %v65 = vunpack.c.l.b16 %v33
  %v66 = vunpack.c.l.b16 %v34
  %v67 = vunpack.c.l.b16 %v35
  %v68 = vunpack.c.l.b16 %v36
  %v69 = vunpack.c.l.b16 %v37
  %v70 = vunpack.c.l.b16 %v38
  %v71 = vunpack.c.l.b16 %v39
  %v72 = vunpack.c.l.b16 %v40
  %v73 = vunpack.c.l.b16 %v41
  %v74 = vunpack.c.l.b16 %v42
  %v75 = vpack.c.b16 %v60, %v59
  %v76 = vpack.c.b16 %v62, %v61
  %v77 = vpack.c.b16 %v64, %v63
  %v78 = vpack.c.b16 %v66, %v65
  %v79 = vpack.c.b16 %v68, %v67
  %v80 = vpack.c.b16 %v70, %v69
  %v81 = vpack.c.b16 %v72, %v71
  %v82 = vpack.c.b16 %v74, %v73
  %v91 = vunpack.c.l.b16 %v18
  %v92 = vunpack.c.h.b16 %v18
  %v93 = vunpack.c.l.b16 %v19
  %v94 = vunpack.c.h.b16 %v19
  %v95 = vunpack.c.l.b16 %v20
  %v96 = vunpack.c.h.b16 %v20
  %v97 = vunpack.c.l.b16 %v21
  %v98 = vunpack.c.h.b16 %v21
  %v99 = vunpack.c.l.b16 %v22
  %v100 = vunpack.c.h.b16 %v22
  %v101 = vunpack.c.l.b16 %v23
  %v102 = vunpack.c.h.b16 %v23
  %v103 = vunpack.c.l.b16 %v24
  %v104 = vunpack.c.h.b16 %v24
  %v105 = vunpack.c.l.b16 %v25
  %v106 = vunpack.c.h.b16 %v25
  %v107 = vpack.c.b16 %v95, %v91
  %v108 = vpack.c.b16 %v96, %v92
  %v109 = vpack.c.b16 %v97, %v93
  %v110 = vpack.c.b16 %v98, %v94
  %v111 = vpack.c.b16 %v103, %v99
  %v112 = vpack.c.b16 %v104, %v100
  %v113 = vpack.c.b16 %v105, %v101
  %v114 = vpack.c.b16 %v106, %v102
  %vm123 = vcmask 261120
  %v125 = vsel %vm123, %v75, 0
  %v128 = vsel %vm123, %v76, 0
  %v131 = vsel %vm123, %v77, 0
  %v134 = vsel %vm123, %v78, 0
  %v137 = vsel %vm123, %v79, 0
  %v140 = vsel %vm123, %v80, 0
  %v143 = vsel %vm123, %v81, 0
  %v146 = vsel %vm123, %v82, 0
  %148 = vmatprep.subr.bf16.mxu0 %v108
  %149 = vmatpush1.bf16.msra.mxu0 %v107
  %150 = vmatprep.subr.bf16.mxu0 %v112
  %151 = vmatpush1.bf16.msra.mxu0 %v111
  %152 = vmatprep.subr.bf16.mxu0 0
  %153 = vmatpush1.bf16.msra.mxu0 0
  %154 = vmatprep.subr.bf16.mxu0 0
  %155 = vmatpush1.bf16.msra.mxu0 0
  %156 = vmatprep.subr.bf16.mxu0 0
  %157 = vmatpush1.bf16.msra.mxu0 0
  %158 = vmatprep.subr.bf16.mxu0 0
  %159 = vmatpush1.bf16.msra.mxu0 0
  %160 = vmatprep.subr.bf16.mxu0 0
  %161 = vmatpush1.bf16.msra.mxu0 0
  %162 = vmatprep.subr.bf16.mxu0 0
  %163 = vmatpush1.bf16.msra.mxu0 0
  %164 = vmatprep.subr.bf16.mxu0 0
  %165 = vmatpush1.bf16.msra.mxu0 0
  %166 = vmatprep.subr.bf16.mxu0 0
  %167 = vmatpush1.bf16.msra.mxu0 0
  %168 = vmatprep.subr.bf16.mxu0 0
  %169 = vmatpush1.bf16.msra.mxu0 0
  %170 = vmatprep.subr.bf16.mxu0 0
  %171 = vmatpush1.bf16.msra.mxu0 0
  %172 = vmatprep.subr.bf16.mxu0 0
  %173 = vmatpush1.bf16.msra.mxu0 0
  %174 = vmatprep.subr.bf16.mxu0 0
  %175 = vmatpush1.bf16.msra.mxu0 0
  %176 = vmatprep.subr.bf16.mxu0 0
  %177 = vmatpush1.bf16.msra.mxu0 0
  %178 = vmatprep.subr.bf16.mxu0 0
  %179 = vmatpush1.bf16.msra.mxu0 0
  %180 = vmatprep.mubr.bf16.mxu0 0
  %181 = vmatmul.mubr.bf16.gmra.mrb[0].mxu0 %v125
  %v182 = vpop.f32.mrb[0].mxu0
  %v183 = vadd.f32 0.0, %v182
  %v184 = vpop.f32.mrb[0].mxu0
  %v185 = vadd.f32 0.0, %v184
  %v186 = vpop.f32.mrb[0].mxu0
  %v187 = vadd.f32 0.0, %v186
  %v188 = vpop.f32.mrb[0].mxu0
  %v189 = vadd.f32 0.0, %v188
  %190 = vmatprep.mubr.bf16.mxu0 0
  %191 = vmatmul.mubr.bf16.gmra.mrb[0].mxu0 %v128
  %v192 = vpop.f32.mrb[0].mxu0
  %v193 = vadd.f32 0.0, %v192
  %v194 = vpop.f32.mrb[0].mxu0
  %v195 = vadd.f32 0.0, %v194
  %v196 = vpop.f32.mrb[0].mxu0
  %v197 = vadd.f32 0.0, %v196
  %v198 = vpop.f32.mrb[0].mxu0
  %v199 = vadd.f32 0.0, %v198
  %200 = vmatprep.mubr.bf16.mxu0 0
  %201 = vmatmul.mubr.bf16.gmra.mrb[0].mxu0 %v131
  %v202 = vpop.f32.mrb[0].mxu0
  %v203 = vadd.f32 0.0, %v202
  %v204 = vpop.f32.mrb[0].mxu0
  %v205 = vadd.f32 0.0, %v204
  %v206 = vpop.f32.mrb[0].mxu0
  %v207 = vadd.f32 0.0, %v206
  %v208 = vpop.f32.mrb[0].mxu0
  %v209 = vadd.f32 0.0, %v208
  %210 = vmatprep.mubr.bf16.mxu0 0
  %211 = vmatmul.mubr.bf16.gmra.mrb[0].mxu0 %v134
  %v212 = vpop.f32.mrb[0].mxu0
  %v213 = vadd.f32 0.0, %v212
  %v214 = vpop.f32.mrb[0].mxu0
  %v215 = vadd.f32 0.0, %v214
  %v216 = vpop.f32.mrb[0].mxu0
  %v217 = vadd.f32 0.0, %v216
  %v218 = vpop.f32.mrb[0].mxu0
  %v219 = vadd.f32 0.0, %v218
  %220 = vmatprep.mubr.bf16.mxu0 0
  %221 = vmatmul.mubr.bf16.gmra.mrb[0].mxu0 %v137
  %v222 = vpop.f32.mrb[0].mxu0
  %v223 = vadd.f32 0.0, %v222
  %v224 = vpop.f32.mrb[0].mxu0
  %v225 = vadd.f32 0.0, %v224
  %v226 = vpop.f32.mrb[0].mxu0
  %v227 = vadd.f32 0.0, %v226
  %v228 = vpop.f32.mrb[0].mxu0
  %v229 = vadd.f32 0.0, %v228
  %230 = vmatprep.mubr.bf16.mxu0 0
  %231 = vmatmul.mubr.bf16.gmra.mrb[0].mxu0 %v140
  %v232 = vpop.f32.mrb[0].mxu0
  %v233 = vadd.f32 0.0, %v232
  %v234 = vpop.f32.mrb[0].mxu0
  %v235 = vadd.f32 0.0, %v234
  %v236 = vpop.f32.mrb[0].mxu0
  %v237 = vadd.f32 0.0, %v236
  %v238 = vpop.f32.mrb[0].mxu0
  %v239 = vadd.f32 0.0, %v238
  %240 = vmatprep.mubr.bf16.mxu0 0
  %241 = vmatmul.mubr.bf16.gmra.mrb[0].mxu0 %v143
  %v242 = vpop.f32.mrb[0].mxu0
  %v243 = vadd.f32 0.0, %v242
  %v244 = vpop.f32.mrb[0].mxu0
  %v245 = vadd.f32 0.0, %v244
  %v246 = vpop.f32.mrb[0].mxu0
  %v247 = vadd.f32 0.0, %v246
  %v248 = vpop.f32.mrb[0].mxu0
  %v249 = vadd.f32 0.0, %v248
  %250 = vmatprep.mubr.bf16.mxu0 0
  %251 = vmatmul.mubr.bf16.gmra.mrb[0].mxu0 %v146
  %v252 = vpop.f32.mrb[0].mxu0
  %v253 = vadd.f32 0.0, %v252
  %v254 = vpop.f32.mrb[0].mxu0
  %v255 = vadd.f32 0.0, %v254
  %v256 = vpop.f32.mrb[0].mxu0
  %v257 = vadd.f32 0.0, %v256
  %v258 = vpop.f32.mrb[0].mxu0
  %v259 = vadd.f32 0.0, %v258
  %260 = vdwg.mxu0
  %261 = vmatprep.subr.bf16.mxu0 %v110
  %262 = vmatpush1.bf16.msra.mxu0 %v109
  %263 = vmatprep.subr.bf16.mxu0 %v114
  %264 = vmatpush1.bf16.msra.mxu0 %v113
  %265 = vmatprep.subr.bf16.mxu0 0
  %266 = vmatpush1.bf16.msra.mxu0 0
  %267 = vmatprep.subr.bf16.mxu0 0
  %268 = vmatpush1.bf16.msra.mxu0 0
  %269 = vmatprep.subr.bf16.mxu0 0
  %270 = vmatpush1.bf16.msra.mxu0 0
  %271 = vmatprep.subr.bf16.mxu0 0
  %272 = vmatpush1.bf16.msra.mxu0 0
  %273 = vmatprep.subr.bf16.mxu0 0
  %274 = vmatpush1.bf16.msra.mxu0 0
  %275 = vmatprep.subr.bf16.mxu0 0
  %276 = vmatpush1.bf16.msra.mxu0 0
  %277 = vmatprep.subr.bf16.mxu0 0
  %278 = vmatpush1.bf16.msra.mxu0 0
  %279 = vmatprep.subr.bf16.mxu0 0
  %280 = vmatpush1.bf16.msra.mxu0 0
  %281 = vmatprep.subr.bf16.mxu0 0
  %282 = vmatpush1.bf16.msra.mxu0 0
  %283 = vmatprep.subr.bf16.mxu0 0
  %284 = vmatpush1.bf16.msra.mxu0 0
  %285 = vmatprep.subr.bf16.mxu0 0
  %286 = vmatpush1.bf16.msra.mxu0 0
  %287 = vmatprep.subr.bf16.mxu0 0
  %288 = vmatpush1.bf16.msra.mxu0 0
  %289 = vmatprep.subr.bf16.mxu0 0
  %290 = vmatpush1.bf16.msra.mxu0 0
  %291 = vmatprep.subr.bf16.mxu0 0
  %292 = vmatpush1.bf16.msra.mxu0 0
  %293 = vmatprep.mubr.bf16.mxu0 0
  %294 = vmatmul.mubr.bf16.gmra.mrb[0].mxu0 %v125
  %v295 = vpop.f32.mrb[0].mxu0
  %v296 = vadd.f32 0.0, %v295
  %v297 = vpop.f32.mrb[0].mxu0
  %v298 = vadd.f32 0.0, %v297
  %v299 = vpop.f32.mrb[0].mxu0
  %v300 = vadd.f32 0.0, %v299
  %v301 = vpop.f32.mrb[0].mxu0
  %v302 = vadd.f32 0.0, %v301
  %303 = vmatprep.mubr.bf16.mxu0 0
  %304 = vmatmul.mubr.bf16.gmra.mrb[0].mxu0 %v128
  %v305 = vpop.f32.mrb[0].mxu0
  %v306 = vadd.f32 0.0, %v305
  %v307 = vpop.f32.mrb[0].mxu0
  %v308 = vadd.f32 0.0, %v307
  %v309 = vpop.f32.mrb[0].mxu0
  %v310 = vadd.f32 0.0, %v309
  %v311 = vpop.f32.mrb[0].mxu0
  %v312 = vadd.f32 0.0, %v311
  %313 = vmatprep.mubr.bf16.mxu0 0
  %314 = vmatmul.mubr.bf16.gmra.mrb[0].mxu0 %v131
  %v315 = vpop.f32.mrb[0].mxu0
  %v316 = vadd.f32 0.0, %v315
  %v317 = vpop.f32.mrb[0].mxu0
  %v318 = vadd.f32 0.0, %v317
  %v319 = vpop.f32.mrb[0].mxu0
  %v320 = vadd.f32 0.0, %v319
  %v321 = vpop.f32.mrb[0].mxu0
  %v322 = vadd.f32 0.0, %v321
  %323 = vmatprep.mubr.bf16.mxu0 0
  %324 = vmatmul.mubr.bf16.gmra.mrb[0].mxu0 %v134
  %v325 = vpop.f32.mrb[0].mxu0
  %v326 = vadd.f32 0.0, %v325
  %v327 = vpop.f32.mrb[0].mxu0
  %v328 = vadd.f32 0.0, %v327
  %v329 = vpop.f32.mrb[0].mxu0
  %v330 = vadd.f32 0.0, %v329
  %v331 = vpop.f32.mrb[0].mxu0
  %v332 = vadd.f32 0.0, %v331
  %333 = vmatprep.mubr.bf16.mxu0 0
  %334 = vmatmul.mubr.bf16.gmra.mrb[0].mxu0 %v137
  %v335 = vpop.f32.mrb[0].mxu0
  %v336 = vadd.f32 0.0, %v335
  %v337 = vpop.f32.mrb[0].mxu0
  %v338 = vadd.f32 0.0, %v337
  %v339 = vpop.f32.mrb[0].mxu0
  %v340 = vadd.f32 0.0, %v339
  %v341 = vpop.f32.mrb[0].mxu0
  %v342 = vadd.f32 0.0, %v341
  %343 = vmatprep.mubr.bf16.mxu0 0
  %344 = vmatmul.mubr.bf16.gmra.mrb[0].mxu0 %v140
  %v345 = vpop.f32.mrb[0].mxu0
  %v346 = vadd.f32 0.0, %v345
  %v347 = vpop.f32.mrb[0].mxu0
  %v348 = vadd.f32 0.0, %v347
  %v349 = vpop.f32.mrb[0].mxu0
  %v350 = vadd.f32 0.0, %v349
  %v351 = vpop.f32.mrb[0].mxu0
  %v352 = vadd.f32 0.0, %v351
  %353 = vmatprep.mubr.bf16.mxu0 0
  %354 = vmatmul.mubr.bf16.gmra.mrb[0].mxu0 %v143
  %v355 = vpop.f32.mrb[0].mxu0
  %v356 = vadd.f32 0.0, %v355
  %v357 = vpop.f32.mrb[0].mxu0
  %v358 = vadd.f32 0.0, %v357
  %v359 = vpop.f32.mrb[0].mxu0
  %v360 = vadd.f32 0.0, %v359
  %v361 = vpop.f32.mrb[0].mxu0
  %v362 = vadd.f32 0.0, %v361
  %363 = vmatprep.mubr.bf16.mxu0 0
  %364 = vmatmul.mubr.bf16.gmra.mrb[0].mxu0 %v146
  %v365 = vpop.f32.mrb[0].mxu0
  %v366 = vadd.f32 0.0, %v365
  %v367 = vpop.f32.mrb[0].mxu0
  %v368 = vadd.f32 0.0, %v367
  %v369 = vpop.f32.mrb[0].mxu0
  %v370 = vadd.f32 0.0, %v369
  %v371 = vpop.f32.mrb[0].mxu0
  %v372 = vadd.f32 0.0, %v371
  %373 = vdwg.mxu0
  %v374 = vmax.f32 %v183, 0.0
  %v375 = vmax.f32 %v185, 0.0
  %v376 = vmax.f32 %v296, 0.0
  %v377 = vmax.f32 %v298, 0.0
  %v378 = vmax.f32 %v187, 0.0
  %v379 = vmax.f32 %v189, 0.0
  %v380 = vmax.f32 %v300, 0.0
  %v381 = vmax.f32 %v302, 0.0
  %v382 = vmax.f32 %v193, 0.0
  %v383 = vmax.f32 %v195, 0.0
  %v384 = vmax.f32 %v306, 0.0
  %v385 = vmax.f32 %v308, 0.0
  %v386 = vmax.f32 %v197, 0.0
  %v387 = vmax.f32 %v199, 0.0
  %v388 = vmax.f32 %v310, 0.0
  %v389 = vmax.f32 %v312, 0.0
  %v390 = vmax.f32 %v203, 0.0
  %v391 = vmax.f32 %v205, 0.0
  %v392 = vmax.f32 %v316, 0.0
  %v393 = vmax.f32 %v318, 0.0
  %v394 = vmax.f32 %v207, 0.0
  %v395 = vmax.f32 %v209, 0.0
  %v396 = vmax.f32 %v320, 0.0
  %v397 = vmax.f32 %v322, 0.0
  %v398 = vmax.f32 %v213, 0.0
  %v399 = vmax.f32 %v215, 0.0
  %v400 = vmax.f32 %v326, 0.0
  %v401 = vmax.f32 %v328, 0.0
  %v402 = vmax.f32 %v217, 0.0
  %v403 = vmax.f32 %v219, 0.0
  %v404 = vmax.f32 %v330, 0.0
  %v405 = vmax.f32 %v332, 0.0
  %v406 = vmax.f32 %v223, 0.0
  %v407 = vmax.f32 %v225, 0.0
  %v408 = vmax.f32 %v336, 0.0
  %v409 = vmax.f32 %v338, 0.0
  %v410 = vmax.f32 %v227, 0.0
  %v411 = vmax.f32 %v229, 0.0
  %v412 = vmax.f32 %v340, 0.0
  %v413 = vmax.f32 %v342, 0.0
  %v414 = vmax.f32 %v233, 0.0
  %v415 = vmax.f32 %v235, 0.0
  %v416 = vmax.f32 %v346, 0.0
  %v417 = vmax.f32 %v348, 0.0
  %v418 = vmax.f32 %v237, 0.0
  %v419 = vmax.f32 %v239, 0.0
  %v420 = vmax.f32 %v350, 0.0
  %v421 = vmax.f32 %v352, 0.0
  %v422 = vmax.f32 %v243, 0.0
  %v423 = vmax.f32 %v245, 0.0
  %v424 = vmax.f32 %v356, 0.0
  %v425 = vmax.f32 %v358, 0.0
  %v426 = vmax.f32 %v247, 0.0
  %v427 = vmax.f32 %v249, 0.0
  %v428 = vmax.f32 %v360, 0.0
  %v429 = vmax.f32 %v362, 0.0
  %v430 = vmax.f32 %v253, 0.0
  %v431 = vmax.f32 %v255, 0.0
  %v432 = vmax.f32 %v366, 0.0
  %v433 = vmax.f32 %v368, 0.0
  %v434 = vmax.f32 %v257, 0.0
  %v435 = vmax.f32 %v259, 0.0
  %v436 = vmax.f32 %v370, 0.0
  %v437 = vmax.f32 %v372, 0.0
  %v438 = vpack.c.bf16 %v378, %v374
  %v439 = vpack.c.bf16 %v379, %v375
  %v440 = vpack.c.bf16 %v380, %v376
  %v441 = vpack.c.bf16 %v381, %v377
  %v442 = vpack.c.bf16 %v386, %v382
  %v443 = vpack.c.bf16 %v387, %v383
  %v444 = vpack.c.bf16 %v388, %v384
  %v445 = vpack.c.bf16 %v389, %v385
  %v446 = vpack.c.bf16 %v394, %v390
  %v447 = vpack.c.bf16 %v395, %v391
  %v448 = vpack.c.bf16 %v396, %v392
  %v449 = vpack.c.bf16 %v397, %v393
  %v450 = vpack.c.bf16 %v402, %v398
  %v451 = vpack.c.bf16 %v403, %v399
  %v452 = vpack.c.bf16 %v404, %v400
  %v453 = vpack.c.bf16 %v405, %v401
  %v454 = vpack.c.bf16 %v410, %v406
  %v455 = vpack.c.bf16 %v411, %v407
  %v456 = vpack.c.bf16 %v412, %v408
  %v457 = vpack.c.bf16 %v413, %v409
  %v458 = vpack.c.bf16 %v418, %v414
  %v459 = vpack.c.bf16 %v419, %v415
  %v460 = vpack.c.bf16 %v420, %v416
  %v461 = vpack.c.bf16 %v421, %v417
  %v462 = vpack.c.bf16 %v426, %v422
  %v463 = vpack.c.bf16 %v427, %v423
  %v464 = vpack.c.bf16 %v428, %v424
  %v465 = vpack.c.bf16 %v429, %v425
  %v466 = vpack.c.bf16 %v434, %v430
  %v467 = vpack.c.bf16 %v435, %v431
  %v468 = vpack.c.bf16 %v436, %v432
  %v469 = vpack.c.bf16 %v437, %v433
  %v470 = vld [vmem:[%s2] sm:$0xf]
  %v471 = vld [vmem:[%s2 + $0x4] sm:$0xf]
  %v472 = vld [vmem:[%s2 + $0x8] sm:$0xf]
  %v473 = vld [vmem:[%s2 + $0xc] sm:$0xf]
  %v474 = vld [vmem:[%s2 + $0x10] sm:$0xf]
  %v475 = vld [vmem:[%s2 + $0x14] sm:$0xf]
  %v476 = vld [vmem:[%s2 + $0x18] sm:$0xf]
  %v477 = vld [vmem:[%s2 + $0x1c] sm:$0xf]
  %v478 = vld [vmem:[%s2 + $0x20] sm:$0xf]
  %v479 = vld [vmem:[%s2 + $0x24] sm:$0xf]
  %v480 = vld [vmem:[%s2 + $0x28] sm:$0xf]
  %v481 = vld [vmem:[%s2 + $0x2c] sm:$0xf]
  %v482 = vld [vmem:[%s2 + $0x30] sm:$0xf]
  %v483 = vld [vmem:[%s2 + $0x34] sm:$0xf]
  %v484 = vld [vmem:[%s2 + $0x38] sm:$0xf]
  %v485 = vld [vmem:[%s2 + $0x3c] sm:$0xf]
  %v486 = vld [vmem:[%s2 + $0x40] sm:$0xf]
  %v487 = vld [vmem:[%s2 + $0x44] sm:$0xf]
  %v488 = vld [vmem:[%s2 + $0x48] sm:$0xf]
  %v489 = vld [vmem:[%s2 + $0x4c] sm:$0xf]
  %v490 = vld [vmem:[%s2 + $0x50] sm:$0xf]
  %v491 = vld [vmem:[%s2 + $0x54] sm:$0xf]
  %v492 = vld [vmem:[%s2 + $0x58] sm:$0xf]
  %v493 = vld [vmem:[%s2 + $0x5c] sm:$0xf]
  %v494 = vld [vmem:[%s2 + $0x60] sm:$0xf]
  %v495 = vld [vmem:[%s2 + $0x64] sm:$0xf]
  %v496 = vld [vmem:[%s2 + $0x68] sm:$0xf]
  %v497 = vld [vmem:[%s2 + $0x6c] sm:$0xf]
  %v498 = vld [vmem:[%s2 + $0x70] sm:$0xf]
  %v499 = vld [vmem:[%s2 + $0x74] sm:$0xf]
  %v500 = vld [vmem:[%s2 + $0x78] sm:$0xf]
  %v501 = vld [vmem:[%s2 + $0x7c] sm:$0xf]
  %v502 = vld [vmem:[%s2 + $0x80] sm:$0xf]
  %v503 = vld [vmem:[%s2 + $0x84] sm:$0xf]
  %v504 = vld [vmem:[%s2 + $0x88] sm:$0xf]
  %v505 = vld [vmem:[%s2 + $0x8c] sm:$0xf]
  %v506 = vld [vmem:[%s2 + $0x90] sm:$0xf]
  %v507 = vld [vmem:[%s2 + $0x94] sm:$0xf]
  %v508 = vld [vmem:[%s2 + $0x98] sm:$0xf]
  %v509 = vld [vmem:[%s2 + $0x9c] sm:$0xf]
  %v510 = vld [vmem:[%s2 + $0xa0] sm:$0xf]
  %v511 = vld [vmem:[%s2 + $0xa4] sm:$0xf]
  %v512 = vld [vmem:[%s2 + $0xa8] sm:$0xf]
  %v513 = vld [vmem:[%s2 + $0xac] sm:$0xf]
  %v514 = vld [vmem:[%s2 + $0xb0] sm:$0xf]
  %v515 = vld [vmem:[%s2 + $0xb4] sm:$0xf]
  %v516 = vld [vmem:[%s2 + $0xb8] sm:$0xf]
  %v517 = vld [vmem:[%s2 + $0xbc] sm:$0xf]
  %v518 = vld [vmem:[%s2 + $0xc0] sm:$0xf]
  %v519 = vld [vmem:[%s2 + $0xc4] sm:$0xf]
  %v520 = vld [vmem:[%s2 + $0xc8] sm:$0xf]
  %v521 = vld [vmem:[%s2 + $0xcc] sm:$0xf]
  %v522 = vld [vmem:[%s2 + $0xd0] sm:$0xf]
  %v523 = vld [vmem:[%s2 + $0xd4] sm:$0xf]
  %v524 = vld [vmem:[%s2 + $0xd8] sm:$0xf]
  %v525 = vld [vmem:[%s2 + $0xdc] sm:$0xf]
  %v526 = vld [vmem:[%s2 + $0xe0] sm:$0xf]
  %v527 = vld [vmem:[%s2 + $0xe4] sm:$0xf]
  %v528 = vld [vmem:[%s2 + $0xe8] sm:$0xf]
  %v529 = vld [vmem:[%s2 + $0xec] sm:$0xf]
  %v530 = vld [vmem:[%s2 + $0xf0] sm:$0xf]
  %v531 = vld [vmem:[%s2 + $0xf4] sm:$0xf]
  %v532 = vld [vmem:[%s2 + $0xf8] sm:$0xf]
  %v533 = vld [vmem:[%s2 + $0xfc] sm:$0xf]
  %s534 = scalar_lea.vmem %s0, 64
  %v535 = vld [vmem:[%s534] sm:$0xf]
  %v536 = vld [vmem:[%s534 + $0x4] sm:$0xf]
  %v537 = vld [vmem:[%s534 + $0x8] sm:$0xf]
  %v538 = vld [vmem:[%s534 + $0xc] sm:$0xf]
  %v539 = vld [vmem:[%s534 + $0x10] sm:$0xf]
  %v540 = vld [vmem:[%s534 + $0x14] sm:$0xf]
  %v541 = vld [vmem:[%s534 + $0x18] sm:$0xf]
  %v542 = vld [vmem:[%s534 + $0x1c] sm:$0xf]
  %v543 = vld [vmem:[%s534 + $0x20] sm:$0xf]
  %v544 = vld [vmem:[%s534 + $0x24] sm:$0xf]
  %v545 = vld [vmem:[%s534 + $0x28] sm:$0xf]
  %v546 = vld [vmem:[%s534 + $0x2c] sm:$0xf]
  %v547 = vld [vmem:[%s534 + $0x30] sm:$0xf]
  %v548 = vld [vmem:[%s534 + $0x34] sm:$0xf]
  %v549 = vld [vmem:[%s534 + $0x38] sm:$0xf]
  %v550 = vld [vmem:[%s534 + $0x3c] sm:$0xf]
  %v567 = vunpack.c.l.b16 %v535
  %v568 = vunpack.c.l.b16 %v536
  %v569 = vunpack.c.l.b16 %v537
  %v570 = vunpack.c.l.b16 %v538
  %v571 = vunpack.c.l.b16 %v539
  %v572 = vunpack.c.l.b16 %v540
  %v573 = vunpack.c.l.b16 %v541
  %v574 = vunpack.c.l.b16 %v542
  %v575 = vunpack.c.l.b16 %v543
  %v576 = vunpack.c.l.b16 %v544
  %v577 = vunpack.c.l.b16 %v545
  %v578 = vunpack.c.l.b16 %v546
  %v579 = vunpack.c.l.b16 %v547
  %v580 = vunpack.c.l.b16 %v548
  %v581 = vunpack.c.l.b16 %v549
  %v582 = vunpack.c.l.b16 %v550
  %v583 = vpack.c.b16 %v568, %v567
  %v584 = vpack.c.b16 %v570, %v569
  %v585 = vpack.c.b16 %v572, %v571
  %v586 = vpack.c.b16 %v574, %v573
  %v587 = vpack.c.b16 %v576, %v575
  %v588 = vpack.c.b16 %v578, %v577
  %v589 = vpack.c.b16 %v580, %v579
  %v590 = vpack.c.b16 %v582, %v581
  %v592 = vsel %vm123, %v583, 0
  %v595 = vsel %vm123, %v584, 0
  %v598 = vsel %vm123, %v585, 0
  %v601 = vsel %vm123, %v586, 0
  %v604 = vsel %vm123, %v587, 0
  %v607 = vsel %vm123, %v588, 0
  %v610 = vsel %vm123, %v589, 0
  %v613 = vsel %vm123, %v590, 0
  %615 = vmatprep.subr.bf16.mxu0 %v108
  %616 = vmatpush1.bf16.msra.mxu0 %v107
  %617 = vmatprep.subr.bf16.mxu0 %v112
  %618 = vmatpush1.bf16.msra.mxu0 %v111
  %619 = vmatprep.subr.bf16.mxu0 0
  %620 = vmatpush1.bf16.msra.mxu0 0
  %621 = vmatprep.subr.bf16.mxu0 0
  %622 = vmatpush1.bf16.msra.mxu0 0
  %623 = vmatprep.subr.bf16.mxu0 0
  %624 = vmatpush1.bf16.msra.mxu0 0
  %625 = vmatprep.subr.bf16.mxu0 0
  %626 = vmatpush1.bf16.msra.mxu0 0
  %627 = vmatprep.subr.bf16.mxu0 0
  %628 = vmatpush1.bf16.msra.mxu0 0
  %629 = vmatprep.subr.bf16.mxu0 0
  %630 = vmatpush1.bf16.msra.mxu0 0
  %631 = vmatprep.subr.bf16.mxu0 0
  %632 = vmatpush1.bf16.msra.mxu0 0
  %633 = vmatprep.subr.bf16.mxu0 0
  %634 = vmatpush1.bf16.msra.mxu0 0
  %635 = vmatprep.subr.bf16.mxu0 0
  %636 = vmatpush1.bf16.msra.mxu0 0
  %637 = vmatprep.subr.bf16.mxu0 0
  %638 = vmatpush1.bf16.msra.mxu0 0
  %639 = vmatprep.subr.bf16.mxu0 0
  %640 = vmatpush1.bf16.msra.mxu0 0
  %641 = vmatprep.subr.bf16.mxu0 0
  %642 = vmatpush1.bf16.msra.mxu0 0
  %643 = vmatprep.subr.bf16.mxu0 0
  %644 = vmatpush1.bf16.msra.mxu0 0
  %645 = vmatprep.subr.bf16.mxu0 0
  %646 = vmatpush1.bf16.msra.mxu0 0
  %647 = vmatprep.mubr.bf16.mxu0 0
  %648 = vmatmul.mubr.bf16.gmra.mrb[0].mxu0 %v592
  %v649 = vpop.f32.mrb[0].mxu0
  %v650 = vadd.f32 0.0, %v649
  %v651 = vpop.f32.mrb[0].mxu0
  %v652 = vadd.f32 0.0, %v651
  %v653 = vpop.f32.mrb[0].mxu0
  %v654 = vadd.f32 0.0, %v653
  %v655 = vpop.f32.mrb[0].mxu0
  %v656 = vadd.f32 0.0, %v655
  %657 = vmatprep.mubr.bf16.mxu0 0
  %658 = vmatmul.mubr.bf16.gmra.mrb[0].mxu0 %v595
  %v659 = vpop.f32.mrb[0].mxu0
  %v660 = vadd.f32 0.0, %v659
  %v661 = vpop.f32.mrb[0].mxu0
  %v662 = vadd.f32 0.0, %v661
  %v663 = vpop.f32.mrb[0].mxu0
  %v664 = vadd.f32 0.0, %v663
  %v665 = vpop.f32.mrb[0].mxu0
  %v666 = vadd.f32 0.0, %v665
  %667 = vmatprep.mubr.bf16.mxu0 0
  %668 = vmatmul.mubr.bf16.gmra.mrb[0].mxu0 %v598
  %v669 = vpop.f32.mrb[0].mxu0
  %v670 = vadd.f32 0.0, %v669
  %v671 = vpop.f32.mrb[0].mxu0
  %v672 = vadd.f32 0.0, %v671
  %v673 = vpop.f32.mrb[0].mxu0
  %v674 = vadd.f32 0.0, %v673
  %v675 = vpop.f32.mrb[0].mxu0
  %v676 = vadd.f32 0.0, %v675
  %677 = vmatprep.mubr.bf16.mxu0 0
  %678 = vmatmul.mubr.bf16.gmra.mrb[0].mxu0 %v601
  %v679 = vpop.f32.mrb[0].mxu0
  %v680 = vadd.f32 0.0, %v679
  %v681 = vpop.f32.mrb[0].mxu0
  %v682 = vadd.f32 0.0, %v681
  %v683 = vpop.f32.mrb[0].mxu0
  %v684 = vadd.f32 0.0, %v683
  %v685 = vpop.f32.mrb[0].mxu0
  %v686 = vadd.f32 0.0, %v685
  %687 = vmatprep.mubr.bf16.mxu0 0
  %688 = vmatmul.mubr.bf16.gmra.mrb[0].mxu0 %v604
  %v689 = vpop.f32.mrb[0].mxu0
  %v690 = vadd.f32 0.0, %v689
  %v691 = vpop.f32.mrb[0].mxu0
  %v692 = vadd.f32 0.0, %v691
  %v693 = vpop.f32.mrb[0].mxu0
  %v694 = vadd.f32 0.0, %v693
  %v695 = vpop.f32.mrb[0].mxu0
  %v696 = vadd.f32 0.0, %v695
  %697 = vmatprep.mubr.bf16.mxu0 0
  %698 = vmatmul.mubr.bf16.gmra.mrb[0].mxu0 %v607
  %v699 = vpop.f32.mrb[0].mxu0
  %v700 = vadd.f32 0.0, %v699
  %v701 = vpop.f32.mrb[0].mxu0
  %v702 = vadd.f32 0.0, %v701
  %v703 = vpop.f32.mrb[0].mxu0
  %v704 = vadd.f32 0.0, %v703
  %v705 = vpop.f32.mrb[0].mxu0
  %v706 = vadd.f32 0.0, %v705
  %707 = vmatprep.mubr.bf16.mxu0 0
  %708 = vmatmul.mubr.bf16.gmra.mrb[0].mxu0 %v610
  %v709 = vpop.f32.mrb[0].mxu0
  %v710 = vadd.f32 0.0, %v709
  %v711 = vpop.f32.mrb[0].mxu0
  %v712 = vadd.f32 0.0, %v711
  %v713 = vpop.f32.mrb[0].mxu0
  %v714 = vadd.f32 0.0, %v713
  %v715 = vpop.f32.mrb[0].mxu0
  %v716 = vadd.f32 0.0, %v715
  %717 = vmatprep.mubr.bf16.mxu0 0
  %718 = vmatmul.mubr.bf16.gmra.mrb[0].mxu0 %v613
  %v719 = vpop.f32.mrb[0].mxu0
  %v720 = vadd.f32 0.0, %v719
  %v721 = vpop.f32.mrb[0].mxu0
  %v722 = vadd.f32 0.0, %v721
  %v723 = vpop.f32.mrb[0].mxu0
  %v724 = vadd.f32 0.0, %v723
  %v725 = vpop.f32.mrb[0].mxu0
  %v726 = vadd.f32 0.0, %v725
  %727 = vdwg.mxu0
  %728 = vmatprep.subr.bf16.mxu0 %v110
  %729 = vmatpush1.bf16.msra.mxu0 %v109
  %730 = vmatprep.subr.bf16.mxu0 %v114
  %731 = vmatpush1.bf16.msra.mxu0 %v113
  %732 = vmatprep.subr.bf16.mxu0 0
  %733 = vmatpush1.bf16.msra.mxu0 0
  %734 = vmatprep.subr.bf16.mxu0 0
  %735 = vmatpush1.bf16.msra.mxu0 0
  %736 = vmatprep.subr.bf16.mxu0 0
  %737 = vmatpush1.bf16.msra.mxu0 0
  %738 = vmatprep.subr.bf16.mxu0 0
  %739 = vmatpush1.bf16.msra.mxu0 0
  %740 = vmatprep.subr.bf16.mxu0 0
  %741 = vmatpush1.bf16.msra.mxu0 0
  %742 = vmatprep.subr.bf16.mxu0 0
  %743 = vmatpush1.bf16.msra.mxu0 0
  %744 = vmatprep.subr.bf16.mxu0 0
  %745 = vmatpush1.bf16.msra.mxu0 0
  %746 = vmatprep.subr.bf16.mxu0 0
  %747 = vmatpush1.bf16.msra.mxu0 0
  %748 = vmatprep.subr.bf16.mxu0 0
  %749 = vmatpush1.bf16.msra.mxu0 0
  %750 = vmatprep.subr.bf16.mxu0 0
  %751 = vmatpush1.bf16.msra.mxu0 0
  %752 = vmatprep.subr.bf16.mxu0 0
  %753 = vmatpush1.bf16.msra.mxu0 0
  %754 = vmatprep.subr.bf16.mxu0 0
  %755 = vmatpush1.bf16.msra.mxu0 0
  %756 = vmatprep.subr.bf16.mxu0 0
  %757 = vmatpush1.bf16.msra.mxu0 0
  %758 = vmatprep.subr.bf16.mxu0 0
  %759 = vmatpush1.bf16.msra.mxu0 0
  %760 = vmatprep.mubr.bf16.mxu0 0
  %761 = vmatmul.mubr.bf16.gmra.mrb[0].mxu0 %v592
  %v762 = vpop.f32.mrb[0].mxu0
  %v763 = vadd.f32 0.0, %v762
  %v764 = vpop.f32.mrb[0].mxu0
  %v765 = vadd.f32 0.0, %v764
  %v766 = vpop.f32.mrb[0].mxu0
  %v767 = vadd.f32 0.0, %v766
  %v768 = vpop.f32.mrb[0].mxu0
  %v769 = vadd.f32 0.0, %v768
  %770 = vmatprep.mubr.bf16.mxu0 0
  %771 = vmatmul.mubr.bf16.gmra.mrb[0].mxu0 %v595
  %v772 = vpop.f32.mrb[0].mxu0
  %v773 = vadd.f32 0.0, %v772
  %v774 = vpop.f32.mrb[0].mxu0
  %v775 = vadd.f32 0.0, %v774
  %v776 = vpop.f32.mrb[0].mxu0
  %v777 = vadd.f32 0.0, %v776
  %v778 = vpop.f32.mrb[0].mxu0
  %v779 = vadd.f32 0.0, %v778
  %780 = vmatprep.mubr.bf16.mxu0 0
  %781 = vmatmul.mubr.bf16.gmra.mrb[0].mxu0 %v598
  %v782 = vpop.f32.mrb[0].mxu0
  %v783 = vadd.f32 0.0, %v782
  %v784 = vpop.f32.mrb[0].mxu0
  %v785 = vadd.f32 0.0, %v784
  %v786 = vpop.f32.mrb[0].mxu0
  %v787 = vadd.f32 0.0, %v786
  %v788 = vpop.f32.mrb[0].mxu0
  %v789 = vadd.f32 0.0, %v788
  %790 = vmatprep.mubr.bf16.mxu0 0
  %791 = vmatmul.mubr.bf16.gmra.mrb[0].mxu0 %v601
  %v792 = vpop.f32.mrb[0].mxu0
  %v793 = vadd.f32 0.0, %v792
  %v794 = vpop.f32.mrb[0].mxu0
  %v795 = vadd.f32 0.0, %v794
  %v796 = vpop.f32.mrb[0].mxu0
  %v797 = vadd.f32 0.0, %v796
  %v798 = vpop.f32.mrb[0].mxu0
  %v799 = vadd.f32 0.0, %v798
  %800 = vmatprep.mubr.bf16.mxu0 0
  %801 = vmatmul.mubr.bf16.gmra.mrb[0].mxu0 %v604
  %v802 = vpop.f32.mrb[0].mxu0
  %v803 = vadd.f32 0.0, %v802
  %v804 = vpop.f32.mrb[0].mxu0
  %v805 = vadd.f32 0.0, %v804
  %v806 = vpop.f32.mrb[0].mxu0
  %v807 = vadd.f32 0.0, %v806
  %v808 = vpop.f32.mrb[0].mxu0
  %v809 = vadd.f32 0.0, %v808
  %810 = vmatprep.mubr.bf16.mxu0 0
  %811 = vmatmul.mubr.bf16.gmra.mrb[0].mxu0 %v607
  %v812 = vpop.f32.mrb[0].mxu0
  %v813 = vadd.f32 0.0, %v812
  %v814 = vpop.f32.mrb[0].mxu0
  %v815 = vadd.f32 0.0, %v814
  %v816 = vpop.f32.mrb[0].mxu0
  %v817 = vadd.f32 0.0, %v816
  %v818 = vpop.f32.mrb[0].mxu0
  %v819 = vadd.f32 0.0, %v818
  %820 = vmatprep.mubr.bf16.mxu0 0
  %821 = vmatmul.mubr.bf16.gmra.mrb[0].mxu0 %v610
  %v822 = vpop.f32.mrb[0].mxu0
  %v823 = vadd.f32 0.0, %v822
  %v824 = vpop.f32.mrb[0].mxu0
  %v825 = vadd.f32 0.0, %v824
  %v826 = vpop.f32.mrb[0].mxu0
  %v827 = vadd.f32 0.0, %v826
  %v828 = vpop.f32.mrb[0].mxu0
  %v829 = vadd.f32 0.0, %v828
  %830 = vmatprep.mubr.bf16.mxu0 0
  %831 = vmatmul.mubr.bf16.gmra.mrb[0].mxu0 %v613
  %v832 = vpop.f32.mrb[0].mxu0
  %v833 = vadd.f32 0.0, %v832
  %v834 = vpop.f32.mrb[0].mxu0
  %v835 = vadd.f32 0.0, %v834
  %v836 = vpop.f32.mrb[0].mxu0
  %v837 = vadd.f32 0.0, %v836
  %v838 = vpop.f32.mrb[0].mxu0
  %v839 = vadd.f32 0.0, %v838
  %840 = vdwg.mxu0
  %v841 = vmax.f32 %v650, 0.0
  %v842 = vmax.f32 %v652, 0.0
  %v843 = vmax.f32 %v763, 0.0
  %v844 = vmax.f32 %v765, 0.0
  %v845 = vmax.f32 %v654, 0.0
  %v846 = vmax.f32 %v656, 0.0
  %v847 = vmax.f32 %v767, 0.0
  %v848 = vmax.f32 %v769, 0.0
  %v849 = vmax.f32 %v660, 0.0
  %v850 = vmax.f32 %v662, 0.0
  %v851 = vmax.f32 %v773, 0.0
  %v852 = vmax.f32 %v775, 0.0
  %v853 = vmax.f32 %v664, 0.0
  %v854 = vmax.f32 %v666, 0.0
  %v855 = vmax.f32 %v777, 0.0
  %v856 = vmax.f32 %v779, 0.0
  %v857 = vmax.f32 %v670, 0.0
  %v858 = vmax.f32 %v672, 0.0
  %v859 = vmax.f32 %v783, 0.0
  %v860 = vmax.f32 %v785, 0.0
  %v861 = vmax.f32 %v674, 0.0
  %v862 = vmax.f32 %v676, 0.0
  %v863 = vmax.f32 %v787, 0.0
  %v864 = vmax.f32 %v789, 0.0
  %v865 = vmax.f32 %v680, 0.0
  %v866 = vmax.f32 %v682, 0.0
  %v867 = vmax.f32 %v793, 0.0
  %v868 = vmax.f32 %v795, 0.0
  %v869 = vmax.f32 %v684, 0.0
  %v870 = vmax.f32 %v686, 0.0
  %v871 = vmax.f32 %v797, 0.0
  %v872 = vmax.f32 %v799, 0.0
  %v873 = vmax.f32 %v690, 0.0
  %v874 = vmax.f32 %v692, 0.0
  %v875 = vmax.f32 %v803, 0.0
  %v876 = vmax.f32 %v805, 0.0
  %v877 = vmax.f32 %v694, 0.0
  %v878 = vmax.f32 %v696, 0.0
  %v879 = vmax.f32 %v807, 0.0
  %v880 = vmax.f32 %v809, 0.0
  %v881 = vmax.f32 %v700, 0.0
  %v882 = vmax.f32 %v702, 0.0
  %v883 = vmax.f32 %v813, 0.0
  %v884 = vmax.f32 %v815, 0.0
  %v885 = vmax.f32 %v704, 0.0
  %v886 = vmax.f32 %v706, 0.0
  %v887 = vmax.f32 %v817, 0.0
  %v888 = vmax.f32 %v819, 0.0
  %v889 = vmax.f32 %v710, 0.0
  %v890 = vmax.f32 %v712, 0.0
  %v891 = vmax.f32 %v823, 0.0
  %v892 = vmax.f32 %v825, 0.0
  %v893 = vmax.f32 %v714, 0.0
  %v894 = vmax.f32 %v716, 0.0
  %v895 = vmax.f32 %v827, 0.0
  %v896 = vmax.f32 %v829, 0.0
  %v897 = vmax.f32 %v720, 0.0
  %v898 = vmax.f32 %v722, 0.0
  %v899 = vmax.f32 %v833, 0.0
  %v900 = vmax.f32 %v835, 0.0
  %v901 = vmax.f32 %v724, 0.0
  %v902 = vmax.f32 %v726, 0.0
  %v903 = vmax.f32 %v837, 0.0
  %v904 = vmax.f32 %v839, 0.0
  %v905 = vpack.c.bf16 %v845, %v841
  %v906 = vpack.c.bf16 %v846, %v842
  %v907 = vpack.c.bf16 %v847, %v843
  %v908 = vpack.c.bf16 %v848, %v844
  %v909 = vpack.c.bf16 %v853, %v849
  %v910 = vpack.c.bf16 %v854, %v850
  %v911 = vpack.c.bf16 %v855, %v851
  %v912 = vpack.c.bf16 %v856, %v852
  %v913 = vpack.c.bf16 %v861, %v857
  %v914 = vpack.c.bf16 %v862, %v858
  %v915 = vpack.c.bf16 %v863, %v859
  %v916 = vpack.c.bf16 %v864, %v860
  %v917 = vpack.c.bf16 %v869, %v865
  %v918 = vpack.c.bf16 %v870, %v866
  %v919 = vpack.c.bf16 %v871, %v867
  %v920 = vpack.c.bf16 %v872, %v868
  %v921 = vpack.c.bf16 %v877, %v873
  %v922 = vpack.c.bf16 %v878, %v874
  %v923 = vpack.c.bf16 %v879, %v875
  %v924 = vpack.c.bf16 %v880, %v876
  %v925 = vpack.c.bf16 %v885, %v881
  %v926 = vpack.c.bf16 %v886, %v882
  %v927 = vpack.c.bf16 %v887, %v883
  %v928 = vpack.c.bf16 %v888, %v884
  %v929 = vpack.c.bf16 %v893, %v889
  %v930 = vpack.c.bf16 %v894, %v890
  %v931 = vpack.c.bf16 %v895, %v891
  %v932 = vpack.c.bf16 %v896, %v892
  %v933 = vpack.c.bf16 %v901, %v897
  %v934 = vpack.c.bf16 %v902, %v898
  %v935 = vpack.c.bf16 %v903, %v899
  %v936 = vpack.c.bf16 %v904, %v900
  %s937 = scalar_lea.vmem %s2, 256
  %v938 = vld [vmem:[%s937] sm:$0xf]
  %v939 = vld [vmem:[%s937 + $0x4] sm:$0xf]
  %v940 = vld [vmem:[%s937 + $0x8] sm:$0xf]
  %v941 = vld [vmem:[%s937 + $0xc] sm:$0xf]
  %v942 = vld [vmem:[%s937 + $0x10] sm:$0xf]
  %v943 = vld [vmem:[%s937 + $0x14] sm:$0xf]
  %v944 = vld [vmem:[%s937 + $0x18] sm:$0xf]
  %v945 = vld [vmem:[%s937 + $0x1c] sm:$0xf]
  %v946 = vld [vmem:[%s937 + $0x20] sm:$0xf]
  %v947 = vld [vmem:[%s937 + $0x24] sm:$0xf]
  %v948 = vld [vmem:[%s937 + $0x28] sm:$0xf]
  %v949 = vld [vmem:[%s937 + $0x2c] sm:$0xf]
  %v950 = vld [vmem:[%s937 + $0x30] sm:$0xf]
  %v951 = vld [vmem:[%s937 + $0x34] sm:$0xf]
  %v952 = vld [vmem:[%s937 + $0x38] sm:$0xf]
  %v953 = vld [vmem:[%s937 + $0x3c] sm:$0xf]
  %v954 = vld [vmem:[%s937 + $0x40] sm:$0xf]
  %v955 = vld [vmem:[%s937 + $0x44] sm:$0xf]
  %v956 = vld [vmem:[%s937 + $0x48] sm:$0xf]
  %v957 = vld [vmem:[%s937 + $0x4c] sm:$0xf]
  %v958 = vld [vmem:[%s937 + $0x50] sm:$0xf]
  %v959 = vld [vmem:[%s937 + $0x54] sm:$0xf]
  %v960 = vld [vmem:[%s937 + $0x58] sm:$0xf]
  %v961 = vld [vmem:[%s937 + $0x5c] sm:$0xf]
  %v962 = vld [vmem:[%s937 + $0x60] sm:$0xf]
  %v963 = vld [vmem:[%s937 + $0x64] sm:$0xf]
  %v964 = vld [vmem:[%s937 + $0x68] sm:$0xf]
  %v965 = vld [vmem:[%s937 + $0x6c] sm:$0xf]
  %v966 = vld [vmem:[%s937 + $0x70] sm:$0xf]
  %v967 = vld [vmem:[%s937 + $0x74] sm:$0xf]
  %v968 = vld [vmem:[%s937 + $0x78] sm:$0xf]
  %v969 = vld [vmem:[%s937 + $0x7c] sm:$0xf]
  %v970 = vld [vmem:[%s937 + $0x80] sm:$0xf]
  %v971 = vld [vmem:[%s937 + $0x84] sm:$0xf]
  %v972 = vld [vmem:[%s937 + $0x88] sm:$0xf]
  %v973 = vld [vmem:[%s937 + $0x8c] sm:$0xf]
  %v974 = vld [vmem:[%s937 + $0x90] sm:$0xf]
  %v975 = vld [vmem:[%s937 + $0x94] sm:$0xf]
  %v976 = vld [vmem:[%s937 + $0x98] sm:$0xf]
  %v977 = vld [vmem:[%s937 + $0x9c] sm:$0xf]
  %v978 = vld [vmem:[%s937 + $0xa0] sm:$0xf]
  %v979 = vld [vmem:[%s937 + $0xa4] sm:$0xf]
  %v980 = vld [vmem:[%s937 + $0xa8] sm:$0xf]
  %v981 = vld [vmem:[%s937 + $0xac] sm:$0xf]
  %v982 = vld [vmem:[%s937 + $0xb0] sm:$0xf]
  %v983 = vld [vmem:[%s937 + $0xb4] sm:$0xf]
  %v984 = vld [vmem:[%s937 + $0xb8] sm:$0xf]
  %v985 = vld [vmem:[%s937 + $0xbc] sm:$0xf]
  %v986 = vld [vmem:[%s937 + $0xc0] sm:$0xf]
  %v987 = vld [vmem:[%s937 + $0xc4] sm:$0xf]
  %v988 = vld [vmem:[%s937 + $0xc8] sm:$0xf]
  %v989 = vld [vmem:[%s937 + $0xcc] sm:$0xf]
  %v990 = vld [vmem:[%s937 + $0xd0] sm:$0xf]
  %v991 = vld [vmem:[%s937 + $0xd4] sm:$0xf]
  %v992 = vld [vmem:[%s937 + $0xd8] sm:$0xf]
  %v993 = vld [vmem:[%s937 + $0xdc] sm:$0xf]
  %v994 = vld [vmem:[%s937 + $0xe0] sm:$0xf]
  %v995 = vld [vmem:[%s937 + $0xe4] sm:$0xf]
  %v996 = vld [vmem:[%s937 + $0xe8] sm:$0xf]
  %v997 = vld [vmem:[%s937 + $0xec] sm:$0xf]
  %v998 = vld [vmem:[%s937 + $0xf0] sm:$0xf]
  %v999 = vld [vmem:[%s937 + $0xf4] sm:$0xf]
  %v1000 = vld [vmem:[%s937 + $0xf8] sm:$0xf]
  %v1001 = vld [vmem:[%s937 + $0xfc] sm:$0xf]
  %v1066 = vunpack.c.l.b16 %v938
  %v1067 = vunpack.c.l.b16 %v939
  %v1068 = vunpack.c.l.b16 %v940
  %v1069 = vunpack.c.l.b16 %v941
  %v1070 = vunpack.c.l.b16 %v942
  %v1071 = vunpack.c.l.b16 %v943
  %v1072 = vunpack.c.l.b16 %v944
  %v1073 = vunpack.c.l.b16 %v945
  %v1074 = vunpack.c.l.b16 %v946
  %v1075 = vunpack.c.l.b16 %v947
  %v1076 = vunpack.c.l.b16 %v948
  %v1077 = vunpack.c.l.b16 %v949
  %v1078 = vunpack.c.l.b16 %v950
  %v1079 = vunpack.c.l.b16 %v951
  %v1080 = vunpack.c.l.b16 %v952
  %v1081 = vunpack.c.l.b16 %v953
  %v1082 = vunpack.c.l.b16 %v954
  %v1083 = vunpack.c.l.b16 %v955
  %v1084 = vunpack.c.l.b16 %v956
  %v1085 = vunpack.c.l.b16 %v957
  %v1086 = vunpack.c.l.b16 %v958
  %v1087 = vunpack.c.l.b16 %v959
  %v1088 = vunpack.c.l.b16 %v960
  %v1089 = vunpack.c.l.b16 %v961
  %v1090 = vunpack.c.l.b16 %v962
  %v1091 = vunpack.c.l.b16 %v963
  %v1092 = vunpack.c.l.b16 %v964
  %v1093 = vunpack.c.l.b16 %v965
  %v1094 = vunpack.c.l.b16 %v966
  %v1095 = vunpack.c.l.b16 %v967
  %v1096 = vunpack.c.l.b16 %v968
  %v1097 = vunpack.c.l.b16 %v969
  %v1098 = vunpack.c.l.b16 %v970
  %v1099 = vunpack.c.l.b16 %v971
  %v1100 = vunpack.c.l.b16 %v972
  %v1101 = vunpack.c.l.b16 %v973
  %v1102 = vunpack.c.l.b16 %v974
  %v1103 = vunpack.c.l.b16 %v975
  %v1104 = vunpack.c.l.b16 %v976
  %v1105 = vunpack.c.l.b16 %v977
  %v1106 = vunpack.c.l.b16 %v978
  %v1107 = vunpack.c.l.b16 %v979
  %v1108 = vunpack.c.l.b16 %v980
  %v1109 = vunpack.c.l.b16 %v981
  %v1110 = vunpack.c.l.b16 %v982
  %v1111 = vunpack.c.l.b16 %v983
  %v1112 = vunpack.c.l.b16 %v984
  %v1113 = vunpack.c.l.b16 %v985
  %v1114 = vunpack.c.l.b16 %v986
  %v1115 = vunpack.c.l.b16 %v987
  %v1116 = vunpack.c.l.b16 %v988
  %v1117 = vunpack.c.l.b16 %v989
  %v1118 = vunpack.c.l.b16 %v990
  %v1119 = vunpack.c.l.b16 %v991
  %v1120 = vunpack.c.l.b16 %v992
  %v1121 = vunpack.c.l.b16 %v993
  %v1122 = vunpack.c.l.b16 %v994
  %v1123 = vunpack.c.l.b16 %v995
  %v1124 = vunpack.c.l.b16 %v996
  %v1125 = vunpack.c.l.b16 %v997
  %v1126 = vunpack.c.l.b16 %v998
  %v1127 = vunpack.c.l.b16 %v999
  %v1128 = vunpack.c.l.b16 %v1000
  %v1129 = vunpack.c.l.b16 %v1001
  %v1130 = vpack.c.b16 %v1067, %v1066
  %v1131 = vpack.c.b16 %v1069, %v1068
  %v1132 = vpack.c.b16 %v1071, %v1070
  %v1133 = vpack.c.b16 %v1073, %v1072
  %v1134 = vpack.c.b16 %v1075, %v1074
  %v1135 = vpack.c.b16 %v1077, %v1076
  %v1136 = vpack.c.b16 %v1079, %v1078
  %v1137 = vpack.c.b16 %v1081, %v1080
  %v1138 = vpack.c.b16 %v1083, %v1082
  %v1139 = vpack.c.b16 %v1085, %v1084
  %v1140 = vpack.c.b16 %v1087, %v1086
  %v1141 = vpack.c.b16 %v1089, %v1088
  %v1142 = vpack.c.b16 %v1091, %v1090
  %v1143 = vpack.c.b16 %v1093, %v1092
  %v1144 = vpack.c.b16 %v1095, %v1094
  %v1145 = vpack.c.b16 %v1097, %v1096
  %v1146 = vpack.c.b16 %v1099, %v1098
  %v1147 = vpack.c.b16 %v1101, %v1100
  %v1148 = vpack.c.b16 %v1103, %v1102
  %v1149 = vpack.c.b16 %v1105, %v1104
  %v1150 = vpack.c.b16 %v1107, %v1106
  %v1151 = vpack.c.b16 %v1109, %v1108
  %v1152 = vpack.c.b16 %v1111, %v1110
  %v1153 = vpack.c.b16 %v1113, %v1112
  %v1154 = vpack.c.b16 %v1115, %v1114
  %v1155 = vpack.c.b16 %v1117, %v1116
  %v1156 = vpack.c.b16 %v1119, %v1118
  %v1157 = vpack.c.b16 %v1121, %v1120
  %v1158 = vpack.c.b16 %v1123, %v1122
  %v1159 = vpack.c.b16 %v1125, %v1124
  %v1160 = vpack.c.b16 %v1127, %v1126
  %v1161 = vpack.c.b16 %v1129, %v1128
  %1194 = vmatprep.subr.bf16.mxu0 0
  %1195 = vmatpush1.bf16.msra.mxu0 %v1130
  %1196 = vmatprep.subr.bf16.mxu0 0
  %1197 = vmatpush1.bf16.msra.mxu0 %v1131
  %1198 = vmatprep.subr.bf16.mxu0 0
  %1199 = vmatpush1.bf16.msra.mxu0 %v1132
  %1200 = vmatprep.subr.bf16.mxu0 0
  %1201 = vmatpush1.bf16.msra.mxu0 %v1133
  %1202 = vmatprep.subr.bf16.mxu0 0
  %1203 = vmatpush1.bf16.msra.mxu0 %v1134
  %1204 = vmatprep.subr.bf16.mxu0 0
  %1205 = vmatpush1.bf16.msra.mxu0 %v1135
  %1206 = vmatprep.subr.bf16.mxu0 0
  %1207 = vmatpush1.bf16.msra.mxu0 %v1136
  %1208 = vmatprep.subr.bf16.mxu0 0
  %1209 = vmatpush1.bf16.msra.mxu0 %v1137
  %1210 = vmatprep.subr.bf16.mxu0 0
  %1211 = vmatpush1.bf16.msra.mxu0 %v1138
  %1212 = vmatprep.subr.bf16.mxu0 0
  %1213 = vmatpush1.bf16.msra.mxu0 %v1139
  %1214 = vmatprep.subr.bf16.mxu0 0
  %1215 = vmatpush1.bf16.msra.mxu0 %v1140
  %1216 = vmatprep.subr.bf16.mxu0 0
  %1217 = vmatpush1.bf16.msra.mxu0 %v1141
  %1218 = vmatprep.subr.bf16.mxu0 0
  %1219 = vmatpush1.bf16.msra.mxu0 %v1142
  %1220 = vmatprep.subr.bf16.mxu0 0
  %1221 = vmatpush1.bf16.msra.mxu0 %v1143
  %1222 = vmatprep.subr.bf16.mxu0 0
  %1223 = vmatpush1.bf16.msra.mxu0 %v1144
  %1224 = vmatprep.subr.bf16.mxu0 0
  %1225 = vmatpush1.bf16.msra.mxu0 %v1145
  %1226 = vmatprep.mubr.bf16.mxu0 %v906
  %1227 = vmatmul.mubr.bf16.gmra.mrb[0].mxu0 %v905
  %v1228 = vpop.f32.mrb[0].mxu0
  %v1229 = vadd.f32 0.0, %v1228
  %v1230 = vpop.f32.mrb[0].mxu0
  %v1231 = vpop.f32.mrb[0].mxu0
  %v1232 = vadd.f32 0.0, %v1231
  %v1233 = vpop.f32.mrb[0].mxu0
  %1234 = vmatprep.mubr.bf16.mxu0 %v910
  %1235 = vmatmul.mubr.bf16.gmra.mrb[0].mxu0 %v909
  %v1236 = vpop.f32.mrb[0].mxu0
  %v1237 = vadd.f32 0.0, %v1236
  %v1238 = vpop.f32.mrb[0].mxu0
  %v1239 = vpop.f32.mrb[0].mxu0
  %v1240 = vadd.f32 0.0, %v1239
  %v1241 = vpop.f32.mrb[0].mxu0
  %1242 = vmatprep.mubr.bf16.mxu0 %v914
  %1243 = vmatmul.mubr.bf16.gmra.mrb[0].mxu0 %v913
  %v1244 = vpop.f32.mrb[0].mxu0
  %v1245 = vadd.f32 0.0, %v1244
  %v1246 = vpop.f32.mrb[0].mxu0
  %v1247 = vpop.f32.mrb[0].mxu0
  %v1248 = vadd.f32 0.0, %v1247
  %v1249 = vpop.f32.mrb[0].mxu0
  %1250 = vmatprep.mubr.bf16.mxu0 %v918
  %1251 = vmatmul.mubr.bf16.gmra.mrb[0].mxu0 %v917
  %v1252 = vpop.f32.mrb[0].mxu0
  %v1253 = vadd.f32 0.0, %v1252
  %v1254 = vpop.f32.mrb[0].mxu0
  %v1255 = vpop.f32.mrb[0].mxu0
  %v1256 = vadd.f32 0.0, %v1255
  %v1257 = vpop.f32.mrb[0].mxu0
  %1258 = vmatprep.mubr.bf16.mxu0 %v922
  %1259 = vmatmul.mubr.bf16.gmra.mrb[0].mxu0 %v921
  %v1260 = vpop.f32.mrb[0].mxu0
  %v1261 = vadd.f32 0.0, %v1260
  %v1262 = vpop.f32.mrb[0].mxu0
  %v1263 = vpop.f32.mrb[0].mxu0
  %v1264 = vadd.f32 0.0, %v1263
  %v1265 = vpop.f32.mrb[0].mxu0
  %1266 = vmatprep.mubr.bf16.mxu0 %v926
  %1267 = vmatmul.mubr.bf16.gmra.mrb[0].mxu0 %v925
  %v1268 = vpop.f32.mrb[0].mxu0
  %v1269 = vadd.f32 0.0, %v1268
  %v1270 = vpop.f32.mrb[0].mxu0
  %v1271 = vpop.f32.mrb[0].mxu0
  %v1272 = vadd.f32 0.0, %v1271
  %v1273 = vpop.f32.mrb[0].mxu0
  %1274 = vmatprep.mubr.bf16.mxu0 %v930
  %1275 = vmatmul.mubr.bf16.gmra.mrb[0].mxu0 %v929
  %v1276 = vpop.f32.mrb[0].mxu0
  %v1277 = vadd.f32 0.0, %v1276
  %v1278 = vpop.f32.mrb[0].mxu0
  %v1279 = vpop.f32.mrb[0].mxu0
  %v1280 = vadd.f32 0.0, %v1279
  %v1281 = vpop.f32.mrb[0].mxu0
  %1282 = vmatprep.mubr.bf16.mxu0 %v934
  %1283 = vmatmul.mubr.bf16.gmra.mrb[0].mxu0 %v933
  %v1284 = vpop.f32.mrb[0].mxu0
  %v1285 = vadd.f32 0.0, %v1284
  %v1286 = vpop.f32.mrb[0].mxu0
  %v1287 = vpop.f32.mrb[0].mxu0
  %v1288 = vadd.f32 0.0, %v1287
  %v1289 = vpop.f32.mrb[0].mxu0
  %1290 = vdwg.mxu0
  %1291 = vmatprep.subr.bf16.mxu0 0
  %1292 = vmatpush1.bf16.msra.mxu0 %v1146
  %1293 = vmatprep.subr.bf16.mxu0 0
  %1294 = vmatpush1.bf16.msra.mxu0 %v1147
  %1295 = vmatprep.subr.bf16.mxu0 0
  %1296 = vmatpush1.bf16.msra.mxu0 %v1148
  %1297 = vmatprep.subr.bf16.mxu0 0
  %1298 = vmatpush1.bf16.msra.mxu0 %v1149
  %1299 = vmatprep.subr.bf16.mxu0 0
  %1300 = vmatpush1.bf16.msra.mxu0 %v1150
  %1301 = vmatprep.subr.bf16.mxu0 0
  %1302 = vmatpush1.bf16.msra.mxu0 %v1151
  %1303 = vmatprep.subr.bf16.mxu0 0
  %1304 = vmatpush1.bf16.msra.mxu0 %v1152
  %1305 = vmatprep.subr.bf16.mxu0 0
  %1306 = vmatpush1.bf16.msra.mxu0 %v1153
  %1307 = vmatprep.subr.bf16.mxu0 0
  %1308 = vmatpush1.bf16.msra.mxu0 %v1154
  %1309 = vmatprep.subr.bf16.mxu0 0
  %1310 = vmatpush1.bf16.msra.mxu0 %v1155
  %1311 = vmatprep.subr.bf16.mxu0 0
  %1312 = vmatpush1.bf16.msra.mxu0 %v1156
  %1313 = vmatprep.subr.bf16.mxu0 0
  %1314 = vmatpush1.bf16.msra.mxu0 %v1157
  %1315 = vmatprep.subr.bf16.mxu0 0
  %1316 = vmatpush1.bf16.msra.mxu0 %v1158
  %1317 = vmatprep.subr.bf16.mxu0 0
  %1318 = vmatpush1.bf16.msra.mxu0 %v1159
  %1319 = vmatprep.subr.bf16.mxu0 0
  %1320 = vmatpush1.bf16.msra.mxu0 %v1160
  %1321 = vmatprep.subr.bf16.mxu0 0
  %1322 = vmatpush1.bf16.msra.mxu0 %v1161
  %1323 = vmatprep.mubr.bf16.mxu0 %v908
  %1324 = vmatmul.mubr.bf16.gmra.mrb[0].mxu0 %v907
  %v1325 = vpop.f32.mrb[0].mxu0
  %v1326 = vadd.f32 %v1229, %v1325
  %v1327 = vpop.f32.mrb[0].mxu0
  %v1328 = vpop.f32.mrb[0].mxu0
  %v1329 = vadd.f32 %v1232, %v1328
  %v1330 = vpop.f32.mrb[0].mxu0
  %1331 = vmatprep.mubr.bf16.mxu0 %v912
  %1332 = vmatmul.mubr.bf16.gmra.mrb[0].mxu0 %v911
  %v1333 = vpop.f32.mrb[0].mxu0
  %v1334 = vadd.f32 %v1237, %v1333
  %v1335 = vpop.f32.mrb[0].mxu0
  %v1336 = vpop.f32.mrb[0].mxu0
  %v1337 = vadd.f32 %v1240, %v1336
  %v1338 = vpop.f32.mrb[0].mxu0
  %1339 = vmatprep.mubr.bf16.mxu0 %v916
  %1340 = vmatmul.mubr.bf16.gmra.mrb[0].mxu0 %v915
  %v1341 = vpop.f32.mrb[0].mxu0
  %v1342 = vadd.f32 %v1245, %v1341
  %v1343 = vpop.f32.mrb[0].mxu0
  %v1344 = vpop.f32.mrb[0].mxu0
  %v1345 = vadd.f32 %v1248, %v1344
  %v1346 = vpop.f32.mrb[0].mxu0
  %1347 = vmatprep.mubr.bf16.mxu0 %v920
  %1348 = vmatmul.mubr.bf16.gmra.mrb[0].mxu0 %v919
  %v1349 = vpop.f32.mrb[0].mxu0
  %v1350 = vadd.f32 %v1253, %v1349
  %v1351 = vpop.f32.mrb[0].mxu0
  %v1352 = vpop.f32.mrb[0].mxu0
  %v1353 = vadd.f32 %v1256, %v1352
  %v1354 = vpop.f32.mrb[0].mxu0
  %1355 = vmatprep.mubr.bf16.mxu0 %v924
  %1356 = vmatmul.mubr.bf16.gmra.mrb[0].mxu0 %v923
  %v1357 = vpop.f32.mrb[0].mxu0
  %v1358 = vadd.f32 %v1261, %v1357
  %v1359 = vpop.f32.mrb[0].mxu0
  %v1360 = vpop.f32.mrb[0].mxu0
  %v1361 = vadd.f32 %v1264, %v1360
  %v1362 = vpop.f32.mrb[0].mxu0
  %1363 = vmatprep.mubr.bf16.mxu0 %v928
  %1364 = vmatmul.mubr.bf16.gmra.mrb[0].mxu0 %v927
  %v1365 = vpop.f32.mrb[0].mxu0
  %v1366 = vadd.f32 %v1269, %v1365
  %v1367 = vpop.f32.mrb[0].mxu0
  %v1368 = vpop.f32.mrb[0].mxu0
  %v1369 = vadd.f32 %v1272, %v1368
  %v1370 = vpop.f32.mrb[0].mxu0
  %1371 = vmatprep.mubr.bf16.mxu0 %v932
  %1372 = vmatmul.mubr.bf16.gmra.mrb[0].mxu0 %v931
  %v1373 = vpop.f32.mrb[0].mxu0
  %v1374 = vadd.f32 %v1277, %v1373
  %v1375 = vpop.f32.mrb[0].mxu0
  %v1376 = vpop.f32.mrb[0].mxu0
  %v1377 = vadd.f32 %v1280, %v1376
  %v1378 = vpop.f32.mrb[0].mxu0
  %1379 = vmatprep.mubr.bf16.mxu0 %v936
  %1380 = vmatmul.mubr.bf16.gmra.mrb[0].mxu0 %v935
  %v1381 = vpop.f32.mrb[0].mxu0
  %v1382 = vadd.f32 %v1285, %v1381
  %v1383 = vpop.f32.mrb[0].mxu0
  %v1384 = vpop.f32.mrb[0].mxu0
  %v1385 = vadd.f32 %v1288, %v1384
  %v1386 = vpop.f32.mrb[0].mxu0
  %1387 = vdwg.mxu0
  %v1452 = vunpack.c.l.b16 %v470
  %v1453 = vunpack.c.l.b16 %v471
  %v1454 = vunpack.c.l.b16 %v472
  %v1455 = vunpack.c.l.b16 %v473
  %v1456 = vunpack.c.l.b16 %v474
  %v1457 = vunpack.c.l.b16 %v475
  %v1458 = vunpack.c.l.b16 %v476
  %v1459 = vunpack.c.l.b16 %v477
  %v1460 = vunpack.c.l.b16 %v478
  %v1461 = vunpack.c.l.b16 %v479
  %v1462 = vunpack.c.l.b16 %v480
  %v1463 = vunpack.c.l.b16 %v481
  %v1464 = vunpack.c.l.b16 %v482
  %v1465 = vunpack.c.l.b16 %v483
  %v1466 = vunpack.c.l.b16 %v484
  %v1467 = vunpack.c.l.b16 %v485
  %v1468 = vunpack.c.l.b16 %v486
  %v1469 = vunpack.c.l.b16 %v487
  %v1470 = vunpack.c.l.b16 %v488
  %v1471 = vunpack.c.l.b16 %v489
  %v1472 = vunpack.c.l.b16 %v490
  %v1473 = vunpack.c.l.b16 %v491
  %v1474 = vunpack.c.l.b16 %v492
  %v1475 = vunpack.c.l.b16 %v493
  %v1476 = vunpack.c.l.b16 %v494
  %v1477 = vunpack.c.l.b16 %v495
  %v1478 = vunpack.c.l.b16 %v496
  %v1479 = vunpack.c.l.b16 %v497
  %v1480 = vunpack.c.l.b16 %v498
  %v1481 = vunpack.c.l.b16 %v499
  %v1482 = vunpack.c.l.b16 %v500
  %v1483 = vunpack.c.l.b16 %v501
  %v1484 = vunpack.c.l.b16 %v502
  %v1485 = vunpack.c.l.b16 %v503
  %v1486 = vunpack.c.l.b16 %v504
  %v1487 = vunpack.c.l.b16 %v505
  %v1488 = vunpack.c.l.b16 %v506
  %v1489 = vunpack.c.l.b16 %v507
  %v1490 = vunpack.c.l.b16 %v508
  %v1491 = vunpack.c.l.b16 %v509
  %v1492 = vunpack.c.l.b16 %v510
  %v1493 = vunpack.c.l.b16 %v511
  %v1494 = vunpack.c.l.b16 %v512
  %v1495 = vunpack.c.l.b16 %v513
  %v1496 = vunpack.c.l.b16 %v514
  %v1497 = vunpack.c.l.b16 %v515
  %v1498 = vunpack.c.l.b16 %v516
  %v1499 = vunpack.c.l.b16 %v517
  %v1500 = vunpack.c.l.b16 %v518
  %v1501 = vunpack.c.l.b16 %v519
  %v1502 = vunpack.c.l.b16 %v520
  %v1503 = vunpack.c.l.b16 %v521
  %v1504 = vunpack.c.l.b16 %v522
  %v1505 = vunpack.c.l.b16 %v523
  %v1506 = vunpack.c.l.b16 %v524
  %v1507 = vunpack.c.l.b16 %v525
  %v1508 = vunpack.c.l.b16 %v526
  %v1509 = vunpack.c.l.b16 %v527
  %v1510 = vunpack.c.l.b16 %v528
  %v1511 = vunpack.c.l.b16 %v529
  %v1512 = vunpack.c.l.b16 %v530
  %v1513 = vunpack.c.l.b16 %v531
  %v1514 = vunpack.c.l.b16 %v532
  %v1515 = vunpack.c.l.b16 %v533
  %v1516 = vpack.c.b16 %v1453, %v1452
  %v1517 = vpack.c.b16 %v1455, %v1454
  %v1518 = vpack.c.b16 %v1457, %v1456
  %v1519 = vpack.c.b16 %v1459, %v1458
  %v1520 = vpack.c.b16 %v1461, %v1460
  %v1521 = vpack.c.b16 %v1463, %v1462
  %v1522 = vpack.c.b16 %v1465, %v1464
  %v1523 = vpack.c.b16 %v1467, %v1466
  %v1524 = vpack.c.b16 %v1469, %v1468
  %v1525 = vpack.c.b16 %v1471, %v1470
  %v1526 = vpack.c.b16 %v1473, %v1472
  %v1527 = vpack.c.b16 %v1475, %v1474
  %v1528 = vpack.c.b16 %v1477, %v1476
  %v1529 = vpack.c.b16 %v1479, %v1478
  %v1530 = vpack.c.b16 %v1481, %v1480
  %v1531 = vpack.c.b16 %v1483, %v1482
  %v1532 = vpack.c.b16 %v1485, %v1484
  %v1533 = vpack.c.b16 %v1487, %v1486
  %v1534 = vpack.c.b16 %v1489, %v1488
  %v1535 = vpack.c.b16 %v1491, %v1490
  %v1536 = vpack.c.b16 %v1493, %v1492
  %v1537 = vpack.c.b16 %v1495, %v1494
  %v1538 = vpack.c.b16 %v1497, %v1496
  %v1539 = vpack.c.b16 %v1499, %v1498
  %v1540 = vpack.c.b16 %v1501, %v1500
  %v1541 = vpack.c.b16 %v1503, %v1502
  %v1542 = vpack.c.b16 %v1505, %v1504
  %v1543 = vpack.c.b16 %v1507, %v1506
  %v1544 = vpack.c.b16 %v1509, %v1508
  %v1545 = vpack.c.b16 %v1511, %v1510
  %v1546 = vpack.c.b16 %v1513, %v1512
  %v1547 = vpack.c.b16 %v1515, %v1514
  %1580 = vmatprep.subr.bf16.mxu0 0
  %1581 = vmatpush1.bf16.msra.mxu0 %v1516
  %1582 = vmatprep.subr.bf16.mxu0 0
  %1583 = vmatpush1.bf16.msra.mxu0 %v1517
  %1584 = vmatprep.subr.bf16.mxu0 0
  %1585 = vmatpush1.bf16.msra.mxu0 %v1518
  %1586 = vmatprep.subr.bf16.mxu0 0
  %1587 = vmatpush1.bf16.msra.mxu0 %v1519
  %1588 = vmatprep.subr.bf16.mxu0 0
  %1589 = vmatpush1.bf16.msra.mxu0 %v1520
  %1590 = vmatprep.subr.bf16.mxu0 0
  %1591 = vmatpush1.bf16.msra.mxu0 %v1521
  %1592 = vmatprep.subr.bf16.mxu0 0
  %1593 = vmatpush1.bf16.msra.mxu0 %v1522
  %1594 = vmatprep.subr.bf16.mxu0 0
  %1595 = vmatpush1.bf16.msra.mxu0 %v1523
  %1596 = vmatprep.subr.bf16.mxu0 0
  %1597 = vmatpush1.bf16.msra.mxu0 %v1524
  %1598 = vmatprep.subr.bf16.mxu0 0
  %1599 = vmatpush1.bf16.msra.mxu0 %v1525
  %1600 = vmatprep.subr.bf16.mxu0 0
  %1601 = vmatpush1.bf16.msra.mxu0 %v1526
  %1602 = vmatprep.subr.bf16.mxu0 0
  %1603 = vmatpush1.bf16.msra.mxu0 %v1527
  %1604 = vmatprep.subr.bf16.mxu0 0
  %1605 = vmatpush1.bf16.msra.mxu0 %v1528
  %1606 = vmatprep.subr.bf16.mxu0 0
  %1607 = vmatpush1.bf16.msra.mxu0 %v1529
  %1608 = vmatprep.subr.bf16.mxu0 0
  %1609 = vmatpush1.bf16.msra.mxu0 %v1530
  %1610 = vmatprep.subr.bf16.mxu0 0
  %1611 = vmatpush1.bf16.msra.mxu0 %v1531
  %1612 = vmatprep.mubr.bf16.mxu0 %v439
  %1613 = vmatmul.mubr.bf16.gmra.mrb[0].mxu0 %v438
  %v1614 = vpop.f32.mrb[0].mxu0
  %v1615 = vadd.f32 %v1326, %v1614
  %v1616 = vpop.f32.mrb[0].mxu0
  %v1617 = vpop.f32.mrb[0].mxu0
  %v1618 = vadd.f32 %v1329, %v1617
  %v1619 = vpop.f32.mrb[0].mxu0
  %1620 = vmatprep.mubr.bf16.mxu0 %v443
  %1621 = vmatmul.mubr.bf16.gmra.mrb[0].mxu0 %v442
  %v1622 = vpop.f32.mrb[0].mxu0
  %v1623 = vadd.f32 %v1334, %v1622
  %v1624 = vpop.f32.mrb[0].mxu0
  %v1625 = vpop.f32.mrb[0].mxu0
  %v1626 = vadd.f32 %v1337, %v1625
  %v1627 = vpop.f32.mrb[0].mxu0
  %1628 = vmatprep.mubr.bf16.mxu0 %v447
  %1629 = vmatmul.mubr.bf16.gmra.mrb[0].mxu0 %v446
  %v1630 = vpop.f32.mrb[0].mxu0
  %v1631 = vadd.f32 %v1342, %v1630
  %v1632 = vpop.f32.mrb[0].mxu0
  %v1633 = vpop.f32.mrb[0].mxu0
  %v1634 = vadd.f32 %v1345, %v1633
  %v1635 = vpop.f32.mrb[0].mxu0
  %1636 = vmatprep.mubr.bf16.mxu0 %v451
  %1637 = vmatmul.mubr.bf16.gmra.mrb[0].mxu0 %v450
  %v1638 = vpop.f32.mrb[0].mxu0
  %v1639 = vadd.f32 %v1350, %v1638
  %v1640 = vpop.f32.mrb[0].mxu0
  %v1641 = vpop.f32.mrb[0].mxu0
  %v1642 = vadd.f32 %v1353, %v1641
  %v1643 = vpop.f32.mrb[0].mxu0
  %1644 = vmatprep.mubr.bf16.mxu0 %v455
  %1645 = vmatmul.mubr.bf16.gmra.mrb[0].mxu0 %v454
  %v1646 = vpop.f32.mrb[0].mxu0
  %v1647 = vadd.f32 %v1358, %v1646
  %v1648 = vpop.f32.mrb[0].mxu0
  %v1649 = vpop.f32.mrb[0].mxu0
  %v1650 = vadd.f32 %v1361, %v1649
  %v1651 = vpop.f32.mrb[0].mxu0
  %1652 = vmatprep.mubr.bf16.mxu0 %v459
  %1653 = vmatmul.mubr.bf16.gmra.mrb[0].mxu0 %v458
  %v1654 = vpop.f32.mrb[0].mxu0
  %v1655 = vadd.f32 %v1366, %v1654
  %v1656 = vpop.f32.mrb[0].mxu0
  %v1657 = vpop.f32.mrb[0].mxu0
  %v1658 = vadd.f32 %v1369, %v1657
  %v1659 = vpop.f32.mrb[0].mxu0
  %1660 = vmatprep.mubr.bf16.mxu0 %v463
  %1661 = vmatmul.mubr.bf16.gmra.mrb[0].mxu0 %v462
  %v1662 = vpop.f32.mrb[0].mxu0
  %v1663 = vadd.f32 %v1374, %v1662
  %v1664 = vpop.f32.mrb[0].mxu0
  %v1665 = vpop.f32.mrb[0].mxu0
  %v1666 = vadd.f32 %v1377, %v1665
  %v1667 = vpop.f32.mrb[0].mxu0
  %1668 = vmatprep.mubr.bf16.mxu0 %v467
  %1669 = vmatmul.mubr.bf16.gmra.mrb[0].mxu0 %v466
  %v1670 = vpop.f32.mrb[0].mxu0
  %v1671 = vadd.f32 %v1382, %v1670
  %v1672 = vpop.f32.mrb[0].mxu0
  %v1673 = vpop.f32.mrb[0].mxu0
  %v1674 = vadd.f32 %v1385, %v1673
  %v1675 = vpop.f32.mrb[0].mxu0
  %1676 = vdwg.mxu0
  %1677 = vmatprep.subr.bf16.mxu0 0
  %1678 = vmatpush1.bf16.msra.mxu0 %v1532
  %1679 = vmatprep.subr.bf16.mxu0 0
  %1680 = vmatpush1.bf16.msra.mxu0 %v1533
  %1681 = vmatprep.subr.bf16.mxu0 0
  %1682 = vmatpush1.bf16.msra.mxu0 %v1534
  %1683 = vmatprep.subr.bf16.mxu0 0
  %1684 = vmatpush1.bf16.msra.mxu0 %v1535
  %1685 = vmatprep.subr.bf16.mxu0 0
  %1686 = vmatpush1.bf16.msra.mxu0 %v1536
  %1687 = vmatprep.subr.bf16.mxu0 0
  %1688 = vmatpush1.bf16.msra.mxu0 %v1537
  %1689 = vmatprep.subr.bf16.mxu0 0
  %1690 = vmatpush1.bf16.msra.mxu0 %v1538
  %1691 = vmatprep.subr.bf16.mxu0 0
  %1692 = vmatpush1.bf16.msra.mxu0 %v1539
  %1693 = vmatprep.subr.bf16.mxu0 0
  %1694 = vmatpush1.bf16.msra.mxu0 %v1540
  %1695 = vmatprep.subr.bf16.mxu0 0
  %1696 = vmatpush1.bf16.msra.mxu0 %v1541
  %1697 = vmatprep.subr.bf16.mxu0 0
  %1698 = vmatpush1.bf16.msra.mxu0 %v1542
  %1699 = vmatprep.subr.bf16.mxu0 0
  %1700 = vmatpush1.bf16.msra.mxu0 %v1543
  %1701 = vmatprep.subr.bf16.mxu0 0
  %1702 = vmatpush1.bf16.msra.mxu0 %v1544
  %1703 = vmatprep.subr.bf16.mxu0 0
  %1704 = vmatpush1.bf16.msra.mxu0 %v1545
  %1705 = vmatprep.subr.bf16.mxu0 0
  %1706 = vmatpush1.bf16.msra.mxu0 %v1546
  %1707 = vmatprep.subr.bf16.mxu0 0
  %1708 = vmatpush1.bf16.msra.mxu0 %v1547
  %1709 = vmatprep.mubr.bf16.mxu0 %v441
  %1710 = vmatmul.mubr.bf16.gmra.mrb[0].mxu0 %v440
  %v1711 = vpop.f32.mrb[0].mxu0
  %v1712 = vadd.f32 %v1615, %v1711
  %v1713 = vpop.f32.mrb[0].mxu0
  %v1714 = vpop.f32.mrb[0].mxu0
  %v1715 = vadd.f32 %v1618, %v1714
  %v1716 = vpop.f32.mrb[0].mxu0
  %1717 = vmatprep.mubr.bf16.mxu0 %v445
  %1718 = vmatmul.mubr.bf16.gmra.mrb[0].mxu0 %v444
  %v1719 = vpop.f32.mrb[0].mxu0
  %v1720 = vadd.f32 %v1623, %v1719
  %v1721 = vpop.f32.mrb[0].mxu0
  %v1722 = vpop.f32.mrb[0].mxu0
  %v1723 = vadd.f32 %v1626, %v1722
  %v1724 = vpop.f32.mrb[0].mxu0
  %1725 = vmatprep.mubr.bf16.mxu0 %v449
  %1726 = vmatmul.mubr.bf16.gmra.mrb[0].mxu0 %v448
  %v1727 = vpop.f32.mrb[0].mxu0
  %v1728 = vadd.f32 %v1631, %v1727
  %v1729 = vpop.f32.mrb[0].mxu0
  %v1730 = vpop.f32.mrb[0].mxu0
  %v1731 = vadd.f32 %v1634, %v1730
  %v1732 = vpop.f32.mrb[0].mxu0
  %1733 = vmatprep.mubr.bf16.mxu0 %v453
  %1734 = vmatmul.mubr.bf16.gmra.mrb[0].mxu0 %v452
  %v1735 = vpop.f32.mrb[0].mxu0
  %v1736 = vadd.f32 %v1639, %v1735
  %v1737 = vpop.f32.mrb[0].mxu0
  %v1738 = vpop.f32.mrb[0].mxu0
  %v1739 = vadd.f32 %v1642, %v1738
  %v1740 = vpop.f32.mrb[0].mxu0
  %1741 = vmatprep.mubr.bf16.mxu0 %v457
  %1742 = vmatmul.mubr.bf16.gmra.mrb[0].mxu0 %v456
  %v1743 = vpop.f32.mrb[0].mxu0
  %v1744 = vadd.f32 %v1647, %v1743
  %v1745 = vpop.f32.mrb[0].mxu0
  %v1746 = vpop.f32.mrb[0].mxu0
  %v1747 = vadd.f32 %v1650, %v1746
  %v1748 = vpop.f32.mrb[0].mxu0
  %1749 = vmatprep.mubr.bf16.mxu0 %v461
  %1750 = vmatmul.mubr.bf16.gmra.mrb[0].mxu0 %v460
  %v1751 = vpop.f32.mrb[0].mxu0
  %v1752 = vadd.f32 %v1655, %v1751
  %v1753 = vpop.f32.mrb[0].mxu0
  %v1754 = vpop.f32.mrb[0].mxu0
  %v1755 = vadd.f32 %v1658, %v1754
  %v1756 = vpop.f32.mrb[0].mxu0
  %1757 = vmatprep.mubr.bf16.mxu0 %v465
  %1758 = vmatmul.mubr.bf16.gmra.mrb[0].mxu0 %v464
  %v1759 = vpop.f32.mrb[0].mxu0
  %v1760 = vadd.f32 %v1663, %v1759
  %v1761 = vpop.f32.mrb[0].mxu0
  %v1762 = vpop.f32.mrb[0].mxu0
  %v1763 = vadd.f32 %v1666, %v1762
  %v1764 = vpop.f32.mrb[0].mxu0
  %1765 = vmatprep.mubr.bf16.mxu0 %v469
  %1766 = vmatmul.mubr.bf16.gmra.mrb[0].mxu0 %v468
  %v1767 = vpop.f32.mrb[0].mxu0
  %v1768 = vadd.f32 %v1671, %v1767
  %v1769 = vpop.f32.mrb[0].mxu0
  %v1770 = vpop.f32.mrb[0].mxu0
  %v1771 = vadd.f32 %v1674, %v1770
  %v1772 = vpop.f32.mrb[0].mxu0
  %1773 = vdwg.mxu0
  %s1774 = scalar_lea.vmem %s0, 128
  %v1775 = vld [vmem:[%s1774] sm:$0xf]
  %v1776 = vld [vmem:[%s1774 + $0x4] sm:$0xf]
  %v1777 = vld [vmem:[%s1774 + $0x8] sm:$0xf]
  %v1778 = vld [vmem:[%s1774 + $0xc] sm:$0xf]
  %v1779 = vld [vmem:[%s1774 + $0x10] sm:$0xf]
  %v1780 = vld [vmem:[%s1774 + $0x14] sm:$0xf]
  %v1781 = vld [vmem:[%s1774 + $0x18] sm:$0xf]
  %v1782 = vld [vmem:[%s1774 + $0x1c] sm:$0xf]
  %v1783 = vld [vmem:[%s1774 + $0x20] sm:$0xf]
  %v1784 = vld [vmem:[%s1774 + $0x24] sm:$0xf]
  %v1785 = vld [vmem:[%s1774 + $0x28] sm:$0xf]
  %v1786 = vld [vmem:[%s1774 + $0x2c] sm:$0xf]
  %v1787 = vld [vmem:[%s1774 + $0x30] sm:$0xf]
  %v1788 = vld [vmem:[%s1774 + $0x34] sm:$0xf]
  %v1789 = vld [vmem:[%s1774 + $0x38] sm:$0xf]
  %v1790 = vld [vmem:[%s1774 + $0x3c] sm:$0xf]
  %v1807 = vunpack.c.l.b16 %v1775
  %v1808 = vunpack.c.l.b16 %v1776
  %v1809 = vunpack.c.l.b16 %v1777
  %v1810 = vunpack.c.l.b16 %v1778
  %v1811 = vunpack.c.l.b16 %v1779
  %v1812 = vunpack.c.l.b16 %v1780
  %v1813 = vunpack.c.l.b16 %v1781
  %v1814 = vunpack.c.l.b16 %v1782
  %v1815 = vunpack.c.l.b16 %v1783
  %v1816 = vunpack.c.l.b16 %v1784
  %v1817 = vunpack.c.l.b16 %v1785
  %v1818 = vunpack.c.l.b16 %v1786
  %v1819 = vunpack.c.l.b16 %v1787
  %v1820 = vunpack.c.l.b16 %v1788
  %v1821 = vunpack.c.l.b16 %v1789
  %v1822 = vunpack.c.l.b16 %v1790
  %v1823 = vpack.c.b16 %v1808, %v1807
  %v1824 = vpack.c.b16 %v1810, %v1809
  %v1825 = vpack.c.b16 %v1812, %v1811
  %v1826 = vpack.c.b16 %v1814, %v1813
  %v1827 = vpack.c.b16 %v1816, %v1815
  %v1828 = vpack.c.b16 %v1818, %v1817
  %v1829 = vpack.c.b16 %v1820, %v1819
  %v1830 = vpack.c.b16 %v1822, %v1821
  %v1832 = vsel %vm123, %v1823, 0
  %v1835 = vsel %vm123, %v1824, 0
  %v1838 = vsel %vm123, %v1825, 0
  %v1841 = vsel %vm123, %v1826, 0
  %v1844 = vsel %vm123, %v1827, 0
  %v1847 = vsel %vm123, %v1828, 0
  %v1850 = vsel %vm123, %v1829, 0
  %v1853 = vsel %vm123, %v1830, 0
  %1855 = vmatprep.subr.bf16.mxu0 %v108
  %1856 = vmatpush1.bf16.msra.mxu0 %v107
  %1857 = vmatprep.subr.bf16.mxu0 %v112
  %1858 = vmatpush1.bf16.msra.mxu0 %v111
  %1859 = vmatprep.subr.bf16.mxu0 0
  %1860 = vmatpush1.bf16.msra.mxu0 0
  %1861 = vmatprep.subr.bf16.mxu0 0
  %1862 = vmatpush1.bf16.msra.mxu0 0
  %1863 = vmatprep.subr.bf16.mxu0 0
  %1864 = vmatpush1.bf16.msra.mxu0 0
  %1865 = vmatprep.subr.bf16.mxu0 0
  %1866 = vmatpush1.bf16.msra.mxu0 0
  %1867 = vmatprep.subr.bf16.mxu0 0
  %1868 = vmatpush1.bf16.msra.mxu0 0
  %1869 = vmatprep.subr.bf16.mxu0 0
  %1870 = vmatpush1.bf16.msra.mxu0 0
  %1871 = vmatprep.subr.bf16.mxu0 0
  %1872 = vmatpush1.bf16.msra.mxu0 0
  %1873 = vmatprep.subr.bf16.mxu0 0
  %1874 = vmatpush1.bf16.msra.mxu0 0
  %1875 = vmatprep.subr.bf16.mxu0 0
  %1876 = vmatpush1.bf16.msra.mxu0 0
  %1877 = vmatprep.subr.bf16.mxu0 0
  %1878 = vmatpush1.bf16.msra.mxu0 0
  %1879 = vmatprep.subr.bf16.mxu0 0
  %1880 = vmatpush1.bf16.msra.mxu0 0
  %1881 = vmatprep.subr.bf16.mxu0 0
  %1882 = vmatpush1.bf16.msra.mxu0 0
  %1883 = vmatprep.subr.bf16.mxu0 0
  %1884 = vmatpush1.bf16.msra.mxu0 0
  %1885 = vmatprep.subr.bf16.mxu0 0
  %1886 = vmatpush1.bf16.msra.mxu0 0
  %1887 = vmatprep.mubr.bf16.mxu0 0
  %1888 = vmatmul.mubr.bf16.gmra.mrb[0].mxu0 %v1832
  %v1889 = vpop.f32.mrb[0].mxu0
  %v1890 = vadd.f32 0.0, %v1889
  %v1891 = vpop.f32.mrb[0].mxu0
  %v1892 = vadd.f32 0.0, %v1891
  %v1893 = vpop.f32.mrb[0].mxu0
  %v1894 = vadd.f32 0.0, %v1893
  %v1895 = vpop.f32.mrb[0].mxu0
  %v1896 = vadd.f32 0.0, %v1895
  %1897 = vmatprep.mubr.bf16.mxu0 0
  %1898 = vmatmul.mubr.bf16.gmra.mrb[0].mxu0 %v1835
  %v1899 = vpop.f32.mrb[0].mxu0
  %v1900 = vadd.f32 0.0, %v1899
  %v1901 = vpop.f32.mrb[0].mxu0
  %v1902 = vadd.f32 0.0, %v1901
  %v1903 = vpop.f32.mrb[0].mxu0
  %v1904 = vadd.f32 0.0, %v1903
  %v1905 = vpop.f32.mrb[0].mxu0
  %v1906 = vadd.f32 0.0, %v1905
  %1907 = vmatprep.mubr.bf16.mxu0 0
  %1908 = vmatmul.mubr.bf16.gmra.mrb[0].mxu0 %v1838
  %v1909 = vpop.f32.mrb[0].mxu0
  %v1910 = vadd.f32 0.0, %v1909
  %v1911 = vpop.f32.mrb[0].mxu0
  %v1912 = vadd.f32 0.0, %v1911
  %v1913 = vpop.f32.mrb[0].mxu0
  %v1914 = vadd.f32 0.0, %v1913
  %v1915 = vpop.f32.mrb[0].mxu0
  %v1916 = vadd.f32 0.0, %v1915
  %1917 = vmatprep.mubr.bf16.mxu0 0
  %1918 = vmatmul.mubr.bf16.gmra.mrb[0].mxu0 %v1841
  %v1919 = vpop.f32.mrb[0].mxu0
  %v1920 = vadd.f32 0.0, %v1919
  %v1921 = vpop.f32.mrb[0].mxu0
  %v1922 = vadd.f32 0.0, %v1921
  %v1923 = vpop.f32.mrb[0].mxu0
  %v1924 = vadd.f32 0.0, %v1923
  %v1925 = vpop.f32.mrb[0].mxu0
  %v1926 = vadd.f32 0.0, %v1925
  %1927 = vmatprep.mubr.bf16.mxu0 0
  %1928 = vmatmul.mubr.bf16.gmra.mrb[0].mxu0 %v1844
  %v1929 = vpop.f32.mrb[0].mxu0
  %v1930 = vadd.f32 0.0, %v1929
  %v1931 = vpop.f32.mrb[0].mxu0
  %v1932 = vadd.f32 0.0, %v1931
  %v1933 = vpop.f32.mrb[0].mxu0
  %v1934 = vadd.f32 0.0, %v1933
  %v1935 = vpop.f32.mrb[0].mxu0
  %v1936 = vadd.f32 0.0, %v1935
  %1937 = vmatprep.mubr.bf16.mxu0 0
  %1938 = vmatmul.mubr.bf16.gmra.mrb[0].mxu0 %v1847
  %v1939 = vpop.f32.mrb[0].mxu0
  %v1940 = vadd.f32 0.0, %v1939
  %v1941 = vpop.f32.mrb[0].mxu0
  %v1942 = vadd.f32 0.0, %v1941
  %v1943 = vpop.f32.mrb[0].mxu0
  %v1944 = vadd.f32 0.0, %v1943
  %v1945 = vpop.f32.mrb[0].mxu0
  %v1946 = vadd.f32 0.0, %v1945
  %1947 = vmatprep.mubr.bf16.mxu0 0
  %1948 = vmatmul.mubr.bf16.gmra.mrb[0].mxu0 %v1850
  %v1949 = vpop.f32.mrb[0].mxu0
  %v1950 = vadd.f32 0.0, %v1949
  %v1951 = vpop.f32.mrb[0].mxu0
  %v1952 = vadd.f32 0.0, %v1951
  %v1953 = vpop.f32.mrb[0].mxu0
  %v1954 = vadd.f32 0.0, %v1953
  %v1955 = vpop.f32.mrb[0].mxu0
  %v1956 = vadd.f32 0.0, %v1955
  %1957 = vmatprep.mubr.bf16.mxu0 0
  %1958 = vmatmul.mubr.bf16.gmra.mrb[0].mxu0 %v1853
  %v1959 = vpop.f32.mrb[0].mxu0
  %v1960 = vadd.f32 0.0, %v1959
  %v1961 = vpop.f32.mrb[0].mxu0
  %v1962 = vadd.f32 0.0, %v1961
  %v1963 = vpop.f32.mrb[0].mxu0
  %v1964 = vadd.f32 0.0, %v1963
  %v1965 = vpop.f32.mrb[0].mxu0
  %v1966 = vadd.f32 0.0, %v1965
  %1967 = vdwg.mxu0
  %1968 = vmatprep.subr.bf16.mxu0 %v110
  %1969 = vmatpush1.bf16.msra.mxu0 %v109
  %1970 = vmatprep.subr.bf16.mxu0 %v114
  %1971 = vmatpush1.bf16.msra.mxu0 %v113
  %1972 = vmatprep.subr.bf16.mxu0 0
  %1973 = vmatpush1.bf16.msra.mxu0 0
  %1974 = vmatprep.subr.bf16.mxu0 0
  %1975 = vmatpush1.bf16.msra.mxu0 0
  %1976 = vmatprep.subr.bf16.mxu0 0
  %1977 = vmatpush1.bf16.msra.mxu0 0
  %1978 = vmatprep.subr.bf16.mxu0 0
  %1979 = vmatpush1.bf16.msra.mxu0 0
  %1980 = vmatprep.subr.bf16.mxu0 0
  %1981 = vmatpush1.bf16.msra.mxu0 0
  %1982 = vmatprep.subr.bf16.mxu0 0
  %1983 = vmatpush1.bf16.msra.mxu0 0
  %1984 = vmatprep.subr.bf16.mxu0 0
  %1985 = vmatpush1.bf16.msra.mxu0 0
  %1986 = vmatprep.subr.bf16.mxu0 0
  %1987 = vmatpush1.bf16.msra.mxu0 0
  %1988 = vmatprep.subr.bf16.mxu0 0
  %1989 = vmatpush1.bf16.msra.mxu0 0
  %1990 = vmatprep.subr.bf16.mxu0 0
  %1991 = vmatpush1.bf16.msra.mxu0 0
  %1992 = vmatprep.subr.bf16.mxu0 0
  %1993 = vmatpush1.bf16.msra.mxu0 0
  %1994 = vmatprep.subr.bf16.mxu0 0
  %1995 = vmatpush1.bf16.msra.mxu0 0
  %1996 = vmatprep.subr.bf16.mxu0 0
  %1997 = vmatpush1.bf16.msra.mxu0 0
  %1998 = vmatprep.subr.bf16.mxu0 0
  %1999 = vmatpush1.bf16.msra.mxu0 0
  %2000 = vmatprep.mubr.bf16.mxu0 0
  %2001 = vmatmul.mubr.bf16.gmra.mrb[0].mxu0 %v1832
  %v2002 = vpop.f32.mrb[0].mxu0
  %v2003 = vadd.f32 0.0, %v2002
  %v2004 = vpop.f32.mrb[0].mxu0
  %v2005 = vadd.f32 0.0, %v2004
  %v2006 = vpop.f32.mrb[0].mxu0
  %v2007 = vadd.f32 0.0, %v2006
  %v2008 = vpop.f32.mrb[0].mxu0
  %v2009 = vadd.f32 0.0, %v2008
  %2010 = vmatprep.mubr.bf16.mxu0 0
  %2011 = vmatmul.mubr.bf16.gmra.mrb[0].mxu0 %v1835
  %v2012 = vpop.f32.mrb[0].mxu0
  %v2013 = vadd.f32 0.0, %v2012
  %v2014 = vpop.f32.mrb[0].mxu0
  %v2015 = vadd.f32 0.0, %v2014
  %v2016 = vpop.f32.mrb[0].mxu0
  %v2017 = vadd.f32 0.0, %v2016
  %v2018 = vpop.f32.mrb[0].mxu0
  %v2019 = vadd.f32 0.0, %v2018
  %2020 = vmatprep.mubr.bf16.mxu0 0
  %2021 = vmatmul.mubr.bf16.gmra.mrb[0].mxu0 %v1838
  %v2022 = vpop.f32.mrb[0].mxu0
  %v2023 = vadd.f32 0.0, %v2022
  %v2024 = vpop.f32.mrb[0].mxu0
  %v2025 = vadd.f32 0.0, %v2024
  %v2026 = vpop.f32.mrb[0].mxu0
  %v2027 = vadd.f32 0.0, %v2026
  %v2028 = vpop.f32.mrb[0].mxu0
  %v2029 = vadd.f32 0.0, %v2028
  %2030 = vmatprep.mubr.bf16.mxu0 0
  %2031 = vmatmul.mubr.bf16.gmra.mrb[0].mxu0 %v1841
  %v2032 = vpop.f32.mrb[0].mxu0
  %v2033 = vadd.f32 0.0, %v2032
  %v2034 = vpop.f32.mrb[0].mxu0
  %v2035 = vadd.f32 0.0, %v2034
  %v2036 = vpop.f32.mrb[0].mxu0
  %v2037 = vadd.f32 0.0, %v2036
  %v2038 = vpop.f32.mrb[0].mxu0
  %v2039 = vadd.f32 0.0, %v2038
  %2040 = vmatprep.mubr.bf16.mxu0 0
  %2041 = vmatmul.mubr.bf16.gmra.mrb[0].mxu0 %v1844
  %v2042 = vpop.f32.mrb[0].mxu0
  %v2043 = vadd.f32 0.0, %v2042
  %v2044 = vpop.f32.mrb[0].mxu0
  %v2045 = vadd.f32 0.0, %v2044
  %v2046 = vpop.f32.mrb[0].mxu0
  %v2047 = vadd.f32 0.0, %v2046
  %v2048 = vpop.f32.mrb[0].mxu0
  %v2049 = vadd.f32 0.0, %v2048
  %2050 = vmatprep.mubr.bf16.mxu0 0
  %2051 = vmatmul.mubr.bf16.gmra.mrb[0].mxu0 %v1847
  %v2052 = vpop.f32.mrb[0].mxu0
  %v2053 = vadd.f32 0.0, %v2052
  %v2054 = vpop.f32.mrb[0].mxu0
  %v2055 = vadd.f32 0.0, %v2054
  %v2056 = vpop.f32.mrb[0].mxu0
  %v2057 = vadd.f32 0.0, %v2056
  %v2058 = vpop.f32.mrb[0].mxu0
  %v2059 = vadd.f32 0.0, %v2058
  %2060 = vmatprep.mubr.bf16.mxu0 0
  %2061 = vmatmul.mubr.bf16.gmra.mrb[0].mxu0 %v1850
  %v2062 = vpop.f32.mrb[0].mxu0
  %v2063 = vadd.f32 0.0, %v2062
  %v2064 = vpop.f32.mrb[0].mxu0
  %v2065 = vadd.f32 0.0, %v2064
  %v2066 = vpop.f32.mrb[0].mxu0
  %v2067 = vadd.f32 0.0, %v2066
  %v2068 = vpop.f32.mrb[0].mxu0
  %v2069 = vadd.f32 0.0, %v2068
  %2070 = vmatprep.mubr.bf16.mxu0 0
  %2071 = vmatmul.mubr.bf16.gmra.mrb[0].mxu0 %v1853
  %v2072 = vpop.f32.mrb[0].mxu0
  %v2073 = vadd.f32 0.0, %v2072
  %v2074 = vpop.f32.mrb[0].mxu0
  %v2075 = vadd.f32 0.0, %v2074
  %v2076 = vpop.f32.mrb[0].mxu0
  %v2077 = vadd.f32 0.0, %v2076
  %v2078 = vpop.f32.mrb[0].mxu0
  %v2079 = vadd.f32 0.0, %v2078
  %2080 = vdwg.mxu0
  %v2081 = vmax.f32 %v1890, 0.0
  %v2082 = vmax.f32 %v1892, 0.0
  %v2083 = vmax.f32 %v2003, 0.0
  %v2084 = vmax.f32 %v2005, 0.0
  %v2085 = vmax.f32 %v1894, 0.0
  %v2086 = vmax.f32 %v1896, 0.0
  %v2087 = vmax.f32 %v2007, 0.0
  %v2088 = vmax.f32 %v2009, 0.0
  %v2089 = vmax.f32 %v1900, 0.0
  %v2090 = vmax.f32 %v1902, 0.0
  %v2091 = vmax.f32 %v2013, 0.0
  %v2092 = vmax.f32 %v2015, 0.0
  %v2093 = vmax.f32 %v1904, 0.0
  %v2094 = vmax.f32 %v1906, 0.0
  %v2095 = vmax.f32 %v2017, 0.0
  %v2096 = vmax.f32 %v2019, 0.0
  %v2097 = vmax.f32 %v1910, 0.0
  %v2098 = vmax.f32 %v1912, 0.0
  %v2099 = vmax.f32 %v2023, 0.0
  %v2100 = vmax.f32 %v2025, 0.0
  %v2101 = vmax.f32 %v1914, 0.0
  %v2102 = vmax.f32 %v1916, 0.0
  %v2103 = vmax.f32 %v2027, 0.0
  %v2104 = vmax.f32 %v2029, 0.0
  %v2105 = vmax.f32 %v1920, 0.0
  %v2106 = vmax.f32 %v1922, 0.0
  %v2107 = vmax.f32 %v2033, 0.0
  %v2108 = vmax.f32 %v2035, 0.0
  %v2109 = vmax.f32 %v1924, 0.0
  %v2110 = vmax.f32 %v1926, 0.0
  %v2111 = vmax.f32 %v2037, 0.0
  %v2112 = vmax.f32 %v2039, 0.0
  %v2113 = vmax.f32 %v1930, 0.0
  %v2114 = vmax.f32 %v1932, 0.0
  %v2115 = vmax.f32 %v2043, 0.0
  %v2116 = vmax.f32 %v2045, 0.0
  %v2117 = vmax.f32 %v1934, 0.0
  %v2118 = vmax.f32 %v1936, 0.0
  %v2119 = vmax.f32 %v2047, 0.0
  %v2120 = vmax.f32 %v2049, 0.0
  %v2121 = vmax.f32 %v1940, 0.0
  %v2122 = vmax.f32 %v1942, 0.0
  %v2123 = vmax.f32 %v2053, 0.0
  %v2124 = vmax.f32 %v2055, 0.0
  %v2125 = vmax.f32 %v1944, 0.0
  %v2126 = vmax.f32 %v1946, 0.0
  %v2127 = vmax.f32 %v2057, 0.0
  %v2128 = vmax.f32 %v2059, 0.0
  %v2129 = vmax.f32 %v1950, 0.0
  %v2130 = vmax.f32 %v1952, 0.0
  %v2131 = vmax.f32 %v2063, 0.0
  %v2132 = vmax.f32 %v2065, 0.0
  %v2133 = vmax.f32 %v1954, 0.0
  %v2134 = vmax.f32 %v1956, 0.0
  %v2135 = vmax.f32 %v2067, 0.0
  %v2136 = vmax.f32 %v2069, 0.0
  %v2137 = vmax.f32 %v1960, 0.0
  %v2138 = vmax.f32 %v1962, 0.0
  %v2139 = vmax.f32 %v2073, 0.0
  %v2140 = vmax.f32 %v2075, 0.0
  %v2141 = vmax.f32 %v1964, 0.0
  %v2142 = vmax.f32 %v1966, 0.0
  %v2143 = vmax.f32 %v2077, 0.0
  %v2144 = vmax.f32 %v2079, 0.0
  %v2145 = vpack.c.bf16 %v2085, %v2081
  %v2146 = vpack.c.bf16 %v2086, %v2082
  %v2147 = vpack.c.bf16 %v2087, %v2083
  %v2148 = vpack.c.bf16 %v2088, %v2084
  %v2149 = vpack.c.bf16 %v2093, %v2089
  %v2150 = vpack.c.bf16 %v2094, %v2090
  %v2151 = vpack.c.bf16 %v2095, %v2091
  %v2152 = vpack.c.bf16 %v2096, %v2092
  %v2153 = vpack.c.bf16 %v2101, %v2097
  %v2154 = vpack.c.bf16 %v2102, %v2098
  %v2155 = vpack.c.bf16 %v2103, %v2099
  %v2156 = vpack.c.bf16 %v2104, %v2100
  %v2157 = vpack.c.bf16 %v2109, %v2105
  %v2158 = vpack.c.bf16 %v2110, %v2106
  %v2159 = vpack.c.bf16 %v2111, %v2107
  %v2160 = vpack.c.bf16 %v2112, %v2108
  %v2161 = vpack.c.bf16 %v2117, %v2113
  %v2162 = vpack.c.bf16 %v2118, %v2114
  %v2163 = vpack.c.bf16 %v2119, %v2115
  %v2164 = vpack.c.bf16 %v2120, %v2116
  %v2165 = vpack.c.bf16 %v2125, %v2121
  %v2166 = vpack.c.bf16 %v2126, %v2122
  %v2167 = vpack.c.bf16 %v2127, %v2123
  %v2168 = vpack.c.bf16 %v2128, %v2124
  %v2169 = vpack.c.bf16 %v2133, %v2129
  %v2170 = vpack.c.bf16 %v2134, %v2130
  %v2171 = vpack.c.bf16 %v2135, %v2131
  %v2172 = vpack.c.bf16 %v2136, %v2132
  %v2173 = vpack.c.bf16 %v2141, %v2137
  %v2174 = vpack.c.bf16 %v2142, %v2138
  %v2175 = vpack.c.bf16 %v2143, %v2139
  %v2176 = vpack.c.bf16 %v2144, %v2140
  %s2177 = scalar_lea.vmem %s2, 512
  %v2178 = vld [vmem:[%s2177] sm:$0xf]
  %v2179 = vld [vmem:[%s2177 + $0x4] sm:$0xf]
  %v2180 = vld [vmem:[%s2177 + $0x8] sm:$0xf]
  %v2181 = vld [vmem:[%s2177 + $0xc] sm:$0xf]
  %v2182 = vld [vmem:[%s2177 + $0x10] sm:$0xf]
  %v2183 = vld [vmem:[%s2177 + $0x14] sm:$0xf]
  %v2184 = vld [vmem:[%s2177 + $0x18] sm:$0xf]
  %v2185 = vld [vmem:[%s2177 + $0x1c] sm:$0xf]
  %v2186 = vld [vmem:[%s2177 + $0x20] sm:$0xf]
  %v2187 = vld [vmem:[%s2177 + $0x24] sm:$0xf]
  %v2188 = vld [vmem:[%s2177 + $0x28] sm:$0xf]
  %v2189 = vld [vmem:[%s2177 + $0x2c] sm:$0xf]
  %v2190 = vld [vmem:[%s2177 + $0x30] sm:$0xf]
  %v2191 = vld [vmem:[%s2177 + $0x34] sm:$0xf]
  %v2192 = vld [vmem:[%s2177 + $0x38] sm:$0xf]
  %v2193 = vld [vmem:[%s2177 + $0x3c] sm:$0xf]
  %v2194 = vld [vmem:[%s2177 + $0x40] sm:$0xf]
  %v2195 = vld [vmem:[%s2177 + $0x44] sm:$0xf]
  %v2196 = vld [vmem:[%s2177 + $0x48] sm:$0xf]
  %v2197 = vld [vmem:[%s2177 + $0x4c] sm:$0xf]
  %v2198 = vld [vmem:[%s2177 + $0x50] sm:$0xf]
  %v2199 = vld [vmem:[%s2177 + $0x54] sm:$0xf]
  %v2200 = vld [vmem:[%s2177 + $0x58] sm:$0xf]
  %v2201 = vld [vmem:[%s2177 + $0x5c] sm:$0xf]
  %v2202 = vld [vmem:[%s2177 + $0x60] sm:$0xf]
  %v2203 = vld [vmem:[%s2177 + $0x64] sm:$0xf]
  %v2204 = vld [vmem:[%s2177 + $0x68] sm:$0xf]
  %v2205 = vld [vmem:[%s2177 + $0x6c] sm:$0xf]
  %v2206 = vld [vmem:[%s2177 + $0x70] sm:$0xf]
  %v2207 = vld [vmem:[%s2177 + $0x74] sm:$0xf]
  %v2208 = vld [vmem:[%s2177 + $0x78] sm:$0xf]
  %v2209 = vld [vmem:[%s2177 + $0x7c] sm:$0xf]
  %v2210 = vld [vmem:[%s2177 + $0x80] sm:$0xf]
  %v2211 = vld [vmem:[%s2177 + $0x84] sm:$0xf]
  %v2212 = vld [vmem:[%s2177 + $0x88] sm:$0xf]
  %v2213 = vld [vmem:[%s2177 + $0x8c] sm:$0xf]
  %v2214 = vld [vmem:[%s2177 + $0x90] sm:$0xf]
  %v2215 = vld [vmem:[%s2177 + $0x94] sm:$0xf]
  %v2216 = vld [vmem:[%s2177 + $0x98] sm:$0xf]
  %v2217 = vld [vmem:[%s2177 + $0x9c] sm:$0xf]
  %v2218 = vld [vmem:[%s2177 + $0xa0] sm:$0xf]
  %v2219 = vld [vmem:[%s2177 + $0xa4] sm:$0xf]
  %v2220 = vld [vmem:[%s2177 + $0xa8] sm:$0xf]
  %v2221 = vld [vmem:[%s2177 + $0xac] sm:$0xf]
  %v2222 = vld [vmem:[%s2177 + $0xb0] sm:$0xf]
  %v2223 = vld [vmem:[%s2177 + $0xb4] sm:$0xf]
  %v2224 = vld [vmem:[%s2177 + $0xb8] sm:$0xf]
  %v2225 = vld [vmem:[%s2177 + $0xbc] sm:$0xf]
  %v2226 = vld [vmem:[%s2177 + $0xc0] sm:$0xf]
  %v2227 = vld [vmem:[%s2177 + $0xc4] sm:$0xf]
  %v2228 = vld [vmem:[%s2177 + $0xc8] sm:$0xf]
  %v2229 = vld [vmem:[%s2177 + $0xcc] sm:$0xf]
  %v2230 = vld [vmem:[%s2177 + $0xd0] sm:$0xf]
  %v2231 = vld [vmem:[%s2177 + $0xd4] sm:$0xf]
  %v2232 = vld [vmem:[%s2177 + $0xd8] sm:$0xf]
  %v2233 = vld [vmem:[%s2177 + $0xdc] sm:$0xf]
  %v2234 = vld [vmem:[%s2177 + $0xe0] sm:$0xf]
  %v2235 = vld [vmem:[%s2177 + $0xe4] sm:$0xf]
  %v2236 = vld [vmem:[%s2177 + $0xe8] sm:$0xf]
  %v2237 = vld [vmem:[%s2177 + $0xec] sm:$0xf]
  %v2238 = vld [vmem:[%s2177 + $0xf0] sm:$0xf]
  %v2239 = vld [vmem:[%s2177 + $0xf4] sm:$0xf]
  %v2240 = vld [vmem:[%s2177 + $0xf8] sm:$0xf]
  %v2241 = vld [vmem:[%s2177 + $0xfc] sm:$0xf]
  %v2306 = vunpack.c.l.b16 %v2178
  %v2307 = vunpack.c.l.b16 %v2179
  %v2308 = vunpack.c.l.b16 %v2180
  %v2309 = vunpack.c.l.b16 %v2181
  %v2310 = vunpack.c.l.b16 %v2182
  %v2311 = vunpack.c.l.b16 %v2183
  %v2312 = vunpack.c.l.b16 %v2184
  %v2313 = vunpack.c.l.b16 %v2185
  %v2314 = vunpack.c.l.b16 %v2186
  %v2315 = vunpack.c.l.b16 %v2187
  %v2316 = vunpack.c.l.b16 %v2188
  %v2317 = vunpack.c.l.b16 %v2189
  %v2318 = vunpack.c.l.b16 %v2190
  %v2319 = vunpack.c.l.b16 %v2191
  %v2320 = vunpack.c.l.b16 %v2192
  %v2321 = vunpack.c.l.b16 %v2193
  %v2322 = vunpack.c.l.b16 %v2194
  %v2323 = vunpack.c.l.b16 %v2195
  %v2324 = vunpack.c.l.b16 %v2196
  %v2325 = vunpack.c.l.b16 %v2197
  %v2326 = vunpack.c.l.b16 %v2198
  %v2327 = vunpack.c.l.b16 %v2199
  %v2328 = vunpack.c.l.b16 %v2200
  %v2329 = vunpack.c.l.b16 %v2201
  %v2330 = vunpack.c.l.b16 %v2202
  %v2331 = vunpack.c.l.b16 %v2203
  %v2332 = vunpack.c.l.b16 %v2204
  %v2333 = vunpack.c.l.b16 %v2205
  %v2334 = vunpack.c.l.b16 %v2206
  %v2335 = vunpack.c.l.b16 %v2207
  %v2336 = vunpack.c.l.b16 %v2208
  %v2337 = vunpack.c.l.b16 %v2209
  %v2338 = vunpack.c.l.b16 %v2210
  %v2339 = vunpack.c.l.b16 %v2211
  %v2340 = vunpack.c.l.b16 %v2212
  %v2341 = vunpack.c.l.b16 %v2213
  %v2342 = vunpack.c.l.b16 %v2214
  %v2343 = vunpack.c.l.b16 %v2215
  %v2344 = vunpack.c.l.b16 %v2216
  %v2345 = vunpack.c.l.b16 %v2217
  %v2346 = vunpack.c.l.b16 %v2218
  %v2347 = vunpack.c.l.b16 %v2219
  %v2348 = vunpack.c.l.b16 %v2220
  %v2349 = vunpack.c.l.b16 %v2221
  %v2350 = vunpack.c.l.b16 %v2222
  %v2351 = vunpack.c.l.b16 %v2223
  %v2352 = vunpack.c.l.b16 %v2224
  %v2353 = vunpack.c.l.b16 %v2225
  %v2354 = vunpack.c.l.b16 %v2226
  %v2355 = vunpack.c.l.b16 %v2227
  %v2356 = vunpack.c.l.b16 %v2228
  %v2357 = vunpack.c.l.b16 %v2229
  %v2358 = vunpack.c.l.b16 %v2230
  %v2359 = vunpack.c.l.b16 %v2231
  %v2360 = vunpack.c.l.b16 %v2232
  %v2361 = vunpack.c.l.b16 %v2233
  %v2362 = vunpack.c.l.b16 %v2234
  %v2363 = vunpack.c.l.b16 %v2235
  %v2364 = vunpack.c.l.b16 %v2236
  %v2365 = vunpack.c.l.b16 %v2237
  %v2366 = vunpack.c.l.b16 %v2238
  %v2367 = vunpack.c.l.b16 %v2239
  %v2368 = vunpack.c.l.b16 %v2240
  %v2369 = vunpack.c.l.b16 %v2241
  %v2370 = vpack.c.b16 %v2307, %v2306
  %v2371 = vpack.c.b16 %v2309, %v2308
  %v2372 = vpack.c.b16 %v2311, %v2310
  %v2373 = vpack.c.b16 %v2313, %v2312
  %v2374 = vpack.c.b16 %v2315, %v2314
  %v2375 = vpack.c.b16 %v2317, %v2316
  %v2376 = vpack.c.b16 %v2319, %v2318
  %v2377 = vpack.c.b16 %v2321, %v2320
  %v2378 = vpack.c.b16 %v2323, %v2322
  %v2379 = vpack.c.b16 %v2325, %v2324
  %v2380 = vpack.c.b16 %v2327, %v2326
  %v2381 = vpack.c.b16 %v2329, %v2328
  %v2382 = vpack.c.b16 %v2331, %v2330
  %v2383 = vpack.c.b16 %v2333, %v2332
  %v2384 = vpack.c.b16 %v2335, %v2334
  %v2385 = vpack.c.b16 %v2337, %v2336
  %v2386 = vpack.c.b16 %v2339, %v2338
  %v2387 = vpack.c.b16 %v2341, %v2340
  %v2388 = vpack.c.b16 %v2343, %v2342
  %v2389 = vpack.c.b16 %v2345, %v2344
  %v2390 = vpack.c.b16 %v2347, %v2346
  %v2391 = vpack.c.b16 %v2349, %v2348
  %v2392 = vpack.c.b16 %v2351, %v2350
  %v2393 = vpack.c.b16 %v2353, %v2352
  %v2394 = vpack.c.b16 %v2355, %v2354
  %v2395 = vpack.c.b16 %v2357, %v2356
  %v2396 = vpack.c.b16 %v2359, %v2358
  %v2397 = vpack.c.b16 %v2361, %v2360
  %v2398 = vpack.c.b16 %v2363, %v2362
  %v2399 = vpack.c.b16 %v2365, %v2364
  %v2400 = vpack.c.b16 %v2367, %v2366
  %v2401 = vpack.c.b16 %v2369, %v2368
  %2434 = vmatprep.subr.bf16.mxu0 0
  %2435 = vmatpush1.bf16.msra.mxu0 %v2370
  %2436 = vmatprep.subr.bf16.mxu0 0
  %2437 = vmatpush1.bf16.msra.mxu0 %v2371
  %2438 = vmatprep.subr.bf16.mxu0 0
  %2439 = vmatpush1.bf16.msra.mxu0 %v2372
  %2440 = vmatprep.subr.bf16.mxu0 0
  %2441 = vmatpush1.bf16.msra.mxu0 %v2373
  %2442 = vmatprep.subr.bf16.mxu0 0
  %2443 = vmatpush1.bf16.msra.mxu0 %v2374
  %2444 = vmatprep.subr.bf16.mxu0 0
  %2445 = vmatpush1.bf16.msra.mxu0 %v2375
  %2446 = vmatprep.subr.bf16.mxu0 0
  %2447 = vmatpush1.bf16.msra.mxu0 %v2376
  %2448 = vmatprep.subr.bf16.mxu0 0
  %2449 = vmatpush1.bf16.msra.mxu0 %v2377
  %2450 = vmatprep.subr.bf16.mxu0 0
  %2451 = vmatpush1.bf16.msra.mxu0 %v2378
  %2452 = vmatprep.subr.bf16.mxu0 0
  %2453 = vmatpush1.bf16.msra.mxu0 %v2379
  %2454 = vmatprep.subr.bf16.mxu0 0
  %2455 = vmatpush1.bf16.msra.mxu0 %v2380
  %2456 = vmatprep.subr.bf16.mxu0 0
  %2457 = vmatpush1.bf16.msra.mxu0 %v2381
  %2458 = vmatprep.subr.bf16.mxu0 0
  %2459 = vmatpush1.bf16.msra.mxu0 %v2382
  %2460 = vmatprep.subr.bf16.mxu0 0
  %2461 = vmatpush1.bf16.msra.mxu0 %v2383
  %2462 = vmatprep.subr.bf16.mxu0 0
  %2463 = vmatpush1.bf16.msra.mxu0 %v2384
  %2464 = vmatprep.subr.bf16.mxu0 0
  %2465 = vmatpush1.bf16.msra.mxu0 %v2385
  %2466 = vmatprep.mubr.bf16.mxu0 %v2146
  %2467 = vmatmul.mubr.bf16.gmra.mrb[0].mxu0 %v2145
  %v2468 = vpop.f32.mrb[0].mxu0
  %v2469 = vadd.f32 0.0, %v2468
  %v2470 = vpop.f32.mrb[0].mxu0
  %v2471 = vpop.f32.mrb[0].mxu0
  %v2472 = vadd.f32 0.0, %v2471
  %v2473 = vpop.f32.mrb[0].mxu0
  %2474 = vmatprep.mubr.bf16.mxu0 %v2150
  %2475 = vmatmul.mubr.bf16.gmra.mrb[0].mxu0 %v2149
  %v2476 = vpop.f32.mrb[0].mxu0
  %v2477 = vadd.f32 0.0, %v2476
  %v2478 = vpop.f32.mrb[0].mxu0
  %v2479 = vpop.f32.mrb[0].mxu0
  %v2480 = vadd.f32 0.0, %v2479
  %v2481 = vpop.f32.mrb[0].mxu0
  %2482 = vmatprep.mubr.bf16.mxu0 %v2154
  %2483 = vmatmul.mubr.bf16.gmra.mrb[0].mxu0 %v2153
  %v2484 = vpop.f32.mrb[0].mxu0
  %v2485 = vadd.f32 0.0, %v2484
  %v2486 = vpop.f32.mrb[0].mxu0
  %v2487 = vpop.f32.mrb[0].mxu0
  %v2488 = vadd.f32 0.0, %v2487
  %v2489 = vpop.f32.mrb[0].mxu0
  %2490 = vmatprep.mubr.bf16.mxu0 %v2158
  %2491 = vmatmul.mubr.bf16.gmra.mrb[0].mxu0 %v2157
  %v2492 = vpop.f32.mrb[0].mxu0
  %v2493 = vadd.f32 0.0, %v2492
  %v2494 = vpop.f32.mrb[0].mxu0
  %v2495 = vpop.f32.mrb[0].mxu0
  %v2496 = vadd.f32 0.0, %v2495
  %v2497 = vpop.f32.mrb[0].mxu0
  %2498 = vmatprep.mubr.bf16.mxu0 %v2162
  %2499 = vmatmul.mubr.bf16.gmra.mrb[0].mxu0 %v2161
  %v2500 = vpop.f32.mrb[0].mxu0
  %v2501 = vadd.f32 0.0, %v2500
  %v2502 = vpop.f32.mrb[0].mxu0
  %v2503 = vpop.f32.mrb[0].mxu0
  %v2504 = vadd.f32 0.0, %v2503
  %v2505 = vpop.f32.mrb[0].mxu0
  %2506 = vmatprep.mubr.bf16.mxu0 %v2166
  %2507 = vmatmul.mubr.bf16.gmra.mrb[0].mxu0 %v2165
  %v2508 = vpop.f32.mrb[0].mxu0
  %v2509 = vadd.f32 0.0, %v2508
  %v2510 = vpop.f32.mrb[0].mxu0
  %v2511 = vpop.f32.mrb[0].mxu0
  %v2512 = vadd.f32 0.0, %v2511
  %v2513 = vpop.f32.mrb[0].mxu0
  %2514 = vmatprep.mubr.bf16.mxu0 %v2170
  %2515 = vmatmul.mubr.bf16.gmra.mrb[0].mxu0 %v2169
  %v2516 = vpop.f32.mrb[0].mxu0
  %v2517 = vadd.f32 0.0, %v2516
  %v2518 = vpop.f32.mrb[0].mxu0
  %v2519 = vpop.f32.mrb[0].mxu0
  %v2520 = vadd.f32 0.0, %v2519
  %v2521 = vpop.f32.mrb[0].mxu0
  %2522 = vmatprep.mubr.bf16.mxu0 %v2174
  %2523 = vmatmul.mubr.bf16.gmra.mrb[0].mxu0 %v2173
  %v2524 = vpop.f32.mrb[0].mxu0
  %v2525 = vadd.f32 0.0, %v2524
  %v2526 = vpop.f32.mrb[0].mxu0
  %v2527 = vpop.f32.mrb[0].mxu0
  %v2528 = vadd.f32 0.0, %v2527
  %v2529 = vpop.f32.mrb[0].mxu0
  %2530 = vdwg.mxu0
  %2531 = vmatprep.subr.bf16.mxu0 0
  %2532 = vmatpush1.bf16.msra.mxu0 %v2386
  %2533 = vmatprep.subr.bf16.mxu0 0
  %2534 = vmatpush1.bf16.msra.mxu0 %v2387
  %2535 = vmatprep.subr.bf16.mxu0 0
  %2536 = vmatpush1.bf16.msra.mxu0 %v2388
  %2537 = vmatprep.subr.bf16.mxu0 0
  %2538 = vmatpush1.bf16.msra.mxu0 %v2389
  %2539 = vmatprep.subr.bf16.mxu0 0
  %2540 = vmatpush1.bf16.msra.mxu0 %v2390
  %2541 = vmatprep.subr.bf16.mxu0 0
  %2542 = vmatpush1.bf16.msra.mxu0 %v2391
  %2543 = vmatprep.subr.bf16.mxu0 0
  %2544 = vmatpush1.bf16.msra.mxu0 %v2392
  %2545 = vmatprep.subr.bf16.mxu0 0
  %2546 = vmatpush1.bf16.msra.mxu0 %v2393
  %2547 = vmatprep.subr.bf16.mxu0 0
  %2548 = vmatpush1.bf16.msra.mxu0 %v2394
  %2549 = vmatprep.subr.bf16.mxu0 0
  %2550 = vmatpush1.bf16.msra.mxu0 %v2395
  %2551 = vmatprep.subr.bf16.mxu0 0
  %2552 = vmatpush1.bf16.msra.mxu0 %v2396
  %2553 = vmatprep.subr.bf16.mxu0 0
  %2554 = vmatpush1.bf16.msra.mxu0 %v2397
  %2555 = vmatprep.subr.bf16.mxu0 0
  %2556 = vmatpush1.bf16.msra.mxu0 %v2398
  %2557 = vmatprep.subr.bf16.mxu0 0
  %2558 = vmatpush1.bf16.msra.mxu0 %v2399
  %2559 = vmatprep.subr.bf16.mxu0 0
  %2560 = vmatpush1.bf16.msra.mxu0 %v2400
  %2561 = vmatprep.subr.bf16.mxu0 0
  %2562 = vmatpush1.bf16.msra.mxu0 %v2401
  %2563 = vmatprep.mubr.bf16.mxu0 %v2148
  %2564 = vmatmul.mubr.bf16.gmra.mrb[0].mxu0 %v2147
  %v2565 = vpop.f32.mrb[0].mxu0
  %v2566 = vadd.f32 %v2469, %v2565
  %v2567 = vpop.f32.mrb[0].mxu0
  %v2568 = vpop.f32.mrb[0].mxu0
  %v2569 = vadd.f32 %v2472, %v2568
  %v2570 = vpop.f32.mrb[0].mxu0
  %2571 = vmatprep.mubr.bf16.mxu0 %v2152
  %2572 = vmatmul.mubr.bf16.gmra.mrb[0].mxu0 %v2151
  %v2573 = vpop.f32.mrb[0].mxu0
  %v2574 = vadd.f32 %v2477, %v2573
  %v2575 = vpop.f32.mrb[0].mxu0
  %v2576 = vpop.f32.mrb[0].mxu0
  %v2577 = vadd.f32 %v2480, %v2576
  %v2578 = vpop.f32.mrb[0].mxu0
  %2579 = vmatprep.mubr.bf16.mxu0 %v2156
  %2580 = vmatmul.mubr.bf16.gmra.mrb[0].mxu0 %v2155
  %v2581 = vpop.f32.mrb[0].mxu0
  %v2582 = vadd.f32 %v2485, %v2581
  %v2583 = vpop.f32.mrb[0].mxu0
  %v2584 = vpop.f32.mrb[0].mxu0
  %v2585 = vadd.f32 %v2488, %v2584
  %v2586 = vpop.f32.mrb[0].mxu0
  %2587 = vmatprep.mubr.bf16.mxu0 %v2160
  %2588 = vmatmul.mubr.bf16.gmra.mrb[0].mxu0 %v2159
  %v2589 = vpop.f32.mrb[0].mxu0
  %v2590 = vadd.f32 %v2493, %v2589
  %v2591 = vpop.f32.mrb[0].mxu0
  %v2592 = vpop.f32.mrb[0].mxu0
  %v2593 = vadd.f32 %v2496, %v2592
  %v2594 = vpop.f32.mrb[0].mxu0
  %2595 = vmatprep.mubr.bf16.mxu0 %v2164
  %2596 = vmatmul.mubr.bf16.gmra.mrb[0].mxu0 %v2163
  %v2597 = vpop.f32.mrb[0].mxu0
  %v2598 = vadd.f32 %v2501, %v2597
  %v2599 = vpop.f32.mrb[0].mxu0
  %v2600 = vpop.f32.mrb[0].mxu0
  %v2601 = vadd.f32 %v2504, %v2600
  %v2602 = vpop.f32.mrb[0].mxu0
  %2603 = vmatprep.mubr.bf16.mxu0 %v2168
  %2604 = vmatmul.mubr.bf16.gmra.mrb[0].mxu0 %v2167
  %v2605 = vpop.f32.mrb[0].mxu0
  %v2606 = vadd.f32 %v2509, %v2605
  %v2607 = vpop.f32.mrb[0].mxu0
  %v2608 = vpop.f32.mrb[0].mxu0
  %v2609 = vadd.f32 %v2512, %v2608
  %v2610 = vpop.f32.mrb[0].mxu0
  %2611 = vmatprep.mubr.bf16.mxu0 %v2172
  %2612 = vmatmul.mubr.bf16.gmra.mrb[0].mxu0 %v2171
  %v2613 = vpop.f32.mrb[0].mxu0
  %v2614 = vadd.f32 %v2517, %v2613
  %v2615 = vpop.f32.mrb[0].mxu0
  %v2616 = vpop.f32.mrb[0].mxu0
  %v2617 = vadd.f32 %v2520, %v2616
  %v2618 = vpop.f32.mrb[0].mxu0
  %2619 = vmatprep.mubr.bf16.mxu0 %v2176
  %2620 = vmatmul.mubr.bf16.gmra.mrb[0].mxu0 %v2175
  %v2621 = vpop.f32.mrb[0].mxu0
  %v2622 = vadd.f32 %v2525, %v2621
  %v2623 = vpop.f32.mrb[0].mxu0
  %v2624 = vpop.f32.mrb[0].mxu0
  %v2625 = vadd.f32 %v2528, %v2624
  %v2626 = vpop.f32.mrb[0].mxu0
  %2627 = vdwg.mxu0
  %v2628 = vadd.f32 %v1712, %v2566
  %v2629 = vadd.f32 %v1715, %v2569
  %v2630 = vadd.f32 %v1720, %v2574
  %v2631 = vadd.f32 %v1723, %v2577
  %v2632 = vadd.f32 %v1728, %v2582
  %v2633 = vadd.f32 %v1731, %v2585
  %v2634 = vadd.f32 %v1736, %v2590
  %v2635 = vadd.f32 %v1739, %v2593
  %v2636 = vadd.f32 %v1744, %v2598
  %v2637 = vadd.f32 %v1747, %v2601
  %v2638 = vadd.f32 %v1752, %v2606
  %v2639 = vadd.f32 %v1755, %v2609
  %v2640 = vadd.f32 %v1760, %v2614
  %v2641 = vadd.f32 %v1763, %v2617
  %v2642 = vadd.f32 %v1768, %v2622
  %v2643 = vadd.f32 %v1771, %v2625
  %s2644 = scalar_lea.vmem %s0, 192
  %v2645 = vld [vmem:[%s2644] sm:$0xf]
  %v2646 = vld [vmem:[%s2644 + $0x4] sm:$0xf]
  %v2647 = vld [vmem:[%s2644 + $0x8] sm:$0xf]
  %v2648 = vld [vmem:[%s2644 + $0xc] sm:$0xf]
  %v2649 = vld [vmem:[%s2644 + $0x10] sm:$0xf]
  %v2650 = vld [vmem:[%s2644 + $0x14] sm:$0xf]
  %v2651 = vld [vmem:[%s2644 + $0x18] sm:$0xf]
  %v2652 = vld [vmem:[%s2644 + $0x1c] sm:$0xf]
  %v2653 = vld [vmem:[%s2644 + $0x20] sm:$0xf]
  %v2654 = vld [vmem:[%s2644 + $0x24] sm:$0xf]
  %v2655 = vld [vmem:[%s2644 + $0x28] sm:$0xf]
  %v2656 = vld [vmem:[%s2644 + $0x2c] sm:$0xf]
  %v2657 = vld [vmem:[%s2644 + $0x30] sm:$0xf]
  %v2658 = vld [vmem:[%s2644 + $0x34] sm:$0xf]
  %v2659 = vld [vmem:[%s2644 + $0x38] sm:$0xf]
  %v2660 = vld [vmem:[%s2644 + $0x3c] sm:$0xf]
  %v2677 = vunpack.c.l.b16 %v2645
  %v2678 = vunpack.c.l.b16 %v2646
  %v2679 = vunpack.c.l.b16 %v2647
  %v2680 = vunpack.c.l.b16 %v2648
  %v2681 = vunpack.c.l.b16 %v2649
  %v2682 = vunpack.c.l.b16 %v2650
  %v2683 = vunpack.c.l.b16 %v2651
  %v2684 = vunpack.c.l.b16 %v2652
  %v2685 = vunpack.c.l.b16 %v2653
  %v2686 = vunpack.c.l.b16 %v2654
  %v2687 = vunpack.c.l.b16 %v2655
  %v2688 = vunpack.c.l.b16 %v2656
  %v2689 = vunpack.c.l.b16 %v2657
  %v2690 = vunpack.c.l.b16 %v2658
  %v2691 = vunpack.c.l.b16 %v2659
  %v2692 = vunpack.c.l.b16 %v2660
  %v2693 = vpack.c.b16 %v2678, %v2677
  %v2694 = vpack.c.b16 %v2680, %v2679
  %v2695 = vpack.c.b16 %v2682, %v2681
  %v2696 = vpack.c.b16 %v2684, %v2683
  %v2697 = vpack.c.b16 %v2686, %v2685
  %v2698 = vpack.c.b16 %v2688, %v2687
  %v2699 = vpack.c.b16 %v2690, %v2689
  %v2700 = vpack.c.b16 %v2692, %v2691
  %v2702 = vsel %vm123, %v2693, 0
  %v2705 = vsel %vm123, %v2694, 0
  %v2708 = vsel %vm123, %v2695, 0
  %v2711 = vsel %vm123, %v2696, 0
  %v2714 = vsel %vm123, %v2697, 0
  %v2717 = vsel %vm123, %v2698, 0
  %v2720 = vsel %vm123, %v2699, 0
  %v2723 = vsel %vm123, %v2700, 0
  %2725 = vmatprep.subr.bf16.mxu0 %v108
  %2726 = vmatpush1.bf16.msra.mxu0 %v107
  %2727 = vmatprep.subr.bf16.mxu0 %v112
  %2728 = vmatpush1.bf16.msra.mxu0 %v111
  %2729 = vmatprep.subr.bf16.mxu0 0
  %2730 = vmatpush1.bf16.msra.mxu0 0
  %2731 = vmatprep.subr.bf16.mxu0 0
  %2732 = vmatpush1.bf16.msra.mxu0 0
  %2733 = vmatprep.subr.bf16.mxu0 0
  %2734 = vmatpush1.bf16.msra.mxu0 0
  %2735 = vmatprep.subr.bf16.mxu0 0
  %2736 = vmatpush1.bf16.msra.mxu0 0
  %2737 = vmatprep.subr.bf16.mxu0 0
  %2738 = vmatpush1.bf16.msra.mxu0 0
  %2739 = vmatprep.subr.bf16.mxu0 0
  %2740 = vmatpush1.bf16.msra.mxu0 0
  %2741 = vmatprep.subr.bf16.mxu0 0
  %2742 = vmatpush1.bf16.msra.mxu0 0
  %2743 = vmatprep.subr.bf16.mxu0 0
  %2744 = vmatpush1.bf16.msra.mxu0 0
  %2745 = vmatprep.subr.bf16.mxu0 0
  %2746 = vmatpush1.bf16.msra.mxu0 0
  %2747 = vmatprep.subr.bf16.mxu0 0
  %2748 = vmatpush1.bf16.msra.mxu0 0
  %2749 = vmatprep.subr.bf16.mxu0 0
  %2750 = vmatpush1.bf16.msra.mxu0 0
  %2751 = vmatprep.subr.bf16.mxu0 0
  %2752 = vmatpush1.bf16.msra.mxu0 0
  %2753 = vmatprep.subr.bf16.mxu0 0
  %2754 = vmatpush1.bf16.msra.mxu0 0
  %2755 = vmatprep.subr.bf16.mxu0 0
  %2756 = vmatpush1.bf16.msra.mxu0 0
  %2757 = vmatprep.mubr.bf16.mxu0 0
  %2758 = vmatmul.mubr.bf16.gmra.mrb[0].mxu0 %v2702
  %v2759 = vpop.f32.mrb[0].mxu0
  %v2760 = vadd.f32 0.0, %v2759
  %v2761 = vpop.f32.mrb[0].mxu0
  %v2762 = vadd.f32 0.0, %v2761
  %v2763 = vpop.f32.mrb[0].mxu0
  %v2764 = vadd.f32 0.0, %v2763
  %v2765 = vpop.f32.mrb[0].mxu0
  %v2766 = vadd.f32 0.0, %v2765
  %2767 = vmatprep.mubr.bf16.mxu0 0
  %2768 = vmatmul.mubr.bf16.gmra.mrb[0].mxu0 %v2705
  %v2769 = vpop.f32.mrb[0].mxu0
  %v2770 = vadd.f32 0.0, %v2769
  %v2771 = vpop.f32.mrb[0].mxu0
  %v2772 = vadd.f32 0.0, %v2771
  %v2773 = vpop.f32.mrb[0].mxu0
  %v2774 = vadd.f32 0.0, %v2773
  %v2775 = vpop.f32.mrb[0].mxu0
  %v2776 = vadd.f32 0.0, %v2775
  %2777 = vmatprep.mubr.bf16.mxu0 0
  %2778 = vmatmul.mubr.bf16.gmra.mrb[0].mxu0 %v2708
  %v2779 = vpop.f32.mrb[0].mxu0
  %v2780 = vadd.f32 0.0, %v2779
  %v2781 = vpop.f32.mrb[0].mxu0
  %v2782 = vadd.f32 0.0, %v2781
  %v2783 = vpop.f32.mrb[0].mxu0
  %v2784 = vadd.f32 0.0, %v2783
  %v2785 = vpop.f32.mrb[0].mxu0
  %v2786 = vadd.f32 0.0, %v2785
  %2787 = vmatprep.mubr.bf16.mxu0 0
  %2788 = vmatmul.mubr.bf16.gmra.mrb[0].mxu0 %v2711
  %v2789 = vpop.f32.mrb[0].mxu0
  %v2790 = vadd.f32 0.0, %v2789
  %v2791 = vpop.f32.mrb[0].mxu0
  %v2792 = vadd.f32 0.0, %v2791
  %v2793 = vpop.f32.mrb[0].mxu0
  %v2794 = vadd.f32 0.0, %v2793
  %v2795 = vpop.f32.mrb[0].mxu0
  %v2796 = vadd.f32 0.0, %v2795
  %2797 = vmatprep.mubr.bf16.mxu0 0
  %2798 = vmatmul.mubr.bf16.gmra.mrb[0].mxu0 %v2714
  %v2799 = vpop.f32.mrb[0].mxu0
  %v2800 = vadd.f32 0.0, %v2799
  %v2801 = vpop.f32.mrb[0].mxu0
  %v2802 = vadd.f32 0.0, %v2801
  %v2803 = vpop.f32.mrb[0].mxu0
  %v2804 = vadd.f32 0.0, %v2803
  %v2805 = vpop.f32.mrb[0].mxu0
  %v2806 = vadd.f32 0.0, %v2805
  %2807 = vmatprep.mubr.bf16.mxu0 0
  %2808 = vmatmul.mubr.bf16.gmra.mrb[0].mxu0 %v2717
  %v2809 = vpop.f32.mrb[0].mxu0
  %v2810 = vadd.f32 0.0, %v2809
  %v2811 = vpop.f32.mrb[0].mxu0
  %v2812 = vadd.f32 0.0, %v2811
  %v2813 = vpop.f32.mrb[0].mxu0
  %v2814 = vadd.f32 0.0, %v2813
  %v2815 = vpop.f32.mrb[0].mxu0
  %v2816 = vadd.f32 0.0, %v2815
  %2817 = vmatprep.mubr.bf16.mxu0 0
  %2818 = vmatmul.mubr.bf16.gmra.mrb[0].mxu0 %v2720
  %v2819 = vpop.f32.mrb[0].mxu0
  %v2820 = vadd.f32 0.0, %v2819
  %v2821 = vpop.f32.mrb[0].mxu0
  %v2822 = vadd.f32 0.0, %v2821
  %v2823 = vpop.f32.mrb[0].mxu0
  %v2824 = vadd.f32 0.0, %v2823
  %v2825 = vpop.f32.mrb[0].mxu0
  %v2826 = vadd.f32 0.0, %v2825
  %2827 = vmatprep.mubr.bf16.mxu0 0
  %2828 = vmatmul.mubr.bf16.gmra.mrb[0].mxu0 %v2723
  %v2829 = vpop.f32.mrb[0].mxu0
  %v2830 = vadd.f32 0.0, %v2829
  %v2831 = vpop.f32.mrb[0].mxu0
  %v2832 = vadd.f32 0.0, %v2831
  %v2833 = vpop.f32.mrb[0].mxu0
  %v2834 = vadd.f32 0.0, %v2833
  %v2835 = vpop.f32.mrb[0].mxu0
  %v2836 = vadd.f32 0.0, %v2835
  %2837 = vdwg.mxu0
  %2838 = vmatprep.subr.bf16.mxu0 %v110
  %2839 = vmatpush1.bf16.msra.mxu0 %v109
  %2840 = vmatprep.subr.bf16.mxu0 %v114
  %2841 = vmatpush1.bf16.msra.mxu0 %v113
  %2842 = vmatprep.subr.bf16.mxu0 0
  %2843 = vmatpush1.bf16.msra.mxu0 0
  %2844 = vmatprep.subr.bf16.mxu0 0
  %2845 = vmatpush1.bf16.msra.mxu0 0
  %2846 = vmatprep.subr.bf16.mxu0 0
  %2847 = vmatpush1.bf16.msra.mxu0 0
  %2848 = vmatprep.subr.bf16.mxu0 0
  %2849 = vmatpush1.bf16.msra.mxu0 0
  %2850 = vmatprep.subr.bf16.mxu0 0
  %2851 = vmatpush1.bf16.msra.mxu0 0
  %2852 = vmatprep.subr.bf16.mxu0 0
  %2853 = vmatpush1.bf16.msra.mxu0 0
  %2854 = vmatprep.subr.bf16.mxu0 0
  %2855 = vmatpush1.bf16.msra.mxu0 0
  %2856 = vmatprep.subr.bf16.mxu0 0
  %2857 = vmatpush1.bf16.msra.mxu0 0
  %2858 = vmatprep.subr.bf16.mxu0 0
  %2859 = vmatpush1.bf16.msra.mxu0 0
  %2860 = vmatprep.subr.bf16.mxu0 0
  %2861 = vmatpush1.bf16.msra.mxu0 0
  %2862 = vmatprep.subr.bf16.mxu0 0
  %2863 = vmatpush1.bf16.msra.mxu0 0
  %2864 = vmatprep.subr.bf16.mxu0 0
  %2865 = vmatpush1.bf16.msra.mxu0 0
  %2866 = vmatprep.subr.bf16.mxu0 0
  %2867 = vmatpush1.bf16.msra.mxu0 0
  %2868 = vmatprep.subr.bf16.mxu0 0
  %2869 = vmatpush1.bf16.msra.mxu0 0
  %2870 = vmatprep.mubr.bf16.mxu0 0
  %2871 = vmatmul.mubr.bf16.gmra.mrb[0].mxu0 %v2702
  %v2872 = vpop.f32.mrb[0].mxu0
  %v2873 = vadd.f32 0.0, %v2872
  %v2874 = vpop.f32.mrb[0].mxu0
  %v2875 = vadd.f32 0.0, %v2874
  %v2876 = vpop.f32.mrb[0].mxu0
  %v2877 = vadd.f32 0.0, %v2876
  %v2878 = vpop.f32.mrb[0].mxu0
  %v2879 = vadd.f32 0.0, %v2878
  %2880 = vmatprep.mubr.bf16.mxu0 0
  %2881 = vmatmul.mubr.bf16.gmra.mrb[0].mxu0 %v2705
  %v2882 = vpop.f32.mrb[0].mxu0
  %v2883 = vadd.f32 0.0, %v2882
  %v2884 = vpop.f32.mrb[0].mxu0
  %v2885 = vadd.f32 0.0, %v2884
  %v2886 = vpop.f32.mrb[0].mxu0
  %v2887 = vadd.f32 0.0, %v2886
  %v2888 = vpop.f32.mrb[0].mxu0
  %v2889 = vadd.f32 0.0, %v2888
  %2890 = vmatprep.mubr.bf16.mxu0 0
  %2891 = vmatmul.mubr.bf16.gmra.mrb[0].mxu0 %v2708
  %v2892 = vpop.f32.mrb[0].mxu0
  %v2893 = vadd.f32 0.0, %v2892
  %v2894 = vpop.f32.mrb[0].mxu0
  %v2895 = vadd.f32 0.0, %v2894
  %v2896 = vpop.f32.mrb[0].mxu0
  %v2897 = vadd.f32 0.0, %v2896
  %v2898 = vpop.f32.mrb[0].mxu0
  %v2899 = vadd.f32 0.0, %v2898
  %2900 = vmatprep.mubr.bf16.mxu0 0
  %2901 = vmatmul.mubr.bf16.gmra.mrb[0].mxu0 %v2711
  %v2902 = vpop.f32.mrb[0].mxu0
  %v2903 = vadd.f32 0.0, %v2902
  %v2904 = vpop.f32.mrb[0].mxu0
  %v2905 = vadd.f32 0.0, %v2904
  %v2906 = vpop.f32.mrb[0].mxu0
  %v2907 = vadd.f32 0.0, %v2906
  %v2908 = vpop.f32.mrb[0].mxu0
  %v2909 = vadd.f32 0.0, %v2908
  %2910 = vmatprep.mubr.bf16.mxu0 0
  %2911 = vmatmul.mubr.bf16.gmra.mrb[0].mxu0 %v2714
  %v2912 = vpop.f32.mrb[0].mxu0
  %v2913 = vadd.f32 0.0, %v2912
  %v2914 = vpop.f32.mrb[0].mxu0
  %v2915 = vadd.f32 0.0, %v2914
  %v2916 = vpop.f32.mrb[0].mxu0
  %v2917 = vadd.f32 0.0, %v2916
  %v2918 = vpop.f32.mrb[0].mxu0
  %v2919 = vadd.f32 0.0, %v2918
  %2920 = vmatprep.mubr.bf16.mxu0 0
  %2921 = vmatmul.mubr.bf16.gmra.mrb[0].mxu0 %v2717
  %v2922 = vpop.f32.mrb[0].mxu0
  %v2923 = vadd.f32 0.0, %v2922
  %v2924 = vpop.f32.mrb[0].mxu0
  %v2925 = vadd.f32 0.0, %v2924
  %v2926 = vpop.f32.mrb[0].mxu0
  %v2927 = vadd.f32 0.0, %v2926
  %v2928 = vpop.f32.mrb[0].mxu0
  %v2929 = vadd.f32 0.0, %v2928
  %2930 = vmatprep.mubr.bf16.mxu0 0
  %2931 = vmatmul.mubr.bf16.gmra.mrb[0].mxu0 %v2720
  %v2932 = vpop.f32.mrb[0].mxu0
  %v2933 = vadd.f32 0.0, %v2932
  %v2934 = vpop.f32.mrb[0].mxu0
  %v2935 = vadd.f32 0.0, %v2934
  %v2936 = vpop.f32.mrb[0].mxu0
  %v2937 = vadd.f32 0.0, %v2936
  %v2938 = vpop.f32.mrb[0].mxu0
  %v2939 = vadd.f32 0.0, %v2938
  %2940 = vmatprep.mubr.bf16.mxu0 0
  %2941 = vmatmul.mubr.bf16.gmra.mrb[0].mxu0 %v2723
  %v2942 = vpop.f32.mrb[0].mxu0
  %v2943 = vadd.f32 0.0, %v2942
  %v2944 = vpop.f32.mrb[0].mxu0
  %v2945 = vadd.f32 0.0, %v2944
  %v2946 = vpop.f32.mrb[0].mxu0
  %v2947 = vadd.f32 0.0, %v2946
  %v2948 = vpop.f32.mrb[0].mxu0
  %v2949 = vadd.f32 0.0, %v2948
  %2950 = vdwg.mxu0
  %v2951 = vmax.f32 %v2760, 0.0
  %v2952 = vmax.f32 %v2762, 0.0
  %v2953 = vmax.f32 %v2873, 0.0
  %v2954 = vmax.f32 %v2875, 0.0
  %v2955 = vmax.f32 %v2764, 0.0
  %v2956 = vmax.f32 %v2766, 0.0
  %v2957 = vmax.f32 %v2877, 0.0
  %v2958 = vmax.f32 %v2879, 0.0
  %v2959 = vmax.f32 %v2770, 0.0
  %v2960 = vmax.f32 %v2772, 0.0
  %v2961 = vmax.f32 %v2883, 0.0
  %v2962 = vmax.f32 %v2885, 0.0
  %v2963 = vmax.f32 %v2774, 0.0
  %v2964 = vmax.f32 %v2776, 0.0
  %v2965 = vmax.f32 %v2887, 0.0
  %v2966 = vmax.f32 %v2889, 0.0
  %v2967 = vmax.f32 %v2780, 0.0
  %v2968 = vmax.f32 %v2782, 0.0
  %v2969 = vmax.f32 %v2893, 0.0
  %v2970 = vmax.f32 %v2895, 0.0
  %v2971 = vmax.f32 %v2784, 0.0
  %v2972 = vmax.f32 %v2786, 0.0
  %v2973 = vmax.f32 %v2897, 0.0
  %v2974 = vmax.f32 %v2899, 0.0
  %v2975 = vmax.f32 %v2790, 0.0
  %v2976 = vmax.f32 %v2792, 0.0
  %v2977 = vmax.f32 %v2903, 0.0
  %v2978 = vmax.f32 %v2905, 0.0
  %v2979 = vmax.f32 %v2794, 0.0
  %v2980 = vmax.f32 %v2796, 0.0
  %v2981 = vmax.f32 %v2907, 0.0
  %v2982 = vmax.f32 %v2909, 0.0
  %v2983 = vmax.f32 %v2800, 0.0
  %v2984 = vmax.f32 %v2802, 0.0
  %v2985 = vmax.f32 %v2913, 0.0
  %v2986 = vmax.f32 %v2915, 0.0
  %v2987 = vmax.f32 %v2804, 0.0
  %v2988 = vmax.f32 %v2806, 0.0
  %v2989 = vmax.f32 %v2917, 0.0
  %v2990 = vmax.f32 %v2919, 0.0
  %v2991 = vmax.f32 %v2810, 0.0
  %v2992 = vmax.f32 %v2812, 0.0
  %v2993 = vmax.f32 %v2923, 0.0
  %v2994 = vmax.f32 %v2925, 0.0
  %v2995 = vmax.f32 %v2814, 0.0
  %v2996 = vmax.f32 %v2816, 0.0
  %v2997 = vmax.f32 %v2927, 0.0
  %v2998 = vmax.f32 %v2929, 0.0
  %v2999 = vmax.f32 %v2820, 0.0
  %v3000 = vmax.f32 %v2822, 0.0
  %v3001 = vmax.f32 %v2933, 0.0
  %v3002 = vmax.f32 %v2935, 0.0
  %v3003 = vmax.f32 %v2824, 0.0
  %v3004 = vmax.f32 %v2826, 0.0
  %v3005 = vmax.f32 %v2937, 0.0
  %v3006 = vmax.f32 %v2939, 0.0
  %v3007 = vmax.f32 %v2830, 0.0
  %v3008 = vmax.f32 %v2832, 0.0
  %v3009 = vmax.f32 %v2943, 0.0
  %v3010 = vmax.f32 %v2945, 0.0
  %v3011 = vmax.f32 %v2834, 0.0
  %v3012 = vmax.f32 %v2836, 0.0
  %v3013 = vmax.f32 %v2947, 0.0
  %v3014 = vmax.f32 %v2949, 0.0
  %v3015 = vpack.c.bf16 %v2955, %v2951
  %v3016 = vpack.c.bf16 %v2956, %v2952
  %v3017 = vpack.c.bf16 %v2957, %v2953
  %v3018 = vpack.c.bf16 %v2958, %v2954
  %v3019 = vpack.c.bf16 %v2963, %v2959
  %v3020 = vpack.c.bf16 %v2964, %v2960
  %v3021 = vpack.c.bf16 %v2965, %v2961
  %v3022 = vpack.c.bf16 %v2966, %v2962
  %v3023 = vpack.c.bf16 %v2971, %v2967
  %v3024 = vpack.c.bf16 %v2972, %v2968
  %v3025 = vpack.c.bf16 %v2973, %v2969
  %v3026 = vpack.c.bf16 %v2974, %v2970
  %v3027 = vpack.c.bf16 %v2979, %v2975
  %v3028 = vpack.c.bf16 %v2980, %v2976
  %v3029 = vpack.c.bf16 %v2981, %v2977
  %v3030 = vpack.c.bf16 %v2982, %v2978
  %v3031 = vpack.c.bf16 %v2987, %v2983
  %v3032 = vpack.c.bf16 %v2988, %v2984
  %v3033 = vpack.c.bf16 %v2989, %v2985
  %v3034 = vpack.c.bf16 %v2990, %v2986
  %v3035 = vpack.c.bf16 %v2995, %v2991
  %v3036 = vpack.c.bf16 %v2996, %v2992
  %v3037 = vpack.c.bf16 %v2997, %v2993
  %v3038 = vpack.c.bf16 %v2998, %v2994
  %v3039 = vpack.c.bf16 %v3003, %v2999
  %v3040 = vpack.c.bf16 %v3004, %v3000
  %v3041 = vpack.c.bf16 %v3005, %v3001
  %v3042 = vpack.c.bf16 %v3006, %v3002
  %v3043 = vpack.c.bf16 %v3011, %v3007
  %v3044 = vpack.c.bf16 %v3012, %v3008
  %v3045 = vpack.c.bf16 %v3013, %v3009
  %v3046 = vpack.c.bf16 %v3014, %v3010
  %s3047 = scalar_lea.vmem %s2, 768
  %v3048 = vld [vmem:[%s3047] sm:$0xf]
  %v3049 = vld [vmem:[%s3047 + $0x4] sm:$0xf]
  %v3050 = vld [vmem:[%s3047 + $0x8] sm:$0xf]
  %v3051 = vld [vmem:[%s3047 + $0xc] sm:$0xf]
  %v3052 = vld [vmem:[%s3047 + $0x10] sm:$0xf]
  %v3053 = vld [vmem:[%s3047 + $0x14] sm:$0xf]
  %v3054 = vld [vmem:[%s3047 + $0x18] sm:$0xf]
  %v3055 = vld [vmem:[%s3047 + $0x1c] sm:$0xf]
  %v3056 = vld [vmem:[%s3047 + $0x20] sm:$0xf]
  %v3057 = vld [vmem:[%s3047 + $0x24] sm:$0xf]
  %v3058 = vld [vmem:[%s3047 + $0x28] sm:$0xf]
  %v3059 = vld [vmem:[%s3047 + $0x2c] sm:$0xf]
  %v3060 = vld [vmem:[%s3047 + $0x30] sm:$0xf]
  %v3061 = vld [vmem:[%s3047 + $0x34] sm:$0xf]
  %v3062 = vld [vmem:[%s3047 + $0x38] sm:$0xf]
  %v3063 = vld [vmem:[%s3047 + $0x3c] sm:$0xf]
  %v3064 = vld [vmem:[%s3047 + $0x40] sm:$0xf]
  %v3065 = vld [vmem:[%s3047 + $0x44] sm:$0xf]
  %v3066 = vld [vmem:[%s3047 + $0x48] sm:$0xf]
  %v3067 = vld [vmem:[%s3047 + $0x4c] sm:$0xf]
  %v3068 = vld [vmem:[%s3047 + $0x50] sm:$0xf]
  %v3069 = vld [vmem:[%s3047 + $0x54] sm:$0xf]
  %v3070 = vld [vmem:[%s3047 + $0x58] sm:$0xf]
  %v3071 = vld [vmem:[%s3047 + $0x5c] sm:$0xf]
  %v3072 = vld [vmem:[%s3047 + $0x60] sm:$0xf]
  %v3073 = vld [vmem:[%s3047 + $0x64] sm:$0xf]
  %v3074 = vld [vmem:[%s3047 + $0x68] sm:$0xf]
  %v3075 = vld [vmem:[%s3047 + $0x6c] sm:$0xf]
  %v3076 = vld [vmem:[%s3047 + $0x70] sm:$0xf]
  %v3077 = vld [vmem:[%s3047 + $0x74] sm:$0xf]
  %v3078 = vld [vmem:[%s3047 + $0x78] sm:$0xf]
  %v3079 = vld [vmem:[%s3047 + $0x7c] sm:$0xf]
  %v3080 = vld [vmem:[%s3047 + $0x80] sm:$0xf]
  %v3081 = vld [vmem:[%s3047 + $0x84] sm:$0xf]
  %v3082 = vld [vmem:[%s3047 + $0x88] sm:$0xf]
  %v3083 = vld [vmem:[%s3047 + $0x8c] sm:$0xf]
  %v3084 = vld [vmem:[%s3047 + $0x90] sm:$0xf]
  %v3085 = vld [vmem:[%s3047 + $0x94] sm:$0xf]
  %v3086 = vld [vmem:[%s3047 + $0x98] sm:$0xf]
  %v3087 = vld [vmem:[%s3047 + $0x9c] sm:$0xf]
  %v3088 = vld [vmem:[%s3047 + $0xa0] sm:$0xf]
  %v3089 = vld [vmem:[%s3047 + $0xa4] sm:$0xf]
  %v3090 = vld [vmem:[%s3047 + $0xa8] sm:$0xf]
  %v3091 = vld [vmem:[%s3047 + $0xac] sm:$0xf]
  %v3092 = vld [vmem:[%s3047 + $0xb0] sm:$0xf]
  %v3093 = vld [vmem:[%s3047 + $0xb4] sm:$0xf]
  %v3094 = vld [vmem:[%s3047 + $0xb8] sm:$0xf]
  %v3095 = vld [vmem:[%s3047 + $0xbc] sm:$0xf]
  %v3096 = vld [vmem:[%s3047 + $0xc0] sm:$0xf]
  %v3097 = vld [vmem:[%s3047 + $0xc4] sm:$0xf]
  %v3098 = vld [vmem:[%s3047 + $0xc8] sm:$0xf]
  %v3099 = vld [vmem:[%s3047 + $0xcc] sm:$0xf]
  %v3100 = vld [vmem:[%s3047 + $0xd0] sm:$0xf]
  %v3101 = vld [vmem:[%s3047 + $0xd4] sm:$0xf]
  %v3102 = vld [vmem:[%s3047 + $0xd8] sm:$0xf]
  %v3103 = vld [vmem:[%s3047 + $0xdc] sm:$0xf]
  %v3104 = vld [vmem:[%s3047 + $0xe0] sm:$0xf]
  %v3105 = vld [vmem:[%s3047 + $0xe4] sm:$0xf]
  %v3106 = vld [vmem:[%s3047 + $0xe8] sm:$0xf]
  %v3107 = vld [vmem:[%s3047 + $0xec] sm:$0xf]
  %v3108 = vld [vmem:[%s3047 + $0xf0] sm:$0xf]
  %v3109 = vld [vmem:[%s3047 + $0xf4] sm:$0xf]
  %v3110 = vld [vmem:[%s3047 + $0xf8] sm:$0xf]
  %v3111 = vld [vmem:[%s3047 + $0xfc] sm:$0xf]
  %v3176 = vunpack.c.l.b16 %v3048
  %v3177 = vunpack.c.l.b16 %v3049
  %v3178 = vunpack.c.l.b16 %v3050
  %v3179 = vunpack.c.l.b16 %v3051
  %v3180 = vunpack.c.l.b16 %v3052
  %v3181 = vunpack.c.l.b16 %v3053
  %v3182 = vunpack.c.l.b16 %v3054
  %v3183 = vunpack.c.l.b16 %v3055
  %v3184 = vunpack.c.l.b16 %v3056
  %v3185 = vunpack.c.l.b16 %v3057
  %v3186 = vunpack.c.l.b16 %v3058
  %v3187 = vunpack.c.l.b16 %v3059
  %v3188 = vunpack.c.l.b16 %v3060
  %v3189 = vunpack.c.l.b16 %v3061
  %v3190 = vunpack.c.l.b16 %v3062
  %v3191 = vunpack.c.l.b16 %v3063
  %v3192 = vunpack.c.l.b16 %v3064
  %v3193 = vunpack.c.l.b16 %v3065
  %v3194 = vunpack.c.l.b16 %v3066
  %v3195 = vunpack.c.l.b16 %v3067
  %v3196 = vunpack.c.l.b16 %v3068
  %v3197 = vunpack.c.l.b16 %v3069
  %v3198 = vunpack.c.l.b16 %v3070
  %v3199 = vunpack.c.l.b16 %v3071
  %v3200 = vunpack.c.l.b16 %v3072
  %v3201 = vunpack.c.l.b16 %v3073
  %v3202 = vunpack.c.l.b16 %v3074
  %v3203 = vunpack.c.l.b16 %v3075
  %v3204 = vunpack.c.l.b16 %v3076
  %v3205 = vunpack.c.l.b16 %v3077
  %v3206 = vunpack.c.l.b16 %v3078
  %v3207 = vunpack.c.l.b16 %v3079
  %v3208 = vunpack.c.l.b16 %v3080
  %v3209 = vunpack.c.l.b16 %v3081
  %v3210 = vunpack.c.l.b16 %v3082
  %v3211 = vunpack.c.l.b16 %v3083
  %v3212 = vunpack.c.l.b16 %v3084
  %v3213 = vunpack.c.l.b16 %v3085
  %v3214 = vunpack.c.l.b16 %v3086
  %v3215 = vunpack.c.l.b16 %v3087
  %v3216 = vunpack.c.l.b16 %v3088
  %v3217 = vunpack.c.l.b16 %v3089
  %v3218 = vunpack.c.l.b16 %v3090
  %v3219 = vunpack.c.l.b16 %v3091
  %v3220 = vunpack.c.l.b16 %v3092
  %v3221 = vunpack.c.l.b16 %v3093
  %v3222 = vunpack.c.l.b16 %v3094
  %v3223 = vunpack.c.l.b16 %v3095
  %v3224 = vunpack.c.l.b16 %v3096
  %v3225 = vunpack.c.l.b16 %v3097
  %v3226 = vunpack.c.l.b16 %v3098
  %v3227 = vunpack.c.l.b16 %v3099
  %v3228 = vunpack.c.l.b16 %v3100
  %v3229 = vunpack.c.l.b16 %v3101
  %v3230 = vunpack.c.l.b16 %v3102
  %v3231 = vunpack.c.l.b16 %v3103
  %v3232 = vunpack.c.l.b16 %v3104
  %v3233 = vunpack.c.l.b16 %v3105
  %v3234 = vunpack.c.l.b16 %v3106
  %v3235 = vunpack.c.l.b16 %v3107
  %v3236 = vunpack.c.l.b16 %v3108
  %v3237 = vunpack.c.l.b16 %v3109
  %v3238 = vunpack.c.l.b16 %v3110
  %v3239 = vunpack.c.l.b16 %v3111
  %v3240 = vpack.c.b16 %v3177, %v3176
  %v3241 = vpack.c.b16 %v3179, %v3178
  %v3242 = vpack.c.b16 %v3181, %v3180
  %v3243 = vpack.c.b16 %v3183, %v3182
  %v3244 = vpack.c.b16 %v3185, %v3184
  %v3245 = vpack.c.b16 %v3187, %v3186
  %v3246 = vpack.c.b16 %v3189, %v3188
  %v3247 = vpack.c.b16 %v3191, %v3190
  %v3248 = vpack.c.b16 %v3193, %v3192
  %v3249 = vpack.c.b16 %v3195, %v3194
  %v3250 = vpack.c.b16 %v3197, %v3196
  %v3251 = vpack.c.b16 %v3199, %v3198
  %v3252 = vpack.c.b16 %v3201, %v3200
  %v3253 = vpack.c.b16 %v3203, %v3202
  %v3254 = vpack.c.b16 %v3205, %v3204
  %v3255 = vpack.c.b16 %v3207, %v3206
  %v3256 = vpack.c.b16 %v3209, %v3208
  %v3257 = vpack.c.b16 %v3211, %v3210
  %v3258 = vpack.c.b16 %v3213, %v3212
  %v3259 = vpack.c.b16 %v3215, %v3214
  %v3260 = vpack.c.b16 %v3217, %v3216
  %v3261 = vpack.c.b16 %v3219, %v3218
  %v3262 = vpack.c.b16 %v3221, %v3220
  %v3263 = vpack.c.b16 %v3223, %v3222
  %v3264 = vpack.c.b16 %v3225, %v3224
  %v3265 = vpack.c.b16 %v3227, %v3226
  %v3266 = vpack.c.b16 %v3229, %v3228
  %v3267 = vpack.c.b16 %v3231, %v3230
  %v3268 = vpack.c.b16 %v3233, %v3232
  %v3269 = vpack.c.b16 %v3235, %v3234
  %v3270 = vpack.c.b16 %v3237, %v3236
  %v3271 = vpack.c.b16 %v3239, %v3238
  %3304 = vmatprep.subr.bf16.mxu0 0
  %3305 = vmatpush1.bf16.msra.mxu0 %v3240
  %3306 = vmatprep.subr.bf16.mxu0 0
  %3307 = vmatpush1.bf16.msra.mxu0 %v3241
  %3308 = vmatprep.subr.bf16.mxu0 0
  %3309 = vmatpush1.bf16.msra.mxu0 %v3242
  %3310 = vmatprep.subr.bf16.mxu0 0
  %3311 = vmatpush1.bf16.msra.mxu0 %v3243
  %3312 = vmatprep.subr.bf16.mxu0 0
  %3313 = vmatpush1.bf16.msra.mxu0 %v3244
  %3314 = vmatprep.subr.bf16.mxu0 0
  %3315 = vmatpush1.bf16.msra.mxu0 %v3245
  %3316 = vmatprep.subr.bf16.mxu0 0
  %3317 = vmatpush1.bf16.msra.mxu0 %v3246
  %3318 = vmatprep.subr.bf16.mxu0 0
  %3319 = vmatpush1.bf16.msra.mxu0 %v3247
  %3320 = vmatprep.subr.bf16.mxu0 0
  %3321 = vmatpush1.bf16.msra.mxu0 %v3248
  %3322 = vmatprep.subr.bf16.mxu0 0
  %3323 = vmatpush1.bf16.msra.mxu0 %v3249
  %3324 = vmatprep.subr.bf16.mxu0 0
  %3325 = vmatpush1.bf16.msra.mxu0 %v3250
  %3326 = vmatprep.subr.bf16.mxu0 0
  %3327 = vmatpush1.bf16.msra.mxu0 %v3251
  %3328 = vmatprep.subr.bf16.mxu0 0
  %3329 = vmatpush1.bf16.msra.mxu0 %v3252
  %3330 = vmatprep.subr.bf16.mxu0 0
  %3331 = vmatpush1.bf16.msra.mxu0 %v3253
  %3332 = vmatprep.subr.bf16.mxu0 0
  %3333 = vmatpush1.bf16.msra.mxu0 %v3254
  %3334 = vmatprep.subr.bf16.mxu0 0
  %3335 = vmatpush1.bf16.msra.mxu0 %v3255
  %3336 = vmatprep.mubr.bf16.mxu0 %v3016
  %3337 = vmatmul.mubr.bf16.gmra.mrb[0].mxu0 %v3015
  %v3338 = vpop.f32.mrb[0].mxu0
  %v3339 = vadd.f32 0.0, %v3338
  %v3340 = vpop.f32.mrb[0].mxu0
  %v3341 = vpop.f32.mrb[0].mxu0
  %v3342 = vadd.f32 0.0, %v3341
  %v3343 = vpop.f32.mrb[0].mxu0
  %3344 = vmatprep.mubr.bf16.mxu0 %v3020
  %3345 = vmatmul.mubr.bf16.gmra.mrb[0].mxu0 %v3019
  %v3346 = vpop.f32.mrb[0].mxu0
  %v3347 = vadd.f32 0.0, %v3346
  %v3348 = vpop.f32.mrb[0].mxu0
  %v3349 = vpop.f32.mrb[0].mxu0
  %v3350 = vadd.f32 0.0, %v3349
  %v3351 = vpop.f32.mrb[0].mxu0
  %3352 = vmatprep.mubr.bf16.mxu0 %v3024
  %3353 = vmatmul.mubr.bf16.gmra.mrb[0].mxu0 %v3023
  %v3354 = vpop.f32.mrb[0].mxu0
  %v3355 = vadd.f32 0.0, %v3354
  %v3356 = vpop.f32.mrb[0].mxu0
  %v3357 = vpop.f32.mrb[0].mxu0
  %v3358 = vadd.f32 0.0, %v3357
  %v3359 = vpop.f32.mrb[0].mxu0
  %3360 = vmatprep.mubr.bf16.mxu0 %v3028
  %3361 = vmatmul.mubr.bf16.gmra.mrb[0].mxu0 %v3027
  %v3362 = vpop.f32.mrb[0].mxu0
  %v3363 = vadd.f32 0.0, %v3362
  %v3364 = vpop.f32.mrb[0].mxu0
  %v3365 = vpop.f32.mrb[0].mxu0
  %v3366 = vadd.f32 0.0, %v3365
  %v3367 = vpop.f32.mrb[0].mxu0
  %3368 = vmatprep.mubr.bf16.mxu0 %v3032
  %3369 = vmatmul.mubr.bf16.gmra.mrb[0].mxu0 %v3031
  %v3370 = vpop.f32.mrb[0].mxu0
  %v3371 = vadd.f32 0.0, %v3370
  %v3372 = vpop.f32.mrb[0].mxu0
  %v3373 = vpop.f32.mrb[0].mxu0
  %v3374 = vadd.f32 0.0, %v3373
  %v3375 = vpop.f32.mrb[0].mxu0
  %3376 = vmatprep.mubr.bf16.mxu0 %v3036
  %3377 = vmatmul.mubr.bf16.gmra.mrb[0].mxu0 %v3035
  %v3378 = vpop.f32.mrb[0].mxu0
  %v3379 = vadd.f32 0.0, %v3378
  %v3380 = vpop.f32.mrb[0].mxu0
  %v3381 = vpop.f32.mrb[0].mxu0
  %v3382 = vadd.f32 0.0, %v3381
  %v3383 = vpop.f32.mrb[0].mxu0
  %3384 = vmatprep.mubr.bf16.mxu0 %v3040
  %3385 = vmatmul.mubr.bf16.gmra.mrb[0].mxu0 %v3039
  %v3386 = vpop.f32.mrb[0].mxu0
  %v3387 = vadd.f32 0.0, %v3386
  %v3388 = vpop.f32.mrb[0].mxu0
  %v3389 = vpop.f32.mrb[0].mxu0
  %v3390 = vadd.f32 0.0, %v3389
  %v3391 = vpop.f32.mrb[0].mxu0
  %3392 = vmatprep.mubr.bf16.mxu0 %v3044
  %3393 = vmatmul.mubr.bf16.gmra.mrb[0].mxu0 %v3043
  %v3394 = vpop.f32.mrb[0].mxu0
  %v3395 = vadd.f32 0.0, %v3394
  %v3396 = vpop.f32.mrb[0].mxu0
  %v3397 = vpop.f32.mrb[0].mxu0
  %v3398 = vadd.f32 0.0, %v3397
  %v3399 = vpop.f32.mrb[0].mxu0
  %3400 = vdwg.mxu0
  %3401 = vmatprep.subr.bf16.mxu0 0
  %3402 = vmatpush1.bf16.msra.mxu0 %v3256
  %3403 = vmatprep.subr.bf16.mxu0 0
  %3404 = vmatpush1.bf16.msra.mxu0 %v3257
  %3405 = vmatprep.subr.bf16.mxu0 0
  %3406 = vmatpush1.bf16.msra.mxu0 %v3258
  %3407 = vmatprep.subr.bf16.mxu0 0
  %3408 = vmatpush1.bf16.msra.mxu0 %v3259
  %3409 = vmatprep.subr.bf16.mxu0 0
  %3410 = vmatpush1.bf16.msra.mxu0 %v3260
  %3411 = vmatprep.subr.bf16.mxu0 0
  %3412 = vmatpush1.bf16.msra.mxu0 %v3261
  %3413 = vmatprep.subr.bf16.mxu0 0
  %3414 = vmatpush1.bf16.msra.mxu0 %v3262
  %3415 = vmatprep.subr.bf16.mxu0 0
  %3416 = vmatpush1.bf16.msra.mxu0 %v3263
  %3417 = vmatprep.subr.bf16.mxu0 0
  %3418 = vmatpush1.bf16.msra.mxu0 %v3264
  %3419 = vmatprep.subr.bf16.mxu0 0
  %3420 = vmatpush1.bf16.msra.mxu0 %v3265
  %3421 = vmatprep.subr.bf16.mxu0 0
  %3422 = vmatpush1.bf16.msra.mxu0 %v3266
  %3423 = vmatprep.subr.bf16.mxu0 0
  %3424 = vmatpush1.bf16.msra.mxu0 %v3267
  %3425 = vmatprep.subr.bf16.mxu0 0
  %3426 = vmatpush1.bf16.msra.mxu0 %v3268
  %3427 = vmatprep.subr.bf16.mxu0 0
  %3428 = vmatpush1.bf16.msra.mxu0 %v3269
  %3429 = vmatprep.subr.bf16.mxu0 0
  %3430 = vmatpush1.bf16.msra.mxu0 %v3270
  %3431 = vmatprep.subr.bf16.mxu0 0
  %3432 = vmatpush1.bf16.msra.mxu0 %v3271
  %3433 = vmatprep.mubr.bf16.mxu0 %v3018
  %3434 = vmatmul.mubr.bf16.gmra.mrb[0].mxu0 %v3017
  %v3435 = vpop.f32.mrb[0].mxu0
  %v3436 = vadd.f32 %v3339, %v3435
  %v3437 = vpop.f32.mrb[0].mxu0
  %v3438 = vpop.f32.mrb[0].mxu0
  %v3439 = vadd.f32 %v3342, %v3438
  %v3440 = vpop.f32.mrb[0].mxu0
  %3441 = vmatprep.mubr.bf16.mxu0 %v3022
  %3442 = vmatmul.mubr.bf16.gmra.mrb[0].mxu0 %v3021
  %v3443 = vpop.f32.mrb[0].mxu0
  %v3444 = vadd.f32 %v3347, %v3443
  %v3445 = vpop.f32.mrb[0].mxu0
  %v3446 = vpop.f32.mrb[0].mxu0
  %v3447 = vadd.f32 %v3350, %v3446
  %v3448 = vpop.f32.mrb[0].mxu0
  %3449 = vmatprep.mubr.bf16.mxu0 %v3026
  %3450 = vmatmul.mubr.bf16.gmra.mrb[0].mxu0 %v3025
  %v3451 = vpop.f32.mrb[0].mxu0
  %v3452 = vadd.f32 %v3355, %v3451
  %v3453 = vpop.f32.mrb[0].mxu0
  %v3454 = vpop.f32.mrb[0].mxu0
  %v3455 = vadd.f32 %v3358, %v3454
  %v3456 = vpop.f32.mrb[0].mxu0
  %3457 = vmatprep.mubr.bf16.mxu0 %v3030
  %3458 = vmatmul.mubr.bf16.gmra.mrb[0].mxu0 %v3029
  %v3459 = vpop.f32.mrb[0].mxu0
  %v3460 = vadd.f32 %v3363, %v3459
  %v3461 = vpop.f32.mrb[0].mxu0
  %v3462 = vpop.f32.mrb[0].mxu0
  %v3463 = vadd.f32 %v3366, %v3462
  %v3464 = vpop.f32.mrb[0].mxu0
  %3465 = vmatprep.mubr.bf16.mxu0 %v3034
  %3466 = vmatmul.mubr.bf16.gmra.mrb[0].mxu0 %v3033
  %v3467 = vpop.f32.mrb[0].mxu0
  %v3468 = vadd.f32 %v3371, %v3467
  %v3469 = vpop.f32.mrb[0].mxu0
  %v3470 = vpop.f32.mrb[0].mxu0
  %v3471 = vadd.f32 %v3374, %v3470
  %v3472 = vpop.f32.mrb[0].mxu0
  %3473 = vmatprep.mubr.bf16.mxu0 %v3038
  %3474 = vmatmul.mubr.bf16.gmra.mrb[0].mxu0 %v3037
  %v3475 = vpop.f32.mrb[0].mxu0
  %v3476 = vadd.f32 %v3379, %v3475
  %v3477 = vpop.f32.mrb[0].mxu0
  %v3478 = vpop.f32.mrb[0].mxu0
  %v3479 = vadd.f32 %v3382, %v3478
  %v3480 = vpop.f32.mrb[0].mxu0
  %3481 = vmatprep.mubr.bf16.mxu0 %v3042
  %3482 = vmatmul.mubr.bf16.gmra.mrb[0].mxu0 %v3041
  %v3483 = vpop.f32.mrb[0].mxu0
  %v3484 = vadd.f32 %v3387, %v3483
  %v3485 = vpop.f32.mrb[0].mxu0
  %v3486 = vpop.f32.mrb[0].mxu0
  %v3487 = vadd.f32 %v3390, %v3486
  %v3488 = vpop.f32.mrb[0].mxu0
  %3489 = vmatprep.mubr.bf16.mxu0 %v3046
  %3490 = vmatmul.mubr.bf16.gmra.mrb[0].mxu0 %v3045
  %v3491 = vpop.f32.mrb[0].mxu0
  %v3492 = vadd.f32 %v3395, %v3491
  %v3493 = vpop.f32.mrb[0].mxu0
  %v3494 = vpop.f32.mrb[0].mxu0
  %v3495 = vadd.f32 %v3398, %v3494
  %v3496 = vpop.f32.mrb[0].mxu0
  %3497 = vdwg.mxu0
  %v3498 = vadd.f32 %v2628, %v3436
  %v3499 = vadd.f32 %v2629, %v3439
  %v3500 = vadd.f32 %v2630, %v3444
  %v3501 = vadd.f32 %v2631, %v3447
  %v3502 = vadd.f32 %v2632, %v3452
  %v3503 = vadd.f32 %v2633, %v3455
  %v3504 = vadd.f32 %v2634, %v3460
  %v3505 = vadd.f32 %v2635, %v3463
  %v3506 = vadd.f32 %v2636, %v3468
  %v3507 = vadd.f32 %v2637, %v3471
  %v3508 = vadd.f32 %v2638, %v3476
  %v3509 = vadd.f32 %v2639, %v3479
  %v3510 = vadd.f32 %v2640, %v3484
  %v3511 = vadd.f32 %v2641, %v3487
  %v3512 = vadd.f32 %v2642, %v3492
  %v3513 = vadd.f32 %v2643, %v3495
  %s3514 = scalar_lea.vmem %s0, 256
  %v3515 = vld [vmem:[%s3514] sm:$0xf]
  %v3516 = vld [vmem:[%s3514 + $0x4] sm:$0xf]
  %v3517 = vld [vmem:[%s3514 + $0x8] sm:$0xf]
  %v3518 = vld [vmem:[%s3514 + $0xc] sm:$0xf]
  %v3519 = vld [vmem:[%s3514 + $0x10] sm:$0xf]
  %v3520 = vld [vmem:[%s3514 + $0x14] sm:$0xf]
  %v3521 = vld [vmem:[%s3514 + $0x18] sm:$0xf]
  %v3522 = vld [vmem:[%s3514 + $0x1c] sm:$0xf]
  %v3523 = vld [vmem:[%s3514 + $0x20] sm:$0xf]
  %v3524 = vld [vmem:[%s3514 + $0x24] sm:$0xf]
  %v3525 = vld [vmem:[%s3514 + $0x28] sm:$0xf]
  %v3526 = vld [vmem:[%s3514 + $0x2c] sm:$0xf]
  %v3527 = vld [vmem:[%s3514 + $0x30] sm:$0xf]
  %v3528 = vld [vmem:[%s3514 + $0x34] sm:$0xf]
  %v3529 = vld [vmem:[%s3514 + $0x38] sm:$0xf]
  %v3530 = vld [vmem:[%s3514 + $0x3c] sm:$0xf]
  %v3547 = vunpack.c.l.b16 %v3515
  %v3548 = vunpack.c.l.b16 %v3516
  %v3549 = vunpack.c.l.b16 %v3517
  %v3550 = vunpack.c.l.b16 %v3518
  %v3551 = vunpack.c.l.b16 %v3519
  %v3552 = vunpack.c.l.b16 %v3520
  %v3553 = vunpack.c.l.b16 %v3521
  %v3554 = vunpack.c.l.b16 %v3522
  %v3555 = vunpack.c.l.b16 %v3523
  %v3556 = vunpack.c.l.b16 %v3524
  %v3557 = vunpack.c.l.b16 %v3525
  %v3558 = vunpack.c.l.b16 %v3526
  %v3559 = vunpack.c.l.b16 %v3527
  %v3560 = vunpack.c.l.b16 %v3528
  %v3561 = vunpack.c.l.b16 %v3529
  %v3562 = vunpack.c.l.b16 %v3530
  %v3563 = vpack.c.b16 %v3548, %v3547
  %v3564 = vpack.c.b16 %v3550, %v3549
  %v3565 = vpack.c.b16 %v3552, %v3551
  %v3566 = vpack.c.b16 %v3554, %v3553
  %v3567 = vpack.c.b16 %v3556, %v3555
  %v3568 = vpack.c.b16 %v3558, %v3557
  %v3569 = vpack.c.b16 %v3560, %v3559
  %v3570 = vpack.c.b16 %v3562, %v3561
  %v3572 = vsel %vm123, %v3563, 0
  %v3575 = vsel %vm123, %v3564, 0
  %v3578 = vsel %vm123, %v3565, 0
  %v3581 = vsel %vm123, %v3566, 0
  %v3584 = vsel %vm123, %v3567, 0
  %v3587 = vsel %vm123, %v3568, 0
  %v3590 = vsel %vm123, %v3569, 0
  %v3593 = vsel %vm123, %v3570, 0
  %3595 = vmatprep.subr.bf16.mxu0 %v108
  %3596 = vmatpush1.bf16.msra.mxu0 %v107
  %3597 = vmatprep.subr.bf16.mxu0 %v112
  %3598 = vmatpush1.bf16.msra.mxu0 %v111
  %3599 = vmatprep.subr.bf16.mxu0 0
  %3600 = vmatpush1.bf16.msra.mxu0 0
  %3601 = vmatprep.subr.bf16.mxu0 0
  %3602 = vmatpush1.bf16.msra.mxu0 0
  %3603 = vmatprep.subr.bf16.mxu0 0
  %3604 = vmatpush1.bf16.msra.mxu0 0
  %3605 = vmatprep.subr.bf16.mxu0 0
  %3606 = vmatpush1.bf16.msra.mxu0 0
  %3607 = vmatprep.subr.bf16.mxu0 0
  %3608 = vmatpush1.bf16.msra.mxu0 0
  %3609 = vmatprep.subr.bf16.mxu0 0
  %3610 = vmatpush1.bf16.msra.mxu0 0
  %3611 = vmatprep.subr.bf16.mxu0 0
  %3612 = vmatpush1.bf16.msra.mxu0 0
  %3613 = vmatprep.subr.bf16.mxu0 0
  %3614 = vmatpush1.bf16.msra.mxu0 0
  %3615 = vmatprep.subr.bf16.mxu0 0
  %3616 = vmatpush1.bf16.msra.mxu0 0
  %3617 = vmatprep.subr.bf16.mxu0 0
  %3618 = vmatpush1.bf16.msra.mxu0 0
  %3619 = vmatprep.subr.bf16.mxu0 0
  %3620 = vmatpush1.bf16.msra.mxu0 0
  %3621 = vmatprep.subr.bf16.mxu0 0
  %3622 = vmatpush1.bf16.msra.mxu0 0
  %3623 = vmatprep.subr.bf16.mxu0 0
  %3624 = vmatpush1.bf16.msra.mxu0 0
  %3625 = vmatprep.subr.bf16.mxu0 0
  %3626 = vmatpush1.bf16.msra.mxu0 0
  %3627 = vmatprep.mubr.bf16.mxu0 0
  %3628 = vmatmul.mubr.bf16.gmra.mrb[0].mxu0 %v3572
  %v3629 = vpop.f32.mrb[0].mxu0
  %v3630 = vadd.f32 0.0, %v3629
  %v3631 = vpop.f32.mrb[0].mxu0
  %v3632 = vadd.f32 0.0, %v3631
  %v3633 = vpop.f32.mrb[0].mxu0
  %v3634 = vadd.f32 0.0, %v3633
  %v3635 = vpop.f32.mrb[0].mxu0
  %v3636 = vadd.f32 0.0, %v3635
  %3637 = vmatprep.mubr.bf16.mxu0 0
  %3638 = vmatmul.mubr.bf16.gmra.mrb[0].mxu0 %v3575
  %v3639 = vpop.f32.mrb[0].mxu0
  %v3640 = vadd.f32 0.0, %v3639
  %v3641 = vpop.f32.mrb[0].mxu0
  %v3642 = vadd.f32 0.0, %v3641
  %v3643 = vpop.f32.mrb[0].mxu0
  %v3644 = vadd.f32 0.0, %v3643
  %v3645 = vpop.f32.mrb[0].mxu0
  %v3646 = vadd.f32 0.0, %v3645
  %3647 = vmatprep.mubr.bf16.mxu0 0
  %3648 = vmatmul.mubr.bf16.gmra.mrb[0].mxu0 %v3578
  %v3649 = vpop.f32.mrb[0].mxu0
  %v3650 = vadd.f32 0.0, %v3649
  %v3651 = vpop.f32.mrb[0].mxu0
  %v3652 = vadd.f32 0.0, %v3651
  %v3653 = vpop.f32.mrb[0].mxu0
  %v3654 = vadd.f32 0.0, %v3653
  %v3655 = vpop.f32.mrb[0].mxu0
  %v3656 = vadd.f32 0.0, %v3655
  %3657 = vmatprep.mubr.bf16.mxu0 0
  %3658 = vmatmul.mubr.bf16.gmra.mrb[0].mxu0 %v3581
  %v3659 = vpop.f32.mrb[0].mxu0
  %v3660 = vadd.f32 0.0, %v3659
  %v3661 = vpop.f32.mrb[0].mxu0
  %v3662 = vadd.f32 0.0, %v3661
  %v3663 = vpop.f32.mrb[0].mxu0
  %v3664 = vadd.f32 0.0, %v3663
  %v3665 = vpop.f32.mrb[0].mxu0
  %v3666 = vadd.f32 0.0, %v3665
  %3667 = vmatprep.mubr.bf16.mxu0 0
  %3668 = vmatmul.mubr.bf16.gmra.mrb[0].mxu0 %v3584
  %v3669 = vpop.f32.mrb[0].mxu0
  %v3670 = vadd.f32 0.0, %v3669
  %v3671 = vpop.f32.mrb[0].mxu0
  %v3672 = vadd.f32 0.0, %v3671
  %v3673 = vpop.f32.mrb[0].mxu0
  %v3674 = vadd.f32 0.0, %v3673
  %v3675 = vpop.f32.mrb[0].mxu0
  %v3676 = vadd.f32 0.0, %v3675
  %3677 = vmatprep.mubr.bf16.mxu0 0
  %3678 = vmatmul.mubr.bf16.gmra.mrb[0].mxu0 %v3587
  %v3679 = vpop.f32.mrb[0].mxu0
  %v3680 = vadd.f32 0.0, %v3679
  %v3681 = vpop.f32.mrb[0].mxu0
  %v3682 = vadd.f32 0.0, %v3681
  %v3683 = vpop.f32.mrb[0].mxu0
  %v3684 = vadd.f32 0.0, %v3683
  %v3685 = vpop.f32.mrb[0].mxu0
  %v3686 = vadd.f32 0.0, %v3685
  %3687 = vmatprep.mubr.bf16.mxu0 0
  %3688 = vmatmul.mubr.bf16.gmra.mrb[0].mxu0 %v3590
  %v3689 = vpop.f32.mrb[0].mxu0
  %v3690 = vadd.f32 0.0, %v3689
  %v3691 = vpop.f32.mrb[0].mxu0
  %v3692 = vadd.f32 0.0, %v3691
  %v3693 = vpop.f32.mrb[0].mxu0
  %v3694 = vadd.f32 0.0, %v3693
  %v3695 = vpop.f32.mrb[0].mxu0
  %v3696 = vadd.f32 0.0, %v3695
  %3697 = vmatprep.mubr.bf16.mxu0 0
  %3698 = vmatmul.mubr.bf16.gmra.mrb[0].mxu0 %v3593
  %v3699 = vpop.f32.mrb[0].mxu0
  %v3700 = vadd.f32 0.0, %v3699
  %v3701 = vpop.f32.mrb[0].mxu0
  %v3702 = vadd.f32 0.0, %v3701
  %v3703 = vpop.f32.mrb[0].mxu0
  %v3704 = vadd.f32 0.0, %v3703
  %v3705 = vpop.f32.mrb[0].mxu0
  %v3706 = vadd.f32 0.0, %v3705
  %3707 = vdwg.mxu0
  %3708 = vmatprep.subr.bf16.mxu0 %v110
  %3709 = vmatpush1.bf16.msra.mxu0 %v109
  %3710 = vmatprep.subr.bf16.mxu0 %v114
  %3711 = vmatpush1.bf16.msra.mxu0 %v113
  %3712 = vmatprep.subr.bf16.mxu0 0
  %3713 = vmatpush1.bf16.msra.mxu0 0
  %3714 = vmatprep.subr.bf16.mxu0 0
  %3715 = vmatpush1.bf16.msra.mxu0 0
  %3716 = vmatprep.subr.bf16.mxu0 0
  %3717 = vmatpush1.bf16.msra.mxu0 0
  %3718 = vmatprep.subr.bf16.mxu0 0
  %3719 = vmatpush1.bf16.msra.mxu0 0
  %3720 = vmatprep.subr.bf16.mxu0 0
  %3721 = vmatpush1.bf16.msra.mxu0 0
  %3722 = vmatprep.subr.bf16.mxu0 0
  %3723 = vmatpush1.bf16.msra.mxu0 0
  %3724 = vmatprep.subr.bf16.mxu0 0
  %3725 = vmatpush1.bf16.msra.mxu0 0
  %3726 = vmatprep.subr.bf16.mxu0 0
  %3727 = vmatpush1.bf16.msra.mxu0 0
  %3728 = vmatprep.subr.bf16.mxu0 0
  %3729 = vmatpush1.bf16.msra.mxu0 0
  %3730 = vmatprep.subr.bf16.mxu0 0
  %3731 = vmatpush1.bf16.msra.mxu0 0
  %3732 = vmatprep.subr.bf16.mxu0 0
  %3733 = vmatpush1.bf16.msra.mxu0 0
  %3734 = vmatprep.subr.bf16.mxu0 0
  %3735 = vmatpush1.bf16.msra.mxu0 0
  %3736 = vmatprep.subr.bf16.mxu0 0
  %3737 = vmatpush1.bf16.msra.mxu0 0
  %3738 = vmatprep.subr.bf16.mxu0 0
  %3739 = vmatpush1.bf16.msra.mxu0 0
  %3740 = vmatprep.mubr.bf16.mxu0 0
  %3741 = vmatmul.mubr.bf16.gmra.mrb[0].mxu0 %v3572
  %v3742 = vpop.f32.mrb[0].mxu0
  %v3743 = vadd.f32 0.0, %v3742
  %v3744 = vpop.f32.mrb[0].mxu0
  %v3745 = vadd.f32 0.0, %v3744
  %v3746 = vpop.f32.mrb[0].mxu0
  %v3747 = vadd.f32 0.0, %v3746
  %v3748 = vpop.f32.mrb[0].mxu0
  %v3749 = vadd.f32 0.0, %v3748
  %3750 = vmatprep.mubr.bf16.mxu0 0
  %3751 = vmatmul.mubr.bf16.gmra.mrb[0].mxu0 %v3575
  %v3752 = vpop.f32.mrb[0].mxu0
  %v3753 = vadd.f32 0.0, %v3752
  %v3754 = vpop.f32.mrb[0].mxu0
  %v3755 = vadd.f32 0.0, %v3754
  %v3756 = vpop.f32.mrb[0].mxu0
  %v3757 = vadd.f32 0.0, %v3756
  %v3758 = vpop.f32.mrb[0].mxu0
  %v3759 = vadd.f32 0.0, %v3758
  %3760 = vmatprep.mubr.bf16.mxu0 0
  %3761 = vmatmul.mubr.bf16.gmra.mrb[0].mxu0 %v3578
  %v3762 = vpop.f32.mrb[0].mxu0
  %v3763 = vadd.f32 0.0, %v3762
  %v3764 = vpop.f32.mrb[0].mxu0
  %v3765 = vadd.f32 0.0, %v3764
  %v3766 = vpop.f32.mrb[0].mxu0
  %v3767 = vadd.f32 0.0, %v3766
  %v3768 = vpop.f32.mrb[0].mxu0
  %v3769 = vadd.f32 0.0, %v3768
  %3770 = vmatprep.mubr.bf16.mxu0 0
  %3771 = vmatmul.mubr.bf16.gmra.mrb[0].mxu0 %v3581
  %v3772 = vpop.f32.mrb[0].mxu0
  %v3773 = vadd.f32 0.0, %v3772
  %v3774 = vpop.f32.mrb[0].mxu0
  %v3775 = vadd.f32 0.0, %v3774
  %v3776 = vpop.f32.mrb[0].mxu0
  %v3777 = vadd.f32 0.0, %v3776
  %v3778 = vpop.f32.mrb[0].mxu0
  %v3779 = vadd.f32 0.0, %v3778
  %3780 = vmatprep.mubr.bf16.mxu0 0
  %3781 = vmatmul.mubr.bf16.gmra.mrb[0].mxu0 %v3584
  %v3782 = vpop.f32.mrb[0].mxu0
  %v3783 = vadd.f32 0.0, %v3782
  %v3784 = vpop.f32.mrb[0].mxu0
  %v3785 = vadd.f32 0.0, %v3784
  %v3786 = vpop.f32.mrb[0].mxu0
  %v3787 = vadd.f32 0.0, %v3786
  %v3788 = vpop.f32.mrb[0].mxu0
  %v3789 = vadd.f32 0.0, %v3788
  %3790 = vmatprep.mubr.bf16.mxu0 0
  %3791 = vmatmul.mubr.bf16.gmra.mrb[0].mxu0 %v3587
  %v3792 = vpop.f32.mrb[0].mxu0
  %v3793 = vadd.f32 0.0, %v3792
  %v3794 = vpop.f32.mrb[0].mxu0
  %v3795 = vadd.f32 0.0, %v3794
  %v3796 = vpop.f32.mrb[0].mxu0
  %v3797 = vadd.f32 0.0, %v3796
  %v3798 = vpop.f32.mrb[0].mxu0
  %v3799 = vadd.f32 0.0, %v3798
  %3800 = vmatprep.mubr.bf16.mxu0 0
  %3801 = vmatmul.mubr.bf16.gmra.mrb[0].mxu0 %v3590
  %v3802 = vpop.f32.mrb[0].mxu0
  %v3803 = vadd.f32 0.0, %v3802
  %v3804 = vpop.f32.mrb[0].mxu0
  %v3805 = vadd.f32 0.0, %v3804
  %v3806 = vpop.f32.mrb[0].mxu0
  %v3807 = vadd.f32 0.0, %v3806
  %v3808 = vpop.f32.mrb[0].mxu0
  %v3809 = vadd.f32 0.0, %v3808
  %3810 = vmatprep.mubr.bf16.mxu0 0
  %3811 = vmatmul.mubr.bf16.gmra.mrb[0].mxu0 %v3593
  %v3812 = vpop.f32.mrb[0].mxu0
  %v3813 = vadd.f32 0.0, %v3812
  %v3814 = vpop.f32.mrb[0].mxu0
  %v3815 = vadd.f32 0.0, %v3814
  %v3816 = vpop.f32.mrb[0].mxu0
  %v3817 = vadd.f32 0.0, %v3816
  %v3818 = vpop.f32.mrb[0].mxu0
  %v3819 = vadd.f32 0.0, %v3818
  %3820 = vdwg.mxu0
  %v3821 = vmax.f32 %v3630, 0.0
  %v3822 = vmax.f32 %v3632, 0.0
  %v3823 = vmax.f32 %v3743, 0.0
  %v3824 = vmax.f32 %v3745, 0.0
  %v3825 = vmax.f32 %v3634, 0.0
  %v3826 = vmax.f32 %v3636, 0.0
  %v3827 = vmax.f32 %v3747, 0.0
  %v3828 = vmax.f32 %v3749, 0.0
  %v3829 = vmax.f32 %v3640, 0.0
  %v3830 = vmax.f32 %v3642, 0.0
  %v3831 = vmax.f32 %v3753, 0.0
  %v3832 = vmax.f32 %v3755, 0.0
  %v3833 = vmax.f32 %v3644, 0.0
  %v3834 = vmax.f32 %v3646, 0.0
  %v3835 = vmax.f32 %v3757, 0.0
  %v3836 = vmax.f32 %v3759, 0.0
  %v3837 = vmax.f32 %v3650, 0.0
  %v3838 = vmax.f32 %v3652, 0.0
  %v3839 = vmax.f32 %v3763, 0.0
  %v3840 = vmax.f32 %v3765, 0.0
  %v3841 = vmax.f32 %v3654, 0.0
  %v3842 = vmax.f32 %v3656, 0.0
  %v3843 = vmax.f32 %v3767, 0.0
  %v3844 = vmax.f32 %v3769, 0.0
  %v3845 = vmax.f32 %v3660, 0.0
  %v3846 = vmax.f32 %v3662, 0.0
  %v3847 = vmax.f32 %v3773, 0.0
  %v3848 = vmax.f32 %v3775, 0.0
  %v3849 = vmax.f32 %v3664, 0.0
  %v3850 = vmax.f32 %v3666, 0.0
  %v3851 = vmax.f32 %v3777, 0.0
  %v3852 = vmax.f32 %v3779, 0.0
  %v3853 = vmax.f32 %v3670, 0.0
  %v3854 = vmax.f32 %v3672, 0.0
  %v3855 = vmax.f32 %v3783, 0.0
  %v3856 = vmax.f32 %v3785, 0.0
  %v3857 = vmax.f32 %v3674, 0.0
  %v3858 = vmax.f32 %v3676, 0.0
  %v3859 = vmax.f32 %v3787, 0.0
  %v3860 = vmax.f32 %v3789, 0.0
  %v3861 = vmax.f32 %v3680, 0.0
  %v3862 = vmax.f32 %v3682, 0.0
  %v3863 = vmax.f32 %v3793, 0.0
  %v3864 = vmax.f32 %v3795, 0.0
  %v3865 = vmax.f32 %v3684, 0.0
  %v3866 = vmax.f32 %v3686, 0.0
  %v3867 = vmax.f32 %v3797, 0.0
  %v3868 = vmax.f32 %v3799, 0.0
  %v3869 = vmax.f32 %v3690, 0.0
  %v3870 = vmax.f32 %v3692, 0.0
  %v3871 = vmax.f32 %v3803, 0.0
  %v3872 = vmax.f32 %v3805, 0.0
  %v3873 = vmax.f32 %v3694, 0.0
  %v3874 = vmax.f32 %v3696, 0.0
  %v3875 = vmax.f32 %v3807, 0.0
  %v3876 = vmax.f32 %v3809, 0.0
  %v3877 = vmax.f32 %v3700, 0.0
  %v3878 = vmax.f32 %v3702, 0.0
  %v3879 = vmax.f32 %v3813, 0.0
  %v3880 = vmax.f32 %v3815, 0.0
  %v3881 = vmax.f32 %v3704, 0.0
  %v3882 = vmax.f32 %v3706, 0.0
  %v3883 = vmax.f32 %v3817, 0.0
  %v3884 = vmax.f32 %v3819, 0.0
  %v3885 = vpack.c.bf16 %v3825, %v3821
  %v3886 = vpack.c.bf16 %v3826, %v3822
  %v3887 = vpack.c.bf16 %v3827, %v3823
  %v3888 = vpack.c.bf16 %v3828, %v3824
  %v3889 = vpack.c.bf16 %v3833, %v3829
  %v3890 = vpack.c.bf16 %v3834, %v3830
  %v3891 = vpack.c.bf16 %v3835, %v3831
  %v3892 = vpack.c.bf16 %v3836, %v3832
  %v3893 = vpack.c.bf16 %v3841, %v3837
  %v3894 = vpack.c.bf16 %v3842, %v3838
  %v3895 = vpack.c.bf16 %v3843, %v3839
  %v3896 = vpack.c.bf16 %v3844, %v3840
  %v3897 = vpack.c.bf16 %v3849, %v3845
  %v3898 = vpack.c.bf16 %v3850, %v3846
  %v3899 = vpack.c.bf16 %v3851, %v3847
  %v3900 = vpack.c.bf16 %v3852, %v3848
  %v3901 = vpack.c.bf16 %v3857, %v3853
  %v3902 = vpack.c.bf16 %v3858, %v3854
  %v3903 = vpack.c.bf16 %v3859, %v3855
  %v3904 = vpack.c.bf16 %v3860, %v3856
  %v3905 = vpack.c.bf16 %v3865, %v3861
  %v3906 = vpack.c.bf16 %v3866, %v3862
  %v3907 = vpack.c.bf16 %v3867, %v3863
  %v3908 = vpack.c.bf16 %v3868, %v3864
  %v3909 = vpack.c.bf16 %v3873, %v3869
  %v3910 = vpack.c.bf16 %v3874, %v3870
  %v3911 = vpack.c.bf16 %v3875, %v3871
  %v3912 = vpack.c.bf16 %v3876, %v3872
  %v3913 = vpack.c.bf16 %v3881, %v3877
  %v3914 = vpack.c.bf16 %v3882, %v3878
  %v3915 = vpack.c.bf16 %v3883, %v3879
  %v3916 = vpack.c.bf16 %v3884, %v3880
  %s3917 = scalar_lea.vmem %s2, 1024
  %v3918 = vld [vmem:[%s3917] sm:$0xf]
  %v3919 = vld [vmem:[%s3917 + $0x4] sm:$0xf]
  %v3920 = vld [vmem:[%s3917 + $0x8] sm:$0xf]
  %v3921 = vld [vmem:[%s3917 + $0xc] sm:$0xf]
  %v3922 = vld [vmem:[%s3917 + $0x10] sm:$0xf]
  %v3923 = vld [vmem:[%s3917 + $0x14] sm:$0xf]
  %v3924 = vld [vmem:[%s3917 + $0x18] sm:$0xf]
  %v3925 = vld [vmem:[%s3917 + $0x1c] sm:$0xf]
  %v3926 = vld [vmem:[%s3917 + $0x20] sm:$0xf]
  %v3927 = vld [vmem:[%s3917 + $0x24] sm:$0xf]
  %v3928 = vld [vmem:[%s3917 + $0x28] sm:$0xf]
  %v3929 = vld [vmem:[%s3917 + $0x2c] sm:$0xf]
  %v3930 = vld [vmem:[%s3917 + $0x30] sm:$0xf]
  %v3931 = vld [vmem:[%s3917 + $0x34] sm:$0xf]
  %v3932 = vld [vmem:[%s3917 + $0x38] sm:$0xf]
  %v3933 = vld [vmem:[%s3917 + $0x3c] sm:$0xf]
  %v3934 = vld [vmem:[%s3917 + $0x40] sm:$0xf]
  %v3935 = vld [vmem:[%s3917 + $0x44] sm:$0xf]
  %v3936 = vld [vmem:[%s3917 + $0x48] sm:$0xf]
  %v3937 = vld [vmem:[%s3917 + $0x4c] sm:$0xf]
  %v3938 = vld [vmem:[%s3917 + $0x50] sm:$0xf]
  %v3939 = vld [vmem:[%s3917 + $0x54] sm:$0xf]
  %v3940 = vld [vmem:[%s3917 + $0x58] sm:$0xf]
  %v3941 = vld [vmem:[%s3917 + $0x5c] sm:$0xf]
  %v3942 = vld [vmem:[%s3917 + $0x60] sm:$0xf]
  %v3943 = vld [vmem:[%s3917 + $0x64] sm:$0xf]
  %v3944 = vld [vmem:[%s3917 + $0x68] sm:$0xf]
  %v3945 = vld [vmem:[%s3917 + $0x6c] sm:$0xf]
  %v3946 = vld [vmem:[%s3917 + $0x70] sm:$0xf]
  %v3947 = vld [vmem:[%s3917 + $0x74] sm:$0xf]
  %v3948 = vld [vmem:[%s3917 + $0x78] sm:$0xf]
  %v3949 = vld [vmem:[%s3917 + $0x7c] sm:$0xf]
  %v3950 = vld [vmem:[%s3917 + $0x80] sm:$0xf]
  %v3951 = vld [vmem:[%s3917 + $0x84] sm:$0xf]
  %v3952 = vld [vmem:[%s3917 + $0x88] sm:$0xf]
  %v3953 = vld [vmem:[%s3917 + $0x8c] sm:$0xf]
  %v3954 = vld [vmem:[%s3917 + $0x90] sm:$0xf]
  %v3955 = vld [vmem:[%s3917 + $0x94] sm:$0xf]
  %v3956 = vld [vmem:[%s3917 + $0x98] sm:$0xf]
  %v3957 = vld [vmem:[%s3917 + $0x9c] sm:$0xf]
  %v3958 = vld [vmem:[%s3917 + $0xa0] sm:$0xf]
  %v3959 = vld [vmem:[%s3917 + $0xa4] sm:$0xf]
  %v3960 = vld [vmem:[%s3917 + $0xa8] sm:$0xf]
  %v3961 = vld [vmem:[%s3917 + $0xac] sm:$0xf]
  %v3962 = vld [vmem:[%s3917 + $0xb0] sm:$0xf]
  %v3963 = vld [vmem:[%s3917 + $0xb4] sm:$0xf]
  %v3964 = vld [vmem:[%s3917 + $0xb8] sm:$0xf]
  %v3965 = vld [vmem:[%s3917 + $0xbc] sm:$0xf]
  %v3966 = vld [vmem:[%s3917 + $0xc0] sm:$0xf]
  %v3967 = vld [vmem:[%s3917 + $0xc4] sm:$0xf]
  %v3968 = vld [vmem:[%s3917 + $0xc8] sm:$0xf]
  %v3969 = vld [vmem:[%s3917 + $0xcc] sm:$0xf]
  %v3970 = vld [vmem:[%s3917 + $0xd0] sm:$0xf]
  %v3971 = vld [vmem:[%s3917 + $0xd4] sm:$0xf]
  %v3972 = vld [vmem:[%s3917 + $0xd8] sm:$0xf]
  %v3973 = vld [vmem:[%s3917 + $0xdc] sm:$0xf]
  %v3974 = vld [vmem:[%s3917 + $0xe0] sm:$0xf]
  %v3975 = vld [vmem:[%s3917 + $0xe4] sm:$0xf]
  %v3976 = vld [vmem:[%s3917 + $0xe8] sm:$0xf]
  %v3977 = vld [vmem:[%s3917 + $0xec] sm:$0xf]
  %v3978 = vld [vmem:[%s3917 + $0xf0] sm:$0xf]
  %v3979 = vld [vmem:[%s3917 + $0xf4] sm:$0xf]
  %v3980 = vld [vmem:[%s3917 + $0xf8] sm:$0xf]
  %v3981 = vld [vmem:[%s3917 + $0xfc] sm:$0xf]
  %v4046 = vunpack.c.l.b16 %v3918
  %v4047 = vunpack.c.l.b16 %v3919
  %v4048 = vunpack.c.l.b16 %v3920
  %v4049 = vunpack.c.l.b16 %v3921
  %v4050 = vunpack.c.l.b16 %v3922
  %v4051 = vunpack.c.l.b16 %v3923
  %v4052 = vunpack.c.l.b16 %v3924
  %v4053 = vunpack.c.l.b16 %v3925
  %v4054 = vunpack.c.l.b16 %v3926
  %v4055 = vunpack.c.l.b16 %v3927
  %v4056 = vunpack.c.l.b16 %v3928
  %v4057 = vunpack.c.l.b16 %v3929
  %v4058 = vunpack.c.l.b16 %v3930
  %v4059 = vunpack.c.l.b16 %v3931
  %v4060 = vunpack.c.l.b16 %v3932
  %v4061 = vunpack.c.l.b16 %v3933
  %v4062 = vunpack.c.l.b16 %v3934
  %v4063 = vunpack.c.l.b16 %v3935
  %v4064 = vunpack.c.l.b16 %v3936
  %v4065 = vunpack.c.l.b16 %v3937
  %v4066 = vunpack.c.l.b16 %v3938
  %v4067 = vunpack.c.l.b16 %v3939
  %v4068 = vunpack.c.l.b16 %v3940
  %v4069 = vunpack.c.l.b16 %v3941
  %v4070 = vunpack.c.l.b16 %v3942
  %v4071 = vunpack.c.l.b16 %v3943
  %v4072 = vunpack.c.l.b16 %v3944
  %v4073 = vunpack.c.l.b16 %v3945
  %v4074 = vunpack.c.l.b16 %v3946
  %v4075 = vunpack.c.l.b16 %v3947
  %v4076 = vunpack.c.l.b16 %v3948
  %v4077 = vunpack.c.l.b16 %v3949
  %v4078 = vunpack.c.l.b16 %v3950
  %v4079 = vunpack.c.l.b16 %v3951
  %v4080 = vunpack.c.l.b16 %v3952
  %v4081 = vunpack.c.l.b16 %v3953
  %v4082 = vunpack.c.l.b16 %v3954
  %v4083 = vunpack.c.l.b16 %v3955
  %v4084 = vunpack.c.l.b16 %v3956
  %v4085 = vunpack.c.l.b16 %v3957
  %v4086 = vunpack.c.l.b16 %v3958
  %v4087 = vunpack.c.l.b16 %v3959
  %v4088 = vunpack.c.l.b16 %v3960
  %v4089 = vunpack.c.l.b16 %v3961
  %v4090 = vunpack.c.l.b16 %v3962
  %v4091 = vunpack.c.l.b16 %v3963
  %v4092 = vunpack.c.l.b16 %v3964
  %v4093 = vunpack.c.l.b16 %v3965
  %v4094 = vunpack.c.l.b16 %v3966
  %v4095 = vunpack.c.l.b16 %v3967
  %v4096 = vunpack.c.l.b16 %v3968
  %v4097 = vunpack.c.l.b16 %v3969
  %v4098 = vunpack.c.l.b16 %v3970
  %v4099 = vunpack.c.l.b16 %v3971
  %v4100 = vunpack.c.l.b16 %v3972
  %v4101 = vunpack.c.l.b16 %v3973
  %v4102 = vunpack.c.l.b16 %v3974
  %v4103 = vunpack.c.l.b16 %v3975
  %v4104 = vunpack.c.l.b16 %v3976
  %v4105 = vunpack.c.l.b16 %v3977
  %v4106 = vunpack.c.l.b16 %v3978
  %v4107 = vunpack.c.l.b16 %v3979
  %v4108 = vunpack.c.l.b16 %v3980
  %v4109 = vunpack.c.l.b16 %v3981
  %v4110 = vpack.c.b16 %v4047, %v4046
  %v4111 = vpack.c.b16 %v4049, %v4048
  %v4112 = vpack.c.b16 %v4051, %v4050
  %v4113 = vpack.c.b16 %v4053, %v4052
  %v4114 = vpack.c.b16 %v4055, %v4054
  %v4115 = vpack.c.b16 %v4057, %v4056
  %v4116 = vpack.c.b16 %v4059, %v4058
  %v4117 = vpack.c.b16 %v4061, %v4060
  %v4118 = vpack.c.b16 %v4063, %v4062
  %v4119 = vpack.c.b16 %v4065, %v4064
  %v4120 = vpack.c.b16 %v4067, %v4066
  %v4121 = vpack.c.b16 %v4069, %v4068
  %v4122 = vpack.c.b16 %v4071, %v4070
  %v4123 = vpack.c.b16 %v4073, %v4072
  %v4124 = vpack.c.b16 %v4075, %v4074
  %v4125 = vpack.c.b16 %v4077, %v4076
  %v4126 = vpack.c.b16 %v4079, %v4078
  %v4127 = vpack.c.b16 %v4081, %v4080
  %v4128 = vpack.c.b16 %v4083, %v4082
  %v4129 = vpack.c.b16 %v4085, %v4084
  %v4130 = vpack.c.b16 %v4087, %v4086
  %v4131 = vpack.c.b16 %v4089, %v4088
  %v4132 = vpack.c.b16 %v4091, %v4090
  %v4133 = vpack.c.b16 %v4093, %v4092
  %v4134 = vpack.c.b16 %v4095, %v4094
  %v4135 = vpack.c.b16 %v4097, %v4096
  %v4136 = vpack.c.b16 %v4099, %v4098
  %v4137 = vpack.c.b16 %v4101, %v4100
  %v4138 = vpack.c.b16 %v4103, %v4102
  %v4139 = vpack.c.b16 %v4105, %v4104
  %v4140 = vpack.c.b16 %v4107, %v4106
  %v4141 = vpack.c.b16 %v4109, %v4108
  %4174 = vmatprep.subr.bf16.mxu0 0
  %4175 = vmatpush1.bf16.msra.mxu0 %v4110
  %4176 = vmatprep.subr.bf16.mxu0 0
  %4177 = vmatpush1.bf16.msra.mxu0 %v4111
  %4178 = vmatprep.subr.bf16.mxu0 0
  %4179 = vmatpush1.bf16.msra.mxu0 %v4112
  %4180 = vmatprep.subr.bf16.mxu0 0
  %4181 = vmatpush1.bf16.msra.mxu0 %v4113
  %4182 = vmatprep.subr.bf16.mxu0 0
  %4183 = vmatpush1.bf16.msra.mxu0 %v4114
  %4184 = vmatprep.subr.bf16.mxu0 0
  %4185 = vmatpush1.bf16.msra.mxu0 %v4115
  %4186 = vmatprep.subr.bf16.mxu0 0
  %4187 = vmatpush1.bf16.msra.mxu0 %v4116
  %4188 = vmatprep.subr.bf16.mxu0 0
  %4189 = vmatpush1.bf16.msra.mxu0 %v4117
  %4190 = vmatprep.subr.bf16.mxu0 0
  %4191 = vmatpush1.bf16.msra.mxu0 %v4118
  %4192 = vmatprep.subr.bf16.mxu0 0
  %4193 = vmatpush1.bf16.msra.mxu0 %v4119
  %4194 = vmatprep.subr.bf16.mxu0 0
  %4195 = vmatpush1.bf16.msra.mxu0 %v4120
  %4196 = vmatprep.subr.bf16.mxu0 0
  %4197 = vmatpush1.bf16.msra.mxu0 %v4121
  %4198 = vmatprep.subr.bf16.mxu0 0
  %4199 = vmatpush1.bf16.msra.mxu0 %v4122
  %4200 = vmatprep.subr.bf16.mxu0 0
  %4201 = vmatpush1.bf16.msra.mxu0 %v4123
  %4202 = vmatprep.subr.bf16.mxu0 0
  %4203 = vmatpush1.bf16.msra.mxu0 %v4124
  %4204 = vmatprep.subr.bf16.mxu0 0
  %4205 = vmatpush1.bf16.msra.mxu0 %v4125
  %4206 = vmatprep.mubr.bf16.mxu0 %v3886
  %4207 = vmatmul.mubr.bf16.gmra.mrb[0].mxu0 %v3885
  %v4208 = vpop.f32.mrb[0].mxu0
  %v4209 = vadd.f32 0.0, %v4208
  %v4210 = vpop.f32.mrb[0].mxu0
  %v4211 = vpop.f32.mrb[0].mxu0
  %v4212 = vadd.f32 0.0, %v4211
  %v4213 = vpop.f32.mrb[0].mxu0
  %4214 = vmatprep.mubr.bf16.mxu0 %v3890
  %4215 = vmatmul.mubr.bf16.gmra.mrb[0].mxu0 %v3889
  %v4216 = vpop.f32.mrb[0].mxu0
  %v4217 = vadd.f32 0.0, %v4216
  %v4218 = vpop.f32.mrb[0].mxu0
  %v4219 = vpop.f32.mrb[0].mxu0
  %v4220 = vadd.f32 0.0, %v4219
  %v4221 = vpop.f32.mrb[0].mxu0
  %4222 = vmatprep.mubr.bf16.mxu0 %v3894
  %4223 = vmatmul.mubr.bf16.gmra.mrb[0].mxu0 %v3893
  %v4224 = vpop.f32.mrb[0].mxu0
  %v4225 = vadd.f32 0.0, %v4224
  %v4226 = vpop.f32.mrb[0].mxu0
  %v4227 = vpop.f32.mrb[0].mxu0
  %v4228 = vadd.f32 0.0, %v4227
  %v4229 = vpop.f32.mrb[0].mxu0
  %4230 = vmatprep.mubr.bf16.mxu0 %v3898
  %4231 = vmatmul.mubr.bf16.gmra.mrb[0].mxu0 %v3897
  %v4232 = vpop.f32.mrb[0].mxu0
  %v4233 = vadd.f32 0.0, %v4232
  %v4234 = vpop.f32.mrb[0].mxu0
  %v4235 = vpop.f32.mrb[0].mxu0
  %v4236 = vadd.f32 0.0, %v4235
  %v4237 = vpop.f32.mrb[0].mxu0
  %4238 = vmatprep.mubr.bf16.mxu0 %v3902
  %4239 = vmatmul.mubr.bf16.gmra.mrb[0].mxu0 %v3901
  %v4240 = vpop.f32.mrb[0].mxu0
  %v4241 = vadd.f32 0.0, %v4240
  %v4242 = vpop.f32.mrb[0].mxu0
  %v4243 = vpop.f32.mrb[0].mxu0
  %v4244 = vadd.f32 0.0, %v4243
  %v4245 = vpop.f32.mrb[0].mxu0
  %4246 = vmatprep.mubr.bf16.mxu0 %v3906
  %4247 = vmatmul.mubr.bf16.gmra.mrb[0].mxu0 %v3905
  %v4248 = vpop.f32.mrb[0].mxu0
  %v4249 = vadd.f32 0.0, %v4248
  %v4250 = vpop.f32.mrb[0].mxu0
  %v4251 = vpop.f32.mrb[0].mxu0
  %v4252 = vadd.f32 0.0, %v4251
  %v4253 = vpop.f32.mrb[0].mxu0
  %4254 = vmatprep.mubr.bf16.mxu0 %v3910
  %4255 = vmatmul.mubr.bf16.gmra.mrb[0].mxu0 %v3909
  %v4256 = vpop.f32.mrb[0].mxu0
  %v4257 = vadd.f32 0.0, %v4256
  %v4258 = vpop.f32.mrb[0].mxu0
  %v4259 = vpop.f32.mrb[0].mxu0
  %v4260 = vadd.f32 0.0, %v4259
  %v4261 = vpop.f32.mrb[0].mxu0
  %4262 = vmatprep.mubr.bf16.mxu0 %v3914
  %4263 = vmatmul.mubr.bf16.gmra.mrb[0].mxu0 %v3913
  %v4264 = vpop.f32.mrb[0].mxu0
  %v4265 = vadd.f32 0.0, %v4264
  %v4266 = vpop.f32.mrb[0].mxu0
  %v4267 = vpop.f32.mrb[0].mxu0
  %v4268 = vadd.f32 0.0, %v4267
  %v4269 = vpop.f32.mrb[0].mxu0
  %4270 = vdwg.mxu0
  %4271 = vmatprep.subr.bf16.mxu0 0
  %4272 = vmatpush1.bf16.msra.mxu0 %v4126
  %4273 = vmatprep.subr.bf16.mxu0 0
  %4274 = vmatpush1.bf16.msra.mxu0 %v4127
  %4275 = vmatprep.subr.bf16.mxu0 0
  %4276 = vmatpush1.bf16.msra.mxu0 %v4128
  %4277 = vmatprep.subr.bf16.mxu0 0
  %4278 = vmatpush1.bf16.msra.mxu0 %v4129
  %4279 = vmatprep.subr.bf16.mxu0 0
  %4280 = vmatpush1.bf16.msra.mxu0 %v4130
  %4281 = vmatprep.subr.bf16.mxu0 0
  %4282 = vmatpush1.bf16.msra.mxu0 %v4131
  %4283 = vmatprep.subr.bf16.mxu0 0
  %4284 = vmatpush1.bf16.msra.mxu0 %v4132
  %4285 = vmatprep.subr.bf16.mxu0 0
  %4286 = vmatpush1.bf16.msra.mxu0 %v4133
  %4287 = vmatprep.subr.bf16.mxu0 0
  %4288 = vmatpush1.bf16.msra.mxu0 %v4134
  %4289 = vmatprep.subr.bf16.mxu0 0
  %4290 = vmatpush1.bf16.msra.mxu0 %v4135
  %4291 = vmatprep.subr.bf16.mxu0 0
  %4292 = vmatpush1.bf16.msra.mxu0 %v4136
  %4293 = vmatprep.subr.bf16.mxu0 0
  %4294 = vmatpush1.bf16.msra.mxu0 %v4137
  %4295 = vmatprep.subr.bf16.mxu0 0
  %4296 = vmatpush1.bf16.msra.mxu0 %v4138
  %4297 = vmatprep.subr.bf16.mxu0 0
  %4298 = vmatpush1.bf16.msra.mxu0 %v4139
  %4299 = vmatprep.subr.bf16.mxu0 0
  %4300 = vmatpush1.bf16.msra.mxu0 %v4140
  %4301 = vmatprep.subr.bf16.mxu0 0
  %4302 = vmatpush1.bf16.msra.mxu0 %v4141
  %4303 = vmatprep.mubr.bf16.mxu0 %v3888
  %4304 = vmatmul.mubr.bf16.gmra.mrb[0].mxu0 %v3887
  %v4305 = vpop.f32.mrb[0].mxu0
  %v4306 = vadd.f32 %v4209, %v4305
  %v4307 = vpop.f32.mrb[0].mxu0
  %v4308 = vpop.f32.mrb[0].mxu0
  %v4309 = vadd.f32 %v4212, %v4308
  %v4310 = vpop.f32.mrb[0].mxu0
  %4311 = vmatprep.mubr.bf16.mxu0 %v3892
  %4312 = vmatmul.mubr.bf16.gmra.mrb[0].mxu0 %v3891
  %v4313 = vpop.f32.mrb[0].mxu0
  %v4314 = vadd.f32 %v4217, %v4313
  %v4315 = vpop.f32.mrb[0].mxu0
  %v4316 = vpop.f32.mrb[0].mxu0
  %v4317 = vadd.f32 %v4220, %v4316
  %v4318 = vpop.f32.mrb[0].mxu0
  %4319 = vmatprep.mubr.bf16.mxu0 %v3896
  %4320 = vmatmul.mubr.bf16.gmra.mrb[0].mxu0 %v3895
  %v4321 = vpop.f32.mrb[0].mxu0
  %v4322 = vadd.f32 %v4225, %v4321
  %v4323 = vpop.f32.mrb[0].mxu0
  %v4324 = vpop.f32.mrb[0].mxu0
  %v4325 = vadd.f32 %v4228, %v4324
  %v4326 = vpop.f32.mrb[0].mxu0
  %4327 = vmatprep.mubr.bf16.mxu0 %v3900
  %4328 = vmatmul.mubr.bf16.gmra.mrb[0].mxu0 %v3899
  %v4329 = vpop.f32.mrb[0].mxu0
  %v4330 = vadd.f32 %v4233, %v4329
  %v4331 = vpop.f32.mrb[0].mxu0
  %v4332 = vpop.f32.mrb[0].mxu0
  %v4333 = vadd.f32 %v4236, %v4332
  %v4334 = vpop.f32.mrb[0].mxu0
  %4335 = vmatprep.mubr.bf16.mxu0 %v3904
  %4336 = vmatmul.mubr.bf16.gmra.mrb[0].mxu0 %v3903
  %v4337 = vpop.f32.mrb[0].mxu0
  %v4338 = vadd.f32 %v4241, %v4337
  %v4339 = vpop.f32.mrb[0].mxu0
  %v4340 = vpop.f32.mrb[0].mxu0
  %v4341 = vadd.f32 %v4244, %v4340
  %v4342 = vpop.f32.mrb[0].mxu0
  %4343 = vmatprep.mubr.bf16.mxu0 %v3908
  %4344 = vmatmul.mubr.bf16.gmra.mrb[0].mxu0 %v3907
  %v4345 = vpop.f32.mrb[0].mxu0
  %v4346 = vadd.f32 %v4249, %v4345
  %v4347 = vpop.f32.mrb[0].mxu0
  %v4348 = vpop.f32.mrb[0].mxu0
  %v4349 = vadd.f32 %v4252, %v4348
  %v4350 = vpop.f32.mrb[0].mxu0
  %4351 = vmatprep.mubr.bf16.mxu0 %v3912
  %4352 = vmatmul.mubr.bf16.gmra.mrb[0].mxu0 %v3911
  %v4353 = vpop.f32.mrb[0].mxu0
  %v4354 = vadd.f32 %v4257, %v4353
  %v4355 = vpop.f32.mrb[0].mxu0
  %v4356 = vpop.f32.mrb[0].mxu0
  %v4357 = vadd.f32 %v4260, %v4356
  %v4358 = vpop.f32.mrb[0].mxu0
  %4359 = vmatprep.mubr.bf16.mxu0 %v3916
  %4360 = vmatmul.mubr.bf16.gmra.mrb[0].mxu0 %v3915
  %v4361 = vpop.f32.mrb[0].mxu0
  %v4362 = vadd.f32 %v4265, %v4361
  %v4363 = vpop.f32.mrb[0].mxu0
  %v4364 = vpop.f32.mrb[0].mxu0
  %v4365 = vadd.f32 %v4268, %v4364
  %v4366 = vpop.f32.mrb[0].mxu0
  %4367 = vdwg.mxu0
  %v4368 = vadd.f32 %v3498, %v4306
  %v4369 = vadd.f32 %v3499, %v4309
  %v4370 = vadd.f32 %v3500, %v4314
  %v4371 = vadd.f32 %v3501, %v4317
  %v4372 = vadd.f32 %v3502, %v4322
  %v4373 = vadd.f32 %v3503, %v4325
  %v4374 = vadd.f32 %v3504, %v4330
  %v4375 = vadd.f32 %v3505, %v4333
  %v4376 = vadd.f32 %v3506, %v4338
  %v4377 = vadd.f32 %v3507, %v4341
  %v4378 = vadd.f32 %v3508, %v4346
  %v4379 = vadd.f32 %v3509, %v4349
  %v4380 = vadd.f32 %v3510, %v4354
  %v4381 = vadd.f32 %v3511, %v4357
  %v4382 = vadd.f32 %v3512, %v4362
  %v4383 = vadd.f32 %v3513, %v4365
  %s4384 = scalar_lea.vmem %s0, 320
  %v4385 = vld [vmem:[%s4384] sm:$0xf]
  %v4386 = vld [vmem:[%s4384 + $0x4] sm:$0xf]
  %v4387 = vld [vmem:[%s4384 + $0x8] sm:$0xf]
  %v4388 = vld [vmem:[%s4384 + $0xc] sm:$0xf]
  %v4389 = vld [vmem:[%s4384 + $0x10] sm:$0xf]
  %v4390 = vld [vmem:[%s4384 + $0x14] sm:$0xf]
  %v4391 = vld [vmem:[%s4384 + $0x18] sm:$0xf]
  %v4392 = vld [vmem:[%s4384 + $0x1c] sm:$0xf]
  %v4393 = vld [vmem:[%s4384 + $0x20] sm:$0xf]
  %v4394 = vld [vmem:[%s4384 + $0x24] sm:$0xf]
  %v4395 = vld [vmem:[%s4384 + $0x28] sm:$0xf]
  %v4396 = vld [vmem:[%s4384 + $0x2c] sm:$0xf]
  %v4397 = vld [vmem:[%s4384 + $0x30] sm:$0xf]
  %v4398 = vld [vmem:[%s4384 + $0x34] sm:$0xf]
  %v4399 = vld [vmem:[%s4384 + $0x38] sm:$0xf]
  %v4400 = vld [vmem:[%s4384 + $0x3c] sm:$0xf]
  %v4417 = vunpack.c.l.b16 %v4385
  %v4418 = vunpack.c.l.b16 %v4386
  %v4419 = vunpack.c.l.b16 %v4387
  %v4420 = vunpack.c.l.b16 %v4388
  %v4421 = vunpack.c.l.b16 %v4389
  %v4422 = vunpack.c.l.b16 %v4390
  %v4423 = vunpack.c.l.b16 %v4391
  %v4424 = vunpack.c.l.b16 %v4392
  %v4425 = vunpack.c.l.b16 %v4393
  %v4426 = vunpack.c.l.b16 %v4394
  %v4427 = vunpack.c.l.b16 %v4395
  %v4428 = vunpack.c.l.b16 %v4396
  %v4429 = vunpack.c.l.b16 %v4397
  %v4430 = vunpack.c.l.b16 %v4398
  %v4431 = vunpack.c.l.b16 %v4399
  %v4432 = vunpack.c.l.b16 %v4400
  %v4433 = vpack.c.b16 %v4418, %v4417
  %v4434 = vpack.c.b16 %v4420, %v4419
  %v4435 = vpack.c.b16 %v4422, %v4421
  %v4436 = vpack.c.b16 %v4424, %v4423
  %v4437 = vpack.c.b16 %v4426, %v4425
  %v4438 = vpack.c.b16 %v4428, %v4427
  %v4439 = vpack.c.b16 %v4430, %v4429
  %v4440 = vpack.c.b16 %v4432, %v4431
  %v4442 = vsel %vm123, %v4433, 0
  %v4445 = vsel %vm123, %v4434, 0
  %v4448 = vsel %vm123, %v4435, 0
  %v4451 = vsel %vm123, %v4436, 0
  %v4454 = vsel %vm123, %v4437, 0
  %v4457 = vsel %vm123, %v4438, 0
  %v4460 = vsel %vm123, %v4439, 0
  %v4463 = vsel %vm123, %v4440, 0
  %4465 = vmatprep.subr.bf16.mxu0 %v108
  %4466 = vmatpush1.bf16.msra.mxu0 %v107
  %4467 = vmatprep.subr.bf16.mxu0 %v112
  %4468 = vmatpush1.bf16.msra.mxu0 %v111
  %4469 = vmatprep.subr.bf16.mxu0 0
  %4470 = vmatpush1.bf16.msra.mxu0 0
  %4471 = vmatprep.subr.bf16.mxu0 0
  %4472 = vmatpush1.bf16.msra.mxu0 0
  %4473 = vmatprep.subr.bf16.mxu0 0
  %4474 = vmatpush1.bf16.msra.mxu0 0
  %4475 = vmatprep.subr.bf16.mxu0 0
  %4476 = vmatpush1.bf16.msra.mxu0 0
  %4477 = vmatprep.subr.bf16.mxu0 0
  %4478 = vmatpush1.bf16.msra.mxu0 0
  %4479 = vmatprep.subr.bf16.mxu0 0
  %4480 = vmatpush1.bf16.msra.mxu0 0
  %4481 = vmatprep.subr.bf16.mxu0 0
  %4482 = vmatpush1.bf16.msra.mxu0 0
  %4483 = vmatprep.subr.bf16.mxu0 0
  %4484 = vmatpush1.bf16.msra.mxu0 0
  %4485 = vmatprep.subr.bf16.mxu0 0
  %4486 = vmatpush1.bf16.msra.mxu0 0
  %4487 = vmatprep.subr.bf16.mxu0 0
  %4488 = vmatpush1.bf16.msra.mxu0 0
  %4489 = vmatprep.subr.bf16.mxu0 0
  %4490 = vmatpush1.bf16.msra.mxu0 0
  %4491 = vmatprep.subr.bf16.mxu0 0
  %4492 = vmatpush1.bf16.msra.mxu0 0
  %4493 = vmatprep.subr.bf16.mxu0 0
  %4494 = vmatpush1.bf16.msra.mxu0 0
  %4495 = vmatprep.subr.bf16.mxu0 0
  %4496 = vmatpush1.bf16.msra.mxu0 0
  %4497 = vmatprep.mubr.bf16.mxu0 0
  %4498 = vmatmul.mubr.bf16.gmra.mrb[0].mxu0 %v4442
  %v4499 = vpop.f32.mrb[0].mxu0
  %v4500 = vadd.f32 0.0, %v4499
  %v4501 = vpop.f32.mrb[0].mxu0
  %v4502 = vadd.f32 0.0, %v4501
  %v4503 = vpop.f32.mrb[0].mxu0
  %v4504 = vadd.f32 0.0, %v4503
  %v4505 = vpop.f32.mrb[0].mxu0
  %v4506 = vadd.f32 0.0, %v4505
  %4507 = vmatprep.mubr.bf16.mxu0 0
  %4508 = vmatmul.mubr.bf16.gmra.mrb[0].mxu0 %v4445
  %v4509 = vpop.f32.mrb[0].mxu0
  %v4510 = vadd.f32 0.0, %v4509
  %v4511 = vpop.f32.mrb[0].mxu0
  %v4512 = vadd.f32 0.0, %v4511
  %v4513 = vpop.f32.mrb[0].mxu0
  %v4514 = vadd.f32 0.0, %v4513
  %v4515 = vpop.f32.mrb[0].mxu0
  %v4516 = vadd.f32 0.0, %v4515
  %4517 = vmatprep.mubr.bf16.mxu0 0
  %4518 = vmatmul.mubr.bf16.gmra.mrb[0].mxu0 %v4448
  %v4519 = vpop.f32.mrb[0].mxu0
  %v4520 = vadd.f32 0.0, %v4519
  %v4521 = vpop.f32.mrb[0].mxu0
  %v4522 = vadd.f32 0.0, %v4521
  %v4523 = vpop.f32.mrb[0].mxu0
  %v4524 = vadd.f32 0.0, %v4523
  %v4525 = vpop.f32.mrb[0].mxu0
  %v4526 = vadd.f32 0.0, %v4525
  %4527 = vmatprep.mubr.bf16.mxu0 0
  %4528 = vmatmul.mubr.bf16.gmra.mrb[0].mxu0 %v4451
  %v4529 = vpop.f32.mrb[0].mxu0
  %v4530 = vadd.f32 0.0, %v4529
  %v4531 = vpop.f32.mrb[0].mxu0
  %v4532 = vadd.f32 0.0, %v4531
  %v4533 = vpop.f32.mrb[0].mxu0
  %v4534 = vadd.f32 0.0, %v4533
  %v4535 = vpop.f32.mrb[0].mxu0
  %v4536 = vadd.f32 0.0, %v4535
  %4537 = vmatprep.mubr.bf16.mxu0 0
  %4538 = vmatmul.mubr.bf16.gmra.mrb[0].mxu0 %v4454
  %v4539 = vpop.f32.mrb[0].mxu0
  %v4540 = vadd.f32 0.0, %v4539
  %v4541 = vpop.f32.mrb[0].mxu0
  %v4542 = vadd.f32 0.0, %v4541
  %v4543 = vpop.f32.mrb[0].mxu0
  %v4544 = vadd.f32 0.0, %v4543
  %v4545 = vpop.f32.mrb[0].mxu0
  %v4546 = vadd.f32 0.0, %v4545
  %4547 = vmatprep.mubr.bf16.mxu0 0
  %4548 = vmatmul.mubr.bf16.gmra.mrb[0].mxu0 %v4457
  %v4549 = vpop.f32.mrb[0].mxu0
  %v4550 = vadd.f32 0.0, %v4549
  %v4551 = vpop.f32.mrb[0].mxu0
  %v4552 = vadd.f32 0.0, %v4551
  %v4553 = vpop.f32.mrb[0].mxu0
  %v4554 = vadd.f32 0.0, %v4553
  %v4555 = vpop.f32.mrb[0].mxu0
  %v4556 = vadd.f32 0.0, %v4555
  %4557 = vmatprep.mubr.bf16.mxu0 0
  %4558 = vmatmul.mubr.bf16.gmra.mrb[0].mxu0 %v4460
  %v4559 = vpop.f32.mrb[0].mxu0
  %v4560 = vadd.f32 0.0, %v4559
  %v4561 = vpop.f32.mrb[0].mxu0
  %v4562 = vadd.f32 0.0, %v4561
  %v4563 = vpop.f32.mrb[0].mxu0
  %v4564 = vadd.f32 0.0, %v4563
  %v4565 = vpop.f32.mrb[0].mxu0
  %v4566 = vadd.f32 0.0, %v4565
  %4567 = vmatprep.mubr.bf16.mxu0 0
  %4568 = vmatmul.mubr.bf16.gmra.mrb[0].mxu0 %v4463
  %v4569 = vpop.f32.mrb[0].mxu0
  %v4570 = vadd.f32 0.0, %v4569
  %v4571 = vpop.f32.mrb[0].mxu0
  %v4572 = vadd.f32 0.0, %v4571
  %v4573 = vpop.f32.mrb[0].mxu0
  %v4574 = vadd.f32 0.0, %v4573
  %v4575 = vpop.f32.mrb[0].mxu0
  %v4576 = vadd.f32 0.0, %v4575
  %4577 = vdwg.mxu0
  %4578 = vmatprep.subr.bf16.mxu0 %v110
  %4579 = vmatpush1.bf16.msra.mxu0 %v109
  %4580 = vmatprep.subr.bf16.mxu0 %v114
  %4581 = vmatpush1.bf16.msra.mxu0 %v113
  %4582 = vmatprep.subr.bf16.mxu0 0
  %4583 = vmatpush1.bf16.msra.mxu0 0
  %4584 = vmatprep.subr.bf16.mxu0 0
  %4585 = vmatpush1.bf16.msra.mxu0 0
  %4586 = vmatprep.subr.bf16.mxu0 0
  %4587 = vmatpush1.bf16.msra.mxu0 0
  %4588 = vmatprep.subr.bf16.mxu0 0
  %4589 = vmatpush1.bf16.msra.mxu0 0
  %4590 = vmatprep.subr.bf16.mxu0 0
  %4591 = vmatpush1.bf16.msra.mxu0 0
  %4592 = vmatprep.subr.bf16.mxu0 0
  %4593 = vmatpush1.bf16.msra.mxu0 0
  %4594 = vmatprep.subr.bf16.mxu0 0
  %4595 = vmatpush1.bf16.msra.mxu0 0
  %4596 = vmatprep.subr.bf16.mxu0 0
  %4597 = vmatpush1.bf16.msra.mxu0 0
  %4598 = vmatprep.subr.bf16.mxu0 0
  %4599 = vmatpush1.bf16.msra.mxu0 0
  %4600 = vmatprep.subr.bf16.mxu0 0
  %4601 = vmatpush1.bf16.msra.mxu0 0
  %4602 = vmatprep.subr.bf16.mxu0 0
  %4603 = vmatpush1.bf16.msra.mxu0 0
  %4604 = vmatprep.subr.bf16.mxu0 0
  %4605 = vmatpush1.bf16.msra.mxu0 0
  %4606 = vmatprep.subr.bf16.mxu0 0
  %4607 = vmatpush1.bf16.msra.mxu0 0
  %4608 = vmatprep.subr.bf16.mxu0 0
  %4609 = vmatpush1.bf16.msra.mxu0 0
  %4610 = vmatprep.mubr.bf16.mxu0 0
  %4611 = vmatmul.mubr.bf16.gmra.mrb[0].mxu0 %v4442
  %v4612 = vpop.f32.mrb[0].mxu0
  %v4613 = vadd.f32 0.0, %v4612
  %v4614 = vpop.f32.mrb[0].mxu0
  %v4615 = vadd.f32 0.0, %v4614
  %v4616 = vpop.f32.mrb[0].mxu0
  %v4617 = vadd.f32 0.0, %v4616
  %v4618 = vpop.f32.mrb[0].mxu0
  %v4619 = vadd.f32 0.0, %v4618
  %4620 = vmatprep.mubr.bf16.mxu0 0
  %4621 = vmatmul.mubr.bf16.gmra.mrb[0].mxu0 %v4445
  %v4622 = vpop.f32.mrb[0].mxu0
  %v4623 = vadd.f32 0.0, %v4622
  %v4624 = vpop.f32.mrb[0].mxu0
  %v4625 = vadd.f32 0.0, %v4624
  %v4626 = vpop.f32.mrb[0].mxu0
  %v4627 = vadd.f32 0.0, %v4626
  %v4628 = vpop.f32.mrb[0].mxu0
  %v4629 = vadd.f32 0.0, %v4628
  %4630 = vmatprep.mubr.bf16.mxu0 0
  %4631 = vmatmul.mubr.bf16.gmra.mrb[0].mxu0 %v4448
  %v4632 = vpop.f32.mrb[0].mxu0
  %v4633 = vadd.f32 0.0, %v4632
  %v4634 = vpop.f32.mrb[0].mxu0
  %v4635 = vadd.f32 0.0, %v4634
  %v4636 = vpop.f32.mrb[0].mxu0
  %v4637 = vadd.f32 0.0, %v4636
  %v4638 = vpop.f32.mrb[0].mxu0
  %v4639 = vadd.f32 0.0, %v4638
  %4640 = vmatprep.mubr.bf16.mxu0 0
  %4641 = vmatmul.mubr.bf16.gmra.mrb[0].mxu0 %v4451
  %v4642 = vpop.f32.mrb[0].mxu0
  %v4643 = vadd.f32 0.0, %v4642
  %v4644 = vpop.f32.mrb[0].mxu0
  %v4645 = vadd.f32 0.0, %v4644
  %v4646 = vpop.f32.mrb[0].mxu0
  %v4647 = vadd.f32 0.0, %v4646
  %v4648 = vpop.f32.mrb[0].mxu0
  %v4649 = vadd.f32 0.0, %v4648
  %4650 = vmatprep.mubr.bf16.mxu0 0
  %4651 = vmatmul.mubr.bf16.gmra.mrb[0].mxu0 %v4454
  %v4652 = vpop.f32.mrb[0].mxu0
  %v4653 = vadd.f32 0.0, %v4652
  %v4654 = vpop.f32.mrb[0].mxu0
  %v4655 = vadd.f32 0.0, %v4654
  %v4656 = vpop.f32.mrb[0].mxu0
  %v4657 = vadd.f32 0.0, %v4656
  %v4658 = vpop.f32.mrb[0].mxu0
  %v4659 = vadd.f32 0.0, %v4658
  %4660 = vmatprep.mubr.bf16.mxu0 0
  %4661 = vmatmul.mubr.bf16.gmra.mrb[0].mxu0 %v4457
  %v4662 = vpop.f32.mrb[0].mxu0
  %v4663 = vadd.f32 0.0, %v4662
  %v4664 = vpop.f32.mrb[0].mxu0
  %v4665 = vadd.f32 0.0, %v4664
  %v4666 = vpop.f32.mrb[0].mxu0
  %v4667 = vadd.f32 0.0, %v4666
  %v4668 = vpop.f32.mrb[0].mxu0
  %v4669 = vadd.f32 0.0, %v4668
  %4670 = vmatprep.mubr.bf16.mxu0 0
  %4671 = vmatmul.mubr.bf16.gmra.mrb[0].mxu0 %v4460
  %v4672 = vpop.f32.mrb[0].mxu0
  %v4673 = vadd.f32 0.0, %v4672
  %v4674 = vpop.f32.mrb[0].mxu0
  %v4675 = vadd.f32 0.0, %v4674
  %v4676 = vpop.f32.mrb[0].mxu0
  %v4677 = vadd.f32 0.0, %v4676
  %v4678 = vpop.f32.mrb[0].mxu0
  %v4679 = vadd.f32 0.0, %v4678
  %4680 = vmatprep.mubr.bf16.mxu0 0
  %4681 = vmatmul.mubr.bf16.gmra.mrb[0].mxu0 %v4463
  %v4682 = vpop.f32.mrb[0].mxu0
  %v4683 = vadd.f32 0.0, %v4682
  %v4684 = vpop.f32.mrb[0].mxu0
  %v4685 = vadd.f32 0.0, %v4684
  %v4686 = vpop.f32.mrb[0].mxu0
  %v4687 = vadd.f32 0.0, %v4686
  %v4688 = vpop.f32.mrb[0].mxu0
  %v4689 = vadd.f32 0.0, %v4688
  %4690 = vdwg.mxu0
  %v4691 = vmax.f32 %v4500, 0.0
  %v4692 = vmax.f32 %v4502, 0.0
  %v4693 = vmax.f32 %v4613, 0.0
  %v4694 = vmax.f32 %v4615, 0.0
  %v4695 = vmax.f32 %v4504, 0.0
  %v4696 = vmax.f32 %v4506, 0.0
  %v4697 = vmax.f32 %v4617, 0.0
  %v4698 = vmax.f32 %v4619, 0.0
  %v4699 = vmax.f32 %v4510, 0.0
  %v4700 = vmax.f32 %v4512, 0.0
  %v4701 = vmax.f32 %v4623, 0.0
  %v4702 = vmax.f32 %v4625, 0.0
  %v4703 = vmax.f32 %v4514, 0.0
  %v4704 = vmax.f32 %v4516, 0.0
  %v4705 = vmax.f32 %v4627, 0.0
  %v4706 = vmax.f32 %v4629, 0.0
  %v4707 = vmax.f32 %v4520, 0.0
  %v4708 = vmax.f32 %v4522, 0.0
  %v4709 = vmax.f32 %v4633, 0.0
  %v4710 = vmax.f32 %v4635, 0.0
  %v4711 = vmax.f32 %v4524, 0.0
  %v4712 = vmax.f32 %v4526, 0.0
  %v4713 = vmax.f32 %v4637, 0.0
  %v4714 = vmax.f32 %v4639, 0.0
  %v4715 = vmax.f32 %v4530, 0.0
  %v4716 = vmax.f32 %v4532, 0.0
  %v4717 = vmax.f32 %v4643, 0.0
  %v4718 = vmax.f32 %v4645, 0.0
  %v4719 = vmax.f32 %v4534, 0.0
  %v4720 = vmax.f32 %v4536, 0.0
  %v4721 = vmax.f32 %v4647, 0.0
  %v4722 = vmax.f32 %v4649, 0.0
  %v4723 = vmax.f32 %v4540, 0.0
  %v4724 = vmax.f32 %v4542, 0.0
  %v4725 = vmax.f32 %v4653, 0.0
  %v4726 = vmax.f32 %v4655, 0.0
  %v4727 = vmax.f32 %v4544, 0.0
  %v4728 = vmax.f32 %v4546, 0.0
  %v4729 = vmax.f32 %v4657, 0.0
  %v4730 = vmax.f32 %v4659, 0.0
  %v4731 = vmax.f32 %v4550, 0.0
  %v4732 = vmax.f32 %v4552, 0.0
  %v4733 = vmax.f32 %v4663, 0.0
  %v4734 = vmax.f32 %v4665, 0.0
  %v4735 = vmax.f32 %v4554, 0.0
  %v4736 = vmax.f32 %v4556, 0.0
  %v4737 = vmax.f32 %v4667, 0.0
  %v4738 = vmax.f32 %v4669, 0.0
  %v4739 = vmax.f32 %v4560, 0.0
  %v4740 = vmax.f32 %v4562, 0.0
  %v4741 = vmax.f32 %v4673, 0.0
  %v4742 = vmax.f32 %v4675, 0.0
  %v4743 = vmax.f32 %v4564, 0.0
  %v4744 = vmax.f32 %v4566, 0.0
  %v4745 = vmax.f32 %v4677, 0.0
  %v4746 = vmax.f32 %v4679, 0.0
  %v4747 = vmax.f32 %v4570, 0.0
  %v4748 = vmax.f32 %v4572, 0.0
  %v4749 = vmax.f32 %v4683, 0.0
  %v4750 = vmax.f32 %v4685, 0.0
  %v4751 = vmax.f32 %v4574, 0.0
  %v4752 = vmax.f32 %v4576, 0.0
  %v4753 = vmax.f32 %v4687, 0.0
  %v4754 = vmax.f32 %v4689, 0.0
  %v4755 = vpack.c.bf16 %v4695, %v4691
  %v4756 = vpack.c.bf16 %v4696, %v4692
  %v4757 = vpack.c.bf16 %v4697, %v4693
  %v4758 = vpack.c.bf16 %v4698, %v4694
  %v4759 = vpack.c.bf16 %v4703, %v4699
  %v4760 = vpack.c.bf16 %v4704, %v4700
  %v4761 = vpack.c.bf16 %v4705, %v4701
  %v4762 = vpack.c.bf16 %v4706, %v4702
  %v4763 = vpack.c.bf16 %v4711, %v4707
  %v4764 = vpack.c.bf16 %v4712, %v4708
  %v4765 = vpack.c.bf16 %v4713, %v4709
  %v4766 = vpack.c.bf16 %v4714, %v4710
  %v4767 = vpack.c.bf16 %v4719, %v4715
  %v4768 = vpack.c.bf16 %v4720, %v4716
  %v4769 = vpack.c.bf16 %v4721, %v4717
  %v4770 = vpack.c.bf16 %v4722, %v4718
  %v4771 = vpack.c.bf16 %v4727, %v4723
  %v4772 = vpack.c.bf16 %v4728, %v4724
  %v4773 = vpack.c.bf16 %v4729, %v4725
  %v4774 = vpack.c.bf16 %v4730, %v4726
  %v4775 = vpack.c.bf16 %v4735, %v4731
  %v4776 = vpack.c.bf16 %v4736, %v4732
  %v4777 = vpack.c.bf16 %v4737, %v4733
  %v4778 = vpack.c.bf16 %v4738, %v4734
  %v4779 = vpack.c.bf16 %v4743, %v4739
  %v4780 = vpack.c.bf16 %v4744, %v4740
  %v4781 = vpack.c.bf16 %v4745, %v4741
  %v4782 = vpack.c.bf16 %v4746, %v4742
  %v4783 = vpack.c.bf16 %v4751, %v4747
  %v4784 = vpack.c.bf16 %v4752, %v4748
  %v4785 = vpack.c.bf16 %v4753, %v4749
  %v4786 = vpack.c.bf16 %v4754, %v4750
  %s4787 = scalar_lea.vmem %s2, 1280
  %v4788 = vld [vmem:[%s4787] sm:$0xf]
  %v4789 = vld [vmem:[%s4787 + $0x4] sm:$0xf]
  %v4790 = vld [vmem:[%s4787 + $0x8] sm:$0xf]
  %v4791 = vld [vmem:[%s4787 + $0xc] sm:$0xf]
  %v4792 = vld [vmem:[%s4787 + $0x10] sm:$0xf]
  %v4793 = vld [vmem:[%s4787 + $0x14] sm:$0xf]
  %v4794 = vld [vmem:[%s4787 + $0x18] sm:$0xf]
  %v4795 = vld [vmem:[%s4787 + $0x1c] sm:$0xf]
  %v4796 = vld [vmem:[%s4787 + $0x20] sm:$0xf]
  %v4797 = vld [vmem:[%s4787 + $0x24] sm:$0xf]
  %v4798 = vld [vmem:[%s4787 + $0x28] sm:$0xf]
  %v4799 = vld [vmem:[%s4787 + $0x2c] sm:$0xf]
  %v4800 = vld [vmem:[%s4787 + $0x30] sm:$0xf]
  %v4801 = vld [vmem:[%s4787 + $0x34] sm:$0xf]
  %v4802 = vld [vmem:[%s4787 + $0x38] sm:$0xf]
  %v4803 = vld [vmem:[%s4787 + $0x3c] sm:$0xf]
  %v4804 = vld [vmem:[%s4787 + $0x40] sm:$0xf]
  %v4805 = vld [vmem:[%s4787 + $0x44] sm:$0xf]
  %v4806 = vld [vmem:[%s4787 + $0x48] sm:$0xf]
  %v4807 = vld [vmem:[%s4787 + $0x4c] sm:$0xf]
  %v4808 = vld [vmem:[%s4787 + $0x50] sm:$0xf]
  %v4809 = vld [vmem:[%s4787 + $0x54] sm:$0xf]
  %v4810 = vld [vmem:[%s4787 + $0x58] sm:$0xf]
  %v4811 = vld [vmem:[%s4787 + $0x5c] sm:$0xf]
  %v4812 = vld [vmem:[%s4787 + $0x60] sm:$0xf]
  %v4813 = vld [vmem:[%s4787 + $0x64] sm:$0xf]
  %v4814 = vld [vmem:[%s4787 + $0x68] sm:$0xf]
  %v4815 = vld [vmem:[%s4787 + $0x6c] sm:$0xf]
  %v4816 = vld [vmem:[%s4787 + $0x70] sm:$0xf]
  %v4817 = vld [vmem:[%s4787 + $0x74] sm:$0xf]
  %v4818 = vld [vmem:[%s4787 + $0x78] sm:$0xf]
  %v4819 = vld [vmem:[%s4787 + $0x7c] sm:$0xf]
  %v4820 = vld [vmem:[%s4787 + $0x80] sm:$0xf]
  %v4821 = vld [vmem:[%s4787 + $0x84] sm:$0xf]
  %v4822 = vld [vmem:[%s4787 + $0x88] sm:$0xf]
  %v4823 = vld [vmem:[%s4787 + $0x8c] sm:$0xf]
  %v4824 = vld [vmem:[%s4787 + $0x90] sm:$0xf]
  %v4825 = vld [vmem:[%s4787 + $0x94] sm:$0xf]
  %v4826 = vld [vmem:[%s4787 + $0x98] sm:$0xf]
  %v4827 = vld [vmem:[%s4787 + $0x9c] sm:$0xf]
  %v4828 = vld [vmem:[%s4787 + $0xa0] sm:$0xf]
  %v4829 = vld [vmem:[%s4787 + $0xa4] sm:$0xf]
  %v4830 = vld [vmem:[%s4787 + $0xa8] sm:$0xf]
  %v4831 = vld [vmem:[%s4787 + $0xac] sm:$0xf]
  %v4832 = vld [vmem:[%s4787 + $0xb0] sm:$0xf]
  %v4833 = vld [vmem:[%s4787 + $0xb4] sm:$0xf]
  %v4834 = vld [vmem:[%s4787 + $0xb8] sm:$0xf]
  %v4835 = vld [vmem:[%s4787 + $0xbc] sm:$0xf]
  %v4836 = vld [vmem:[%s4787 + $0xc0] sm:$0xf]
  %v4837 = vld [vmem:[%s4787 + $0xc4] sm:$0xf]
  %v4838 = vld [vmem:[%s4787 + $0xc8] sm:$0xf]
  %v4839 = vld [vmem:[%s4787 + $0xcc] sm:$0xf]
  %v4840 = vld [vmem:[%s4787 + $0xd0] sm:$0xf]
  %v4841 = vld [vmem:[%s4787 + $0xd4] sm:$0xf]
  %v4842 = vld [vmem:[%s4787 + $0xd8] sm:$0xf]
  %v4843 = vld [vmem:[%s4787 + $0xdc] sm:$0xf]
  %v4844 = vld [vmem:[%s4787 + $0xe0] sm:$0xf]
  %v4845 = vld [vmem:[%s4787 + $0xe4] sm:$0xf]
  %v4846 = vld [vmem:[%s4787 + $0xe8] sm:$0xf]
  %v4847 = vld [vmem:[%s4787 + $0xec] sm:$0xf]
  %v4848 = vld [vmem:[%s4787 + $0xf0] sm:$0xf]
  %v4849 = vld [vmem:[%s4787 + $0xf4] sm:$0xf]
  %v4850 = vld [vmem:[%s4787 + $0xf8] sm:$0xf]
  %v4851 = vld [vmem:[%s4787 + $0xfc] sm:$0xf]
  %v4916 = vunpack.c.l.b16 %v4788
  %v4917 = vunpack.c.l.b16 %v4789
  %v4918 = vunpack.c.l.b16 %v4790
  %v4919 = vunpack.c.l.b16 %v4791
  %v4920 = vunpack.c.l.b16 %v4792
  %v4921 = vunpack.c.l.b16 %v4793
  %v4922 = vunpack.c.l.b16 %v4794
  %v4923 = vunpack.c.l.b16 %v4795
  %v4924 = vunpack.c.l.b16 %v4796
  %v4925 = vunpack.c.l.b16 %v4797
  %v4926 = vunpack.c.l.b16 %v4798
  %v4927 = vunpack.c.l.b16 %v4799
  %v4928 = vunpack.c.l.b16 %v4800
  %v4929 = vunpack.c.l.b16 %v4801
  %v4930 = vunpack.c.l.b16 %v4802
  %v4931 = vunpack.c.l.b16 %v4803
  %v4932 = vunpack.c.l.b16 %v4804
  %v4933 = vunpack.c.l.b16 %v4805
  %v4934 = vunpack.c.l.b16 %v4806
  %v4935 = vunpack.c.l.b16 %v4807
  %v4936 = vunpack.c.l.b16 %v4808
  %v4937 = vunpack.c.l.b16 %v4809
  %v4938 = vunpack.c.l.b16 %v4810
  %v4939 = vunpack.c.l.b16 %v4811
  %v4940 = vunpack.c.l.b16 %v4812
  %v4941 = vunpack.c.l.b16 %v4813
  %v4942 = vunpack.c.l.b16 %v4814
  %v4943 = vunpack.c.l.b16 %v4815
  %v4944 = vunpack.c.l.b16 %v4816
  %v4945 = vunpack.c.l.b16 %v4817
  %v4946 = vunpack.c.l.b16 %v4818
  %v4947 = vunpack.c.l.b16 %v4819
  %v4948 = vunpack.c.l.b16 %v4820
  %v4949 = vunpack.c.l.b16 %v4821
  %v4950 = vunpack.c.l.b16 %v4822
  %v4951 = vunpack.c.l.b16 %v4823
  %v4952 = vunpack.c.l.b16 %v4824
  %v4953 = vunpack.c.l.b16 %v4825
  %v4954 = vunpack.c.l.b16 %v4826
  %v4955 = vunpack.c.l.b16 %v4827
  %v4956 = vunpack.c.l.b16 %v4828
  %v4957 = vunpack.c.l.b16 %v4829
  %v4958 = vunpack.c.l.b16 %v4830
  %v4959 = vunpack.c.l.b16 %v4831
  %v4960 = vunpack.c.l.b16 %v4832
  %v4961 = vunpack.c.l.b16 %v4833
  %v4962 = vunpack.c.l.b16 %v4834
  %v4963 = vunpack.c.l.b16 %v4835
  %v4964 = vunpack.c.l.b16 %v4836
  %v4965 = vunpack.c.l.b16 %v4837
  %v4966 = vunpack.c.l.b16 %v4838
  %v4967 = vunpack.c.l.b16 %v4839
  %v4968 = vunpack.c.l.b16 %v4840
  %v4969 = vunpack.c.l.b16 %v4841
  %v4970 = vunpack.c.l.b16 %v4842
  %v4971 = vunpack.c.l.b16 %v4843
  %v4972 = vunpack.c.l.b16 %v4844
  %v4973 = vunpack.c.l.b16 %v4845
  %v4974 = vunpack.c.l.b16 %v4846
  %v4975 = vunpack.c.l.b16 %v4847
  %v4976 = vunpack.c.l.b16 %v4848
  %v4977 = vunpack.c.l.b16 %v4849
  %v4978 = vunpack.c.l.b16 %v4850
  %v4979 = vunpack.c.l.b16 %v4851
  %v4980 = vpack.c.b16 %v4917, %v4916
  %v4981 = vpack.c.b16 %v4919, %v4918
  %v4982 = vpack.c.b16 %v4921, %v4920
  %v4983 = vpack.c.b16 %v4923, %v4922
  %v4984 = vpack.c.b16 %v4925, %v4924
  %v4985 = vpack.c.b16 %v4927, %v4926
  %v4986 = vpack.c.b16 %v4929, %v4928
  %v4987 = vpack.c.b16 %v4931, %v4930
  %v4988 = vpack.c.b16 %v4933, %v4932
  %v4989 = vpack.c.b16 %v4935, %v4934
  %v4990 = vpack.c.b16 %v4937, %v4936
  %v4991 = vpack.c.b16 %v4939, %v4938
  %v4992 = vpack.c.b16 %v4941, %v4940
  %v4993 = vpack.c.b16 %v4943, %v4942
  %v4994 = vpack.c.b16 %v4945, %v4944
  %v4995 = vpack.c.b16 %v4947, %v4946
  %v4996 = vpack.c.b16 %v4949, %v4948
  %v4997 = vpack.c.b16 %v4951, %v4950
  %v4998 = vpack.c.b16 %v4953, %v4952
  %v4999 = vpack.c.b16 %v4955, %v4954
  %v5000 = vpack.c.b16 %v4957, %v4956
  %v5001 = vpack.c.b16 %v4959, %v4958
  %v5002 = vpack.c.b16 %v4961, %v4960
  %v5003 = vpack.c.b16 %v4963, %v4962
  %v5004 = vpack.c.b16 %v4965, %v4964
  %v5005 = vpack.c.b16 %v4967, %v4966
  %v5006 = vpack.c.b16 %v4969, %v4968
  %v5007 = vpack.c.b16 %v4971, %v4970
  %v5008 = vpack.c.b16 %v4973, %v4972
  %v5009 = vpack.c.b16 %v4975, %v4974
  %v5010 = vpack.c.b16 %v4977, %v4976
  %v5011 = vpack.c.b16 %v4979, %v4978
  %5044 = vmatprep.subr.bf16.mxu0 0
  %5045 = vmatpush1.bf16.msra.mxu0 %v4980
  %5046 = vmatprep.subr.bf16.mxu0 0
  %5047 = vmatpush1.bf16.msra.mxu0 %v4981
  %5048 = vmatprep.subr.bf16.mxu0 0
  %5049 = vmatpush1.bf16.msra.mxu0 %v4982
  %5050 = vmatprep.subr.bf16.mxu0 0
  %5051 = vmatpush1.bf16.msra.mxu0 %v4983
  %5052 = vmatprep.subr.bf16.mxu0 0
  %5053 = vmatpush1.bf16.msra.mxu0 %v4984
  %5054 = vmatprep.subr.bf16.mxu0 0
  %5055 = vmatpush1.bf16.msra.mxu0 %v4985
  %5056 = vmatprep.subr.bf16.mxu0 0
  %5057 = vmatpush1.bf16.msra.mxu0 %v4986
  %5058 = vmatprep.subr.bf16.mxu0 0
  %5059 = vmatpush1.bf16.msra.mxu0 %v4987
  %5060 = vmatprep.subr.bf16.mxu0 0
  %5061 = vmatpush1.bf16.msra.mxu0 %v4988
  %5062 = vmatprep.subr.bf16.mxu0 0
  %5063 = vmatpush1.bf16.msra.mxu0 %v4989
  %5064 = vmatprep.subr.bf16.mxu0 0
  %5065 = vmatpush1.bf16.msra.mxu0 %v4990
  %5066 = vmatprep.subr.bf16.mxu0 0
  %5067 = vmatpush1.bf16.msra.mxu0 %v4991
  %5068 = vmatprep.subr.bf16.mxu0 0
  %5069 = vmatpush1.bf16.msra.mxu0 %v4992
  %5070 = vmatprep.subr.bf16.mxu0 0
  %5071 = vmatpush1.bf16.msra.mxu0 %v4993
  %5072 = vmatprep.subr.bf16.mxu0 0
  %5073 = vmatpush1.bf16.msra.mxu0 %v4994
  %5074 = vmatprep.subr.bf16.mxu0 0
  %5075 = vmatpush1.bf16.msra.mxu0 %v4995
  %5076 = vmatprep.mubr.bf16.mxu0 %v4756
  %5077 = vmatmul.mubr.bf16.gmra.mrb[0].mxu0 %v4755
  %v5078 = vpop.f32.mrb[0].mxu0
  %v5079 = vadd.f32 0.0, %v5078
  %v5080 = vpop.f32.mrb[0].mxu0
  %v5081 = vpop.f32.mrb[0].mxu0
  %v5082 = vadd.f32 0.0, %v5081
  %v5083 = vpop.f32.mrb[0].mxu0
  %5084 = vmatprep.mubr.bf16.mxu0 %v4760
  %5085 = vmatmul.mubr.bf16.gmra.mrb[0].mxu0 %v4759
  %v5086 = vpop.f32.mrb[0].mxu0
  %v5087 = vadd.f32 0.0, %v5086
  %v5088 = vpop.f32.mrb[0].mxu0
  %v5089 = vpop.f32.mrb[0].mxu0
  %v5090 = vadd.f32 0.0, %v5089
  %v5091 = vpop.f32.mrb[0].mxu0
  %5092 = vmatprep.mubr.bf16.mxu0 %v4764
  %5093 = vmatmul.mubr.bf16.gmra.mrb[0].mxu0 %v4763
  %v5094 = vpop.f32.mrb[0].mxu0
  %v5095 = vadd.f32 0.0, %v5094
  %v5096 = vpop.f32.mrb[0].mxu0
  %v5097 = vpop.f32.mrb[0].mxu0
  %v5098 = vadd.f32 0.0, %v5097
  %v5099 = vpop.f32.mrb[0].mxu0
  %5100 = vmatprep.mubr.bf16.mxu0 %v4768
  %5101 = vmatmul.mubr.bf16.gmra.mrb[0].mxu0 %v4767
  %v5102 = vpop.f32.mrb[0].mxu0
  %v5103 = vadd.f32 0.0, %v5102
  %v5104 = vpop.f32.mrb[0].mxu0
  %v5105 = vpop.f32.mrb[0].mxu0
  %v5106 = vadd.f32 0.0, %v5105
  %v5107 = vpop.f32.mrb[0].mxu0
  %5108 = vmatprep.mubr.bf16.mxu0 %v4772
  %5109 = vmatmul.mubr.bf16.gmra.mrb[0].mxu0 %v4771
  %v5110 = vpop.f32.mrb[0].mxu0
  %v5111 = vadd.f32 0.0, %v5110
  %v5112 = vpop.f32.mrb[0].mxu0
  %v5113 = vpop.f32.mrb[0].mxu0
  %v5114 = vadd.f32 0.0, %v5113
  %v5115 = vpop.f32.mrb[0].mxu0
  %5116 = vmatprep.mubr.bf16.mxu0 %v4776
  %5117 = vmatmul.mubr.bf16.gmra.mrb[0].mxu0 %v4775
  %v5118 = vpop.f32.mrb[0].mxu0
  %v5119 = vadd.f32 0.0, %v5118
  %v5120 = vpop.f32.mrb[0].mxu0
  %v5121 = vpop.f32.mrb[0].mxu0
  %v5122 = vadd.f32 0.0, %v5121
  %v5123 = vpop.f32.mrb[0].mxu0
  %5124 = vmatprep.mubr.bf16.mxu0 %v4780
  %5125 = vmatmul.mubr.bf16.gmra.mrb[0].mxu0 %v4779
  %v5126 = vpop.f32.mrb[0].mxu0
  %v5127 = vadd.f32 0.0, %v5126
  %v5128 = vpop.f32.mrb[0].mxu0
  %v5129 = vpop.f32.mrb[0].mxu0
  %v5130 = vadd.f32 0.0, %v5129
  %v5131 = vpop.f32.mrb[0].mxu0
  %5132 = vmatprep.mubr.bf16.mxu0 %v4784
  %5133 = vmatmul.mubr.bf16.gmra.mrb[0].mxu0 %v4783
  %v5134 = vpop.f32.mrb[0].mxu0
  %v5135 = vadd.f32 0.0, %v5134
  %v5136 = vpop.f32.mrb[0].mxu0
  %v5137 = vpop.f32.mrb[0].mxu0
  %v5138 = vadd.f32 0.0, %v5137
  %v5139 = vpop.f32.mrb[0].mxu0
  %5140 = vdwg.mxu0
  %5141 = vmatprep.subr.bf16.mxu0 0
  %5142 = vmatpush1.bf16.msra.mxu0 %v4996
  %5143 = vmatprep.subr.bf16.mxu0 0
  %5144 = vmatpush1.bf16.msra.mxu0 %v4997
  %5145 = vmatprep.subr.bf16.mxu0 0
  %5146 = vmatpush1.bf16.msra.mxu0 %v4998
  %5147 = vmatprep.subr.bf16.mxu0 0
  %5148 = vmatpush1.bf16.msra.mxu0 %v4999
  %5149 = vmatprep.subr.bf16.mxu0 0
  %5150 = vmatpush1.bf16.msra.mxu0 %v5000
  %5151 = vmatprep.subr.bf16.mxu0 0
  %5152 = vmatpush1.bf16.msra.mxu0 %v5001
  %5153 = vmatprep.subr.bf16.mxu0 0
  %5154 = vmatpush1.bf16.msra.mxu0 %v5002
  %5155 = vmatprep.subr.bf16.mxu0 0
  %5156 = vmatpush1.bf16.msra.mxu0 %v5003
  %5157 = vmatprep.subr.bf16.mxu0 0
  %5158 = vmatpush1.bf16.msra.mxu0 %v5004
  %5159 = vmatprep.subr.bf16.mxu0 0
  %5160 = vmatpush1.bf16.msra.mxu0 %v5005
  %5161 = vmatprep.subr.bf16.mxu0 0
  %5162 = vmatpush1.bf16.msra.mxu0 %v5006
  %5163 = vmatprep.subr.bf16.mxu0 0
  %5164 = vmatpush1.bf16.msra.mxu0 %v5007
  %5165 = vmatprep.subr.bf16.mxu0 0
  %5166 = vmatpush1.bf16.msra.mxu0 %v5008
  %5167 = vmatprep.subr.bf16.mxu0 0
  %5168 = vmatpush1.bf16.msra.mxu0 %v5009
  %5169 = vmatprep.subr.bf16.mxu0 0
  %5170 = vmatpush1.bf16.msra.mxu0 %v5010
  %5171 = vmatprep.subr.bf16.mxu0 0
  %5172 = vmatpush1.bf16.msra.mxu0 %v5011
  %5173 = vmatprep.mubr.bf16.mxu0 %v4758
  %5174 = vmatmul.mubr.bf16.gmra.mrb[0].mxu0 %v4757
  %v5175 = vpop.f32.mrb[0].mxu0
  %v5176 = vadd.f32 %v5079, %v5175
  %v5177 = vpop.f32.mrb[0].mxu0
  %v5178 = vpop.f32.mrb[0].mxu0
  %v5179 = vadd.f32 %v5082, %v5178
  %v5180 = vpop.f32.mrb[0].mxu0
  %5181 = vmatprep.mubr.bf16.mxu0 %v4762
  %5182 = vmatmul.mubr.bf16.gmra.mrb[0].mxu0 %v4761
  %v5183 = vpop.f32.mrb[0].mxu0
  %v5184 = vadd.f32 %v5087, %v5183
  %v5185 = vpop.f32.mrb[0].mxu0
  %v5186 = vpop.f32.mrb[0].mxu0
  %v5187 = vadd.f32 %v5090, %v5186
  %v5188 = vpop.f32.mrb[0].mxu0
  %5189 = vmatprep.mubr.bf16.mxu0 %v4766
  %5190 = vmatmul.mubr.bf16.gmra.mrb[0].mxu0 %v4765
  %v5191 = vpop.f32.mrb[0].mxu0
  %v5192 = vadd.f32 %v5095, %v5191
  %v5193 = vpop.f32.mrb[0].mxu0
  %v5194 = vpop.f32.mrb[0].mxu0
  %v5195 = vadd.f32 %v5098, %v5194
  %v5196 = vpop.f32.mrb[0].mxu0
  %5197 = vmatprep.mubr.bf16.mxu0 %v4770
  %5198 = vmatmul.mubr.bf16.gmra.mrb[0].mxu0 %v4769
  %v5199 = vpop.f32.mrb[0].mxu0
  %v5200 = vadd.f32 %v5103, %v5199
  %v5201 = vpop.f32.mrb[0].mxu0
  %v5202 = vpop.f32.mrb[0].mxu0
  %v5203 = vadd.f32 %v5106, %v5202
  %v5204 = vpop.f32.mrb[0].mxu0
  %5205 = vmatprep.mubr.bf16.mxu0 %v4774
  %5206 = vmatmul.mubr.bf16.gmra.mrb[0].mxu0 %v4773
  %v5207 = vpop.f32.mrb[0].mxu0
  %v5208 = vadd.f32 %v5111, %v5207
  %v5209 = vpop.f32.mrb[0].mxu0
  %v5210 = vpop.f32.mrb[0].mxu0
  %v5211 = vadd.f32 %v5114, %v5210
  %v5212 = vpop.f32.mrb[0].mxu0
  %5213 = vmatprep.mubr.bf16.mxu0 %v4778
  %5214 = vmatmul.mubr.bf16.gmra.mrb[0].mxu0 %v4777
  %v5215 = vpop.f32.mrb[0].mxu0
  %v5216 = vadd.f32 %v5119, %v5215
  %v5217 = vpop.f32.mrb[0].mxu0
  %v5218 = vpop.f32.mrb[0].mxu0
  %v5219 = vadd.f32 %v5122, %v5218
  %v5220 = vpop.f32.mrb[0].mxu0
  %5221 = vmatprep.mubr.bf16.mxu0 %v4782
  %5222 = vmatmul.mubr.bf16.gmra.mrb[0].mxu0 %v4781
  %v5223 = vpop.f32.mrb[0].mxu0
  %v5224 = vadd.f32 %v5127, %v5223
  %v5225 = vpop.f32.mrb[0].mxu0
  %v5226 = vpop.f32.mrb[0].mxu0
  %v5227 = vadd.f32 %v5130, %v5226
  %v5228 = vpop.f32.mrb[0].mxu0
  %5229 = vmatprep.mubr.bf16.mxu0 %v4786
  %5230 = vmatmul.mubr.bf16.gmra.mrb[0].mxu0 %v4785
  %v5231 = vpop.f32.mrb[0].mxu0
  %v5232 = vadd.f32 %v5135, %v5231
  %v5233 = vpop.f32.mrb[0].mxu0
  %v5234 = vpop.f32.mrb[0].mxu0
  %v5235 = vadd.f32 %v5138, %v5234
  %v5236 = vpop.f32.mrb[0].mxu0
  %5237 = vdwg.mxu0
  %v5238 = vadd.f32 %v4368, %v5176
  %v5239 = vadd.f32 %v4369, %v5179
  %v5240 = vadd.f32 %v4370, %v5184
  %v5241 = vadd.f32 %v4371, %v5187
  %v5242 = vadd.f32 %v4372, %v5192
  %v5243 = vadd.f32 %v4373, %v5195
  %v5244 = vadd.f32 %v4374, %v5200
  %v5245 = vadd.f32 %v4375, %v5203
  %v5246 = vadd.f32 %v4376, %v5208
  %v5247 = vadd.f32 %v4377, %v5211
  %v5248 = vadd.f32 %v4378, %v5216
  %v5249 = vadd.f32 %v4379, %v5219
  %v5250 = vadd.f32 %v4380, %v5224
  %v5251 = vadd.f32 %v4381, %v5227
  %v5252 = vadd.f32 %v4382, %v5232
  %v5253 = vadd.f32 %v4383, %v5235
  %s5254 = scalar_lea.vmem %s0, 384
  %v5255 = vld [vmem:[%s5254] sm:$0xf]
  %v5256 = vld [vmem:[%s5254 + $0x4] sm:$0xf]
  %v5257 = vld [vmem:[%s5254 + $0x8] sm:$0xf]
  %v5258 = vld [vmem:[%s5254 + $0xc] sm:$0xf]
  %v5259 = vld [vmem:[%s5254 + $0x10] sm:$0xf]
  %v5260 = vld [vmem:[%s5254 + $0x14] sm:$0xf]
  %v5261 = vld [vmem:[%s5254 + $0x18] sm:$0xf]
  %v5262 = vld [vmem:[%s5254 + $0x1c] sm:$0xf]
  %v5263 = vld [vmem:[%s5254 + $0x20] sm:$0xf]
  %v5264 = vld [vmem:[%s5254 + $0x24] sm:$0xf]
  %v5265 = vld [vmem:[%s5254 + $0x28] sm:$0xf]
  %v5266 = vld [vmem:[%s5254 + $0x2c] sm:$0xf]
  %v5267 = vld [vmem:[%s5254 + $0x30] sm:$0xf]
  %v5268 = vld [vmem:[%s5254 + $0x34] sm:$0xf]
  %v5269 = vld [vmem:[%s5254 + $0x38] sm:$0xf]
  %v5270 = vld [vmem:[%s5254 + $0x3c] sm:$0xf]
  %v5287 = vunpack.c.l.b16 %v5255
  %v5288 = vunpack.c.l.b16 %v5256
  %v5289 = vunpack.c.l.b16 %v5257
  %v5290 = vunpack.c.l.b16 %v5258
  %v5291 = vunpack.c.l.b16 %v5259
  %v5292 = vunpack.c.l.b16 %v5260
  %v5293 = vunpack.c.l.b16 %v5261
  %v5294 = vunpack.c.l.b16 %v5262
  %v5295 = vunpack.c.l.b16 %v5263
  %v5296 = vunpack.c.l.b16 %v5264
  %v5297 = vunpack.c.l.b16 %v5265
  %v5298 = vunpack.c.l.b16 %v5266
  %v5299 = vunpack.c.l.b16 %v5267
  %v5300 = vunpack.c.l.b16 %v5268
  %v5301 = vunpack.c.l.b16 %v5269
  %v5302 = vunpack.c.l.b16 %v5270
  %v5303 = vpack.c.b16 %v5288, %v5287
  %v5304 = vpack.c.b16 %v5290, %v5289
  %v5305 = vpack.c.b16 %v5292, %v5291
  %v5306 = vpack.c.b16 %v5294, %v5293
  %v5307 = vpack.c.b16 %v5296, %v5295
  %v5308 = vpack.c.b16 %v5298, %v5297
  %v5309 = vpack.c.b16 %v5300, %v5299
  %v5310 = vpack.c.b16 %v5302, %v5301
  %v5312 = vsel %vm123, %v5303, 0
  %v5315 = vsel %vm123, %v5304, 0
  %v5318 = vsel %vm123, %v5305, 0
  %v5321 = vsel %vm123, %v5306, 0
  %v5324 = vsel %vm123, %v5307, 0
  %v5327 = vsel %vm123, %v5308, 0
  %v5330 = vsel %vm123, %v5309, 0
  %v5333 = vsel %vm123, %v5310, 0
  %5335 = vmatprep.subr.bf16.mxu0 %v108
  %5336 = vmatpush1.bf16.msra.mxu0 %v107
  %5337 = vmatprep.subr.bf16.mxu0 %v112
  %5338 = vmatpush1.bf16.msra.mxu0 %v111
  %5339 = vmatprep.subr.bf16.mxu0 0
  %5340 = vmatpush1.bf16.msra.mxu0 0
  %5341 = vmatprep.subr.bf16.mxu0 0
  %5342 = vmatpush1.bf16.msra.mxu0 0
  %5343 = vmatprep.subr.bf16.mxu0 0
  %5344 = vmatpush1.bf16.msra.mxu0 0
  %5345 = vmatprep.subr.bf16.mxu0 0
  %5346 = vmatpush1.bf16.msra.mxu0 0
  %5347 = vmatprep.subr.bf16.mxu0 0
  %5348 = vmatpush1.bf16.msra.mxu0 0
  %5349 = vmatprep.subr.bf16.mxu0 0
  %5350 = vmatpush1.bf16.msra.mxu0 0
  %5351 = vmatprep.subr.bf16.mxu0 0
  %5352 = vmatpush1.bf16.msra.mxu0 0
  %5353 = vmatprep.subr.bf16.mxu0 0
  %5354 = vmatpush1.bf16.msra.mxu0 0
  %5355 = vmatprep.subr.bf16.mxu0 0
  %5356 = vmatpush1.bf16.msra.mxu0 0
  %5357 = vmatprep.subr.bf16.mxu0 0
  %5358 = vmatpush1.bf16.msra.mxu0 0
  %5359 = vmatprep.subr.bf16.mxu0 0
  %5360 = vmatpush1.bf16.msra.mxu0 0
  %5361 = vmatprep.subr.bf16.mxu0 0
  %5362 = vmatpush1.bf16.msra.mxu0 0
  %5363 = vmatprep.subr.bf16.mxu0 0
  %5364 = vmatpush1.bf16.msra.mxu0 0
  %5365 = vmatprep.subr.bf16.mxu0 0
  %5366 = vmatpush1.bf16.msra.mxu0 0
  %5367 = vmatprep.mubr.bf16.mxu0 0
  %5368 = vmatmul.mubr.bf16.gmra.mrb[0].mxu0 %v5312
  %v5369 = vpop.f32.mrb[0].mxu0
  %v5370 = vadd.f32 0.0, %v5369
  %v5371 = vpop.f32.mrb[0].mxu0
  %v5372 = vadd.f32 0.0, %v5371
  %v5373 = vpop.f32.mrb[0].mxu0
  %v5374 = vadd.f32 0.0, %v5373
  %v5375 = vpop.f32.mrb[0].mxu0
  %v5376 = vadd.f32 0.0, %v5375
  %5377 = vmatprep.mubr.bf16.mxu0 0
  %5378 = vmatmul.mubr.bf16.gmra.mrb[0].mxu0 %v5315
  %v5379 = vpop.f32.mrb[0].mxu0
  %v5380 = vadd.f32 0.0, %v5379
  %v5381 = vpop.f32.mrb[0].mxu0
  %v5382 = vadd.f32 0.0, %v5381
  %v5383 = vpop.f32.mrb[0].mxu0
  %v5384 = vadd.f32 0.0, %v5383
  %v5385 = vpop.f32.mrb[0].mxu0
  %v5386 = vadd.f32 0.0, %v5385
  %5387 = vmatprep.mubr.bf16.mxu0 0
  %5388 = vmatmul.mubr.bf16.gmra.mrb[0].mxu0 %v5318
  %v5389 = vpop.f32.mrb[0].mxu0
  %v5390 = vadd.f32 0.0, %v5389
  %v5391 = vpop.f32.mrb[0].mxu0
  %v5392 = vadd.f32 0.0, %v5391
  %v5393 = vpop.f32.mrb[0].mxu0
  %v5394 = vadd.f32 0.0, %v5393
  %v5395 = vpop.f32.mrb[0].mxu0
  %v5396 = vadd.f32 0.0, %v5395
  %5397 = vmatprep.mubr.bf16.mxu0 0
  %5398 = vmatmul.mubr.bf16.gmra.mrb[0].mxu0 %v5321
  %v5399 = vpop.f32.mrb[0].mxu0
  %v5400 = vadd.f32 0.0, %v5399
  %v5401 = vpop.f32.mrb[0].mxu0
  %v5402 = vadd.f32 0.0, %v5401
  %v5403 = vpop.f32.mrb[0].mxu0
  %v5404 = vadd.f32 0.0, %v5403
  %v5405 = vpop.f32.mrb[0].mxu0
  %v5406 = vadd.f32 0.0, %v5405
  %5407 = vmatprep.mubr.bf16.mxu0 0
  %5408 = vmatmul.mubr.bf16.gmra.mrb[0].mxu0 %v5324
  %v5409 = vpop.f32.mrb[0].mxu0
  %v5410 = vadd.f32 0.0, %v5409
  %v5411 = vpop.f32.mrb[0].mxu0
  %v5412 = vadd.f32 0.0, %v5411
  %v5413 = vpop.f32.mrb[0].mxu0
  %v5414 = vadd.f32 0.0, %v5413
  %v5415 = vpop.f32.mrb[0].mxu0
  %v5416 = vadd.f32 0.0, %v5415
  %5417 = vmatprep.mubr.bf16.mxu0 0
  %5418 = vmatmul.mubr.bf16.gmra.mrb[0].mxu0 %v5327
  %v5419 = vpop.f32.mrb[0].mxu0
  %v5420 = vadd.f32 0.0, %v5419
  %v5421 = vpop.f32.mrb[0].mxu0
  %v5422 = vadd.f32 0.0, %v5421
  %v5423 = vpop.f32.mrb[0].mxu0
  %v5424 = vadd.f32 0.0, %v5423
  %v5425 = vpop.f32.mrb[0].mxu0
  %v5426 = vadd.f32 0.0, %v5425
  %5427 = vmatprep.mubr.bf16.mxu0 0
  %5428 = vmatmul.mubr.bf16.gmra.mrb[0].mxu0 %v5330
  %v5429 = vpop.f32.mrb[0].mxu0
  %v5430 = vadd.f32 0.0, %v5429
  %v5431 = vpop.f32.mrb[0].mxu0
  %v5432 = vadd.f32 0.0, %v5431
  %v5433 = vpop.f32.mrb[0].mxu0
  %v5434 = vadd.f32 0.0, %v5433
  %v5435 = vpop.f32.mrb[0].mxu0
  %v5436 = vadd.f32 0.0, %v5435
  %5437 = vmatprep.mubr.bf16.mxu0 0
  %5438 = vmatmul.mubr.bf16.gmra.mrb[0].mxu0 %v5333
  %v5439 = vpop.f32.mrb[0].mxu0
  %v5440 = vadd.f32 0.0, %v5439
  %v5441 = vpop.f32.mrb[0].mxu0
  %v5442 = vadd.f32 0.0, %v5441
  %v5443 = vpop.f32.mrb[0].mxu0
  %v5444 = vadd.f32 0.0, %v5443
  %v5445 = vpop.f32.mrb[0].mxu0
  %v5446 = vadd.f32 0.0, %v5445
  %5447 = vdwg.mxu0
  %5448 = vmatprep.subr.bf16.mxu0 %v110
  %5449 = vmatpush1.bf16.msra.mxu0 %v109
  %5450 = vmatprep.subr.bf16.mxu0 %v114
  %5451 = vmatpush1.bf16.msra.mxu0 %v113
  %5452 = vmatprep.subr.bf16.mxu0 0
  %5453 = vmatpush1.bf16.msra.mxu0 0
  %5454 = vmatprep.subr.bf16.mxu0 0
  %5455 = vmatpush1.bf16.msra.mxu0 0
  %5456 = vmatprep.subr.bf16.mxu0 0
  %5457 = vmatpush1.bf16.msra.mxu0 0
  %5458 = vmatprep.subr.bf16.mxu0 0
  %5459 = vmatpush1.bf16.msra.mxu0 0
  %5460 = vmatprep.subr.bf16.mxu0 0
  %5461 = vmatpush1.bf16.msra.mxu0 0
  %5462 = vmatprep.subr.bf16.mxu0 0
  %5463 = vmatpush1.bf16.msra.mxu0 0
  %5464 = vmatprep.subr.bf16.mxu0 0
  %5465 = vmatpush1.bf16.msra.mxu0 0
  %5466 = vmatprep.subr.bf16.mxu0 0
  %5467 = vmatpush1.bf16.msra.mxu0 0
  %5468 = vmatprep.subr.bf16.mxu0 0
  %5469 = vmatpush1.bf16.msra.mxu0 0
  %5470 = vmatprep.subr.bf16.mxu0 0
  %5471 = vmatpush1.bf16.msra.mxu0 0
  %5472 = vmatprep.subr.bf16.mxu0 0
  %5473 = vmatpush1.bf16.msra.mxu0 0
  %5474 = vmatprep.subr.bf16.mxu0 0
  %5475 = vmatpush1.bf16.msra.mxu0 0
  %5476 = vmatprep.subr.bf16.mxu0 0
  %5477 = vmatpush1.bf16.msra.mxu0 0
  %5478 = vmatprep.subr.bf16.mxu0 0
  %5479 = vmatpush1.bf16.msra.mxu0 0
  %5480 = vmatprep.mubr.bf16.mxu0 0
  %5481 = vmatmul.mubr.bf16.gmra.mrb[0].mxu0 %v5312
  %v5482 = vpop.f32.mrb[0].mxu0
  %v5483 = vadd.f32 0.0, %v5482
  %v5484 = vpop.f32.mrb[0].mxu0
  %v5485 = vadd.f32 0.0, %v5484
  %v5486 = vpop.f32.mrb[0].mxu0
  %v5487 = vadd.f32 0.0, %v5486
  %v5488 = vpop.f32.mrb[0].mxu0
  %v5489 = vadd.f32 0.0, %v5488
  %5490 = vmatprep.mubr.bf16.mxu0 0
  %5491 = vmatmul.mubr.bf16.gmra.mrb[0].mxu0 %v5315
  %v5492 = vpop.f32.mrb[0].mxu0
  %v5493 = vadd.f32 0.0, %v5492
  %v5494 = vpop.f32.mrb[0].mxu0
  %v5495 = vadd.f32 0.0, %v5494
  %v5496 = vpop.f32.mrb[0].mxu0
  %v5497 = vadd.f32 0.0, %v5496
  %v5498 = vpop.f32.mrb[0].mxu0
  %v5499 = vadd.f32 0.0, %v5498
  %5500 = vmatprep.mubr.bf16.mxu0 0
  %5501 = vmatmul.mubr.bf16.gmra.mrb[0].mxu0 %v5318
  %v5502 = vpop.f32.mrb[0].mxu0
  %v5503 = vadd.f32 0.0, %v5502
  %v5504 = vpop.f32.mrb[0].mxu0
  %v5505 = vadd.f32 0.0, %v5504
  %v5506 = vpop.f32.mrb[0].mxu0
  %v5507 = vadd.f32 0.0, %v5506
  %v5508 = vpop.f32.mrb[0].mxu0
  %v5509 = vadd.f32 0.0, %v5508
  %5510 = vmatprep.mubr.bf16.mxu0 0
  %5511 = vmatmul.mubr.bf16.gmra.mrb[0].mxu0 %v5321
  %v5512 = vpop.f32.mrb[0].mxu0
  %v5513 = vadd.f32 0.0, %v5512
  %v5514 = vpop.f32.mrb[0].mxu0
  %v5515 = vadd.f32 0.0, %v5514
  %v5516 = vpop.f32.mrb[0].mxu0
  %v5517 = vadd.f32 0.0, %v5516
  %v5518 = vpop.f32.mrb[0].mxu0
  %v5519 = vadd.f32 0.0, %v5518
  %5520 = vmatprep.mubr.bf16.mxu0 0
  %5521 = vmatmul.mubr.bf16.gmra.mrb[0].mxu0 %v5324
  %v5522 = vpop.f32.mrb[0].mxu0
  %v5523 = vadd.f32 0.0, %v5522
  %v5524 = vpop.f32.mrb[0].mxu0
  %v5525 = vadd.f32 0.0, %v5524
  %v5526 = vpop.f32.mrb[0].mxu0
  %v5527 = vadd.f32 0.0, %v5526
  %v5528 = vpop.f32.mrb[0].mxu0
  %v5529 = vadd.f32 0.0, %v5528
  %5530 = vmatprep.mubr.bf16.mxu0 0
  %5531 = vmatmul.mubr.bf16.gmra.mrb[0].mxu0 %v5327
  %v5532 = vpop.f32.mrb[0].mxu0
  %v5533 = vadd.f32 0.0, %v5532
  %v5534 = vpop.f32.mrb[0].mxu0
  %v5535 = vadd.f32 0.0, %v5534
  %v5536 = vpop.f32.mrb[0].mxu0
  %v5537 = vadd.f32 0.0, %v5536
  %v5538 = vpop.f32.mrb[0].mxu0
  %v5539 = vadd.f32 0.0, %v5538
  %5540 = vmatprep.mubr.bf16.mxu0 0
  %5541 = vmatmul.mubr.bf16.gmra.mrb[0].mxu0 %v5330
  %v5542 = vpop.f32.mrb[0].mxu0
  %v5543 = vadd.f32 0.0, %v5542
  %v5544 = vpop.f32.mrb[0].mxu0
  %v5545 = vadd.f32 0.0, %v5544
  %v5546 = vpop.f32.mrb[0].mxu0
  %v5547 = vadd.f32 0.0, %v5546
  %v5548 = vpop.f32.mrb[0].mxu0
  %v5549 = vadd.f32 0.0, %v5548
  %5550 = vmatprep.mubr.bf16.mxu0 0
  %5551 = vmatmul.mubr.bf16.gmra.mrb[0].mxu0 %v5333
  %v5552 = vpop.f32.mrb[0].mxu0
  %v5553 = vadd.f32 0.0, %v5552
  %v5554 = vpop.f32.mrb[0].mxu0
  %v5555 = vadd.f32 0.0, %v5554
  %v5556 = vpop.f32.mrb[0].mxu0
  %v5557 = vadd.f32 0.0, %v5556
  %v5558 = vpop.f32.mrb[0].mxu0
  %v5559 = vadd.f32 0.0, %v5558
  %5560 = vdwg.mxu0
  %v5561 = vmax.f32 %v5370, 0.0
  %v5562 = vmax.f32 %v5372, 0.0
  %v5563 = vmax.f32 %v5483, 0.0
  %v5564 = vmax.f32 %v5485, 0.0
  %v5565 = vmax.f32 %v5374, 0.0
  %v5566 = vmax.f32 %v5376, 0.0
  %v5567 = vmax.f32 %v5487, 0.0
  %v5568 = vmax.f32 %v5489, 0.0
  %v5569 = vmax.f32 %v5380, 0.0
  %v5570 = vmax.f32 %v5382, 0.0
  %v5571 = vmax.f32 %v5493, 0.0
  %v5572 = vmax.f32 %v5495, 0.0
  %v5573 = vmax.f32 %v5384, 0.0
  %v5574 = vmax.f32 %v5386, 0.0
  %v5575 = vmax.f32 %v5497, 0.0
  %v5576 = vmax.f32 %v5499, 0.0
  %v5577 = vmax.f32 %v5390, 0.0
  %v5578 = vmax.f32 %v5392, 0.0
  %v5579 = vmax.f32 %v5503, 0.0
  %v5580 = vmax.f32 %v5505, 0.0
  %v5581 = vmax.f32 %v5394, 0.0
  %v5582 = vmax.f32 %v5396, 0.0
  %v5583 = vmax.f32 %v5507, 0.0
  %v5584 = vmax.f32 %v5509, 0.0
  %v5585 = vmax.f32 %v5400, 0.0
  %v5586 = vmax.f32 %v5402, 0.0
  %v5587 = vmax.f32 %v5513, 0.0
  %v5588 = vmax.f32 %v5515, 0.0
  %v5589 = vmax.f32 %v5404, 0.0
  %v5590 = vmax.f32 %v5406, 0.0
  %v5591 = vmax.f32 %v5517, 0.0
  %v5592 = vmax.f32 %v5519, 0.0
  %v5593 = vmax.f32 %v5410, 0.0
  %v5594 = vmax.f32 %v5412, 0.0
  %v5595 = vmax.f32 %v5523, 0.0
  %v5596 = vmax.f32 %v5525, 0.0
  %v5597 = vmax.f32 %v5414, 0.0
  %v5598 = vmax.f32 %v5416, 0.0
  %v5599 = vmax.f32 %v5527, 0.0
  %v5600 = vmax.f32 %v5529, 0.0
  %v5601 = vmax.f32 %v5420, 0.0
  %v5602 = vmax.f32 %v5422, 0.0
  %v5603 = vmax.f32 %v5533, 0.0
  %v5604 = vmax.f32 %v5535, 0.0
  %v5605 = vmax.f32 %v5424, 0.0
  %v5606 = vmax.f32 %v5426, 0.0
  %v5607 = vmax.f32 %v5537, 0.0
  %v5608 = vmax.f32 %v5539, 0.0
  %v5609 = vmax.f32 %v5430, 0.0
  %v5610 = vmax.f32 %v5432, 0.0
  %v5611 = vmax.f32 %v5543, 0.0
  %v5612 = vmax.f32 %v5545, 0.0
  %v5613 = vmax.f32 %v5434, 0.0
  %v5614 = vmax.f32 %v5436, 0.0
  %v5615 = vmax.f32 %v5547, 0.0
  %v5616 = vmax.f32 %v5549, 0.0
  %v5617 = vmax.f32 %v5440, 0.0
  %v5618 = vmax.f32 %v5442, 0.0
  %v5619 = vmax.f32 %v5553, 0.0
  %v5620 = vmax.f32 %v5555, 0.0
  %v5621 = vmax.f32 %v5444, 0.0
  %v5622 = vmax.f32 %v5446, 0.0
  %v5623 = vmax.f32 %v5557, 0.0
  %v5624 = vmax.f32 %v5559, 0.0
  %v5625 = vpack.c.bf16 %v5565, %v5561
  %v5626 = vpack.c.bf16 %v5566, %v5562
  %v5627 = vpack.c.bf16 %v5567, %v5563
  %v5628 = vpack.c.bf16 %v5568, %v5564
  %v5629 = vpack.c.bf16 %v5573, %v5569
  %v5630 = vpack.c.bf16 %v5574, %v5570
  %v5631 = vpack.c.bf16 %v5575, %v5571
  %v5632 = vpack.c.bf16 %v5576, %v5572
  %v5633 = vpack.c.bf16 %v5581, %v5577
  %v5634 = vpack.c.bf16 %v5582, %v5578
  %v5635 = vpack.c.bf16 %v5583, %v5579
  %v5636 = vpack.c.bf16 %v5584, %v5580
  %v5637 = vpack.c.bf16 %v5589, %v5585
  %v5638 = vpack.c.bf16 %v5590, %v5586
  %v5639 = vpack.c.bf16 %v5591, %v5587
  %v5640 = vpack.c.bf16 %v5592, %v5588
  %v5641 = vpack.c.bf16 %v5597, %v5593
  %v5642 = vpack.c.bf16 %v5598, %v5594
  %v5643 = vpack.c.bf16 %v5599, %v5595
  %v5644 = vpack.c.bf16 %v5600, %v5596
  %v5645 = vpack.c.bf16 %v5605, %v5601
  %v5646 = vpack.c.bf16 %v5606, %v5602
  %v5647 = vpack.c.bf16 %v5607, %v5603
  %v5648 = vpack.c.bf16 %v5608, %v5604
  %v5649 = vpack.c.bf16 %v5613, %v5609
  %v5650 = vpack.c.bf16 %v5614, %v5610
  %v5651 = vpack.c.bf16 %v5615, %v5611
  %v5652 = vpack.c.bf16 %v5616, %v5612
  %v5653 = vpack.c.bf16 %v5621, %v5617
  %v5654 = vpack.c.bf16 %v5622, %v5618
  %v5655 = vpack.c.bf16 %v5623, %v5619
  %v5656 = vpack.c.bf16 %v5624, %v5620
  %s5657 = scalar_lea.vmem %s2, 1536
  %v5658 = vld [vmem:[%s5657] sm:$0xf]
  %v5659 = vld [vmem:[%s5657 + $0x4] sm:$0xf]
  %v5660 = vld [vmem:[%s5657 + $0x8] sm:$0xf]
  %v5661 = vld [vmem:[%s5657 + $0xc] sm:$0xf]
  %v5662 = vld [vmem:[%s5657 + $0x10] sm:$0xf]
  %v5663 = vld [vmem:[%s5657 + $0x14] sm:$0xf]
  %v5664 = vld [vmem:[%s5657 + $0x18] sm:$0xf]
  %v5665 = vld [vmem:[%s5657 + $0x1c] sm:$0xf]
  %v5666 = vld [vmem:[%s5657 + $0x20] sm:$0xf]
  %v5667 = vld [vmem:[%s5657 + $0x24] sm:$0xf]
  %v5668 = vld [vmem:[%s5657 + $0x28] sm:$0xf]
  %v5669 = vld [vmem:[%s5657 + $0x2c] sm:$0xf]
  %v5670 = vld [vmem:[%s5657 + $0x30] sm:$0xf]
  %v5671 = vld [vmem:[%s5657 + $0x34] sm:$0xf]
  %v5672 = vld [vmem:[%s5657 + $0x38] sm:$0xf]
  %v5673 = vld [vmem:[%s5657 + $0x3c] sm:$0xf]
  %v5674 = vld [vmem:[%s5657 + $0x40] sm:$0xf]
  %v5675 = vld [vmem:[%s5657 + $0x44] sm:$0xf]
  %v5676 = vld [vmem:[%s5657 + $0x48] sm:$0xf]
  %v5677 = vld [vmem:[%s5657 + $0x4c] sm:$0xf]
  %v5678 = vld [vmem:[%s5657 + $0x50] sm:$0xf]
  %v5679 = vld [vmem:[%s5657 + $0x54] sm:$0xf]
  %v5680 = vld [vmem:[%s5657 + $0x58] sm:$0xf]
  %v5681 = vld [vmem:[%s5657 + $0x5c] sm:$0xf]
  %v5682 = vld [vmem:[%s5657 + $0x60] sm:$0xf]
  %v5683 = vld [vmem:[%s5657 + $0x64] sm:$0xf]
  %v5684 = vld [vmem:[%s5657 + $0x68] sm:$0xf]
  %v5685 = vld [vmem:[%s5657 + $0x6c] sm:$0xf]
  %v5686 = vld [vmem:[%s5657 + $0x70] sm:$0xf]
  %v5687 = vld [vmem:[%s5657 + $0x74] sm:$0xf]
  %v5688 = vld [vmem:[%s5657 + $0x78] sm:$0xf]
  %v5689 = vld [vmem:[%s5657 + $0x7c] sm:$0xf]
  %v5690 = vld [vmem:[%s5657 + $0x80] sm:$0xf]
  %v5691 = vld [vmem:[%s5657 + $0x84] sm:$0xf]
  %v5692 = vld [vmem:[%s5657 + $0x88] sm:$0xf]
  %v5693 = vld [vmem:[%s5657 + $0x8c] sm:$0xf]
  %v5694 = vld [vmem:[%s5657 + $0x90] sm:$0xf]
  %v5695 = vld [vmem:[%s5657 + $0x94] sm:$0xf]
  %v5696 = vld [vmem:[%s5657 + $0x98] sm:$0xf]
  %v5697 = vld [vmem:[%s5657 + $0x9c] sm:$0xf]
  %v5698 = vld [vmem:[%s5657 + $0xa0] sm:$0xf]
  %v5699 = vld [vmem:[%s5657 + $0xa4] sm:$0xf]
  %v5700 = vld [vmem:[%s5657 + $0xa8] sm:$0xf]
  %v5701 = vld [vmem:[%s5657 + $0xac] sm:$0xf]
  %v5702 = vld [vmem:[%s5657 + $0xb0] sm:$0xf]
  %v5703 = vld [vmem:[%s5657 + $0xb4] sm:$0xf]
  %v5704 = vld [vmem:[%s5657 + $0xb8] sm:$0xf]
  %v5705 = vld [vmem:[%s5657 + $0xbc] sm:$0xf]
  %v5706 = vld [vmem:[%s5657 + $0xc0] sm:$0xf]
  %v5707 = vld [vmem:[%s5657 + $0xc4] sm:$0xf]
  %v5708 = vld [vmem:[%s5657 + $0xc8] sm:$0xf]
  %v5709 = vld [vmem:[%s5657 + $0xcc] sm:$0xf]
  %v5710 = vld [vmem:[%s5657 + $0xd0] sm:$0xf]
  %v5711 = vld [vmem:[%s5657 + $0xd4] sm:$0xf]
  %v5712 = vld [vmem:[%s5657 + $0xd8] sm:$0xf]
  %v5713 = vld [vmem:[%s5657 + $0xdc] sm:$0xf]
  %v5714 = vld [vmem:[%s5657 + $0xe0] sm:$0xf]
  %v5715 = vld [vmem:[%s5657 + $0xe4] sm:$0xf]
  %v5716 = vld [vmem:[%s5657 + $0xe8] sm:$0xf]
  %v5717 = vld [vmem:[%s5657 + $0xec] sm:$0xf]
  %v5718 = vld [vmem:[%s5657 + $0xf0] sm:$0xf]
  %v5719 = vld [vmem:[%s5657 + $0xf4] sm:$0xf]
  %v5720 = vld [vmem:[%s5657 + $0xf8] sm:$0xf]
  %v5721 = vld [vmem:[%s5657 + $0xfc] sm:$0xf]
  %v5786 = vunpack.c.l.b16 %v5658
  %v5787 = vunpack.c.l.b16 %v5659
  %v5788 = vunpack.c.l.b16 %v5660
  %v5789 = vunpack.c.l.b16 %v5661
  %v5790 = vunpack.c.l.b16 %v5662
  %v5791 = vunpack.c.l.b16 %v5663
  %v5792 = vunpack.c.l.b16 %v5664
  %v5793 = vunpack.c.l.b16 %v5665
  %v5794 = vunpack.c.l.b16 %v5666
  %v5795 = vunpack.c.l.b16 %v5667
  %v5796 = vunpack.c.l.b16 %v5668
  %v5797 = vunpack.c.l.b16 %v5669
  %v5798 = vunpack.c.l.b16 %v5670
  %v5799 = vunpack.c.l.b16 %v5671
  %v5800 = vunpack.c.l.b16 %v5672
  %v5801 = vunpack.c.l.b16 %v5673
  %v5802 = vunpack.c.l.b16 %v5674
  %v5803 = vunpack.c.l.b16 %v5675
  %v5804 = vunpack.c.l.b16 %v5676
  %v5805 = vunpack.c.l.b16 %v5677
  %v5806 = vunpack.c.l.b16 %v5678
  %v5807 = vunpack.c.l.b16 %v5679
  %v5808 = vunpack.c.l.b16 %v5680
  %v5809 = vunpack.c.l.b16 %v5681
  %v5810 = vunpack.c.l.b16 %v5682
  %v5811 = vunpack.c.l.b16 %v5683
  %v5812 = vunpack.c.l.b16 %v5684
  %v5813 = vunpack.c.l.b16 %v5685
  %v5814 = vunpack.c.l.b16 %v5686
  %v5815 = vunpack.c.l.b16 %v5687
  %v5816 = vunpack.c.l.b16 %v5688
  %v5817 = vunpack.c.l.b16 %v5689
  %v5818 = vunpack.c.l.b16 %v5690
  %v5819 = vunpack.c.l.b16 %v5691
  %v5820 = vunpack.c.l.b16 %v5692
  %v5821 = vunpack.c.l.b16 %v5693
  %v5822 = vunpack.c.l.b16 %v5694
  %v5823 = vunpack.c.l.b16 %v5695
  %v5824 = vunpack.c.l.b16 %v5696
  %v5825 = vunpack.c.l.b16 %v5697
  %v5826 = vunpack.c.l.b16 %v5698
  %v5827 = vunpack.c.l.b16 %v5699
  %v5828 = vunpack.c.l.b16 %v5700
  %v5829 = vunpack.c.l.b16 %v5701
  %v5830 = vunpack.c.l.b16 %v5702
  %v5831 = vunpack.c.l.b16 %v5703
  %v5832 = vunpack.c.l.b16 %v5704
  %v5833 = vunpack.c.l.b16 %v5705
  %v5834 = vunpack.c.l.b16 %v5706
  %v5835 = vunpack.c.l.b16 %v5707
  %v5836 = vunpack.c.l.b16 %v5708
  %v5837 = vunpack.c.l.b16 %v5709
  %v5838 = vunpack.c.l.b16 %v5710
  %v5839 = vunpack.c.l.b16 %v5711
  %v5840 = vunpack.c.l.b16 %v5712
  %v5841 = vunpack.c.l.b16 %v5713
  %v5842 = vunpack.c.l.b16 %v5714
  %v5843 = vunpack.c.l.b16 %v5715
  %v5844 = vunpack.c.l.b16 %v5716
  %v5845 = vunpack.c.l.b16 %v5717
  %v5846 = vunpack.c.l.b16 %v5718
  %v5847 = vunpack.c.l.b16 %v5719
  %v5848 = vunpack.c.l.b16 %v5720
  %v5849 = vunpack.c.l.b16 %v5721
  %v5850 = vpack.c.b16 %v5787, %v5786
  %v5851 = vpack.c.b16 %v5789, %v5788
  %v5852 = vpack.c.b16 %v5791, %v5790
  %v5853 = vpack.c.b16 %v5793, %v5792
  %v5854 = vpack.c.b16 %v5795, %v5794
  %v5855 = vpack.c.b16 %v5797, %v5796
  %v5856 = vpack.c.b16 %v5799, %v5798
  %v5857 = vpack.c.b16 %v5801, %v5800
  %v5858 = vpack.c.b16 %v5803, %v5802
  %v5859 = vpack.c.b16 %v5805, %v5804
  %v5860 = vpack.c.b16 %v5807, %v5806
  %v5861 = vpack.c.b16 %v5809, %v5808
  %v5862 = vpack.c.b16 %v5811, %v5810
  %v5863 = vpack.c.b16 %v5813, %v5812
  %v5864 = vpack.c.b16 %v5815, %v5814
  %v5865 = vpack.c.b16 %v5817, %v5816
  %v5866 = vpack.c.b16 %v5819, %v5818
  %v5867 = vpack.c.b16 %v5821, %v5820
  %v5868 = vpack.c.b16 %v5823, %v5822
  %v5869 = vpack.c.b16 %v5825, %v5824
  %v5870 = vpack.c.b16 %v5827, %v5826
  %v5871 = vpack.c.b16 %v5829, %v5828
  %v5872 = vpack.c.b16 %v5831, %v5830
  %v5873 = vpack.c.b16 %v5833, %v5832
  %v5874 = vpack.c.b16 %v5835, %v5834
  %v5875 = vpack.c.b16 %v5837, %v5836
  %v5876 = vpack.c.b16 %v5839, %v5838
  %v5877 = vpack.c.b16 %v5841, %v5840
  %v5878 = vpack.c.b16 %v5843, %v5842
  %v5879 = vpack.c.b16 %v5845, %v5844
  %v5880 = vpack.c.b16 %v5847, %v5846
  %v5881 = vpack.c.b16 %v5849, %v5848
  %5914 = vmatprep.subr.bf16.mxu0 0
  %5915 = vmatpush1.bf16.msra.mxu0 %v5850
  %5916 = vmatprep.subr.bf16.mxu0 0
  %5917 = vmatpush1.bf16.msra.mxu0 %v5851
  %5918 = vmatprep.subr.bf16.mxu0 0
  %5919 = vmatpush1.bf16.msra.mxu0 %v5852
  %5920 = vmatprep.subr.bf16.mxu0 0
  %5921 = vmatpush1.bf16.msra.mxu0 %v5853
  %5922 = vmatprep.subr.bf16.mxu0 0
  %5923 = vmatpush1.bf16.msra.mxu0 %v5854
  %5924 = vmatprep.subr.bf16.mxu0 0
  %5925 = vmatpush1.bf16.msra.mxu0 %v5855
  %5926 = vmatprep.subr.bf16.mxu0 0
  %5927 = vmatpush1.bf16.msra.mxu0 %v5856
  %5928 = vmatprep.subr.bf16.mxu0 0
  %5929 = vmatpush1.bf16.msra.mxu0 %v5857
  %5930 = vmatprep.subr.bf16.mxu0 0
  %5931 = vmatpush1.bf16.msra.mxu0 %v5858
  %5932 = vmatprep.subr.bf16.mxu0 0
  %5933 = vmatpush1.bf16.msra.mxu0 %v5859
  %5934 = vmatprep.subr.bf16.mxu0 0
  %5935 = vmatpush1.bf16.msra.mxu0 %v5860
  %5936 = vmatprep.subr.bf16.mxu0 0
  %5937 = vmatpush1.bf16.msra.mxu0 %v5861
  %5938 = vmatprep.subr.bf16.mxu0 0
  %5939 = vmatpush1.bf16.msra.mxu0 %v5862
  %5940 = vmatprep.subr.bf16.mxu0 0
  %5941 = vmatpush1.bf16.msra.mxu0 %v5863
  %5942 = vmatprep.subr.bf16.mxu0 0
  %5943 = vmatpush1.bf16.msra.mxu0 %v5864
  %5944 = vmatprep.subr.bf16.mxu0 0
  %5945 = vmatpush1.bf16.msra.mxu0 %v5865
  %5946 = vmatprep.mubr.bf16.mxu0 %v5626
  %5947 = vmatmul.mubr.bf16.gmra.mrb[0].mxu0 %v5625
  %v5948 = vpop.f32.mrb[0].mxu0
  %v5949 = vadd.f32 0.0, %v5948
  %v5950 = vpop.f32.mrb[0].mxu0
  %v5951 = vpop.f32.mrb[0].mxu0
  %v5952 = vadd.f32 0.0, %v5951
  %v5953 = vpop.f32.mrb[0].mxu0
  %5954 = vmatprep.mubr.bf16.mxu0 %v5630
  %5955 = vmatmul.mubr.bf16.gmra.mrb[0].mxu0 %v5629
  %v5956 = vpop.f32.mrb[0].mxu0
  %v5957 = vadd.f32 0.0, %v5956
  %v5958 = vpop.f32.mrb[0].mxu0
  %v5959 = vpop.f32.mrb[0].mxu0
  %v5960 = vadd.f32 0.0, %v5959
  %v5961 = vpop.f32.mrb[0].mxu0
  %5962 = vmatprep.mubr.bf16.mxu0 %v5634
  %5963 = vmatmul.mubr.bf16.gmra.mrb[0].mxu0 %v5633
  %v5964 = vpop.f32.mrb[0].mxu0
  %v5965 = vadd.f32 0.0, %v5964
  %v5966 = vpop.f32.mrb[0].mxu0
  %v5967 = vpop.f32.mrb[0].mxu0
  %v5968 = vadd.f32 0.0, %v5967
  %v5969 = vpop.f32.mrb[0].mxu0
  %5970 = vmatprep.mubr.bf16.mxu0 %v5638
  %5971 = vmatmul.mubr.bf16.gmra.mrb[0].mxu0 %v5637
  %v5972 = vpop.f32.mrb[0].mxu0
  %v5973 = vadd.f32 0.0, %v5972
  %v5974 = vpop.f32.mrb[0].mxu0
  %v5975 = vpop.f32.mrb[0].mxu0
  %v5976 = vadd.f32 0.0, %v5975
  %v5977 = vpop.f32.mrb[0].mxu0
  %5978 = vmatprep.mubr.bf16.mxu0 %v5642
  %5979 = vmatmul.mubr.bf16.gmra.mrb[0].mxu0 %v5641
  %v5980 = vpop.f32.mrb[0].mxu0
  %v5981 = vadd.f32 0.0, %v5980
  %v5982 = vpop.f32.mrb[0].mxu0
  %v5983 = vpop.f32.mrb[0].mxu0
  %v5984 = vadd.f32 0.0, %v5983
  %v5985 = vpop.f32.mrb[0].mxu0
  %5986 = vmatprep.mubr.bf16.mxu0 %v5646
  %5987 = vmatmul.mubr.bf16.gmra.mrb[0].mxu0 %v5645
  %v5988 = vpop.f32.mrb[0].mxu0
  %v5989 = vadd.f32 0.0, %v5988
  %v5990 = vpop.f32.mrb[0].mxu0
  %v5991 = vpop.f32.mrb[0].mxu0
  %v5992 = vadd.f32 0.0, %v5991
  %v5993 = vpop.f32.mrb[0].mxu0
  %5994 = vmatprep.mubr.bf16.mxu0 %v5650
  %5995 = vmatmul.mubr.bf16.gmra.mrb[0].mxu0 %v5649
  %v5996 = vpop.f32.mrb[0].mxu0
  %v5997 = vadd.f32 0.0, %v5996
  %v5998 = vpop.f32.mrb[0].mxu0
  %v5999 = vpop.f32.mrb[0].mxu0
  %v6000 = vadd.f32 0.0, %v5999
  %v6001 = vpop.f32.mrb[0].mxu0
  %6002 = vmatprep.mubr.bf16.mxu0 %v5654
  %6003 = vmatmul.mubr.bf16.gmra.mrb[0].mxu0 %v5653
  %v6004 = vpop.f32.mrb[0].mxu0
  %v6005 = vadd.f32 0.0, %v6004
  %v6006 = vpop.f32.mrb[0].mxu0
  %v6007 = vpop.f32.mrb[0].mxu0
  %v6008 = vadd.f32 0.0, %v6007
  %v6009 = vpop.f32.mrb[0].mxu0
  %6010 = vdwg.mxu0
  %6011 = vmatprep.subr.bf16.mxu0 0
  %6012 = vmatpush1.bf16.msra.mxu0 %v5866
  %6013 = vmatprep.subr.bf16.mxu0 0
  %6014 = vmatpush1.bf16.msra.mxu0 %v5867
  %6015 = vmatprep.subr.bf16.mxu0 0
  %6016 = vmatpush1.bf16.msra.mxu0 %v5868
  %6017 = vmatprep.subr.bf16.mxu0 0
  %6018 = vmatpush1.bf16.msra.mxu0 %v5869
  %6019 = vmatprep.subr.bf16.mxu0 0
  %6020 = vmatpush1.bf16.msra.mxu0 %v5870
  %6021 = vmatprep.subr.bf16.mxu0 0
  %6022 = vmatpush1.bf16.msra.mxu0 %v5871
  %6023 = vmatprep.subr.bf16.mxu0 0
  %6024 = vmatpush1.bf16.msra.mxu0 %v5872
  %6025 = vmatprep.subr.bf16.mxu0 0
  %6026 = vmatpush1.bf16.msra.mxu0 %v5873
  %6027 = vmatprep.subr.bf16.mxu0 0
  %6028 = vmatpush1.bf16.msra.mxu0 %v5874
  %6029 = vmatprep.subr.bf16.mxu0 0
  %6030 = vmatpush1.bf16.msra.mxu0 %v5875
  %6031 = vmatprep.subr.bf16.mxu0 0
  %6032 = vmatpush1.bf16.msra.mxu0 %v5876
  %6033 = vmatprep.subr.bf16.mxu0 0
  %6034 = vmatpush1.bf16.msra.mxu0 %v5877
  %6035 = vmatprep.subr.bf16.mxu0 0
  %6036 = vmatpush1.bf16.msra.mxu0 %v5878
  %6037 = vmatprep.subr.bf16.mxu0 0
  %6038 = vmatpush1.bf16.msra.mxu0 %v5879
  %6039 = vmatprep.subr.bf16.mxu0 0
  %6040 = vmatpush1.bf16.msra.mxu0 %v5880
  %6041 = vmatprep.subr.bf16.mxu0 0
  %6042 = vmatpush1.bf16.msra.mxu0 %v5881
  %6043 = vmatprep.mubr.bf16.mxu0 %v5628
  %6044 = vmatmul.mubr.bf16.gmra.mrb[0].mxu0 %v5627
  %v6045 = vpop.f32.mrb[0].mxu0
  %v6046 = vadd.f32 %v5949, %v6045
  %v6047 = vpop.f32.mrb[0].mxu0
  %v6048 = vpop.f32.mrb[0].mxu0
  %v6049 = vadd.f32 %v5952, %v6048
  %v6050 = vpop.f32.mrb[0].mxu0
  %6051 = vmatprep.mubr.bf16.mxu0 %v5632
  %6052 = vmatmul.mubr.bf16.gmra.mrb[0].mxu0 %v5631
  %v6053 = vpop.f32.mrb[0].mxu0
  %v6054 = vadd.f32 %v5957, %v6053
  %v6055 = vpop.f32.mrb[0].mxu0
  %v6056 = vpop.f32.mrb[0].mxu0
  %v6057 = vadd.f32 %v5960, %v6056
  %v6058 = vpop.f32.mrb[0].mxu0
  %6059 = vmatprep.mubr.bf16.mxu0 %v5636
  %6060 = vmatmul.mubr.bf16.gmra.mrb[0].mxu0 %v5635
  %v6061 = vpop.f32.mrb[0].mxu0
  %v6062 = vadd.f32 %v5965, %v6061
  %v6063 = vpop.f32.mrb[0].mxu0
  %v6064 = vpop.f32.mrb[0].mxu0
  %v6065 = vadd.f32 %v5968, %v6064
  %v6066 = vpop.f32.mrb[0].mxu0
  %6067 = vmatprep.mubr.bf16.mxu0 %v5640
  %6068 = vmatmul.mubr.bf16.gmra.mrb[0].mxu0 %v5639
  %v6069 = vpop.f32.mrb[0].mxu0
  %v6070 = vadd.f32 %v5973, %v6069
  %v6071 = vpop.f32.mrb[0].mxu0
  %v6072 = vpop.f32.mrb[0].mxu0
  %v6073 = vadd.f32 %v5976, %v6072
  %v6074 = vpop.f32.mrb[0].mxu0
  %6075 = vmatprep.mubr.bf16.mxu0 %v5644
  %6076 = vmatmul.mubr.bf16.gmra.mrb[0].mxu0 %v5643
  %v6077 = vpop.f32.mrb[0].mxu0
  %v6078 = vadd.f32 %v5981, %v6077
  %v6079 = vpop.f32.mrb[0].mxu0
  %v6080 = vpop.f32.mrb[0].mxu0
  %v6081 = vadd.f32 %v5984, %v6080
  %v6082 = vpop.f32.mrb[0].mxu0
  %6083 = vmatprep.mubr.bf16.mxu0 %v5648
  %6084 = vmatmul.mubr.bf16.gmra.mrb[0].mxu0 %v5647
  %v6085 = vpop.f32.mrb[0].mxu0
  %v6086 = vadd.f32 %v5989, %v6085
  %v6087 = vpop.f32.mrb[0].mxu0
  %v6088 = vpop.f32.mrb[0].mxu0
  %v6089 = vadd.f32 %v5992, %v6088
  %v6090 = vpop.f32.mrb[0].mxu0
  %6091 = vmatprep.mubr.bf16.mxu0 %v5652
  %6092 = vmatmul.mubr.bf16.gmra.mrb[0].mxu0 %v5651
  %v6093 = vpop.f32.mrb[0].mxu0
  %v6094 = vadd.f32 %v5997, %v6093
  %v6095 = vpop.f32.mrb[0].mxu0
  %v6096 = vpop.f32.mrb[0].mxu0
  %v6097 = vadd.f32 %v6000, %v6096
  %v6098 = vpop.f32.mrb[0].mxu0
  %6099 = vmatprep.mubr.bf16.mxu0 %v5656
  %6100 = vmatmul.mubr.bf16.gmra.mrb[0].mxu0 %v5655
  %v6101 = vpop.f32.mrb[0].mxu0
  %v6102 = vadd.f32 %v6005, %v6101
  %v6103 = vpop.f32.mrb[0].mxu0
  %v6104 = vpop.f32.mrb[0].mxu0
  %v6105 = vadd.f32 %v6008, %v6104
  %v6106 = vpop.f32.mrb[0].mxu0
  %6107 = vdwg.mxu0
  %v6108 = vadd.f32 %v5238, %v6046
  %v6109 = vadd.f32 %v5239, %v6049
  %v6110 = vadd.f32 %v5240, %v6054
  %v6111 = vadd.f32 %v5241, %v6057
  %v6112 = vadd.f32 %v5242, %v6062
  %v6113 = vadd.f32 %v5243, %v6065
  %v6114 = vadd.f32 %v5244, %v6070
  %v6115 = vadd.f32 %v5245, %v6073
  %v6116 = vadd.f32 %v5246, %v6078
  %v6117 = vadd.f32 %v5247, %v6081
  %v6118 = vadd.f32 %v5248, %v6086
  %v6119 = vadd.f32 %v5249, %v6089
  %v6120 = vadd.f32 %v5250, %v6094
  %v6121 = vadd.f32 %v5251, %v6097
  %v6122 = vadd.f32 %v5252, %v6102
  %v6123 = vadd.f32 %v5253, %v6105
  %s6124 = scalar_lea.vmem %s0, 448
  %v6125 = vld [vmem:[%s6124] sm:$0xf]
  %v6126 = vld [vmem:[%s6124 + $0x4] sm:$0xf]
  %v6127 = vld [vmem:[%s6124 + $0x8] sm:$0xf]
  %v6128 = vld [vmem:[%s6124 + $0xc] sm:$0xf]
  %v6129 = vld [vmem:[%s6124 + $0x10] sm:$0xf]
  %v6130 = vld [vmem:[%s6124 + $0x14] sm:$0xf]
  %v6131 = vld [vmem:[%s6124 + $0x18] sm:$0xf]
  %v6132 = vld [vmem:[%s6124 + $0x1c] sm:$0xf]
  %v6133 = vld [vmem:[%s6124 + $0x20] sm:$0xf]
  %v6134 = vld [vmem:[%s6124 + $0x24] sm:$0xf]
  %v6135 = vld [vmem:[%s6124 + $0x28] sm:$0xf]
  %v6136 = vld [vmem:[%s6124 + $0x2c] sm:$0xf]
  %v6137 = vld [vmem:[%s6124 + $0x30] sm:$0xf]
  %v6138 = vld [vmem:[%s6124 + $0x34] sm:$0xf]
  %v6139 = vld [vmem:[%s6124 + $0x38] sm:$0xf]
  %v6140 = vld [vmem:[%s6124 + $0x3c] sm:$0xf]
  %v6157 = vunpack.c.l.b16 %v6125
  %v6158 = vunpack.c.l.b16 %v6126
  %v6159 = vunpack.c.l.b16 %v6127
  %v6160 = vunpack.c.l.b16 %v6128
  %v6161 = vunpack.c.l.b16 %v6129
  %v6162 = vunpack.c.l.b16 %v6130
  %v6163 = vunpack.c.l.b16 %v6131
  %v6164 = vunpack.c.l.b16 %v6132
  %v6165 = vunpack.c.l.b16 %v6133
  %v6166 = vunpack.c.l.b16 %v6134
  %v6167 = vunpack.c.l.b16 %v6135
  %v6168 = vunpack.c.l.b16 %v6136
  %v6169 = vunpack.c.l.b16 %v6137
  %v6170 = vunpack.c.l.b16 %v6138
  %v6171 = vunpack.c.l.b16 %v6139
  %v6172 = vunpack.c.l.b16 %v6140
  %v6173 = vpack.c.b16 %v6158, %v6157
  %v6174 = vpack.c.b16 %v6160, %v6159
  %v6175 = vpack.c.b16 %v6162, %v6161
  %v6176 = vpack.c.b16 %v6164, %v6163
  %v6177 = vpack.c.b16 %v6166, %v6165
  %v6178 = vpack.c.b16 %v6168, %v6167
  %v6179 = vpack.c.b16 %v6170, %v6169
  %v6180 = vpack.c.b16 %v6172, %v6171
  %v6182 = vsel %vm123, %v6173, 0
  %v6185 = vsel %vm123, %v6174, 0
  %v6188 = vsel %vm123, %v6175, 0
  %v6191 = vsel %vm123, %v6176, 0
  %v6194 = vsel %vm123, %v6177, 0
  %v6197 = vsel %vm123, %v6178, 0
  %v6200 = vsel %vm123, %v6179, 0
  %v6203 = vsel %vm123, %v6180, 0
  %6205 = vmatprep.subr.bf16.mxu0 %v108
  %6206 = vmatpush1.bf16.msra.mxu0 %v107
  %6207 = vmatprep.subr.bf16.mxu0 %v112
  %6208 = vmatpush1.bf16.msra.mxu0 %v111
  %6209 = vmatprep.subr.bf16.mxu0 0
  %6210 = vmatpush1.bf16.msra.mxu0 0
  %6211 = vmatprep.subr.bf16.mxu0 0
  %6212 = vmatpush1.bf16.msra.mxu0 0
  %6213 = vmatprep.subr.bf16.mxu0 0
  %6214 = vmatpush1.bf16.msra.mxu0 0
  %6215 = vmatprep.subr.bf16.mxu0 0
  %6216 = vmatpush1.bf16.msra.mxu0 0
  %6217 = vmatprep.subr.bf16.mxu0 0
  %6218 = vmatpush1.bf16.msra.mxu0 0
  %6219 = vmatprep.subr.bf16.mxu0 0
  %6220 = vmatpush1.bf16.msra.mxu0 0
  %6221 = vmatprep.subr.bf16.mxu0 0
  %6222 = vmatpush1.bf16.msra.mxu0 0
  %6223 = vmatprep.subr.bf16.mxu0 0
  %6224 = vmatpush1.bf16.msra.mxu0 0
  %6225 = vmatprep.subr.bf16.mxu0 0
  %6226 = vmatpush1.bf16.msra.mxu0 0
  %6227 = vmatprep.subr.bf16.mxu0 0
  %6228 = vmatpush1.bf16.msra.mxu0 0
  %6229 = vmatprep.subr.bf16.mxu0 0
  %6230 = vmatpush1.bf16.msra.mxu0 0
  %6231 = vmatprep.subr.bf16.mxu0 0
  %6232 = vmatpush1.bf16.msra.mxu0 0
  %6233 = vmatprep.subr.bf16.mxu0 0
  %6234 = vmatpush1.bf16.msra.mxu0 0
  %6235 = vmatprep.subr.bf16.mxu0 0
  %6236 = vmatpush1.bf16.msra.mxu0 0
  %6237 = vmatprep.mubr.bf16.mxu0 0
  %6238 = vmatmul.mubr.bf16.gmra.mrb[0].mxu0 %v6182
  %v6239 = vpop.f32.mrb[0].mxu0
  %v6240 = vadd.f32 0.0, %v6239
  %v6241 = vpop.f32.mrb[0].mxu0
  %v6242 = vadd.f32 0.0, %v6241
  %v6243 = vpop.f32.mrb[0].mxu0
  %v6244 = vadd.f32 0.0, %v6243
  %v6245 = vpop.f32.mrb[0].mxu0
  %v6246 = vadd.f32 0.0, %v6245
  %6247 = vmatprep.mubr.bf16.mxu0 0
  %6248 = vmatmul.mubr.bf16.gmra.mrb[0].mxu0 %v6185
  %v6249 = vpop.f32.mrb[0].mxu0
  %v6250 = vadd.f32 0.0, %v6249
  %v6251 = vpop.f32.mrb[0].mxu0
  %v6252 = vadd.f32 0.0, %v6251
  %v6253 = vpop.f32.mrb[0].mxu0
  %v6254 = vadd.f32 0.0, %v6253
  %v6255 = vpop.f32.mrb[0].mxu0
  %v6256 = vadd.f32 0.0, %v6255
  %6257 = vmatprep.mubr.bf16.mxu0 0
  %6258 = vmatmul.mubr.bf16.gmra.mrb[0].mxu0 %v6188
  %v6259 = vpop.f32.mrb[0].mxu0
  %v6260 = vadd.f32 0.0, %v6259
  %v6261 = vpop.f32.mrb[0].mxu0
  %v6262 = vadd.f32 0.0, %v6261
  %v6263 = vpop.f32.mrb[0].mxu0
  %v6264 = vadd.f32 0.0, %v6263
  %v6265 = vpop.f32.mrb[0].mxu0
  %v6266 = vadd.f32 0.0, %v6265
  %6267 = vmatprep.mubr.bf16.mxu0 0
  %6268 = vmatmul.mubr.bf16.gmra.mrb[0].mxu0 %v6191
  %v6269 = vpop.f32.mrb[0].mxu0
  %v6270 = vadd.f32 0.0, %v6269
  %v6271 = vpop.f32.mrb[0].mxu0
  %v6272 = vadd.f32 0.0, %v6271
  %v6273 = vpop.f32.mrb[0].mxu0
  %v6274 = vadd.f32 0.0, %v6273
  %v6275 = vpop.f32.mrb[0].mxu0
  %v6276 = vadd.f32 0.0, %v6275
  %6277 = vmatprep.mubr.bf16.mxu0 0
  %6278 = vmatmul.mubr.bf16.gmra.mrb[0].mxu0 %v6194
  %v6279 = vpop.f32.mrb[0].mxu0
  %v6280 = vadd.f32 0.0, %v6279
  %v6281 = vpop.f32.mrb[0].mxu0
  %v6282 = vadd.f32 0.0, %v6281
  %v6283 = vpop.f32.mrb[0].mxu0
  %v6284 = vadd.f32 0.0, %v6283
  %v6285 = vpop.f32.mrb[0].mxu0
  %v6286 = vadd.f32 0.0, %v6285
  %6287 = vmatprep.mubr.bf16.mxu0 0
  %6288 = vmatmul.mubr.bf16.gmra.mrb[0].mxu0 %v6197
  %v6289 = vpop.f32.mrb[0].mxu0
  %v6290 = vadd.f32 0.0, %v6289
  %v6291 = vpop.f32.mrb[0].mxu0
  %v6292 = vadd.f32 0.0, %v6291
  %v6293 = vpop.f32.mrb[0].mxu0
  %v6294 = vadd.f32 0.0, %v6293
  %v6295 = vpop.f32.mrb[0].mxu0
  %v6296 = vadd.f32 0.0, %v6295
  %6297 = vmatprep.mubr.bf16.mxu0 0
  %6298 = vmatmul.mubr.bf16.gmra.mrb[0].mxu0 %v6200
  %v6299 = vpop.f32.mrb[0].mxu0
  %v6300 = vadd.f32 0.0, %v6299
  %v6301 = vpop.f32.mrb[0].mxu0
  %v6302 = vadd.f32 0.0, %v6301
  %v6303 = vpop.f32.mrb[0].mxu0
  %v6304 = vadd.f32 0.0, %v6303
  %v6305 = vpop.f32.mrb[0].mxu0
  %v6306 = vadd.f32 0.0, %v6305
  %6307 = vmatprep.mubr.bf16.mxu0 0
  %6308 = vmatmul.mubr.bf16.gmra.mrb[0].mxu0 %v6203
  %v6309 = vpop.f32.mrb[0].mxu0
  %v6310 = vadd.f32 0.0, %v6309
  %v6311 = vpop.f32.mrb[0].mxu0
  %v6312 = vadd.f32 0.0, %v6311
  %v6313 = vpop.f32.mrb[0].mxu0
  %v6314 = vadd.f32 0.0, %v6313
  %v6315 = vpop.f32.mrb[0].mxu0
  %v6316 = vadd.f32 0.0, %v6315
  %6317 = vdwg.mxu0
  %6318 = vmatprep.subr.bf16.mxu0 %v110
  %6319 = vmatpush1.bf16.msra.mxu0 %v109
  %6320 = vmatprep.subr.bf16.mxu0 %v114
  %6321 = vmatpush1.bf16.msra.mxu0 %v113
  %6322 = vmatprep.subr.bf16.mxu0 0
  %6323 = vmatpush1.bf16.msra.mxu0 0
  %6324 = vmatprep.subr.bf16.mxu0 0
  %6325 = vmatpush1.bf16.msra.mxu0 0
  %6326 = vmatprep.subr.bf16.mxu0 0
  %6327 = vmatpush1.bf16.msra.mxu0 0
  %6328 = vmatprep.subr.bf16.mxu0 0
  %6329 = vmatpush1.bf16.msra.mxu0 0
  %6330 = vmatprep.subr.bf16.mxu0 0
  %6331 = vmatpush1.bf16.msra.mxu0 0
  %6332 = vmatprep.subr.bf16.mxu0 0
  %6333 = vmatpush1.bf16.msra.mxu0 0
  %6334 = vmatprep.subr.bf16.mxu0 0
  %6335 = vmatpush1.bf16.msra.mxu0 0
  %6336 = vmatprep.subr.bf16.mxu0 0
  %6337 = vmatpush1.bf16.msra.mxu0 0
  %6338 = vmatprep.subr.bf16.mxu0 0
  %6339 = vmatpush1.bf16.msra.mxu0 0
  %6340 = vmatprep.subr.bf16.mxu0 0
  %6341 = vmatpush1.bf16.msra.mxu0 0
  %6342 = vmatprep.subr.bf16.mxu0 0
  %6343 = vmatpush1.bf16.msra.mxu0 0
  %6344 = vmatprep.subr.bf16.mxu0 0
  %6345 = vmatpush1.bf16.msra.mxu0 0
  %6346 = vmatprep.subr.bf16.mxu0 0
  %6347 = vmatpush1.bf16.msra.mxu0 0
  %6348 = vmatprep.subr.bf16.mxu0 0
  %6349 = vmatpush1.bf16.msra.mxu0 0
  %6350 = vmatprep.mubr.bf16.mxu0 0
  %6351 = vmatmul.mubr.bf16.gmra.mrb[0].mxu0 %v6182
  %v6352 = vpop.f32.mrb[0].mxu0
  %v6353 = vadd.f32 0.0, %v6352
  %v6354 = vpop.f32.mrb[0].mxu0
  %v6355 = vadd.f32 0.0, %v6354
  %v6356 = vpop.f32.mrb[0].mxu0
  %v6357 = vadd.f32 0.0, %v6356
  %v6358 = vpop.f32.mrb[0].mxu0
  %v6359 = vadd.f32 0.0, %v6358
  %6360 = vmatprep.mubr.bf16.mxu0 0
  %6361 = vmatmul.mubr.bf16.gmra.mrb[0].mxu0 %v6185
  %v6362 = vpop.f32.mrb[0].mxu0
  %v6363 = vadd.f32 0.0, %v6362
  %v6364 = vpop.f32.mrb[0].mxu0
  %v6365 = vadd.f32 0.0, %v6364
  %v6366 = vpop.f32.mrb[0].mxu0
  %v6367 = vadd.f32 0.0, %v6366
  %v6368 = vpop.f32.mrb[0].mxu0
  %v6369 = vadd.f32 0.0, %v6368
  %6370 = vmatprep.mubr.bf16.mxu0 0
  %6371 = vmatmul.mubr.bf16.gmra.mrb[0].mxu0 %v6188
  %v6372 = vpop.f32.mrb[0].mxu0
  %v6373 = vadd.f32 0.0, %v6372
  %v6374 = vpop.f32.mrb[0].mxu0
  %v6375 = vadd.f32 0.0, %v6374
  %v6376 = vpop.f32.mrb[0].mxu0
  %v6377 = vadd.f32 0.0, %v6376
  %v6378 = vpop.f32.mrb[0].mxu0
  %v6379 = vadd.f32 0.0, %v6378
  %6380 = vmatprep.mubr.bf16.mxu0 0
  %6381 = vmatmul.mubr.bf16.gmra.mrb[0].mxu0 %v6191
  %v6382 = vpop.f32.mrb[0].mxu0
  %v6383 = vadd.f32 0.0, %v6382
  %v6384 = vpop.f32.mrb[0].mxu0
  %v6385 = vadd.f32 0.0, %v6384
  %v6386 = vpop.f32.mrb[0].mxu0
  %v6387 = vadd.f32 0.0, %v6386
  %v6388 = vpop.f32.mrb[0].mxu0
  %v6389 = vadd.f32 0.0, %v6388
  %6390 = vmatprep.mubr.bf16.mxu0 0
  %6391 = vmatmul.mubr.bf16.gmra.mrb[0].mxu0 %v6194
  %v6392 = vpop.f32.mrb[0].mxu0
  %v6393 = vadd.f32 0.0, %v6392
  %v6394 = vpop.f32.mrb[0].mxu0
  %v6395 = vadd.f32 0.0, %v6394
  %v6396 = vpop.f32.mrb[0].mxu0
  %v6397 = vadd.f32 0.0, %v6396
  %v6398 = vpop.f32.mrb[0].mxu0
  %v6399 = vadd.f32 0.0, %v6398
  %6400 = vmatprep.mubr.bf16.mxu0 0
  %6401 = vmatmul.mubr.bf16.gmra.mrb[0].mxu0 %v6197
  %v6402 = vpop.f32.mrb[0].mxu0
  %v6403 = vadd.f32 0.0, %v6402
  %v6404 = vpop.f32.mrb[0].mxu0
  %v6405 = vadd.f32 0.0, %v6404
  %v6406 = vpop.f32.mrb[0].mxu0
  %v6407 = vadd.f32 0.0, %v6406
  %v6408 = vpop.f32.mrb[0].mxu0
  %v6409 = vadd.f32 0.0, %v6408
  %6410 = vmatprep.mubr.bf16.mxu0 0
  %6411 = vmatmul.mubr.bf16.gmra.mrb[0].mxu0 %v6200
  %v6412 = vpop.f32.mrb[0].mxu0
  %v6413 = vadd.f32 0.0, %v6412
  %v6414 = vpop.f32.mrb[0].mxu0
  %v6415 = vadd.f32 0.0, %v6414
  %v6416 = vpop.f32.mrb[0].mxu0
  %v6417 = vadd.f32 0.0, %v6416
  %v6418 = vpop.f32.mrb[0].mxu0
  %v6419 = vadd.f32 0.0, %v6418
  %6420 = vmatprep.mubr.bf16.mxu0 0
  %6421 = vmatmul.mubr.bf16.gmra.mrb[0].mxu0 %v6203
  %v6422 = vpop.f32.mrb[0].mxu0
  %v6423 = vadd.f32 0.0, %v6422
  %v6424 = vpop.f32.mrb[0].mxu0
  %v6425 = vadd.f32 0.0, %v6424
  %v6426 = vpop.f32.mrb[0].mxu0
  %v6427 = vadd.f32 0.0, %v6426
  %v6428 = vpop.f32.mrb[0].mxu0
  %v6429 = vadd.f32 0.0, %v6428
  %6430 = vdwg.mxu0
  %v6431 = vmax.f32 %v6240, 0.0
  %v6432 = vmax.f32 %v6242, 0.0
  %v6433 = vmax.f32 %v6353, 0.0
  %v6434 = vmax.f32 %v6355, 0.0
  %v6435 = vmax.f32 %v6244, 0.0
  %v6436 = vmax.f32 %v6246, 0.0
  %v6437 = vmax.f32 %v6357, 0.0
  %v6438 = vmax.f32 %v6359, 0.0
  %v6439 = vmax.f32 %v6250, 0.0
  %v6440 = vmax.f32 %v6252, 0.0
  %v6441 = vmax.f32 %v6363, 0.0
  %v6442 = vmax.f32 %v6365, 0.0
  %v6443 = vmax.f32 %v6254, 0.0
  %v6444 = vmax.f32 %v6256, 0.0
  %v6445 = vmax.f32 %v6367, 0.0
  %v6446 = vmax.f32 %v6369, 0.0
  %v6447 = vmax.f32 %v6260, 0.0
  %v6448 = vmax.f32 %v6262, 0.0
  %v6449 = vmax.f32 %v6373, 0.0
  %v6450 = vmax.f32 %v6375, 0.0
  %v6451 = vmax.f32 %v6264, 0.0
  %v6452 = vmax.f32 %v6266, 0.0
  %v6453 = vmax.f32 %v6377, 0.0
  %v6454 = vmax.f32 %v6379, 0.0
  %v6455 = vmax.f32 %v6270, 0.0
  %v6456 = vmax.f32 %v6272, 0.0
  %v6457 = vmax.f32 %v6383, 0.0
  %v6458 = vmax.f32 %v6385, 0.0
  %v6459 = vmax.f32 %v6274, 0.0
  %v6460 = vmax.f32 %v6276, 0.0
  %v6461 = vmax.f32 %v6387, 0.0
  %v6462 = vmax.f32 %v6389, 0.0
  %v6463 = vmax.f32 %v6280, 0.0
  %v6464 = vmax.f32 %v6282, 0.0
  %v6465 = vmax.f32 %v6393, 0.0
  %v6466 = vmax.f32 %v6395, 0.0
  %v6467 = vmax.f32 %v6284, 0.0
  %v6468 = vmax.f32 %v6286, 0.0
  %v6469 = vmax.f32 %v6397, 0.0
  %v6470 = vmax.f32 %v6399, 0.0
  %v6471 = vmax.f32 %v6290, 0.0
  %v6472 = vmax.f32 %v6292, 0.0
  %v6473 = vmax.f32 %v6403, 0.0
  %v6474 = vmax.f32 %v6405, 0.0
  %v6475 = vmax.f32 %v6294, 0.0
  %v6476 = vmax.f32 %v6296, 0.0
  %v6477 = vmax.f32 %v6407, 0.0
  %v6478 = vmax.f32 %v6409, 0.0
  %v6479 = vmax.f32 %v6300, 0.0
  %v6480 = vmax.f32 %v6302, 0.0
  %v6481 = vmax.f32 %v6413, 0.0
  %v6482 = vmax.f32 %v6415, 0.0
  %v6483 = vmax.f32 %v6304, 0.0
  %v6484 = vmax.f32 %v6306, 0.0
  %v6485 = vmax.f32 %v6417, 0.0
  %v6486 = vmax.f32 %v6419, 0.0
  %v6487 = vmax.f32 %v6310, 0.0
  %v6488 = vmax.f32 %v6312, 0.0
  %v6489 = vmax.f32 %v6423, 0.0
  %v6490 = vmax.f32 %v6425, 0.0
  %v6491 = vmax.f32 %v6314, 0.0
  %v6492 = vmax.f32 %v6316, 0.0
  %v6493 = vmax.f32 %v6427, 0.0
  %v6494 = vmax.f32 %v6429, 0.0
  %v6495 = vpack.c.bf16 %v6435, %v6431
  %v6496 = vpack.c.bf16 %v6436, %v6432
  %v6497 = vpack.c.bf16 %v6437, %v6433
  %v6498 = vpack.c.bf16 %v6438, %v6434
  %v6499 = vpack.c.bf16 %v6443, %v6439
  %v6500 = vpack.c.bf16 %v6444, %v6440
  %v6501 = vpack.c.bf16 %v6445, %v6441
  %v6502 = vpack.c.bf16 %v6446, %v6442
  %v6503 = vpack.c.bf16 %v6451, %v6447
  %v6504 = vpack.c.bf16 %v6452, %v6448
  %v6505 = vpack.c.bf16 %v6453, %v6449
  %v6506 = vpack.c.bf16 %v6454, %v6450
  %v6507 = vpack.c.bf16 %v6459, %v6455
  %v6508 = vpack.c.bf16 %v6460, %v6456
  %v6509 = vpack.c.bf16 %v6461, %v6457
  %v6510 = vpack.c.bf16 %v6462, %v6458
  %v6511 = vpack.c.bf16 %v6467, %v6463
  %v6512 = vpack.c.bf16 %v6468, %v6464
  %v6513 = vpack.c.bf16 %v6469, %v6465
  %v6514 = vpack.c.bf16 %v6470, %v6466
  %v6515 = vpack.c.bf16 %v6475, %v6471
  %v6516 = vpack.c.bf16 %v6476, %v6472
  %v6517 = vpack.c.bf16 %v6477, %v6473
  %v6518 = vpack.c.bf16 %v6478, %v6474
  %v6519 = vpack.c.bf16 %v6483, %v6479
  %v6520 = vpack.c.bf16 %v6484, %v6480
  %v6521 = vpack.c.bf16 %v6485, %v6481
  %v6522 = vpack.c.bf16 %v6486, %v6482
  %v6523 = vpack.c.bf16 %v6491, %v6487
  %v6524 = vpack.c.bf16 %v6492, %v6488
  %v6525 = vpack.c.bf16 %v6493, %v6489
  %v6526 = vpack.c.bf16 %v6494, %v6490
  %s6527 = scalar_lea.vmem %s2, 1792
  %v6528 = vld [vmem:[%s6527] sm:$0xf]
  %v6529 = vld [vmem:[%s6527 + $0x4] sm:$0xf]
  %v6530 = vld [vmem:[%s6527 + $0x8] sm:$0xf]
  %v6531 = vld [vmem:[%s6527 + $0xc] sm:$0xf]
  %v6532 = vld [vmem:[%s6527 + $0x10] sm:$0xf]
  %v6533 = vld [vmem:[%s6527 + $0x14] sm:$0xf]
  %v6534 = vld [vmem:[%s6527 + $0x18] sm:$0xf]
  %v6535 = vld [vmem:[%s6527 + $0x1c] sm:$0xf]
  %v6536 = vld [vmem:[%s6527 + $0x20] sm:$0xf]
  %v6537 = vld [vmem:[%s6527 + $0x24] sm:$0xf]
  %v6538 = vld [vmem:[%s6527 + $0x28] sm:$0xf]
  %v6539 = vld [vmem:[%s6527 + $0x2c] sm:$0xf]
  %v6540 = vld [vmem:[%s6527 + $0x30] sm:$0xf]
  %v6541 = vld [vmem:[%s6527 + $0x34] sm:$0xf]
  %v6542 = vld [vmem:[%s6527 + $0x38] sm:$0xf]
  %v6543 = vld [vmem:[%s6527 + $0x3c] sm:$0xf]
  %v6544 = vld [vmem:[%s6527 + $0x40] sm:$0xf]
  %v6545 = vld [vmem:[%s6527 + $0x44] sm:$0xf]
  %v6546 = vld [vmem:[%s6527 + $0x48] sm:$0xf]
  %v6547 = vld [vmem:[%s6527 + $0x4c] sm:$0xf]
  %v6548 = vld [vmem:[%s6527 + $0x50] sm:$0xf]
  %v6549 = vld [vmem:[%s6527 + $0x54] sm:$0xf]
  %v6550 = vld [vmem:[%s6527 + $0x58] sm:$0xf]
  %v6551 = vld [vmem:[%s6527 + $0x5c] sm:$0xf]
  %v6552 = vld [vmem:[%s6527 + $0x60] sm:$0xf]
  %v6553 = vld [vmem:[%s6527 + $0x64] sm:$0xf]
  %v6554 = vld [vmem:[%s6527 + $0x68] sm:$0xf]
  %v6555 = vld [vmem:[%s6527 + $0x6c] sm:$0xf]
  %v6556 = vld [vmem:[%s6527 + $0x70] sm:$0xf]
  %v6557 = vld [vmem:[%s6527 + $0x74] sm:$0xf]
  %v6558 = vld [vmem:[%s6527 + $0x78] sm:$0xf]
  %v6559 = vld [vmem:[%s6527 + $0x7c] sm:$0xf]
  %v6560 = vld [vmem:[%s6527 + $0x80] sm:$0xf]
  %v6561 = vld [vmem:[%s6527 + $0x84] sm:$0xf]
  %v6562 = vld [vmem:[%s6527 + $0x88] sm:$0xf]
  %v6563 = vld [vmem:[%s6527 + $0x8c] sm:$0xf]
  %v6564 = vld [vmem:[%s6527 + $0x90] sm:$0xf]
  %v6565 = vld [vmem:[%s6527 + $0x94] sm:$0xf]
  %v6566 = vld [vmem:[%s6527 + $0x98] sm:$0xf]
  %v6567 = vld [vmem:[%s6527 + $0x9c] sm:$0xf]
  %v6568 = vld [vmem:[%s6527 + $0xa0] sm:$0xf]
  %v6569 = vld [vmem:[%s6527 + $0xa4] sm:$0xf]
  %v6570 = vld [vmem:[%s6527 + $0xa8] sm:$0xf]
  %v6571 = vld [vmem:[%s6527 + $0xac] sm:$0xf]
  %v6572 = vld [vmem:[%s6527 + $0xb0] sm:$0xf]
  %v6573 = vld [vmem:[%s6527 + $0xb4] sm:$0xf]
  %v6574 = vld [vmem:[%s6527 + $0xb8] sm:$0xf]
  %v6575 = vld [vmem:[%s6527 + $0xbc] sm:$0xf]
  %v6576 = vld [vmem:[%s6527 + $0xc0] sm:$0xf]
  %v6577 = vld [vmem:[%s6527 + $0xc4] sm:$0xf]
  %v6578 = vld [vmem:[%s6527 + $0xc8] sm:$0xf]
  %v6579 = vld [vmem:[%s6527 + $0xcc] sm:$0xf]
  %v6580 = vld [vmem:[%s6527 + $0xd0] sm:$0xf]
  %v6581 = vld [vmem:[%s6527 + $0xd4] sm:$0xf]
  %v6582 = vld [vmem:[%s6527 + $0xd8] sm:$0xf]
  %v6583 = vld [vmem:[%s6527 + $0xdc] sm:$0xf]
  %v6584 = vld [vmem:[%s6527 + $0xe0] sm:$0xf]
  %v6585 = vld [vmem:[%s6527 + $0xe4] sm:$0xf]
  %v6586 = vld [vmem:[%s6527 + $0xe8] sm:$0xf]
  %v6587 = vld [vmem:[%s6527 + $0xec] sm:$0xf]
  %v6588 = vld [vmem:[%s6527 + $0xf0] sm:$0xf]
  %v6589 = vld [vmem:[%s6527 + $0xf4] sm:$0xf]
  %v6590 = vld [vmem:[%s6527 + $0xf8] sm:$0xf]
  %v6591 = vld [vmem:[%s6527 + $0xfc] sm:$0xf]
  %v6656 = vunpack.c.l.b16 %v6528
  %v6657 = vunpack.c.l.b16 %v6529
  %v6658 = vunpack.c.l.b16 %v6530
  %v6659 = vunpack.c.l.b16 %v6531
  %v6660 = vunpack.c.l.b16 %v6532
  %v6661 = vunpack.c.l.b16 %v6533
  %v6662 = vunpack.c.l.b16 %v6534
  %v6663 = vunpack.c.l.b16 %v6535
  %v6664 = vunpack.c.l.b16 %v6536
  %v6665 = vunpack.c.l.b16 %v6537
  %v6666 = vunpack.c.l.b16 %v6538
  %v6667 = vunpack.c.l.b16 %v6539
  %v6668 = vunpack.c.l.b16 %v6540
  %v6669 = vunpack.c.l.b16 %v6541
  %v6670 = vunpack.c.l.b16 %v6542
  %v6671 = vunpack.c.l.b16 %v6543
  %v6672 = vunpack.c.l.b16 %v6544
  %v6673 = vunpack.c.l.b16 %v6545
  %v6674 = vunpack.c.l.b16 %v6546
  %v6675 = vunpack.c.l.b16 %v6547
  %v6676 = vunpack.c.l.b16 %v6548
  %v6677 = vunpack.c.l.b16 %v6549
  %v6678 = vunpack.c.l.b16 %v6550
  %v6679 = vunpack.c.l.b16 %v6551
  %v6680 = vunpack.c.l.b16 %v6552
  %v6681 = vunpack.c.l.b16 %v6553
  %v6682 = vunpack.c.l.b16 %v6554
  %v6683 = vunpack.c.l.b16 %v6555
  %v6684 = vunpack.c.l.b16 %v6556
  %v6685 = vunpack.c.l.b16 %v6557
  %v6686 = vunpack.c.l.b16 %v6558
  %v6687 = vunpack.c.l.b16 %v6559
  %v6688 = vunpack.c.l.b16 %v6560
  %v6689 = vunpack.c.l.b16 %v6561
  %v6690 = vunpack.c.l.b16 %v6562
  %v6691 = vunpack.c.l.b16 %v6563
  %v6692 = vunpack.c.l.b16 %v6564
  %v6693 = vunpack.c.l.b16 %v6565
  %v6694 = vunpack.c.l.b16 %v6566
  %v6695 = vunpack.c.l.b16 %v6567
  %v6696 = vunpack.c.l.b16 %v6568
  %v6697 = vunpack.c.l.b16 %v6569
  %v6698 = vunpack.c.l.b16 %v6570
  %v6699 = vunpack.c.l.b16 %v6571
  %v6700 = vunpack.c.l.b16 %v6572
  %v6701 = vunpack.c.l.b16 %v6573
  %v6702 = vunpack.c.l.b16 %v6574
  %v6703 = vunpack.c.l.b16 %v6575
  %v6704 = vunpack.c.l.b16 %v6576
  %v6705 = vunpack.c.l.b16 %v6577
  %v6706 = vunpack.c.l.b16 %v6578
  %v6707 = vunpack.c.l.b16 %v6579
  %v6708 = vunpack.c.l.b16 %v6580
  %v6709 = vunpack.c.l.b16 %v6581
  %v6710 = vunpack.c.l.b16 %v6582
  %v6711 = vunpack.c.l.b16 %v6583
  %v6712 = vunpack.c.l.b16 %v6584
  %v6713 = vunpack.c.l.b16 %v6585
  %v6714 = vunpack.c.l.b16 %v6586
  %v6715 = vunpack.c.l.b16 %v6587
  %v6716 = vunpack.c.l.b16 %v6588
  %v6717 = vunpack.c.l.b16 %v6589
  %v6718 = vunpack.c.l.b16 %v6590
  %v6719 = vunpack.c.l.b16 %v6591
  %v6720 = vpack.c.b16 %v6657, %v6656
  %v6721 = vpack.c.b16 %v6659, %v6658
  %v6722 = vpack.c.b16 %v6661, %v6660
  %v6723 = vpack.c.b16 %v6663, %v6662
  %v6724 = vpack.c.b16 %v6665, %v6664
  %v6725 = vpack.c.b16 %v6667, %v6666
  %v6726 = vpack.c.b16 %v6669, %v6668
  %v6727 = vpack.c.b16 %v6671, %v6670
  %v6728 = vpack.c.b16 %v6673, %v6672
  %v6729 = vpack.c.b16 %v6675, %v6674
  %v6730 = vpack.c.b16 %v6677, %v6676
  %v6731 = vpack.c.b16 %v6679, %v6678
  %v6732 = vpack.c.b16 %v6681, %v6680
  %v6733 = vpack.c.b16 %v6683, %v6682
  %v6734 = vpack.c.b16 %v6685, %v6684
  %v6735 = vpack.c.b16 %v6687, %v6686
  %v6736 = vpack.c.b16 %v6689, %v6688
  %v6737 = vpack.c.b16 %v6691, %v6690
  %v6738 = vpack.c.b16 %v6693, %v6692
  %v6739 = vpack.c.b16 %v6695, %v6694
  %v6740 = vpack.c.b16 %v6697, %v6696
  %v6741 = vpack.c.b16 %v6699, %v6698
  %v6742 = vpack.c.b16 %v6701, %v6700
  %v6743 = vpack.c.b16 %v6703, %v6702
  %v6744 = vpack.c.b16 %v6705, %v6704
  %v6745 = vpack.c.b16 %v6707, %v6706
  %v6746 = vpack.c.b16 %v6709, %v6708
  %v6747 = vpack.c.b16 %v6711, %v6710
  %v6748 = vpack.c.b16 %v6713, %v6712
  %v6749 = vpack.c.b16 %v6715, %v6714
  %v6750 = vpack.c.b16 %v6717, %v6716
  %v6751 = vpack.c.b16 %v6719, %v6718
  %6784 = vmatprep.subr.bf16.mxu0 0
  %6785 = vmatpush1.bf16.msra.mxu0 %v6720
  %6786 = vmatprep.subr.bf16.mxu0 0
  %6787 = vmatpush1.bf16.msra.mxu0 %v6721
  %6788 = vmatprep.subr.bf16.mxu0 0
  %6789 = vmatpush1.bf16.msra.mxu0 %v6722
  %6790 = vmatprep.subr.bf16.mxu0 0
  %6791 = vmatpush1.bf16.msra.mxu0 %v6723
  %6792 = vmatprep.subr.bf16.mxu0 0
  %6793 = vmatpush1.bf16.msra.mxu0 %v6724
  %6794 = vmatprep.subr.bf16.mxu0 0
  %6795 = vmatpush1.bf16.msra.mxu0 %v6725
  %6796 = vmatprep.subr.bf16.mxu0 0
  %6797 = vmatpush1.bf16.msra.mxu0 %v6726
  %6798 = vmatprep.subr.bf16.mxu0 0
  %6799 = vmatpush1.bf16.msra.mxu0 %v6727
  %6800 = vmatprep.subr.bf16.mxu0 0
  %6801 = vmatpush1.bf16.msra.mxu0 %v6728
  %6802 = vmatprep.subr.bf16.mxu0 0
  %6803 = vmatpush1.bf16.msra.mxu0 %v6729
  %6804 = vmatprep.subr.bf16.mxu0 0
  %6805 = vmatpush1.bf16.msra.mxu0 %v6730
  %6806 = vmatprep.subr.bf16.mxu0 0
  %6807 = vmatpush1.bf16.msra.mxu0 %v6731
  %6808 = vmatprep.subr.bf16.mxu0 0
  %6809 = vmatpush1.bf16.msra.mxu0 %v6732
  %6810 = vmatprep.subr.bf16.mxu0 0
  %6811 = vmatpush1.bf16.msra.mxu0 %v6733
  %6812 = vmatprep.subr.bf16.mxu0 0
  %6813 = vmatpush1.bf16.msra.mxu0 %v6734
  %6814 = vmatprep.subr.bf16.mxu0 0
  %6815 = vmatpush1.bf16.msra.mxu0 %v6735
  %6816 = vmatprep.mubr.bf16.mxu0 %v6496
  %6817 = vmatmul.mubr.bf16.gmra.mrb[0].mxu0 %v6495
  %v6818 = vpop.f32.mrb[0].mxu0
  %v6819 = vadd.f32 0.0, %v6818
  %v6820 = vpop.f32.mrb[0].mxu0
  %v6821 = vpop.f32.mrb[0].mxu0
  %v6822 = vadd.f32 0.0, %v6821
  %v6823 = vpop.f32.mrb[0].mxu0
  %6824 = vmatprep.mubr.bf16.mxu0 %v6500
  %6825 = vmatmul.mubr.bf16.gmra.mrb[0].mxu0 %v6499
  %v6826 = vpop.f32.mrb[0].mxu0
  %v6827 = vadd.f32 0.0, %v6826
  %v6828 = vpop.f32.mrb[0].mxu0
  %v6829 = vpop.f32.mrb[0].mxu0
  %v6830 = vadd.f32 0.0, %v6829
  %v6831 = vpop.f32.mrb[0].mxu0
  %6832 = vmatprep.mubr.bf16.mxu0 %v6504
  %6833 = vmatmul.mubr.bf16.gmra.mrb[0].mxu0 %v6503
  %v6834 = vpop.f32.mrb[0].mxu0
  %v6835 = vadd.f32 0.0, %v6834
  %v6836 = vpop.f32.mrb[0].mxu0
  %v6837 = vpop.f32.mrb[0].mxu0
  %v6838 = vadd.f32 0.0, %v6837
  %v6839 = vpop.f32.mrb[0].mxu0
  %6840 = vmatprep.mubr.bf16.mxu0 %v6508
  %6841 = vmatmul.mubr.bf16.gmra.mrb[0].mxu0 %v6507
  %v6842 = vpop.f32.mrb[0].mxu0
  %v6843 = vadd.f32 0.0, %v6842
  %v6844 = vpop.f32.mrb[0].mxu0
  %v6845 = vpop.f32.mrb[0].mxu0
  %v6846 = vadd.f32 0.0, %v6845
  %v6847 = vpop.f32.mrb[0].mxu0
  %6848 = vmatprep.mubr.bf16.mxu0 %v6512
  %6849 = vmatmul.mubr.bf16.gmra.mrb[0].mxu0 %v6511
  %v6850 = vpop.f32.mrb[0].mxu0
  %v6851 = vadd.f32 0.0, %v6850
  %v6852 = vpop.f32.mrb[0].mxu0
  %v6853 = vpop.f32.mrb[0].mxu0
  %v6854 = vadd.f32 0.0, %v6853
  %v6855 = vpop.f32.mrb[0].mxu0
  %6856 = vmatprep.mubr.bf16.mxu0 %v6516
  %6857 = vmatmul.mubr.bf16.gmra.mrb[0].mxu0 %v6515
  %v6858 = vpop.f32.mrb[0].mxu0
  %v6859 = vadd.f32 0.0, %v6858
  %v6860 = vpop.f32.mrb[0].mxu0
  %v6861 = vpop.f32.mrb[0].mxu0
  %v6862 = vadd.f32 0.0, %v6861
  %v6863 = vpop.f32.mrb[0].mxu0
  %6864 = vmatprep.mubr.bf16.mxu0 %v6520
  %6865 = vmatmul.mubr.bf16.gmra.mrb[0].mxu0 %v6519
  %v6866 = vpop.f32.mrb[0].mxu0
  %v6867 = vadd.f32 0.0, %v6866
  %v6868 = vpop.f32.mrb[0].mxu0
  %v6869 = vpop.f32.mrb[0].mxu0
  %v6870 = vadd.f32 0.0, %v6869
  %v6871 = vpop.f32.mrb[0].mxu0
  %6872 = vmatprep.mubr.bf16.mxu0 %v6524
  %6873 = vmatmul.mubr.bf16.gmra.mrb[0].mxu0 %v6523
  %v6874 = vpop.f32.mrb[0].mxu0
  %v6875 = vadd.f32 0.0, %v6874
  %v6876 = vpop.f32.mrb[0].mxu0
  %v6877 = vpop.f32.mrb[0].mxu0
  %v6878 = vadd.f32 0.0, %v6877
  %v6879 = vpop.f32.mrb[0].mxu0
  %6880 = vdwg.mxu0
  %6881 = vmatprep.subr.bf16.mxu0 0
  %6882 = vmatpush1.bf16.msra.mxu0 %v6736
  %6883 = vmatprep.subr.bf16.mxu0 0
  %6884 = vmatpush1.bf16.msra.mxu0 %v6737
  %6885 = vmatprep.subr.bf16.mxu0 0
  %6886 = vmatpush1.bf16.msra.mxu0 %v6738
  %6887 = vmatprep.subr.bf16.mxu0 0
  %6888 = vmatpush1.bf16.msra.mxu0 %v6739
  %6889 = vmatprep.subr.bf16.mxu0 0
  %6890 = vmatpush1.bf16.msra.mxu0 %v6740
  %6891 = vmatprep.subr.bf16.mxu0 0
  %6892 = vmatpush1.bf16.msra.mxu0 %v6741
  %6893 = vmatprep.subr.bf16.mxu0 0
  %6894 = vmatpush1.bf16.msra.mxu0 %v6742
  %6895 = vmatprep.subr.bf16.mxu0 0
  %6896 = vmatpush1.bf16.msra.mxu0 %v6743
  %6897 = vmatprep.subr.bf16.mxu0 0
  %6898 = vmatpush1.bf16.msra.mxu0 %v6744
  %6899 = vmatprep.subr.bf16.mxu0 0
  %6900 = vmatpush1.bf16.msra.mxu0 %v6745
  %6901 = vmatprep.subr.bf16.mxu0 0
  %6902 = vmatpush1.bf16.msra.mxu0 %v6746
  %6903 = vmatprep.subr.bf16.mxu0 0
  %6904 = vmatpush1.bf16.msra.mxu0 %v6747
  %6905 = vmatprep.subr.bf16.mxu0 0
  %6906 = vmatpush1.bf16.msra.mxu0 %v6748
  %6907 = vmatprep.subr.bf16.mxu0 0
  %6908 = vmatpush1.bf16.msra.mxu0 %v6749
  %6909 = vmatprep.subr.bf16.mxu0 0
  %6910 = vmatpush1.bf16.msra.mxu0 %v6750
  %6911 = vmatprep.subr.bf16.mxu0 0
  %6912 = vmatpush1.bf16.msra.mxu0 %v6751
  %6913 = vmatprep.mubr.bf16.mxu0 %v6498
  %6914 = vmatmul.mubr.bf16.gmra.mrb[0].mxu0 %v6497
  %v6915 = vpop.f32.mrb[0].mxu0
  %v6916 = vadd.f32 %v6819, %v6915
  %v6917 = vpop.f32.mrb[0].mxu0
  %v6918 = vpop.f32.mrb[0].mxu0
  %v6919 = vadd.f32 %v6822, %v6918
  %v6920 = vpop.f32.mrb[0].mxu0
  %6921 = vmatprep.mubr.bf16.mxu0 %v6502
  %6922 = vmatmul.mubr.bf16.gmra.mrb[0].mxu0 %v6501
  %v6923 = vpop.f32.mrb[0].mxu0
  %v6924 = vadd.f32 %v6827, %v6923
  %v6925 = vpop.f32.mrb[0].mxu0
  %v6926 = vpop.f32.mrb[0].mxu0
  %v6927 = vadd.f32 %v6830, %v6926
  %v6928 = vpop.f32.mrb[0].mxu0
  %6929 = vmatprep.mubr.bf16.mxu0 %v6506
  %6930 = vmatmul.mubr.bf16.gmra.mrb[0].mxu0 %v6505
  %v6931 = vpop.f32.mrb[0].mxu0
  %v6932 = vadd.f32 %v6835, %v6931
  %v6933 = vpop.f32.mrb[0].mxu0
  %v6934 = vpop.f32.mrb[0].mxu0
  %v6935 = vadd.f32 %v6838, %v6934
  %v6936 = vpop.f32.mrb[0].mxu0
  %6937 = vmatprep.mubr.bf16.mxu0 %v6510
  %6938 = vmatmul.mubr.bf16.gmra.mrb[0].mxu0 %v6509
  %v6939 = vpop.f32.mrb[0].mxu0
  %v6940 = vadd.f32 %v6843, %v6939
  %v6941 = vpop.f32.mrb[0].mxu0
  %v6942 = vpop.f32.mrb[0].mxu0
  %v6943 = vadd.f32 %v6846, %v6942
  %v6944 = vpop.f32.mrb[0].mxu0
  %6945 = vmatprep.mubr.bf16.mxu0 %v6514
  %6946 = vmatmul.mubr.bf16.gmra.mrb[0].mxu0 %v6513
  %v6947 = vpop.f32.mrb[0].mxu0
  %v6948 = vadd.f32 %v6851, %v6947
  %v6949 = vpop.f32.mrb[0].mxu0
  %v6950 = vpop.f32.mrb[0].mxu0
  %v6951 = vadd.f32 %v6854, %v6950
  %v6952 = vpop.f32.mrb[0].mxu0
  %6953 = vmatprep.mubr.bf16.mxu0 %v6518
  %6954 = vmatmul.mubr.bf16.gmra.mrb[0].mxu0 %v6517
  %v6955 = vpop.f32.mrb[0].mxu0
  %v6956 = vadd.f32 %v6859, %v6955
  %v6957 = vpop.f32.mrb[0].mxu0
  %v6958 = vpop.f32.mrb[0].mxu0
  %v6959 = vadd.f32 %v6862, %v6958
  %v6960 = vpop.f32.mrb[0].mxu0
  %6961 = vmatprep.mubr.bf16.mxu0 %v6522
  %6962 = vmatmul.mubr.bf16.gmra.mrb[0].mxu0 %v6521
  %v6963 = vpop.f32.mrb[0].mxu0
  %v6964 = vadd.f32 %v6867, %v6963
  %v6965 = vpop.f32.mrb[0].mxu0
  %v6966 = vpop.f32.mrb[0].mxu0
  %v6967 = vadd.f32 %v6870, %v6966
  %v6968 = vpop.f32.mrb[0].mxu0
  %6969 = vmatprep.mubr.bf16.mxu0 %v6526
  %6970 = vmatmul.mubr.bf16.gmra.mrb[0].mxu0 %v6525
  %v6971 = vpop.f32.mrb[0].mxu0
  %v6972 = vadd.f32 %v6875, %v6971
  %v6973 = vpop.f32.mrb[0].mxu0
  %v6974 = vpop.f32.mrb[0].mxu0
  %v6975 = vadd.f32 %v6878, %v6974
  %v6976 = vpop.f32.mrb[0].mxu0
  %6977 = vdwg.mxu0
  %v6978 = vadd.f32 %v6108, %v6916
  %v6979 = vadd.f32 %v6109, %v6919
  %v6980 = vadd.f32 %v6110, %v6924
  %v6981 = vadd.f32 %v6111, %v6927
  %v6982 = vadd.f32 %v6112, %v6932
  %v6983 = vadd.f32 %v6113, %v6935
  %v6984 = vadd.f32 %v6114, %v6940
  %v6985 = vadd.f32 %v6115, %v6943
  %v6986 = vadd.f32 %v6116, %v6948
  %v6987 = vadd.f32 %v6117, %v6951
  %v6988 = vadd.f32 %v6118, %v6956
  %v6989 = vadd.f32 %v6119, %v6959
  %v6990 = vadd.f32 %v6120, %v6964
  %v6991 = vadd.f32 %v6121, %v6967
  %v6992 = vadd.f32 %v6122, %v6972
  %v6993 = vadd.f32 %v6123, %v6975
  %v6995 = vlaneseq
  %v6996 = vshrl.u32 %v6995, 7
  %v6997 = vsub.s32 0, %v6996
  %v6998 = vrot.slane %v26, %v6997
  %v7000 = vadd.f32 %v6978, %v6998
  %v7001 = vadd.f32 %v6979, %v6998
  %v7002 = vadd.f32 %v6980, %v6998
  %v7003 = vadd.f32 %v6981, %v6998
  %v7004 = vadd.f32 %v6982, %v6998
  %v7005 = vadd.f32 %v6983, %v6998
  %v7006 = vadd.f32 %v6984, %v6998
  %v7007 = vadd.f32 %v6985, %v6998
  %v7008 = vadd.f32 %v6986, %v6998
  %v7009 = vadd.f32 %v6987, %v6998
  %v7010 = vadd.f32 %v6988, %v6998
  %v7011 = vadd.f32 %v6989, %v6998
  %v7012 = vadd.f32 %v6990, %v6998
  %v7013 = vadd.f32 %v6991, %v6998
  %v7014 = vadd.f32 %v6992, %v6998
  %v7015 = vadd.f32 %v6993, %v6998
  %v7016 = vmax.f32 %v7000, 0.0
  %v7017 = vmax.f32 %v7001, 0.0
  %v7018 = vmax.f32 %v7002, 0.0
  %v7019 = vmax.f32 %v7003, 0.0
  %v7020 = vmax.f32 %v7004, 0.0
  %v7021 = vmax.f32 %v7005, 0.0
  %v7022 = vmax.f32 %v7006, 0.0
  %v7023 = vmax.f32 %v7007, 0.0
  %v7024 = vmax.f32 %v7008, 0.0
  %v7025 = vmax.f32 %v7009, 0.0
  %v7026 = vmax.f32 %v7010, 0.0
  %v7027 = vmax.f32 %v7011, 0.0
  %v7028 = vmax.f32 %v7012, 0.0
  %v7029 = vmax.f32 %v7013, 0.0
  %v7030 = vmax.f32 %v7014, 0.0
  %v7031 = vmax.f32 %v7015, 0.0
  %v7032 = vpack.c.bf16 %v7017, %v7016
  %v7033 = vpack.c.bf16 %v7019, %v7018
  %v7034 = vpack.c.bf16 %v7021, %v7020
  %v7035 = vpack.c.bf16 %v7023, %v7022
  %v7036 = vpack.c.bf16 %v7025, %v7024
  %v7037 = vpack.c.bf16 %v7027, %v7026
  %v7038 = vpack.c.bf16 %v7029, %v7028
  %v7039 = vpack.c.bf16 %v7031, %v7030
  %v7048 = vunpack.c.l.b16 %v7032
  %v7049 = vunpack.c.h.b16 %v7032
  %v7050 = vunpack.c.l.b16 %v7033
  %v7051 = vunpack.c.h.b16 %v7033
  %v7052 = vunpack.c.l.b16 %v7034
  %v7053 = vunpack.c.h.b16 %v7034
  %v7054 = vunpack.c.l.b16 %v7035
  %v7055 = vunpack.c.h.b16 %v7035
  %v7056 = vunpack.c.l.b16 %v7036
  %v7057 = vunpack.c.h.b16 %v7036
  %v7058 = vunpack.c.l.b16 %v7037
  %v7059 = vunpack.c.h.b16 %v7037
  %v7060 = vunpack.c.l.b16 %v7038
  %v7061 = vunpack.c.h.b16 %v7038
  %v7062 = vunpack.c.l.b16 %v7039
  %v7063 = vunpack.c.h.b16 %v7039
  %v7064 = vpack.c.b16 %v7048, %v7048
  %v7065 = vpack.c.b16 %v7049, %v7049
  %v7066 = vpack.c.b16 %v7050, %v7050
  %v7067 = vpack.c.b16 %v7051, %v7051
  %v7068 = vpack.c.b16 %v7052, %v7052
  %v7069 = vpack.c.b16 %v7053, %v7053
  %v7070 = vpack.c.b16 %v7054, %v7054
  %v7071 = vpack.c.b16 %v7055, %v7055
  %v7072 = vpack.c.b16 %v7056, %v7056
  %v7073 = vpack.c.b16 %v7057, %v7057
  %v7074 = vpack.c.b16 %v7058, %v7058
  %v7075 = vpack.c.b16 %v7059, %v7059
  %v7076 = vpack.c.b16 %v7060, %v7060
  %v7077 = vpack.c.b16 %v7061, %v7061
  %v7078 = vpack.c.b16 %v7062, %v7062
  %v7079 = vpack.c.b16 %v7063, %v7063
  %vm7096 = vcmask 191488
  %7097 = vst.msk [vmem:[%s4] sm:$0xf] %vm7096, %v7064
  %7098 = vst.msk [vmem:[%s4 + $0x4] sm:$0xf] %vm7096, %v7065
  %7099 = vst.msk [vmem:[%s4 + $0x8] sm:$0xf] %vm7096, %v7066
  %7100 = vst.msk [vmem:[%s4 + $0xc] sm:$0xf] %vm7096, %v7067
  %7101 = vst.msk [vmem:[%s4 + $0x10] sm:$0xf] %vm7096, %v7068
  %7102 = vst.msk [vmem:[%s4 + $0x14] sm:$0xf] %vm7096, %v7069
  %7103 = vst.msk [vmem:[%s4 + $0x18] sm:$0xf] %vm7096, %v7070
  %7104 = vst.msk [vmem:[%s4 + $0x1c] sm:$0xf] %vm7096, %v7071
  %7105 = vst.msk [vmem:[%s4 + $0x20] sm:$0xf] %vm7096, %v7072
  %7106 = vst.msk [vmem:[%s4 + $0x24] sm:$0xf] %vm7096, %v7073
  %7107 = vst.msk [vmem:[%s4 + $0x28] sm:$0xf] %vm7096, %v7074
  %7108 = vst.msk [vmem:[%s4 + $0x2c] sm:$0xf] %vm7096, %v7075
  %7109 = vst.msk [vmem:[%s4 + $0x30] sm:$0xf] %vm7096, %v7076
  %7110 = vst.msk [vmem:[%s4 + $0x34] sm:$0xf] %vm7096, %v7077
  %7111 = vst.msk [vmem:[%s4 + $0x38] sm:$0xf] %vm7096, %v7078
  %7112 = vst.msk [vmem:[%s4 + $0x3c] sm:$0xf] %vm7096, %v7079
  // Predicated region
  $region18: #{small_data_classifier_forward.2} parent=0 // pred_check
    _
  $region19: #{small_data_classifier_forward.2} parent=0 // pred_check_branch
    %7114 = sbr.rel (0) target = $region21
  $region20: #{small_data_classifier_forward.2} parent=0 // pred_region
    _
  $region21: #{small_data_classifier_forward.2} parent=0 // pred_fallthru
    _
  // Predicated region
  $region22: #{small_data_classifier_forward.2} parent=0 // pred_check
    _
  $region23: #{small_data_classifier_forward.2} parent=0 // pred_check_branch
    %7116 = sbr.rel (0) target = $region25
  $region24: #{small_data_classifier_forward.2} parent=0 // pred_region
    _
  $region25: #{small_data_classifier_forward.2} parent=0 // pred_fallthru
    _

// kernel: small_data_classifier_forward.3
$region0: #{small_data_classifier_forward.3}
  #allocation0 [shape = 'u32[]', space=smem, size = 0x4, offset = 0x4, fixed_abs, tag = 'smem constant byte address 0x4 - core index']
  #allocation1 [shape = 'u32[144,128]{1,0:T(1,128)}', space=vmem, size = 0x12000, scoped, tag = 'internal scratch']
  #allocation2 [shape = 'f32[1,1]{1,0:T(1,128)S(1)}', space=vmem, size = 0x200, scoped, tag = 'scoped memory for small_data_classifier_forward.3']
  %s0 = inlined_call_operand.vmem [shape: bf16[2,1536], index: 0, kind: input, shape index: {}]
  %s1 = inlined_call_operand.vmem [shape: bf16[1536,1024], index: 1, kind: input, shape index: {}]
  %s2 = inlined_call_operand.vmem [shape: f32[1,1024], index: 2, kind: input, shape index: {}]
  %s3 = inlined_call_operand.vmem [shape: bf16[1024,128], index: 3, kind: input, shape index: {}]
  %s4 = inlined_call_operand.vmem [shape: f32[1,128], index: 4, kind: input, shape index: {}]
  %s5 = inlined_call_operand.vmem [shape: bf16[128,128], index: 5, kind: input, shape index: {}]
  %s6 = inlined_call_operand.vmem [shape: f32[1,128], index: 6, kind: input, shape index: {}]
  %s7 = inlined_call_operand.vmem [shape: bf16[128,1], index: 7, kind: input, shape index: {}]
  %s8 = inlined_call_operand.<no memory space> [shape: f32[1,1], index: 8, kind: input, shape index: {}]
  %s9 = inlined_call_operand.vmem [shape: f32[2,1], index: 9, kind: output, shape index: {}]
  %s10 = sld [smem:[#allocation0]]
  $region46: #{small_data_classifier_forward.3} parent=0
    _
  %s12 = ssub.s32 1, %s10
  %s13 = scalar_select 0, %s12, %s10
  %v14 = vstv %s8
  %15 = vst [vmem:[#allocation2] sm:$0x1] %v14
  // Predicated region
  $region2: #{small_data_classifier_forward.3} parent=0 // pred_check
    _
  $region3: #{small_data_classifier_forward.3} parent=0 // pred_check_branch
    %17 = sbr.rel (0) target = $region5
  $region4: #{small_data_classifier_forward.3} parent=0 // pred_region
    _
  $region5: #{small_data_classifier_forward.3} parent=0 // pred_fallthru
    _
  // Predicated region
  $region6: #{small_data_classifier_forward.3} parent=0 // pred_check
    _
  $region7: #{small_data_classifier_forward.3} parent=0 // pred_check_branch
    %19 = sbr.rel (0) target = $region9
  $region8: #{small_data_classifier_forward.3} parent=0 // pred_region
    _
  $region9: #{small_data_classifier_forward.3} parent=0 // pred_fallthru
    _
  // Predicated region
  $region10: #{small_data_classifier_forward.3} parent=0 // pred_check
    _
  $region11: #{small_data_classifier_forward.3} parent=0 // pred_check_branch
    %21 = sbr.rel (0) target = $region13
  $region12: #{small_data_classifier_forward.3} parent=0 // pred_region
    _
  $region13: #{small_data_classifier_forward.3} parent=0 // pred_fallthru
    _
  // Predicated region
  $region14: #{small_data_classifier_forward.3} parent=0 // pred_check
    _
  $region15: #{small_data_classifier_forward.3} parent=0 // pred_check_branch
    %23 = sbr.rel (0) target = $region17
  $region16: #{small_data_classifier_forward.3} parent=0 // pred_region
    _
  $region17: #{small_data_classifier_forward.3} parent=0 // pred_fallthru
    _
  // Predicated region
  $region18: #{small_data_classifier_forward.3} parent=0 // pred_check
    _
  $region19: #{small_data_classifier_forward.3} parent=0 // pred_check_branch
    %25 = sbr.rel (0) target = $region21
  $region20: #{small_data_classifier_forward.3} parent=0 // pred_region
    _
  $region21: #{small_data_classifier_forward.3} parent=0 // pred_fallthru
    _
  // Predicated region
  $region22: #{small_data_classifier_forward.3} parent=0 // pred_check
    _
  $region23: #{small_data_classifier_forward.3} parent=0 // pred_check_branch
    %27 = sbr.rel (0) target = $region25
  $region24: #{small_data_classifier_forward.3} parent=0 // pred_region
    _
  $region25: #{small_data_classifier_forward.3} parent=0 // pred_fallthru
    _
  // Predicated region
  $region26: #{small_data_classifier_forward.3} parent=0 // pred_check
    _
  $region27: #{small_data_classifier_forward.3} parent=0 // pred_check_branch
    %29 = sbr.rel (0) target = $region29
  $region28: #{small_data_classifier_forward.3} parent=0 // pred_region
    _
  $region29: #{small_data_classifier_forward.3} parent=0 // pred_fallthru
    _
  // Predicated region
  $region30: #{small_data_classifier_forward.3} parent=0 // pred_check
    _
  $region31: #{small_data_classifier_forward.3} parent=0 // pred_check_branch
    %31 = sbr.rel (0) target = $region33
  $region32: #{small_data_classifier_forward.3} parent=0 // pred_region
    _
  $region33: #{small_data_classifier_forward.3} parent=0 // pred_fallthru
    _
  // Predicated region
  $region34: #{small_data_classifier_forward.3} parent=0 // pred_check
    _
  $region35: #{small_data_classifier_forward.3} parent=0 // pred_check_branch
    %33 = sbr.rel (0) target = $region37
  $region36: #{small_data_classifier_forward.3} parent=0 // pred_region
    _
  $region37: #{small_data_classifier_forward.3} parent=0 // pred_fallthru
    _
  %v35 = vld [vmem:[%s0] sm:$0xff]
  %v36 = vld [vmem:[%s0 + $0x8] sm:$0xf]
  %v37 = vld [vmem:[%s1] sm:$0xff]
  %v38 = vld [vmem:[%s1 + $0x8] sm:$0xff]
  %v39 = vld [vmem:[%s1 + $0x10] sm:$0xff]
  %v40 = vld [vmem:[%s1 + $0x18] sm:$0xff]
  %v41 = vld [vmem:[%s1 + $0x20] sm:$0xff]
  %v42 = vld [vmem:[%s1 + $0x28] sm:$0xff]
  %v43 = vld [vmem:[%s1 + $0x30] sm:$0xff]
  %v44 = vld [vmem:[%s1 + $0x38] sm:$0xff]
  %v45 = vld [vmem:[%s1 + $0x40] sm:$0xff]
  %v46 = vld [vmem:[%s1 + $0x48] sm:$0xff]
  %v47 = vld [vmem:[%s1 + $0x50] sm:$0xff]
  %v48 = vld [vmem:[%s1 + $0x58] sm:$0xff]
  %v49 = vld [vmem:[%s1 + $0x60] sm:$0xff]
  %v50 = vld [vmem:[%s1 + $0x68] sm:$0xff]
  %v51 = vld [vmem:[%s1 + $0x70] sm:$0xff]
  %v52 = vld [vmem:[%s1 + $0x78] sm:$0xff]
  %v53 = vld [vmem:[%s1 + $0x80] sm:$0xff]
  %v54 = vld [vmem:[%s1 + $0x88] sm:$0xff]
  %v55 = vld [vmem:[%s1 + $0x90] sm:$0xff]
  %v56 = vld [vmem:[%s1 + $0x98] sm:$0xff]
  %v57 = vld [vmem:[%s1 + $0xa0] sm:$0xff]
  %v58 = vld [vmem:[%s1 + $0xa8] sm:$0xff]
  %v59 = vld [vmem:[%s1 + $0xb0] sm:$0xff]
  %v60 = vld [vmem:[%s1 + $0xb8] sm:$0xff]
  %v61 = vld [vmem:[%s1 + $0xc0] sm:$0xff]
  %v62 = vld [vmem:[%s1 + $0xc8] sm:$0xff]
  %v63 = vld [vmem:[%s1 + $0xd0] sm:$0xff]
  %v64 = vld [vmem:[%s1 + $0xd8] sm:$0xff]
  %v65 = vld [vmem:[%s1 + $0xe0] sm:$0xff]
  %v66 = vld [vmem:[%s1 + $0xe8] sm:$0xff]
  %v67 = vld [vmem:[%s1 + $0xf0] sm:$0xff]
  %v68 = vld [vmem:[%s1 + $0xf8] sm:$0xff]
  %v69 = vld [vmem:[%s1 + $0x100] sm:$0xff]
  %v70 = vld [vmem:[%s1 + $0x108] sm:$0xff]
  %v71 = vld [vmem:[%s1 + $0x110] sm:$0xff]
  %v72 = vld [vmem:[%s1 + $0x118] sm:$0xff]
  %v73 = vld [vmem:[%s1 + $0x120] sm:$0xff]
  %v74 = vld [vmem:[%s1 + $0x128] sm:$0xff]
  %v75 = vld [vmem:[%s1 + $0x130] sm:$0xff]
  %v76 = vld [vmem:[%s1 + $0x138] sm:$0xff]
  %v77 = vld [vmem:[%s1 + $0x140] sm:$0xff]
  %v78 = vld [vmem:[%s1 + $0x148] sm:$0xff]
  %v79 = vld [vmem:[%s1 + $0x150] sm:$0xff]
  %v80 = vld [vmem:[%s1 + $0x158] sm:$0xff]
  %v81 = vld [vmem:[%s1 + $0x160] sm:$0xff]
  %v82 = vld [vmem:[%s1 + $0x168] sm:$0xff]
  %v83 = vld [vmem:[%s1 + $0x170] sm:$0xff]
  %v84 = vld [vmem:[%s1 + $0x178] sm:$0xff]
  %v85 = vld [vmem:[%s1 + $0x180] sm:$0xff]
  %v86 = vld [vmem:[%s1 + $0x188] sm:$0xff]
  %v87 = vld [vmem:[%s1 + $0x190] sm:$0xff]
  %v88 = vld [vmem:[%s1 + $0x198] sm:$0xff]
  %v89 = vld [vmem:[%s1 + $0x1a0] sm:$0xff]
  %v90 = vld [vmem:[%s1 + $0x1a8] sm:$0xff]
  %v91 = vld [vmem:[%s1 + $0x1b0] sm:$0xff]
  %v92 = vld [vmem:[%s1 + $0x1b8] sm:$0xff]
  %v93 = vld [vmem:[%s1 + $0x1c0] sm:$0xff]
  %v94 = vld [vmem:[%s1 + $0x1c8] sm:$0xff]
  %v95 = vld [vmem:[%s1 + $0x1d0] sm:$0xff]
  %v96 = vld [vmem:[%s1 + $0x1d8] sm:$0xff]
  %v97 = vld [vmem:[%s1 + $0x1e0] sm:$0xff]
  %v98 = vld [vmem:[%s1 + $0x1e8] sm:$0xff]
  %v99 = vld [vmem:[%s1 + $0x1f0] sm:$0xff]
  %v100 = vld [vmem:[%s1 + $0x1f8] sm:$0xff]
  %v101 = vld [vmem:[%s1 + $0x200] sm:$0xff]
  %v102 = vld [vmem:[%s1 + $0x208] sm:$0xff]
  %v103 = vld [vmem:[%s1 + $0x210] sm:$0xff]
  %v104 = vld [vmem:[%s1 + $0x218] sm:$0xff]
  %v105 = vld [vmem:[%s1 + $0x220] sm:$0xff]
  %v106 = vld [vmem:[%s1 + $0x228] sm:$0xff]
  %v107 = vld [vmem:[%s1 + $0x230] sm:$0xff]
  %v108 = vld [vmem:[%s1 + $0x238] sm:$0xff]
  %v109 = vld [vmem:[%s1 + $0x240] sm:$0xff]
  %v110 = vld [vmem:[%s1 + $0x248] sm:$0xff]
  %v111 = vld [vmem:[%s1 + $0x250] sm:$0xff]
  %v112 = vld [vmem:[%s1 + $0x258] sm:$0xff]
  %v113 = vld [vmem:[%s1 + $0x260] sm:$0xff]
  %v114 = vld [vmem:[%s1 + $0x268] sm:$0xff]
  %v115 = vld [vmem:[%s1 + $0x270] sm:$0xff]
  %v116 = vld [vmem:[%s1 + $0x278] sm:$0xff]
  %v117 = vld [vmem:[%s1 + $0x280] sm:$0xff]
  %v118 = vld [vmem:[%s1 + $0x288] sm:$0xff]
  %v119 = vld [vmem:[%s1 + $0x290] sm:$0xff]
  %v120 = vld [vmem:[%s1 + $0x298] sm:$0xff]
  %v121 = vld [vmem:[%s1 + $0x2a0] sm:$0xff]
  %v122 = vld [vmem:[%s1 + $0x2a8] sm:$0xff]
  %v123 = vld [vmem:[%s1 + $0x2b0] sm:$0xff]
  %v124 = vld [vmem:[%s1 + $0x2b8] sm:$0xff]
  %v125 = vld [vmem:[%s1 + $0x2c0] sm:$0xff]
  %v126 = vld [vmem:[%s1 + $0x2c8] sm:$0xff]
  %v127 = vld [vmem:[%s1 + $0x2d0] sm:$0xff]
  %v128 = vld [vmem:[%s1 + $0x2d8] sm:$0xff]
  %v129 = vld [vmem:[%s1 + $0x2e0] sm:$0xff]
  %v130 = vld [vmem:[%s1 + $0x2e8] sm:$0xff]
  %v131 = vld [vmem:[%s1 + $0x2f0] sm:$0xff]
  %v132 = vld [vmem:[%s1 + $0x2f8] sm:$0xff]
  %v133 = vld [vmem:[%s1 + $0x300] sm:$0xff]
  %v134 = vld [vmem:[%s1 + $0x308] sm:$0xff]
  %v135 = vld [vmem:[%s1 + $0x310] sm:$0xff]
  %v136 = vld [vmem:[%s1 + $0x318] sm:$0xff]
  %v137 = vld [vmem:[%s1 + $0x320] sm:$0xff]
  %v138 = vld [vmem:[%s1 + $0x328] sm:$0xff]
  %v139 = vld [vmem:[%s1 + $0x330] sm:$0xff]
  %v140 = vld [vmem:[%s1 + $0x338] sm:$0xff]
  %v141 = vld [vmem:[%s1 + $0x340] sm:$0xff]
  %v142 = vld [vmem:[%s1 + $0x348] sm:$0xff]
  %v143 = vld [vmem:[%s1 + $0x350] sm:$0xff]
  %v144 = vld [vmem:[%s1 + $0x358] sm:$0xff]
  %v145 = vld [vmem:[%s1 + $0x360] sm:$0xff]
  %v146 = vld [vmem:[%s1 + $0x368] sm:$0xff]
  %v147 = vld [vmem:[%s1 + $0x370] sm:$0xff]
  %v148 = vld [vmem:[%s1 + $0x378] sm:$0xff]
  %v149 = vld [vmem:[%s1 + $0x380] sm:$0xff]
  %v150 = vld [vmem:[%s1 + $0x388] sm:$0xff]
  %v151 = vld [vmem:[%s1 + $0x390] sm:$0xff]
  %v152 = vld [vmem:[%s1 + $0x398] sm:$0xff]
  %v153 = vld [vmem:[%s1 + $0x3a0] sm:$0xff]
  %v154 = vld [vmem:[%s1 + $0x3a8] sm:$0xff]
  %v155 = vld [vmem:[%s1 + $0x3b0] sm:$0xff]
  %v156 = vld [vmem:[%s1 + $0x3b8] sm:$0xff]
  %v157 = vld [vmem:[%s1 + $0x3c0] sm:$0xff]
  %v158 = vld [vmem:[%s1 + $0x3c8] sm:$0xff]
  %v159 = vld [vmem:[%s1 + $0x3d0] sm:$0xff]
  %v160 = vld [vmem:[%s1 + $0x3d8] sm:$0xff]
  %v161 = vld [vmem:[%s1 + $0x3e0] sm:$0xff]
  %v162 = vld [vmem:[%s1 + $0x3e8] sm:$0xff]
  %v163 = vld [vmem:[%s1 + $0x3f0] sm:$0xff]
  %v164 = vld [vmem:[%s1 + $0x3f8] sm:$0xff]
  %v165 = vld [vmem:[%s1 + $0x400] sm:$0xff]
  %v166 = vld [vmem:[%s1 + $0x408] sm:$0xff]
  %v167 = vld [vmem:[%s1 + $0x410] sm:$0xff]
  %v168 = vld [vmem:[%s1 + $0x418] sm:$0xff]
  %v169 = vld [vmem:[%s1 + $0x420] sm:$0xff]
  %v170 = vld [vmem:[%s1 + $0x428] sm:$0xff]
  %v171 = vld [vmem:[%s1 + $0x430] sm:$0xff]
  %v172 = vld [vmem:[%s1 + $0x438] sm:$0xff]
  %v173 = vld [vmem:[%s1 + $0x440] sm:$0xff]
  %v174 = vld [vmem:[%s1 + $0x448] sm:$0xff]
  %v175 = vld [vmem:[%s1 + $0x450] sm:$0xff]
  %v176 = vld [vmem:[%s1 + $0x458] sm:$0xff]
  %v177 = vld [vmem:[%s1 + $0x460] sm:$0xff]
  %v178 = vld [vmem:[%s1 + $0x468] sm:$0xff]
  %v179 = vld [vmem:[%s1 + $0x470] sm:$0xff]
  %v180 = vld [vmem:[%s1 + $0x478] sm:$0xff]
  %v181 = vld [vmem:[%s1 + $0x480] sm:$0xff]
  %v182 = vld [vmem:[%s1 + $0x488] sm:$0xff]
  %v183 = vld [vmem:[%s1 + $0x490] sm:$0xff]
  %v184 = vld [vmem:[%s1 + $0x498] sm:$0xff]
  %v185 = vld [vmem:[%s1 + $0x4a0] sm:$0xff]
  %v186 = vld [vmem:[%s1 + $0x4a8] sm:$0xff]
  %v187 = vld [vmem:[%s1 + $0x4b0] sm:$0xff]
  %v188 = vld [vmem:[%s1 + $0x4b8] sm:$0xff]
  %v189 = vld [vmem:[%s1 + $0x4c0] sm:$0xff]
  %v190 = vld [vmem:[%s1 + $0x4c8] sm:$0xff]
  %v191 = vld [vmem:[%s1 + $0x4d0] sm:$0xff]
  %v192 = vld [vmem:[%s1 + $0x4d8] sm:$0xff]
  %v193 = vld [vmem:[%s1 + $0x4e0] sm:$0xff]
  %v194 = vld [vmem:[%s1 + $0x4e8] sm:$0xff]
  %v195 = vld [vmem:[%s1 + $0x4f0] sm:$0xff]
  %v196 = vld [vmem:[%s1 + $0x4f8] sm:$0xff]
  %v197 = vld [vmem:[%s1 + $0x500] sm:$0xff]
  %v198 = vld [vmem:[%s1 + $0x508] sm:$0xff]
  %v199 = vld [vmem:[%s1 + $0x510] sm:$0xff]
  %v200 = vld [vmem:[%s1 + $0x518] sm:$0xff]
  %v201 = vld [vmem:[%s1 + $0x520] sm:$0xff]
  %v202 = vld [vmem:[%s1 + $0x528] sm:$0xff]
  %v203 = vld [vmem:[%s1 + $0x530] sm:$0xff]
  %v204 = vld [vmem:[%s1 + $0x538] sm:$0xff]
  %v205 = vld [vmem:[%s1 + $0x540] sm:$0xff]
  %v206 = vld [vmem:[%s1 + $0x548] sm:$0xff]
  %v207 = vld [vmem:[%s1 + $0x550] sm:$0xff]
  %v208 = vld [vmem:[%s1 + $0x558] sm:$0xff]
  %v209 = vld [vmem:[%s1 + $0x560] sm:$0xff]
  %v210 = vld [vmem:[%s1 + $0x568] sm:$0xff]
  %v211 = vld [vmem:[%s1 + $0x570] sm:$0xff]
  %v212 = vld [vmem:[%s1 + $0x578] sm:$0xff]
  %v213 = vld [vmem:[%s1 + $0x580] sm:$0xff]
  %v214 = vld [vmem:[%s1 + $0x588] sm:$0xff]
  %v215 = vld [vmem:[%s1 + $0x590] sm:$0xff]
  %v216 = vld [vmem:[%s1 + $0x598] sm:$0xff]
  %v217 = vld [vmem:[%s1 + $0x5a0] sm:$0xff]
  %v218 = vld [vmem:[%s1 + $0x5a8] sm:$0xff]
  %v219 = vld [vmem:[%s1 + $0x5b0] sm:$0xff]
  %v220 = vld [vmem:[%s1 + $0x5b8] sm:$0xff]
  %v221 = vld [vmem:[%s1 + $0x5c0] sm:$0xff]
  %v222 = vld [vmem:[%s1 + $0x5c8] sm:$0xff]
  %v223 = vld [vmem:[%s1 + $0x5d0] sm:$0xff]
  %v224 = vld [vmem:[%s1 + $0x5d8] sm:$0xff]
  %v225 = vld [vmem:[%s1 + $0x5e0] sm:$0xff]
  %v226 = vld [vmem:[%s1 + $0x5e8] sm:$0xff]
  %v227 = vld [vmem:[%s1 + $0x5f0] sm:$0xff]
  %v228 = vld [vmem:[%s1 + $0x5f8] sm:$0xff]
  %v229 = vld [vmem:[%s1 + $0x600] sm:$0xff]
  %v230 = vld [vmem:[%s1 + $0x608] sm:$0xff]
  %v231 = vld [vmem:[%s1 + $0x610] sm:$0xff]
  %v232 = vld [vmem:[%s1 + $0x618] sm:$0xff]
  %v233 = vld [vmem:[%s1 + $0x620] sm:$0xff]
  %v234 = vld [vmem:[%s1 + $0x628] sm:$0xff]
  %v235 = vld [vmem:[%s1 + $0x630] sm:$0xff]
  %v236 = vld [vmem:[%s1 + $0x638] sm:$0xff]
  %v237 = vld [vmem:[%s1 + $0x640] sm:$0xff]
  %v238 = vld [vmem:[%s1 + $0x648] sm:$0xff]
  %v239 = vld [vmem:[%s1 + $0x650] sm:$0xff]
  %v240 = vld [vmem:[%s1 + $0x658] sm:$0xff]
  %v241 = vld [vmem:[%s1 + $0x660] sm:$0xff]
  %v242 = vld [vmem:[%s1 + $0x668] sm:$0xff]
  %v243 = vld [vmem:[%s1 + $0x670] sm:$0xff]
  %v244 = vld [vmem:[%s1 + $0x678] sm:$0xff]
  %v245 = vld [vmem:[%s1 + $0x680] sm:$0xff]
  %v246 = vld [vmem:[%s1 + $0x688] sm:$0xff]
  %v247 = vld [vmem:[%s1 + $0x690] sm:$0xff]
  %v248 = vld [vmem:[%s1 + $0x698] sm:$0xff]
  %v249 = vld [vmem:[%s1 + $0x6a0] sm:$0xff]
  %v250 = vld [vmem:[%s1 + $0x6a8] sm:$0xff]
  %v251 = vld [vmem:[%s1 + $0x6b0] sm:$0xff]
  %v252 = vld [vmem:[%s1 + $0x6b8] sm:$0xff]
  %v253 = vld [vmem:[%s1 + $0x6c0] sm:$0xff]
  %v254 = vld [vmem:[%s1 + $0x6c8] sm:$0xff]
  %v255 = vld [vmem:[%s1 + $0x6d0] sm:$0xff]
  %v256 = vld [vmem:[%s1 + $0x6d8] sm:$0xff]
  %v257 = vld [vmem:[%s1 + $0x6e0] sm:$0xff]
  %v258 = vld [vmem:[%s1 + $0x6e8] sm:$0xff]
  %v259 = vld [vmem:[%s1 + $0x6f0] sm:$0xff]
  %v260 = vld [vmem:[%s1 + $0x6f8] sm:$0xff]
  %v261 = vld [vmem:[%s1 + $0x700] sm:$0xff]
  %v262 = vld [vmem:[%s1 + $0x708] sm:$0xff]
  %v263 = vld [vmem:[%s1 + $0x710] sm:$0xff]
  %v264 = vld [vmem:[%s1 + $0x718] sm:$0xff]
  %v265 = vld [vmem:[%s1 + $0x720] sm:$0xff]
  %v266 = vld [vmem:[%s1 + $0x728] sm:$0xff]
  %v267 = vld [vmem:[%s1 + $0x730] sm:$0xff]
  %v268 = vld [vmem:[%s1 + $0x738] sm:$0xff]
  %v269 = vld [vmem:[%s1 + $0x740] sm:$0xff]
  %v270 = vld [vmem:[%s1 + $0x748] sm:$0xff]
  %v271 = vld [vmem:[%s1 + $0x750] sm:$0xff]
  %v272 = vld [vmem:[%s1 + $0x758] sm:$0xff]
  %v273 = vld [vmem:[%s1 + $0x760] sm:$0xff]
  %v274 = vld [vmem:[%s1 + $0x768] sm:$0xff]
  %v275 = vld [vmem:[%s1 + $0x770] sm:$0xff]
  %v276 = vld [vmem:[%s1 + $0x778] sm:$0xff]
  %v277 = vld [vmem:[%s1 + $0x780] sm:$0xff]
  %v278 = vld [vmem:[%s1 + $0x788] sm:$0xff]
  %v279 = vld [vmem:[%s1 + $0x790] sm:$0xff]
  %v280 = vld [vmem:[%s1 + $0x798] sm:$0xff]
  %v281 = vld [vmem:[%s1 + $0x7a0] sm:$0xff]
  %v282 = vld [vmem:[%s1 + $0x7a8] sm:$0xff]
  %v283 = vld [vmem:[%s1 + $0x7b0] sm:$0xff]
  %v284 = vld [vmem:[%s1 + $0x7b8] sm:$0xff]
  %v285 = vld [vmem:[%s1 + $0x7c0] sm:$0xff]
  %v286 = vld [vmem:[%s1 + $0x7c8] sm:$0xff]
  %v287 = vld [vmem:[%s1 + $0x7d0] sm:$0xff]
  %v288 = vld [vmem:[%s1 + $0x7d8] sm:$0xff]
  %v289 = vld [vmem:[%s1 + $0x7e0] sm:$0xff]
  %v290 = vld [vmem:[%s1 + $0x7e8] sm:$0xff]
  %v291 = vld [vmem:[%s1 + $0x7f0] sm:$0xff]
  %v292 = vld [vmem:[%s1 + $0x7f8] sm:$0xff]
  %v293 = vld [vmem:[%s1 + $0x800] sm:$0xff]
  %v294 = vld [vmem:[%s1 + $0x808] sm:$0xff]
  %v295 = vld [vmem:[%s1 + $0x810] sm:$0xff]
  %v296 = vld [vmem:[%s1 + $0x818] sm:$0xff]
  %v297 = vld [vmem:[%s1 + $0x820] sm:$0xff]
  %v298 = vld [vmem:[%s1 + $0x828] sm:$0xff]
  %v299 = vld [vmem:[%s1 + $0x830] sm:$0xff]
  %v300 = vld [vmem:[%s1 + $0x838] sm:$0xff]
  %v301 = vld [vmem:[%s1 + $0x840] sm:$0xff]
  %v302 = vld [vmem:[%s1 + $0x848] sm:$0xff]
  %v303 = vld [vmem:[%s1 + $0x850] sm:$0xff]
  %v304 = vld [vmem:[%s1 + $0x858] sm:$0xff]
  %v305 = vld [vmem:[%s1 + $0x860] sm:$0xff]
  %v306 = vld [vmem:[%s1 + $0x868] sm:$0xff]
  %v307 = vld [vmem:[%s1 + $0x870] sm:$0xff]
  %v308 = vld [vmem:[%s1 + $0x878] sm:$0xff]
  %v309 = vld [vmem:[%s1 + $0x880] sm:$0xff]
  %v310 = vld [vmem:[%s1 + $0x888] sm:$0xff]
  %v311 = vld [vmem:[%s1 + $0x890] sm:$0xff]
  %v312 = vld [vmem:[%s1 + $0x898] sm:$0xff]
  %v313 = vld [vmem:[%s1 + $0x8a0] sm:$0xff]
  %v314 = vld [vmem:[%s1 + $0x8a8] sm:$0xff]
  %v315 = vld [vmem:[%s1 + $0x8b0] sm:$0xff]
  %v316 = vld [vmem:[%s1 + $0x8b8] sm:$0xff]
  %v317 = vld [vmem:[%s1 + $0x8c0] sm:$0xff]
  %v318 = vld [vmem:[%s1 + $0x8c8] sm:$0xff]
  %v319 = vld [vmem:[%s1 + $0x8d0] sm:$0xff]
  %v320 = vld [vmem:[%s1 + $0x8d8] sm:$0xff]
  %v321 = vld [vmem:[%s1 + $0x8e0] sm:$0xff]
  %v322 = vld [vmem:[%s1 + $0x8e8] sm:$0xff]
  %v323 = vld [vmem:[%s1 + $0x8f0] sm:$0xff]
  %v324 = vld [vmem:[%s1 + $0x8f8] sm:$0xff]
  %v325 = vld [vmem:[%s1 + $0x900] sm:$0xff]
  %v326 = vld [vmem:[%s1 + $0x908] sm:$0xff]
  %v327 = vld [vmem:[%s1 + $0x910] sm:$0xff]
  %v328 = vld [vmem:[%s1 + $0x918] sm:$0xff]
  %v329 = vld [vmem:[%s1 + $0x920] sm:$0xff]
  %v330 = vld [vmem:[%s1 + $0x928] sm:$0xff]
  %v331 = vld [vmem:[%s1 + $0x930] sm:$0xff]
  %v332 = vld [vmem:[%s1 + $0x938] sm:$0xff]
  %v333 = vld [vmem:[%s1 + $0x940] sm:$0xff]
  %v334 = vld [vmem:[%s1 + $0x948] sm:$0xff]
  %v335 = vld [vmem:[%s1 + $0x950] sm:$0xff]
  %v336 = vld [vmem:[%s1 + $0x958] sm:$0xff]
  %v337 = vld [vmem:[%s1 + $0x960] sm:$0xff]
  %v338 = vld [vmem:[%s1 + $0x968] sm:$0xff]
  %v339 = vld [vmem:[%s1 + $0x970] sm:$0xff]
  %v340 = vld [vmem:[%s1 + $0x978] sm:$0xff]
  %v341 = vld [vmem:[%s1 + $0x980] sm:$0xff]
  %v342 = vld [vmem:[%s1 + $0x988] sm:$0xff]
  %v343 = vld [vmem:[%s1 + $0x990] sm:$0xff]
  %v344 = vld [vmem:[%s1 + $0x998] sm:$0xff]
  %v345 = vld [vmem:[%s1 + $0x9a0] sm:$0xff]
  %v346 = vld [vmem:[%s1 + $0x9a8] sm:$0xff]
  %v347 = vld [vmem:[%s1 + $0x9b0] sm:$0xff]
  %v348 = vld [vmem:[%s1 + $0x9b8] sm:$0xff]
  %v349 = vld [vmem:[%s1 + $0x9c0] sm:$0xff]
  %v350 = vld [vmem:[%s1 + $0x9c8] sm:$0xff]
  %v351 = vld [vmem:[%s1 + $0x9d0] sm:$0xff]
  %v352 = vld [vmem:[%s1 + $0x9d8] sm:$0xff]
  %v353 = vld [vmem:[%s1 + $0x9e0] sm:$0xff]
  %v354 = vld [vmem:[%s1 + $0x9e8] sm:$0xff]
  %v355 = vld [vmem:[%s1 + $0x9f0] sm:$0xff]
  %v356 = vld [vmem:[%s1 + $0x9f8] sm:$0xff]
  %v357 = vld [vmem:[%s1 + $0xa00] sm:$0xff]
  %v358 = vld [vmem:[%s1 + $0xa08] sm:$0xff]
  %v359 = vld [vmem:[%s1 + $0xa10] sm:$0xff]
  %v360 = vld [vmem:[%s1 + $0xa18] sm:$0xff]
  %v361 = vld [vmem:[%s1 + $0xa20] sm:$0xff]
  %v362 = vld [vmem:[%s1 + $0xa28] sm:$0xff]
  %v363 = vld [vmem:[%s1 + $0xa30] sm:$0xff]
  %v364 = vld [vmem:[%s1 + $0xa38] sm:$0xff]
  %v365 = vld [vmem:[%s1 + $0xa40] sm:$0xff]
  %v366 = vld [vmem:[%s1 + $0xa48] sm:$0xff]
  %v367 = vld [vmem:[%s1 + $0xa50] sm:$0xff]
  %v368 = vld [vmem:[%s1 + $0xa58] sm:$0xff]
  %v369 = vld [vmem:[%s1 + $0xa60] sm:$0xff]
  %v370 = vld [vmem:[%s1 + $0xa68] sm:$0xff]
  %v371 = vld [vmem:[%s1 + $0xa70] sm:$0xff]
  %v372 = vld [vmem:[%s1 + $0xa78] sm:$0xff]
  %v373 = vld [vmem:[%s1 + $0xa80] sm:$0xff]
  %v374 = vld [vmem:[%s1 + $0xa88] sm:$0xff]
  %v375 = vld [vmem:[%s1 + $0xa90] sm:$0xff]
  %v376 = vld [vmem:[%s1 + $0xa98] sm:$0xff]
  %v377 = vld [vmem:[%s1 + $0xaa0] sm:$0xff]
  %v378 = vld [vmem:[%s1 + $0xaa8] sm:$0xff]
  %v379 = vld [vmem:[%s1 + $0xab0] sm:$0xff]
  %v380 = vld [vmem:[%s1 + $0xab8] sm:$0xff]
  %v381 = vld [vmem:[%s1 + $0xac0] sm:$0xff]
  %v382 = vld [vmem:[%s1 + $0xac8] sm:$0xff]
  %v383 = vld [vmem:[%s1 + $0xad0] sm:$0xff]
  %v384 = vld [vmem:[%s1 + $0xad8] sm:$0xff]
  %v385 = vld [vmem:[%s1 + $0xae0] sm:$0xff]
  %v386 = vld [vmem:[%s1 + $0xae8] sm:$0xff]
  %v387 = vld [vmem:[%s1 + $0xaf0] sm:$0xff]
  %v388 = vld [vmem:[%s1 + $0xaf8] sm:$0xff]
  %v389 = vld [vmem:[%s1 + $0xb00] sm:$0xff]
  %v390 = vld [vmem:[%s1 + $0xb08] sm:$0xff]
  %v391 = vld [vmem:[%s1 + $0xb10] sm:$0xff]
  %v392 = vld [vmem:[%s1 + $0xb18] sm:$0xff]
  %v393 = vld [vmem:[%s1 + $0xb20] sm:$0xff]
  %v394 = vld [vmem:[%s1 + $0xb28] sm:$0xff]
  %v395 = vld [vmem:[%s1 + $0xb30] sm:$0xff]
  %v396 = vld [vmem:[%s1 + $0xb38] sm:$0xff]
  %v397 = vld [vmem:[%s1 + $0xb40] sm:$0xff]
  %v398 = vld [vmem:[%s1 + $0xb48] sm:$0xff]
  %v399 = vld [vmem:[%s1 + $0xb50] sm:$0xff]
  %v400 = vld [vmem:[%s1 + $0xb58] sm:$0xff]
  %v401 = vld [vmem:[%s1 + $0xb60] sm:$0xff]
  %v402 = vld [vmem:[%s1 + $0xb68] sm:$0xff]
  %v403 = vld [vmem:[%s1 + $0xb70] sm:$0xff]
  %v404 = vld [vmem:[%s1 + $0xb78] sm:$0xff]
  %v405 = vld [vmem:[%s1 + $0xb80] sm:$0xff]
  %v406 = vld [vmem:[%s1 + $0xb88] sm:$0xff]
  %v407 = vld [vmem:[%s1 + $0xb90] sm:$0xff]
  %v408 = vld [vmem:[%s1 + $0xb98] sm:$0xff]
  %v409 = vld [vmem:[%s1 + $0xba0] sm:$0xff]
  %v410 = vld [vmem:[%s1 + $0xba8] sm:$0xff]
  %v411 = vld [vmem:[%s1 + $0xbb0] sm:$0xff]
  %v412 = vld [vmem:[%s1 + $0xbb8] sm:$0xff]
  %v413 = vld [vmem:[%s1 + $0xbc0] sm:$0xff]
  %v414 = vld [vmem:[%s1 + $0xbc8] sm:$0xff]
  %v415 = vld [vmem:[%s1 + $0xbd0] sm:$0xff]
  %v416 = vld [vmem:[%s1 + $0xbd8] sm:$0xff]
  %v417 = vld [vmem:[%s1 + $0xbe0] sm:$0xff]
  %v418 = vld [vmem:[%s1 + $0xbe8] sm:$0xff]
  %v419 = vld [vmem:[%s1 + $0xbf0] sm:$0xff]
  %v420 = vld [vmem:[%s1 + $0xbf8] sm:$0xff]
  %v421 = vld [vmem:[%s1 + $0xc00] sm:$0xff]
  %v422 = vld [vmem:[%s1 + $0xc08] sm:$0xff]
  %v423 = vld [vmem:[%s1 + $0xc10] sm:$0xff]
  %v424 = vld [vmem:[%s1 + $0xc18] sm:$0xff]
  %v425 = vld [vmem:[%s1 + $0xc20] sm:$0xff]
  %v426 = vld [vmem:[%s1 + $0xc28] sm:$0xff]
  %v427 = vld [vmem:[%s1 + $0xc30] sm:$0xff]
  %v428 = vld [vmem:[%s1 + $0xc38] sm:$0xff]
  %v429 = vld [vmem:[%s1 + $0xc40] sm:$0xff]
  %v430 = vld [vmem:[%s1 + $0xc48] sm:$0xff]
  %v431 = vld [vmem:[%s1 + $0xc50] sm:$0xff]
  %v432 = vld [vmem:[%s1 + $0xc58] sm:$0xff]
  %v433 = vld [vmem:[%s1 + $0xc60] sm:$0xff]
  %v434 = vld [vmem:[%s1 + $0xc68] sm:$0xff]
  %v435 = vld [vmem:[%s1 + $0xc70] sm:$0xff]
  %v436 = vld [vmem:[%s1 + $0xc78] sm:$0xff]
  %v437 = vld [vmem:[%s1 + $0xc80] sm:$0xff]
  %v438 = vld [vmem:[%s1 + $0xc88] sm:$0xff]
  %v439 = vld [vmem:[%s1 + $0xc90] sm:$0xff]
  %v440 = vld [vmem:[%s1 + $0xc98] sm:$0xff]
  %v441 = vld [vmem:[%s1 + $0xca0] sm:$0xff]
  %v442 = vld [vmem:[%s1 + $0xca8] sm:$0xff]
  %v443 = vld [vmem:[%s1 + $0xcb0] sm:$0xff]
  %v444 = vld [vmem:[%s1 + $0xcb8] sm:$0xff]
  %v445 = vld [vmem:[%s1 + $0xcc0] sm:$0xff]
  %v446 = vld [vmem:[%s1 + $0xcc8] sm:$0xff]
  %v447 = vld [vmem:[%s1 + $0xcd0] sm:$0xff]
  %v448 = vld [vmem:[%s1 + $0xcd8] sm:$0xff]
  %v449 = vld [vmem:[%s1 + $0xce0] sm:$0xff]
  %v450 = vld [vmem:[%s1 + $0xce8] sm:$0xff]
  %v451 = vld [vmem:[%s1 + $0xcf0] sm:$0xff]
  %v452 = vld [vmem:[%s1 + $0xcf8] sm:$0xff]
  %v453 = vld [vmem:[%s1 + $0xd00] sm:$0xff]
  %v454 = vld [vmem:[%s1 + $0xd08] sm:$0xff]
  %v455 = vld [vmem:[%s1 + $0xd10] sm:$0xff]
  %v456 = vld [vmem:[%s1 + $0xd18] sm:$0xff]
  %v457 = vld [vmem:[%s1 + $0xd20] sm:$0xff]
  %v458 = vld [vmem:[%s1 + $0xd28] sm:$0xff]
  %v459 = vld [vmem:[%s1 + $0xd30] sm:$0xff]
  %v460 = vld [vmem:[%s1 + $0xd38] sm:$0xff]
  %v461 = vld [vmem:[%s1 + $0xd40] sm:$0xff]
  %v462 = vld [vmem:[%s1 + $0xd48] sm:$0xff]
  %v463 = vld [vmem:[%s1 + $0xd50] sm:$0xff]
  %v464 = vld [vmem:[%s1 + $0xd58] sm:$0xff]
  %v465 = vld [vmem:[%s1 + $0xd60] sm:$0xff]
  %v466 = vld [vmem:[%s1 + $0xd68] sm:$0xff]
  %v467 = vld [vmem:[%s1 + $0xd70] sm:$0xff]
  %v468 = vld [vmem:[%s1 + $0xd78] sm:$0xff]
  %v469 = vld [vmem:[%s1 + $0xd80] sm:$0xff]
  %v470 = vld [vmem:[%s1 + $0xd88] sm:$0xff]
  %v471 = vld [vmem:[%s1 + $0xd90] sm:$0xff]
  %v472 = vld [vmem:[%s1 + $0xd98] sm:$0xff]
  %v473 = vld [vmem:[%s1 + $0xda0] sm:$0xff]
  %v474 = vld [vmem:[%s1 + $0xda8] sm:$0xff]
  %v475 = vld [vmem:[%s1 + $0xdb0] sm:$0xff]
  %v476 = vld [vmem:[%s1 + $0xdb8] sm:$0xff]
  %v477 = vld [vmem:[%s1 + $0xdc0] sm:$0xff]
  %v478 = vld [vmem:[%s1 + $0xdc8] sm:$0xff]
  %v479 = vld [vmem:[%s1 + $0xdd0] sm:$0xff]
  %v480 = vld [vmem:[%s1 + $0xdd8] sm:$0xff]
  %v481 = vld [vmem:[%s1 + $0xde0] sm:$0xff]
  %v482 = vld [vmem:[%s1 + $0xde8] sm:$0xff]
  %v483 = vld [vmem:[%s1 + $0xdf0] sm:$0xff]
  %v484 = vld [vmem:[%s1 + $0xdf8] sm:$0xff]
  %v485 = vld [vmem:[%s1 + $0xe00] sm:$0xff]
  %v486 = vld [vmem:[%s1 + $0xe08] sm:$0xff]
  %v487 = vld [vmem:[%s1 + $0xe10] sm:$0xff]
  %v488 = vld [vmem:[%s1 + $0xe18] sm:$0xff]
  %v489 = vld [vmem:[%s1 + $0xe20] sm:$0xff]
  %v490 = vld [vmem:[%s1 + $0xe28] sm:$0xff]
  %v491 = vld [vmem:[%s1 + $0xe30] sm:$0xff]
  %v492 = vld [vmem:[%s1 + $0xe38] sm:$0xff]
  %v493 = vld [vmem:[%s1 + $0xe40] sm:$0xff]
  %v494 = vld [vmem:[%s1 + $0xe48] sm:$0xff]
  %v495 = vld [vmem:[%s1 + $0xe50] sm:$0xff]
  %v496 = vld [vmem:[%s1 + $0xe58] sm:$0xff]
  %v497 = vld [vmem:[%s1 + $0xe60] sm:$0xff]
  %v498 = vld [vmem:[%s1 + $0xe68] sm:$0xff]
  %v499 = vld [vmem:[%s1 + $0xe70] sm:$0xff]
  %v500 = vld [vmem:[%s1 + $0xe78] sm:$0xff]
  %v501 = vld [vmem:[%s1 + $0xe80] sm:$0xff]
  %v502 = vld [vmem:[%s1 + $0xe88] sm:$0xff]
  %v503 = vld [vmem:[%s1 + $0xe90] sm:$0xff]
  %v504 = vld [vmem:[%s1 + $0xe98] sm:$0xff]
  %v505 = vld [vmem:[%s1 + $0xea0] sm:$0xff]
  %v506 = vld [vmem:[%s1 + $0xea8] sm:$0xff]
  %v507 = vld [vmem:[%s1 + $0xeb0] sm:$0xff]
  %v508 = vld [vmem:[%s1 + $0xeb8] sm:$0xff]
  %v509 = vld [vmem:[%s1 + $0xec0] sm:$0xff]
  %v510 = vld [vmem:[%s1 + $0xec8] sm:$0xff]
  %v511 = vld [vmem:[%s1 + $0xed0] sm:$0xff]
  %v512 = vld [vmem:[%s1 + $0xed8] sm:$0xff]
  %v513 = vld [vmem:[%s1 + $0xee0] sm:$0xff]
  %v514 = vld [vmem:[%s1 + $0xee8] sm:$0xff]
  %v515 = vld [vmem:[%s1 + $0xef0] sm:$0xff]
  %v516 = vld [vmem:[%s1 + $0xef8] sm:$0xff]
  %v517 = vld [vmem:[%s1 + $0xf00] sm:$0xff]
  %v518 = vld [vmem:[%s1 + $0xf08] sm:$0xff]
  %v519 = vld [vmem:[%s1 + $0xf10] sm:$0xff]
  %v520 = vld [vmem:[%s1 + $0xf18] sm:$0xff]
  %v521 = vld [vmem:[%s1 + $0xf20] sm:$0xff]
  %v522 = vld [vmem:[%s1 + $0xf28] sm:$0xff]
  %v523 = vld [vmem:[%s1 + $0xf30] sm:$0xff]
  %v524 = vld [vmem:[%s1 + $0xf38] sm:$0xff]
  %v525 = vld [vmem:[%s1 + $0xf40] sm:$0xff]
  %v526 = vld [vmem:[%s1 + $0xf48] sm:$0xff]
  %v527 = vld [vmem:[%s1 + $0xf50] sm:$0xff]
  %v528 = vld [vmem:[%s1 + $0xf58] sm:$0xff]
  %v529 = vld [vmem:[%s1 + $0xf60] sm:$0xff]
  %v530 = vld [vmem:[%s1 + $0xf68] sm:$0xff]
  %v531 = vld [vmem:[%s1 + $0xf70] sm:$0xff]
  %v532 = vld [vmem:[%s1 + $0xf78] sm:$0xff]
  %v533 = vld [vmem:[%s1 + $0xf80] sm:$0xff]
  %v534 = vld [vmem:[%s1 + $0xf88] sm:$0xff]
  %v535 = vld [vmem:[%s1 + $0xf90] sm:$0xff]
  %v536 = vld [vmem:[%s1 + $0xf98] sm:$0xff]
  %v537 = vld [vmem:[%s1 + $0xfa0] sm:$0xff]
  %v538 = vld [vmem:[%s1 + $0xfa8] sm:$0xff]
  %v539 = vld [vmem:[%s1 + $0xfb0] sm:$0xff]
  %v540 = vld [vmem:[%s1 + $0xfb8] sm:$0xff]
  %v541 = vld [vmem:[%s1 + $0xfc0] sm:$0xff]
  %v542 = vld [vmem:[%s1 + $0xfc8] sm:$0xff]
  %v543 = vld [vmem:[%s1 + $0xfd0] sm:$0xff]
  %v544 = vld [vmem:[%s1 + $0xfd8] sm:$0xff]
  %v545 = vld [vmem:[%s1 + $0xfe0] sm:$0xff]
  %v546 = vld [vmem:[%s1 + $0xfe8] sm:$0xff]
  %v547 = vld [vmem:[%s1 + $0xff0] sm:$0xff]
  %v548 = vld [vmem:[%s1 + $0xff8] sm:$0xff]
  %v549 = vld [vmem:[%s1 + $0x1000] sm:$0xff]
  %v550 = vld [vmem:[%s1 + $0x1008] sm:$0xff]
  %v551 = vld [vmem:[%s1 + $0x1010] sm:$0xff]
  %v552 = vld [vmem:[%s1 + $0x1018] sm:$0xff]
  %v553 = vld [vmem:[%s1 + $0x1020] sm:$0xff]
  %v554 = vld [vmem:[%s1 + $0x1028] sm:$0xff]
  %v555 = vld [vmem:[%s1 + $0x1030] sm:$0xff]
  %v556 = vld [vmem:[%s1 + $0x1038] sm:$0xff]
  %v557 = vld [vmem:[%s1 + $0x1040] sm:$0xff]
  %v558 = vld [vmem:[%s1 + $0x1048] sm:$0xff]
  %v559 = vld [vmem:[%s1 + $0x1050] sm:$0xff]
  %v560 = vld [vmem:[%s1 + $0x1058] sm:$0xff]
  %v561 = vld [vmem:[%s1 + $0x1060] sm:$0xff]
  %v562 = vld [vmem:[%s1 + $0x1068] sm:$0xff]
  %v563 = vld [vmem:[%s1 + $0x1070] sm:$0xff]
  %v564 = vld [vmem:[%s1 + $0x1078] sm:$0xff]
  %v565 = vld [vmem:[%s1 + $0x1080] sm:$0xff]
  %v566 = vld [vmem:[%s1 + $0x1088] sm:$0xff]
  %v567 = vld [vmem:[%s1 + $0x1090] sm:$0xff]
  %v568 = vld [vmem:[%s1 + $0x1098] sm:$0xff]
  %v569 = vld [vmem:[%s1 + $0x10a0] sm:$0xff]
  %v570 = vld [vmem:[%s1 + $0x10a8] sm:$0xff]
  %v571 = vld [vmem:[%s1 + $0x10b0] sm:$0xff]
  %v572 = vld [vmem:[%s1 + $0x10b8] sm:$0xff]
  %v573 = vld [vmem:[%s1 + $0x10c0] sm:$0xff]
  %v574 = vld [vmem:[%s1 + $0x10c8] sm:$0xff]
  %v575 = vld [vmem:[%s1 + $0x10d0] sm:$0xff]
  %v576 = vld [vmem:[%s1 + $0x10d8] sm:$0xff]
  %v577 = vld [vmem:[%s1 + $0x10e0] sm:$0xff]
  %v578 = vld [vmem:[%s1 + $0x10e8] sm:$0xff]
  %v579 = vld [vmem:[%s1 + $0x10f0] sm:$0xff]
  %v580 = vld [vmem:[%s1 + $0x10f8] sm:$0xff]
  %v581 = vld [vmem:[%s1 + $0x1100] sm:$0xff]
  %v582 = vld [vmem:[%s1 + $0x1108] sm:$0xff]
  %v583 = vld [vmem:[%s1 + $0x1110] sm:$0xff]
  %v584 = vld [vmem:[%s1 + $0x1118] sm:$0xff]
  %v585 = vld [vmem:[%s1 + $0x1120] sm:$0xff]
  %v586 = vld [vmem:[%s1 + $0x1128] sm:$0xff]
  %v587 = vld [vmem:[%s1 + $0x1130] sm:$0xff]
  %v588 = vld [vmem:[%s1 + $0x1138] sm:$0xff]
  %v589 = vld [vmem:[%s1 + $0x1140] sm:$0xff]
  %v590 = vld [vmem:[%s1 + $0x1148] sm:$0xff]
  %v591 = vld [vmem:[%s1 + $0x1150] sm:$0xff]
  %v592 = vld [vmem:[%s1 + $0x1158] sm:$0xff]
  %v593 = vld [vmem:[%s1 + $0x1160] sm:$0xff]
  %v594 = vld [vmem:[%s1 + $0x1168] sm:$0xff]
  %v595 = vld [vmem:[%s1 + $0x1170] sm:$0xff]
  %v596 = vld [vmem:[%s1 + $0x1178] sm:$0xff]
  %v597 = vld [vmem:[%s1 + $0x1180] sm:$0xff]
  %v598 = vld [vmem:[%s1 + $0x1188] sm:$0xff]
  %v599 = vld [vmem:[%s1 + $0x1190] sm:$0xff]
  %v600 = vld [vmem:[%s1 + $0x1198] sm:$0xff]
  %v601 = vld [vmem:[%s1 + $0x11a0] sm:$0xff]
  %v602 = vld [vmem:[%s1 + $0x11a8] sm:$0xff]
  %v603 = vld [vmem:[%s1 + $0x11b0] sm:$0xff]
  %v604 = vld [vmem:[%s1 + $0x11b8] sm:$0xff]
  %v605 = vld [vmem:[%s1 + $0x11c0] sm:$0xff]
  %v606 = vld [vmem:[%s1 + $0x11c8] sm:$0xff]
  %v607 = vld [vmem:[%s1 + $0x11d0] sm:$0xff]
  %v608 = vld [vmem:[%s1 + $0x11d8] sm:$0xff]
  %v609 = vld [vmem:[%s1 + $0x11e0] sm:$0xff]
  %v610 = vld [vmem:[%s1 + $0x11e8] sm:$0xff]
  %v611 = vld [vmem:[%s1 + $0x11f0] sm:$0xff]
  %v612 = vld [vmem:[%s1 + $0x11f8] sm:$0xff]
  %v613 = vld [vmem:[%s1 + $0x1200] sm:$0xff]
  %v614 = vld [vmem:[%s1 + $0x1208] sm:$0xff]
  %v615 = vld [vmem:[%s1 + $0x1210] sm:$0xff]
  %v616 = vld [vmem:[%s1 + $0x1218] sm:$0xff]
  %v617 = vld [vmem:[%s1 + $0x1220] sm:$0xff]
  %v618 = vld [vmem:[%s1 + $0x1228] sm:$0xff]
  %v619 = vld [vmem:[%s1 + $0x1230] sm:$0xff]
  %v620 = vld [vmem:[%s1 + $0x1238] sm:$0xff]
  %v621 = vld [vmem:[%s1 + $0x1240] sm:$0xff]
  %v622 = vld [vmem:[%s1 + $0x1248] sm:$0xff]
  %v623 = vld [vmem:[%s1 + $0x1250] sm:$0xff]
  %v624 = vld [vmem:[%s1 + $0x1258] sm:$0xff]
  %v625 = vld [vmem:[%s1 + $0x1260] sm:$0xff]
  %v626 = vld [vmem:[%s1 + $0x1268] sm:$0xff]
  %v627 = vld [vmem:[%s1 + $0x1270] sm:$0xff]
  %v628 = vld [vmem:[%s1 + $0x1278] sm:$0xff]
  %v629 = vld [vmem:[%s1 + $0x1280] sm:$0xff]
  %v630 = vld [vmem:[%s1 + $0x1288] sm:$0xff]
  %v631 = vld [vmem:[%s1 + $0x1290] sm:$0xff]
  %v632 = vld [vmem:[%s1 + $0x1298] sm:$0xff]
  %v633 = vld [vmem:[%s1 + $0x12a0] sm:$0xff]
  %v634 = vld [vmem:[%s1 + $0x12a8] sm:$0xff]
  %v635 = vld [vmem:[%s1 + $0x12b0] sm:$0xff]
  %v636 = vld [vmem:[%s1 + $0x12b8] sm:$0xff]
  %v637 = vld [vmem:[%s1 + $0x12c0] sm:$0xff]
  %v638 = vld [vmem:[%s1 + $0x12c8] sm:$0xff]
  %v639 = vld [vmem:[%s1 + $0x12d0] sm:$0xff]
  %v640 = vld [vmem:[%s1 + $0x12d8] sm:$0xff]
  %v641 = vld [vmem:[%s1 + $0x12e0] sm:$0xff]
  %v642 = vld [vmem:[%s1 + $0x12e8] sm:$0xff]
  %v643 = vld [vmem:[%s1 + $0x12f0] sm:$0xff]
  %v644 = vld [vmem:[%s1 + $0x12f8] sm:$0xff]
  %v645 = vld [vmem:[%s1 + $0x1300] sm:$0xff]
  %v646 = vld [vmem:[%s1 + $0x1308] sm:$0xff]
  %v647 = vld [vmem:[%s1 + $0x1310] sm:$0xff]
  %v648 = vld [vmem:[%s1 + $0x1318] sm:$0xff]
  %v649 = vld [vmem:[%s1 + $0x1320] sm:$0xff]
  %v650 = vld [vmem:[%s1 + $0x1328] sm:$0xff]
  %v651 = vld [vmem:[%s1 + $0x1330] sm:$0xff]
  %v652 = vld [vmem:[%s1 + $0x1338] sm:$0xff]
  %v653 = vld [vmem:[%s1 + $0x1340] sm:$0xff]
  %v654 = vld [vmem:[%s1 + $0x1348] sm:$0xff]
  %v655 = vld [vmem:[%s1 + $0x1350] sm:$0xff]
  %v656 = vld [vmem:[%s1 + $0x1358] sm:$0xff]
  %v657 = vld [vmem:[%s1 + $0x1360] sm:$0xff]
  %v658 = vld [vmem:[%s1 + $0x1368] sm:$0xff]
  %v659 = vld [vmem:[%s1 + $0x1370] sm:$0xff]
  %v660 = vld [vmem:[%s1 + $0x1378] sm:$0xff]
  %v661 = vld [vmem:[%s1 + $0x1380] sm:$0xff]
  %v662 = vld [vmem:[%s1 + $0x1388] sm:$0xff]
  %v663 = vld [vmem:[%s1 + $0x1390] sm:$0xff]
  %v664 = vld [vmem:[%s1 + $0x1398] sm:$0xff]
  %v665 = vld [vmem:[%s1 + $0x13a0] sm:$0xff]
  %v666 = vld [vmem:[%s1 + $0x13a8] sm:$0xff]
  %v667 = vld [vmem:[%s1 + $0x13b0] sm:$0xff]
  %v668 = vld [vmem:[%s1 + $0x13b8] sm:$0xff]
  %v669 = vld [vmem:[%s1 + $0x13c0] sm:$0xff]
  %v670 = vld [vmem:[%s1 + $0x13c8] sm:$0xff]
  %v671 = vld [vmem:[%s1 + $0x13d0] sm:$0xff]
  %v672 = vld [vmem:[%s1 + $0x13d8] sm:$0xff]
  %v673 = vld [vmem:[%s1 + $0x13e0] sm:$0xff]
  %v674 = vld [vmem:[%s1 + $0x13e8] sm:$0xff]
  %v675 = vld [vmem:[%s1 + $0x13f0] sm:$0xff]
  %v676 = vld [vmem:[%s1 + $0x13f8] sm:$0xff]
  %v677 = vld [vmem:[%s1 + $0x1400] sm:$0xff]
  %v678 = vld [vmem:[%s1 + $0x1408] sm:$0xff]
  %v679 = vld [vmem:[%s1 + $0x1410] sm:$0xff]
  %v680 = vld [vmem:[%s1 + $0x1418] sm:$0xff]
  %v681 = vld [vmem:[%s1 + $0x1420] sm:$0xff]
  %v682 = vld [vmem:[%s1 + $0x1428] sm:$0xff]
  %v683 = vld [vmem:[%s1 + $0x1430] sm:$0xff]
  %v684 = vld [vmem:[%s1 + $0x1438] sm:$0xff]
  %v685 = vld [vmem:[%s1 + $0x1440] sm:$0xff]
  %v686 = vld [vmem:[%s1 + $0x1448] sm:$0xff]
  %v687 = vld [vmem:[%s1 + $0x1450] sm:$0xff]
  %v688 = vld [vmem:[%s1 + $0x1458] sm:$0xff]
  %v689 = vld [vmem:[%s1 + $0x1460] sm:$0xff]
  %v690 = vld [vmem:[%s1 + $0x1468] sm:$0xff]
  %v691 = vld [vmem:[%s1 + $0x1470] sm:$0xff]
  %v692 = vld [vmem:[%s1 + $0x1478] sm:$0xff]
  %v693 = vld [vmem:[%s1 + $0x1480] sm:$0xff]
  %v694 = vld [vmem:[%s1 + $0x1488] sm:$0xff]
  %v695 = vld [vmem:[%s1 + $0x1490] sm:$0xff]
  %v696 = vld [vmem:[%s1 + $0x1498] sm:$0xff]
  %v697 = vld [vmem:[%s1 + $0x14a0] sm:$0xff]
  %v698 = vld [vmem:[%s1 + $0x14a8] sm:$0xff]
  %v699 = vld [vmem:[%s1 + $0x14b0] sm:$0xff]
  %v700 = vld [vmem:[%s1 + $0x14b8] sm:$0xff]
  %v701 = vld [vmem:[%s1 + $0x14c0] sm:$0xff]
  %v702 = vld [vmem:[%s1 + $0x14c8] sm:$0xff]
  %v703 = vld [vmem:[%s1 + $0x14d0] sm:$0xff]
  %v704 = vld [vmem:[%s1 + $0x14d8] sm:$0xff]
  %v705 = vld [vmem:[%s1 + $0x14e0] sm:$0xff]
  %v706 = vld [vmem:[%s1 + $0x14e8] sm:$0xff]
  %v707 = vld [vmem:[%s1 + $0x14f0] sm:$0xff]
  %v708 = vld [vmem:[%s1 + $0x14f8] sm:$0xff]
  %v709 = vld [vmem:[%s1 + $0x1500] sm:$0xff]
  %v710 = vld [vmem:[%s1 + $0x1508] sm:$0xff]
  %v711 = vld [vmem:[%s1 + $0x1510] sm:$0xff]
  %v712 = vld [vmem:[%s1 + $0x1518] sm:$0xff]
  %v713 = vld [vmem:[%s1 + $0x1520] sm:$0xff]
  %v714 = vld [vmem:[%s1 + $0x1528] sm:$0xff]
  %v715 = vld [vmem:[%s1 + $0x1530] sm:$0xff]
  %v716 = vld [vmem:[%s1 + $0x1538] sm:$0xff]
  %v717 = vld [vmem:[%s1 + $0x1540] sm:$0xff]
  %v718 = vld [vmem:[%s1 + $0x1548] sm:$0xff]
  %v719 = vld [vmem:[%s1 + $0x1550] sm:$0xff]
  %v720 = vld [vmem:[%s1 + $0x1558] sm:$0xff]
  %v721 = vld [vmem:[%s1 + $0x1560] sm:$0xff]
  %v722 = vld [vmem:[%s1 + $0x1568] sm:$0xff]
  %v723 = vld [vmem:[%s1 + $0x1570] sm:$0xff]
  %v724 = vld [vmem:[%s1 + $0x1578] sm:$0xff]
  %v725 = vld [vmem:[%s1 + $0x1580] sm:$0xff]
  %v726 = vld [vmem:[%s1 + $0x1588] sm:$0xff]
  %v727 = vld [vmem:[%s1 + $0x1590] sm:$0xff]
  %v728 = vld [vmem:[%s1 + $0x1598] sm:$0xff]
  %v729 = vld [vmem:[%s1 + $0x15a0] sm:$0xff]
  %v730 = vld [vmem:[%s1 + $0x15a8] sm:$0xff]
  %v731 = vld [vmem:[%s1 + $0x15b0] sm:$0xff]
  %v732 = vld [vmem:[%s1 + $0x15b8] sm:$0xff]
  %v733 = vld [vmem:[%s1 + $0x15c0] sm:$0xff]
  %v734 = vld [vmem:[%s1 + $0x15c8] sm:$0xff]
  %v735 = vld [vmem:[%s1 + $0x15d0] sm:$0xff]
  %v736 = vld [vmem:[%s1 + $0x15d8] sm:$0xff]
  %v737 = vld [vmem:[%s1 + $0x15e0] sm:$0xff]
  %v738 = vld [vmem:[%s1 + $0x15e8] sm:$0xff]
  %v739 = vld [vmem:[%s1 + $0x15f0] sm:$0xff]
  %v740 = vld [vmem:[%s1 + $0x15f8] sm:$0xff]
  %v741 = vld [vmem:[%s1 + $0x1600] sm:$0xff]
  %v742 = vld [vmem:[%s1 + $0x1608] sm:$0xff]
  %v743 = vld [vmem:[%s1 + $0x1610] sm:$0xff]
  %v744 = vld [vmem:[%s1 + $0x1618] sm:$0xff]
  %v745 = vld [vmem:[%s1 + $0x1620] sm:$0xff]
  %v746 = vld [vmem:[%s1 + $0x1628] sm:$0xff]
  %v747 = vld [vmem:[%s1 + $0x1630] sm:$0xff]
  %v748 = vld [vmem:[%s1 + $0x1638] sm:$0xff]
  %v749 = vld [vmem:[%s1 + $0x1640] sm:$0xff]
  %v750 = vld [vmem:[%s1 + $0x1648] sm:$0xff]
  %v751 = vld [vmem:[%s1 + $0x1650] sm:$0xff]
  %v752 = vld [vmem:[%s1 + $0x1658] sm:$0xff]
  %v753 = vld [vmem:[%s1 + $0x1660] sm:$0xff]
  %v754 = vld [vmem:[%s1 + $0x1668] sm:$0xff]
  %v755 = vld [vmem:[%s1 + $0x1670] sm:$0xff]
  %v756 = vld [vmem:[%s1 + $0x1678] sm:$0xff]
  %v757 = vld [vmem:[%s1 + $0x1680] sm:$0xff]
  %v758 = vld [vmem:[%s1 + $0x1688] sm:$0xff]
  %v759 = vld [vmem:[%s1 + $0x1690] sm:$0xff]
  %v760 = vld [vmem:[%s1 + $0x1698] sm:$0xff]
  %v761 = vld [vmem:[%s1 + $0x16a0] sm:$0xff]
  %v762 = vld [vmem:[%s1 + $0x16a8] sm:$0xff]
  %v763 = vld [vmem:[%s1 + $0x16b0] sm:$0xff]
  %v764 = vld [vmem:[%s1 + $0x16b8] sm:$0xff]
  %v765 = vld [vmem:[%s1 + $0x16c0] sm:$0xff]
  %v766 = vld [vmem:[%s1 + $0x16c8] sm:$0xff]
  %v767 = vld [vmem:[%s1 + $0x16d0] sm:$0xff]
  %v768 = vld [vmem:[%s1 + $0x16d8] sm:$0xff]
  %v769 = vld [vmem:[%s1 + $0x16e0] sm:$0xff]
  %v770 = vld [vmem:[%s1 + $0x16e8] sm:$0xff]
  %v771 = vld [vmem:[%s1 + $0x16f0] sm:$0xff]
  %v772 = vld [vmem:[%s1 + $0x16f8] sm:$0xff]
  %v773 = vld [vmem:[%s1 + $0x1700] sm:$0xff]
  %v774 = vld [vmem:[%s1 + $0x1708] sm:$0xff]
  %v775 = vld [vmem:[%s1 + $0x1710] sm:$0xff]
  %v776 = vld [vmem:[%s1 + $0x1718] sm:$0xff]
  %v777 = vld [vmem:[%s1 + $0x1720] sm:$0xff]
  %v778 = vld [vmem:[%s1 + $0x1728] sm:$0xff]
  %v779 = vld [vmem:[%s1 + $0x1730] sm:$0xff]
  %v780 = vld [vmem:[%s1 + $0x1738] sm:$0xff]
  %v781 = vld [vmem:[%s1 + $0x1740] sm:$0xff]
  %v782 = vld [vmem:[%s1 + $0x1748] sm:$0xff]
  %v783 = vld [vmem:[%s1 + $0x1750] sm:$0xff]
  %v784 = vld [vmem:[%s1 + $0x1758] sm:$0xff]
  %v785 = vld [vmem:[%s1 + $0x1760] sm:$0xff]
  %v786 = vld [vmem:[%s1 + $0x1768] sm:$0xff]
  %v787 = vld [vmem:[%s1 + $0x1770] sm:$0xff]
  %v788 = vld [vmem:[%s1 + $0x1778] sm:$0xff]
  %v789 = vld [vmem:[%s1 + $0x1780] sm:$0xff]
  %v790 = vld [vmem:[%s1 + $0x1788] sm:$0xff]
  %v791 = vld [vmem:[%s1 + $0x1790] sm:$0xff]
  %v792 = vld [vmem:[%s1 + $0x1798] sm:$0xff]
  %v793 = vld [vmem:[%s1 + $0x17a0] sm:$0xff]
  %v794 = vld [vmem:[%s1 + $0x17a8] sm:$0xff]
  %v795 = vld [vmem:[%s1 + $0x17b0] sm:$0xff]
  %v796 = vld [vmem:[%s1 + $0x17b8] sm:$0xff]
  %v797 = vld [vmem:[%s1 + $0x17c0] sm:$0xff]
  %v798 = vld [vmem:[%s1 + $0x17c8] sm:$0xff]
  %v799 = vld [vmem:[%s1 + $0x17d0] sm:$0xff]
  %v800 = vld [vmem:[%s1 + $0x17d8] sm:$0xff]
  %v801 = vld [vmem:[%s1 + $0x17e0] sm:$0xff]
  %v802 = vld [vmem:[%s1 + $0x17e8] sm:$0xff]
  %v803 = vld [vmem:[%s1 + $0x17f0] sm:$0xff]
  %v804 = vld [vmem:[%s1 + $0x17f8] sm:$0xff]
  %v805 = vld [vmem:[%s2] sm:$0xff]
  %v807 = vlaneseq
  %v808 = vshrl.u32 %v807, 7
  %v809 = vsub.s32 0, %v808
  %v810 = vrot.slane %v805, %v809
  %v811 = vlaneseq
  %v812 = vshrl.u32 %v811, 7
  %v813 = vsub.s32 1, %v812
  %v814 = vrot.slane %v805, %v813
  %v815 = vlaneseq
  %v816 = vshrl.u32 %v815, 7
  %v817 = vsub.s32 2, %v816
  %v818 = vrot.slane %v805, %v817
  %v819 = vlaneseq
  %v820 = vshrl.u32 %v819, 7
  %v821 = vsub.s32 3, %v820
  %v822 = vrot.slane %v805, %v821
  %v823 = vlaneseq
  %v824 = vshrl.u32 %v823, 7
  %v825 = vsub.s32 4, %v824
  %v826 = vrot.slane %v805, %v825
  %v827 = vlaneseq
  %v828 = vshrl.u32 %v827, 7
  %v829 = vsub.s32 5, %v828
  %v830 = vrot.slane %v805, %v829
  %v831 = vlaneseq
  %v832 = vshrl.u32 %v831, 7
  %v833 = vsub.s32 6, %v832
  %v834 = vrot.slane %v805, %v833
  %v835 = vlaneseq
  %v836 = vshrl.u32 %v835, 7
  %v837 = vsub.s32 7, %v836
  %v838 = vrot.slane %v805, %v837
  %v849 = vcombine.high %v35, %v35
  %v851 = vunpack.c.l.s4 1966171168
  %v852 = vunpack.c.0.s8 %v851
  %v853 = vlaneseq
  %v854 = vshrl.u32 %v853, 7
  %v855 = vsub.s32 %v852, %v854
  %v856 = vrot.slane %v35, %v855
  %v858 = vunpack.c.l.s4 1966171168
  %v859 = vunpack.c.0.s8 %v858
  %v860 = vlaneseq
  %v861 = vshrl.u32 %v860, 7
  %v862 = vsub.s32 %v859, %v861
  %v863 = vrot.slane %v849, %v862
  %v864 = vcombine.high %v856, %v856
  %v865 = vcombine.high %v863, %v863
  %v867 = vunpack.c.l.s4 1966171168
  %v868 = vunpack.c.0.s8 %v867
  %v869 = vlaneseq
  %v870 = vshrl.u32 %v869, 7
  %v871 = vsub.s32 %v868, %v870
  %v872 = vrot.slane %v856, %v871
  %v874 = vunpack.c.l.s4 1966171168
  %v875 = vunpack.c.0.s8 %v874
  %v876 = vlaneseq
  %v877 = vshrl.u32 %v876, 7
  %v878 = vsub.s32 %v875, %v877
  %v879 = vrot.slane %v863, %v878
  %v881 = vunpack.c.l.s4 1966171168
  %v882 = vunpack.c.0.s8 %v881
  %v883 = vlaneseq
  %v884 = vshrl.u32 %v883, 7
  %v885 = vsub.s32 %v882, %v884
  %v886 = vrot.slane %v864, %v885
  %v888 = vunpack.c.l.s4 1966171168
  %v889 = vunpack.c.0.s8 %v888
  %v890 = vlaneseq
  %v891 = vshrl.u32 %v890, 7
  %v892 = vsub.s32 %v889, %v891
  %v893 = vrot.slane %v865, %v892
  %v894 = vcombine.high %v872, %v872
  %v895 = vcombine.high %v879, %v879
  %v896 = vcombine.high %v886, %v886
  %v897 = vcombine.high %v893, %v893
  %v899 = vunpack.c.l.s4 1966171168
  %v900 = vunpack.c.0.s8 %v899
  %v901 = vlaneseq
  %v902 = vshrl.u32 %v901, 7
  %v903 = vsub.s32 %v900, %v902
  %v904 = vrot.slane %v36, %v903
  %v905 = vcombine.high %v904, %v904
  %v907 = vunpack.c.l.s4 1966171168
  %v908 = vunpack.c.0.s8 %v907
  %v909 = vlaneseq
  %v910 = vshrl.u32 %v909, 7
  %v911 = vsub.s32 %v908, %v910
  %v912 = vrot.slane %v904, %v911
  %v914 = vunpack.c.l.s4 1966171168
  %v915 = vunpack.c.0.s8 %v914
  %v916 = vlaneseq
  %v917 = vshrl.u32 %v916, 7
  %v918 = vsub.s32 %v915, %v917
  %v919 = vrot.slane %v905, %v918
  %v920 = vcombine.high %v912, %v912
  %v921 = vcombine.high %v919, %v919
  %v1702 = vunpack.c.l.b16 %v37
  %v1703 = vunpack.c.h.b16 %v37
  %v1704 = vunpack.c.l.b16 %v38
  %v1705 = vunpack.c.h.b16 %v38
  %v1706 = vunpack.c.l.b16 %v39
  %v1707 = vunpack.c.h.b16 %v39
  %v1708 = vunpack.c.l.b16 %v40
  %v1709 = vunpack.c.h.b16 %v40
  %v1710 = vunpack.c.l.b16 %v41
  %v1711 = vunpack.c.h.b16 %v41
  %v1712 = vunpack.c.l.b16 %v42
  %v1713 = vunpack.c.h.b16 %v42
  %v1714 = vunpack.c.l.b16 %v43
  %v1715 = vunpack.c.h.b16 %v43
  %v1716 = vunpack.c.l.b16 %v44
  %v1717 = vunpack.c.h.b16 %v44
  %v1718 = vunpack.c.l.b16 %v45
  %v1719 = vunpack.c.h.b16 %v45
  %v1720 = vunpack.c.l.b16 %v46
  %v1721 = vunpack.c.h.b16 %v46
  %v1722 = vunpack.c.l.b16 %v47
  %v1723 = vunpack.c.h.b16 %v47
  %v1724 = vunpack.c.l.b16 %v48
  %v1725 = vunpack.c.h.b16 %v48
  %v1726 = vunpack.c.l.b16 %v49
  %v1727 = vunpack.c.h.b16 %v49
  %v1728 = vunpack.c.l.b16 %v50
  %v1729 = vunpack.c.h.b16 %v50
  %v1730 = vunpack.c.l.b16 %v51
  %v1731 = vunpack.c.h.b16 %v51
  %v1732 = vunpack.c.l.b16 %v52
  %v1733 = vunpack.c.h.b16 %v52
  %v1734 = vunpack.c.l.b16 %v53
  %v1735 = vunpack.c.h.b16 %v53
  %v1736 = vunpack.c.l.b16 %v54
  %v1737 = vunpack.c.h.b16 %v54
  %v1738 = vunpack.c.l.b16 %v55
  %v1739 = vunpack.c.h.b16 %v55
  %v1740 = vunpack.c.l.b16 %v56
  %v1741 = vunpack.c.h.b16 %v56
  %v1742 = vunpack.c.l.b16 %v57
  %v1743 = vunpack.c.h.b16 %v57
  %v1744 = vunpack.c.l.b16 %v58
  %v1745 = vunpack.c.h.b16 %v58
  %v1746 = vunpack.c.l.b16 %v59
  %v1747 = vunpack.c.h.b16 %v59
  %v1748 = vunpack.c.l.b16 %v60
  %v1749 = vunpack.c.h.b16 %v60
  %v1750 = vunpack.c.l.b16 %v61
  %v1751 = vunpack.c.h.b16 %v61
  %v1752 = vunpack.c.l.b16 %v62
  %v1753 = vunpack.c.h.b16 %v62
  %v1754 = vunpack.c.l.b16 %v63
  %v1755 = vunpack.c.h.b16 %v63
  %v1756 = vunpack.c.l.b16 %v64
  %v1757 = vunpack.c.h.b16 %v64
  %v1758 = vunpack.c.l.b16 %v65
  %v1759 = vunpack.c.h.b16 %v65
  %v1760 = vunpack.c.l.b16 %v66
  %v1761 = vunpack.c.h.b16 %v66
  %v1762 = vunpack.c.l.b16 %v67
  %v1763 = vunpack.c.h.b16 %v67
  %v1764 = vunpack.c.l.b16 %v68
  %v1765 = vunpack.c.h.b16 %v68
  %v1766 = vunpack.c.l.b16 %v69
  %v1767 = vunpack.c.h.b16 %v69
  %v1768 = vunpack.c.l.b16 %v70
  %v1769 = vunpack.c.h.b16 %v70
  %v1770 = vunpack.c.l.b16 %v71
  %v1771 = vunpack.c.h.b16 %v71
  %v1772 = vunpack.c.l.b16 %v72
  %v1773 = vunpack.c.h.b16 %v72
  %v1774 = vunpack.c.l.b16 %v73
  %v1775 = vunpack.c.h.b16 %v73
  %v1776 = vunpack.c.l.b16 %v74
  %v1777 = vunpack.c.h.b16 %v74
  %v1778 = vunpack.c.l.b16 %v75
  %v1779 = vunpack.c.h.b16 %v75
  %v1780 = vunpack.c.l.b16 %v76
  %v1781 = vunpack.c.h.b16 %v76
  %v1782 = vunpack.c.l.b16 %v77
  %v1783 = vunpack.c.h.b16 %v77
  %v1784 = vunpack.c.l.b16 %v78
  %v1785 = vunpack.c.h.b16 %v78
  %v1786 = vunpack.c.l.b16 %v79
  %v1787 = vunpack.c.h.b16 %v79
  %v1788 = vunpack.c.l.b16 %v80
  %v1789 = vunpack.c.h.b16 %v80
  %v1790 = vunpack.c.l.b16 %v81
  %v1791 = vunpack.c.h.b16 %v81
  %v1792 = vunpack.c.l.b16 %v82
  %v1793 = vunpack.c.h.b16 %v82
  %v1794 = vunpack.c.l.b16 %v83
  %v1795 = vunpack.c.h.b16 %v83
  %v1796 = vunpack.c.l.b16 %v84
  %v1797 = vunpack.c.h.b16 %v84
  %v1798 = vunpack.c.l.b16 %v85
  %v1799 = vunpack.c.h.b16 %v85
  %v1800 = vunpack.c.l.b16 %v86
  %v1801 = vunpack.c.h.b16 %v86
  %v1802 = vunpack.c.l.b16 %v87
  %v1803 = vunpack.c.h.b16 %v87
  %v1804 = vunpack.c.l.b16 %v88
  %v1805 = vunpack.c.h.b16 %v88
  %v1806 = vunpack.c.l.b16 %v89
  %v1807 = vunpack.c.h.b16 %v89
  %v1808 = vunpack.c.l.b16 %v90
  %v1809 = vunpack.c.h.b16 %v90
  %v1810 = vunpack.c.l.b16 %v91
  %v1811 = vunpack.c.h.b16 %v91
  %v1812 = vunpack.c.l.b16 %v92
  %v1813 = vunpack.c.h.b16 %v92
  %v1814 = vunpack.c.l.b16 %v93
  %v1815 = vunpack.c.h.b16 %v93
  %v1816 = vunpack.c.l.b16 %v94
  %v1817 = vunpack.c.h.b16 %v94
  %v1818 = vunpack.c.l.b16 %v95
  %v1819 = vunpack.c.h.b16 %v95
  %v1820 = vunpack.c.l.b16 %v96
  %v1821 = vunpack.c.h.b16 %v96
  %v1822 = vunpack.c.l.b16 %v97
  %v1823 = vunpack.c.h.b16 %v97
  %v1824 = vunpack.c.l.b16 %v98
  %v1825 = vunpack.c.h.b16 %v98
  %v1826 = vunpack.c.l.b16 %v99
  %v1827 = vunpack.c.h.b16 %v99
  %v1828 = vunpack.c.l.b16 %v100
  %v1829 = vunpack.c.h.b16 %v100
  %v1830 = vunpack.c.l.b16 %v101
  %v1831 = vunpack.c.h.b16 %v101
  %v1832 = vunpack.c.l.b16 %v102
  %v1833 = vunpack.c.h.b16 %v102
  %v1834 = vunpack.c.l.b16 %v103
  %v1835 = vunpack.c.h.b16 %v103
  %v1836 = vunpack.c.l.b16 %v104
  %v1837 = vunpack.c.h.b16 %v104
  %v1838 = vunpack.c.l.b16 %v105
  %v1839 = vunpack.c.h.b16 %v105
  %v1840 = vunpack.c.l.b16 %v106
  %v1841 = vunpack.c.h.b16 %v106
  %v1842 = vunpack.c.l.b16 %v107
  %v1843 = vunpack.c.h.b16 %v107
  %v1844 = vunpack.c.l.b16 %v108
  %v1845 = vunpack.c.h.b16 %v108
  %v1846 = vunpack.c.l.b16 %v109
  %v1847 = vunpack.c.h.b16 %v109
  %v1848 = vunpack.c.l.b16 %v110
  %v1849 = vunpack.c.h.b16 %v110
  %v1850 = vunpack.c.l.b16 %v111
  %v1851 = vunpack.c.h.b16 %v111
  %v1852 = vunpack.c.l.b16 %v112
  %v1853 = vunpack.c.h.b16 %v112
  %v1854 = vunpack.c.l.b16 %v113
  %v1855 = vunpack.c.h.b16 %v113
  %v1856 = vunpack.c.l.b16 %v114
  %v1857 = vunpack.c.h.b16 %v114
  %v1858 = vunpack.c.l.b16 %v115
  %v1859 = vunpack.c.h.b16 %v115
  %v1860 = vunpack.c.l.b16 %v116
  %v1861 = vunpack.c.h.b16 %v116
  %v1862 = vunpack.c.l.b16 %v117
  %v1863 = vunpack.c.h.b16 %v117
  %v1864 = vunpack.c.l.b16 %v118
  %v1865 = vunpack.c.h.b16 %v118
  %v1866 = vunpack.c.l.b16 %v119
  %v1867 = vunpack.c.h.b16 %v119
  %v1868 = vunpack.c.l.b16 %v120
  %v1869 = vunpack.c.h.b16 %v120
  %v1870 = vunpack.c.l.b16 %v121
  %v1871 = vunpack.c.h.b16 %v121
  %v1872 = vunpack.c.l.b16 %v122
  %v1873 = vunpack.c.h.b16 %v122
  %v1874 = vunpack.c.l.b16 %v123
  %v1875 = vunpack.c.h.b16 %v123
  %v1876 = vunpack.c.l.b16 %v124
  %v1877 = vunpack.c.h.b16 %v124
  %v1878 = vunpack.c.l.b16 %v125
  %v1879 = vunpack.c.h.b16 %v125
  %v1880 = vunpack.c.l.b16 %v126
  %v1881 = vunpack.c.h.b16 %v126
  %v1882 = vunpack.c.l.b16 %v127
  %v1883 = vunpack.c.h.b16 %v127
  %v1884 = vunpack.c.l.b16 %v128
  %v1885 = vunpack.c.h.b16 %v128
  %v1886 = vunpack.c.l.b16 %v129
  %v1887 = vunpack.c.h.b16 %v129
  %v1888 = vunpack.c.l.b16 %v130
  %v1889 = vunpack.c.h.b16 %v130
  %v1890 = vunpack.c.l.b16 %v131
  %v1891 = vunpack.c.h.b16 %v131
  %v1892 = vunpack.c.l.b16 %v132
  %v1893 = vunpack.c.h.b16 %v132
  %v1894 = vunpack.c.l.b16 %v133
  %v1895 = vunpack.c.h.b16 %v133
  %v1896 = vunpack.c.l.b16 %v134
  %v1897 = vunpack.c.h.b16 %v134
  %v1898 = vunpack.c.l.b16 %v135
  %v1899 = vunpack.c.h.b16 %v135
  %v1900 = vunpack.c.l.b16 %v136
  %v1901 = vunpack.c.h.b16 %v136
  %v1902 = vunpack.c.l.b16 %v137
  %v1903 = vunpack.c.h.b16 %v137
  %v1904 = vunpack.c.l.b16 %v138
  %v1905 = vunpack.c.h.b16 %v138
  %v1906 = vunpack.c.l.b16 %v139
  %v1907 = vunpack.c.h.b16 %v139
  %v1908 = vunpack.c.l.b16 %v140
  %v1909 = vunpack.c.h.b16 %v140
  %v1910 = vunpack.c.l.b16 %v141
  %v1911 = vunpack.c.h.b16 %v141
  %v1912 = vunpack.c.l.b16 %v142
  %v1913 = vunpack.c.h.b16 %v142
  %v1914 = vunpack.c.l.b16 %v143
  %v1915 = vunpack.c.h.b16 %v143
  %v1916 = vunpack.c.l.b16 %v144
  %v1917 = vunpack.c.h.b16 %v144
  %v1918 = vunpack.c.l.b16 %v145
  %v1919 = vunpack.c.h.b16 %v145
  %v1920 = vunpack.c.l.b16 %v146
  %v1921 = vunpack.c.h.b16 %v146
  %v1922 = vunpack.c.l.b16 %v147
  %v1923 = vunpack.c.h.b16 %v147
  %v1924 = vunpack.c.l.b16 %v148
  %v1925 = vunpack.c.h.b16 %v148
  %v1926 = vunpack.c.l.b16 %v149
  %v1927 = vunpack.c.h.b16 %v149
  %v1928 = vunpack.c.l.b16 %v150
  %v1929 = vunpack.c.h.b16 %v150
  %v1930 = vunpack.c.l.b16 %v151
  %v1931 = vunpack.c.h.b16 %v151
  %v1932 = vunpack.c.l.b16 %v152
  %v1933 = vunpack.c.h.b16 %v152
  %v1934 = vunpack.c.l.b16 %v153
  %v1935 = vunpack.c.h.b16 %v153
  %v1936 = vunpack.c.l.b16 %v154
  %v1937 = vunpack.c.h.b16 %v154
  %v1938 = vunpack.c.l.b16 %v155
  %v1939 = vunpack.c.h.b16 %v155
  %v1940 = vunpack.c.l.b16 %v156
  %v1941 = vunpack.c.h.b16 %v156
  %v1942 = vunpack.c.l.b16 %v157
  %v1943 = vunpack.c.h.b16 %v157
  %v1944 = vunpack.c.l.b16 %v158
  %v1945 = vunpack.c.h.b16 %v158
  %v1946 = vunpack.c.l.b16 %v159
  %v1947 = vunpack.c.h.b16 %v159
  %v1948 = vunpack.c.l.b16 %v160
  %v1949 = vunpack.c.h.b16 %v160
  %v1950 = vunpack.c.l.b16 %v161
  %v1951 = vunpack.c.h.b16 %v161
  %v1952 = vunpack.c.l.b16 %v162
  %v1953 = vunpack.c.h.b16 %v162
  %v1954 = vunpack.c.l.b16 %v163
  %v1955 = vunpack.c.h.b16 %v163
  %v1956 = vunpack.c.l.b16 %v164
  %v1957 = vunpack.c.h.b16 %v164
  %v1958 = vunpack.c.l.b16 %v165
  %v1959 = vunpack.c.h.b16 %v165
  %v1960 = vunpack.c.l.b16 %v166
  %v1961 = vunpack.c.h.b16 %v166
  %v1962 = vunpack.c.l.b16 %v167
  %v1963 = vunpack.c.h.b16 %v167
  %v1964 = vunpack.c.l.b16 %v168
  %v1965 = vunpack.c.h.b16 %v168
  %v1966 = vunpack.c.l.b16 %v169
  %v1967 = vunpack.c.h.b16 %v169
  %v1968 = vunpack.c.l.b16 %v170
  %v1969 = vunpack.c.h.b16 %v170
  %v1970 = vunpack.c.l.b16 %v171
  %v1971 = vunpack.c.h.b16 %v171
  %v1972 = vunpack.c.l.b16 %v172
  %v1973 = vunpack.c.h.b16 %v172
  %v1974 = vunpack.c.l.b16 %v173
  %v1975 = vunpack.c.h.b16 %v173
  %v1976 = vunpack.c.l.b16 %v174
  %v1977 = vunpack.c.h.b16 %v174
  %v1978 = vunpack.c.l.b16 %v175
  %v1979 = vunpack.c.h.b16 %v175
  %v1980 = vunpack.c.l.b16 %v176
  %v1981 = vunpack.c.h.b16 %v176
  %v1982 = vunpack.c.l.b16 %v177
  %v1983 = vunpack.c.h.b16 %v177
  %v1984 = vunpack.c.l.b16 %v178
  %v1985 = vunpack.c.h.b16 %v178
  %v1986 = vunpack.c.l.b16 %v179
  %v1987 = vunpack.c.h.b16 %v179
  %v1988 = vunpack.c.l.b16 %v180
  %v1989 = vunpack.c.h.b16 %v180
  %v1990 = vunpack.c.l.b16 %v181
  %v1991 = vunpack.c.h.b16 %v181
  %v1992 = vunpack.c.l.b16 %v182
  %v1993 = vunpack.c.h.b16 %v182
  %v1994 = vunpack.c.l.b16 %v183
  %v1995 = vunpack.c.h.b16 %v183
  %v1996 = vunpack.c.l.b16 %v184
  %v1997 = vunpack.c.h.b16 %v184
  %v1998 = vunpack.c.l.b16 %v185
  %v1999 = vunpack.c.h.b16 %v185
  %v2000 = vunpack.c.l.b16 %v186
  %v2001 = vunpack.c.h.b16 %v186
  %v2002 = vunpack.c.l.b16 %v187
  %v2003 = vunpack.c.h.b16 %v187
  %v2004 = vunpack.c.l.b16 %v188
  %v2005 = vunpack.c.h.b16 %v188
  %v2006 = vunpack.c.l.b16 %v189
  %v2007 = vunpack.c.h.b16 %v189
  %v2008 = vunpack.c.l.b16 %v190
  %v2009 = vunpack.c.h.b16 %v190
  %v2010 = vunpack.c.l.b16 %v191
  %v2011 = vunpack.c.h.b16 %v191
  %v2012 = vunpack.c.l.b16 %v192
  %v2013 = vunpack.c.h.b16 %v192
  %v2014 = vunpack.c.l.b16 %v193
  %v2015 = vunpack.c.h.b16 %v193
  %v2016 = vunpack.c.l.b16 %v194
  %v2017 = vunpack.c.h.b16 %v194
  %v2018 = vunpack.c.l.b16 %v195
  %v2019 = vunpack.c.h.b16 %v195
  %v2020 = vunpack.c.l.b16 %v196
  %v2021 = vunpack.c.h.b16 %v196
  %v2022 = vunpack.c.l.b16 %v197
  %v2023 = vunpack.c.h.b16 %v197
  %v2024 = vunpack.c.l.b16 %v198
  %v2025 = vunpack.c.h.b16 %v198
  %v2026 = vunpack.c.l.b16 %v199
  %v2027 = vunpack.c.h.b16 %v199
  %v2028 = vunpack.c.l.b16 %v200
  %v2029 = vunpack.c.h.b16 %v200
  %v2030 = vunpack.c.l.b16 %v201
  %v2031 = vunpack.c.h.b16 %v201
  %v2032 = vunpack.c.l.b16 %v202
  %v2033 = vunpack.c.h.b16 %v202
  %v2034 = vunpack.c.l.b16 %v203
  %v2035 = vunpack.c.h.b16 %v203
  %v2036 = vunpack.c.l.b16 %v204
  %v2037 = vunpack.c.h.b16 %v204
  %v2038 = vunpack.c.l.b16 %v205
  %v2039 = vunpack.c.h.b16 %v205
  %v2040 = vunpack.c.l.b16 %v206
  %v2041 = vunpack.c.h.b16 %v206
  %v2042 = vunpack.c.l.b16 %v207
  %v2043 = vunpack.c.h.b16 %v207
  %v2044 = vunpack.c.l.b16 %v208
  %v2045 = vunpack.c.h.b16 %v208
  %v2046 = vunpack.c.l.b16 %v209
  %v2047 = vunpack.c.h.b16 %v209
  %v2048 = vunpack.c.l.b16 %v210
  %v2049 = vunpack.c.h.b16 %v210
  %v2050 = vunpack.c.l.b16 %v211
  %v2051 = vunpack.c.h.b16 %v211
  %v2052 = vunpack.c.l.b16 %v212
  %v2053 = vunpack.c.h.b16 %v212
  %v2054 = vunpack.c.l.b16 %v213
  %v2055 = vunpack.c.h.b16 %v213
  %v2056 = vunpack.c.l.b16 %v214
  %v2057 = vunpack.c.h.b16 %v214
  %v2058 = vunpack.c.l.b16 %v215
  %v2059 = vunpack.c.h.b16 %v215
  %v2060 = vunpack.c.l.b16 %v216
  %v2061 = vunpack.c.h.b16 %v216
  %v2062 = vunpack.c.l.b16 %v217
  %v2063 = vunpack.c.h.b16 %v217
  %v2064 = vunpack.c.l.b16 %v218
  %v2065 = vunpack.c.h.b16 %v218
  %v2066 = vunpack.c.l.b16 %v219
  %v2067 = vunpack.c.h.b16 %v219
  %v2068 = vunpack.c.l.b16 %v220
  %v2069 = vunpack.c.h.b16 %v220
  %v2070 = vunpack.c.l.b16 %v221
  %v2071 = vunpack.c.h.b16 %v221
  %v2072 = vunpack.c.l.b16 %v222
  %v2073 = vunpack.c.h.b16 %v222
  %v2074 = vunpack.c.l.b16 %v223
  %v2075 = vunpack.c.h.b16 %v223
  %v2076 = vunpack.c.l.b16 %v224
  %v2077 = vunpack.c.h.b16 %v224
  %v2078 = vunpack.c.l.b16 %v225
  %v2079 = vunpack.c.h.b16 %v225
  %v2080 = vunpack.c.l.b16 %v226
  %v2081 = vunpack.c.h.b16 %v226
  %v2082 = vunpack.c.l.b16 %v227
  %v2083 = vunpack.c.h.b16 %v227
  %v2084 = vunpack.c.l.b16 %v228
  %v2085 = vunpack.c.h.b16 %v228
  %v2086 = vunpack.c.l.b16 %v229
  %v2087 = vunpack.c.h.b16 %v229
  %v2088 = vunpack.c.l.b16 %v230
  %v2089 = vunpack.c.h.b16 %v230
  %v2090 = vunpack.c.l.b16 %v231
  %v2091 = vunpack.c.h.b16 %v231
  %v2092 = vunpack.c.l.b16 %v232
  %v2093 = vunpack.c.h.b16 %v232
  %v2094 = vunpack.c.l.b16 %v233
  %v2095 = vunpack.c.h.b16 %v233
  %v2096 = vunpack.c.l.b16 %v234
  %v2097 = vunpack.c.h.b16 %v234
  %v2098 = vunpack.c.l.b16 %v235
  %v2099 = vunpack.c.h.b16 %v235
  %v2100 = vunpack.c.l.b16 %v236
  %v2101 = vunpack.c.h.b16 %v236
  %v2102 = vunpack.c.l.b16 %v237
  %v2103 = vunpack.c.h.b16 %v237
  %v2104 = vunpack.c.l.b16 %v238
  %v2105 = vunpack.c.h.b16 %v238
  %v2106 = vunpack.c.l.b16 %v239
  %v2107 = vunpack.c.h.b16 %v239
  %v2108 = vunpack.c.l.b16 %v240
  %v2109 = vunpack.c.h.b16 %v240
  %v2110 = vunpack.c.l.b16 %v241
  %v2111 = vunpack.c.h.b16 %v241
  %v2112 = vunpack.c.l.b16 %v242
  %v2113 = vunpack.c.h.b16 %v242
  %v2114 = vunpack.c.l.b16 %v243
  %v2115 = vunpack.c.h.b16 %v243
  %v2116 = vunpack.c.l.b16 %v244
  %v2117 = vunpack.c.h.b16 %v244
  %v2118 = vunpack.c.l.b16 %v245
  %v2119 = vunpack.c.h.b16 %v245
  %v2120 = vunpack.c.l.b16 %v246
  %v2121 = vunpack.c.h.b16 %v246
  %v2122 = vunpack.c.l.b16 %v247
  %v2123 = vunpack.c.h.b16 %v247
  %v2124 = vunpack.c.l.b16 %v248
  %v2125 = vunpack.c.h.b16 %v248
  %v2126 = vunpack.c.l.b16 %v249
  %v2127 = vunpack.c.h.b16 %v249
  %v2128 = vunpack.c.l.b16 %v250
  %v2129 = vunpack.c.h.b16 %v250
  %v2130 = vunpack.c.l.b16 %v251
  %v2131 = vunpack.c.h.b16 %v251
  %v2132 = vunpack.c.l.b16 %v252
  %v2133 = vunpack.c.h.b16 %v252
  %v2134 = vunpack.c.l.b16 %v253
  %v2135 = vunpack.c.h.b16 %v253
  %v2136 = vunpack.c.l.b16 %v254
  %v2137 = vunpack.c.h.b16 %v254
  %v2138 = vunpack.c.l.b16 %v255
  %v2139 = vunpack.c.h.b16 %v255
  %v2140 = vunpack.c.l.b16 %v256
  %v2141 = vunpack.c.h.b16 %v256
  %v2142 = vunpack.c.l.b16 %v257
  %v2143 = vunpack.c.h.b16 %v257
  %v2144 = vunpack.c.l.b16 %v258
  %v2145 = vunpack.c.h.b16 %v258
  %v2146 = vunpack.c.l.b16 %v259
  %v2147 = vunpack.c.h.b16 %v259
  %v2148 = vunpack.c.l.b16 %v260
  %v2149 = vunpack.c.h.b16 %v260
  %v2150 = vunpack.c.l.b16 %v261
  %v2151 = vunpack.c.h.b16 %v261
  %v2152 = vunpack.c.l.b16 %v262
  %v2153 = vunpack.c.h.b16 %v262
  %v2154 = vunpack.c.l.b16 %v263
  %v2155 = vunpack.c.h.b16 %v263
  %v2156 = vunpack.c.l.b16 %v264
  %v2157 = vunpack.c.h.b16 %v264
  %v2158 = vunpack.c.l.b16 %v265
  %v2159 = vunpack.c.h.b16 %v265
  %v2160 = vunpack.c.l.b16 %v266
  %v2161 = vunpack.c.h.b16 %v266
  %v2162 = vunpack.c.l.b16 %v267
  %v2163 = vunpack.c.h.b16 %v267
  %v2164 = vunpack.c.l.b16 %v268
  %v2165 = vunpack.c.h.b16 %v268
  %v2166 = vunpack.c.l.b16 %v269
  %v2167 = vunpack.c.h.b16 %v269
  %v2168 = vunpack.c.l.b16 %v270
  %v2169 = vunpack.c.h.b16 %v270
  %v2170 = vunpack.c.l.b16 %v271
  %v2171 = vunpack.c.h.b16 %v271
  %v2172 = vunpack.c.l.b16 %v272
  %v2173 = vunpack.c.h.b16 %v272
  %v2174 = vunpack.c.l.b16 %v273
  %v2175 = vunpack.c.h.b16 %v273
  %v2176 = vunpack.c.l.b16 %v274
  %v2177 = vunpack.c.h.b16 %v274
  %v2178 = vunpack.c.l.b16 %v275
  %v2179 = vunpack.c.h.b16 %v275
  %v2180 = vunpack.c.l.b16 %v276
  %v2181 = vunpack.c.h.b16 %v276
  %v2182 = vunpack.c.l.b16 %v277
  %v2183 = vunpack.c.h.b16 %v277
  %v2184 = vunpack.c.l.b16 %v278
  %v2185 = vunpack.c.h.b16 %v278
  %v2186 = vunpack.c.l.b16 %v279
  %v2187 = vunpack.c.h.b16 %v279
  %v2188 = vunpack.c.l.b16 %v280
  %v2189 = vunpack.c.h.b16 %v280
  %v2190 = vunpack.c.l.b16 %v281
  %v2191 = vunpack.c.h.b16 %v281
  %v2192 = vunpack.c.l.b16 %v282
  %v2193 = vunpack.c.h.b16 %v282
  %v2194 = vunpack.c.l.b16 %v283
  %v2195 = vunpack.c.h.b16 %v283
  %v2196 = vunpack.c.l.b16 %v284
  %v2197 = vunpack.c.h.b16 %v284
  %v2198 = vunpack.c.l.b16 %v285
  %v2199 = vunpack.c.h.b16 %v285
  %v2200 = vunpack.c.l.b16 %v286
  %v2201 = vunpack.c.h.b16 %v286
  %v2202 = vunpack.c.l.b16 %v287
  %v2203 = vunpack.c.h.b16 %v287
  %v2204 = vunpack.c.l.b16 %v288
  %v2205 = vunpack.c.h.b16 %v288
  %v2206 = vunpack.c.l.b16 %v289
  %v2207 = vunpack.c.h.b16 %v289
  %v2208 = vunpack.c.l.b16 %v290
  %v2209 = vunpack.c.h.b16 %v290
  %v2210 = vunpack.c.l.b16 %v291
  %v2211 = vunpack.c.h.b16 %v291
  %v2212 = vunpack.c.l.b16 %v292
  %v2213 = vunpack.c.h.b16 %v292
  %v2214 = vunpack.c.l.b16 %v293
  %v2215 = vunpack.c.h.b16 %v293
  %v2216 = vunpack.c.l.b16 %v294
  %v2217 = vunpack.c.h.b16 %v294
  %v2218 = vunpack.c.l.b16 %v295
  %v2219 = vunpack.c.h.b16 %v295
  %v2220 = vunpack.c.l.b16 %v296
  %v2221 = vunpack.c.h.b16 %v296
  %v2222 = vunpack.c.l.b16 %v297
  %v2223 = vunpack.c.h.b16 %v297
  %v2224 = vunpack.c.l.b16 %v298
  %v2225 = vunpack.c.h.b16 %v298
  %v2226 = vunpack.c.l.b16 %v299
  %v2227 = vunpack.c.h.b16 %v299
  %v2228 = vunpack.c.l.b16 %v300
  %v2229 = vunpack.c.h.b16 %v300
  %v2230 = vunpack.c.l.b16 %v301
  %v2231 = vunpack.c.h.b16 %v301
  %v2232 = vunpack.c.l.b16 %v302
  %v2233 = vunpack.c.h.b16 %v302
  %v2234 = vunpack.c.l.b16 %v303
  %v2235 = vunpack.c.h.b16 %v303
  %v2236 = vunpack.c.l.b16 %v304
  %v2237 = vunpack.c.h.b16 %v304
  %v2238 = vunpack.c.l.b16 %v305
  %v2239 = vunpack.c.h.b16 %v305
  %v2240 = vunpack.c.l.b16 %v306
  %v2241 = vunpack.c.h.b16 %v306
  %v2242 = vunpack.c.l.b16 %v307
  %v2243 = vunpack.c.h.b16 %v307
  %v2244 = vunpack.c.l.b16 %v308
  %v2245 = vunpack.c.h.b16 %v308
  %v2246 = vunpack.c.l.b16 %v309
  %v2247 = vunpack.c.h.b16 %v309
  %v2248 = vunpack.c.l.b16 %v310
  %v2249 = vunpack.c.h.b16 %v310
  %v2250 = vunpack.c.l.b16 %v311
  %v2251 = vunpack.c.h.b16 %v311
  %v2252 = vunpack.c.l.b16 %v312
  %v2253 = vunpack.c.h.b16 %v312
  %v2254 = vunpack.c.l.b16 %v313
  %v2255 = vunpack.c.h.b16 %v313
  %v2256 = vunpack.c.l.b16 %v314
  %v2257 = vunpack.c.h.b16 %v314
  %v2258 = vunpack.c.l.b16 %v315
  %v2259 = vunpack.c.h.b16 %v315
  %v2260 = vunpack.c.l.b16 %v316
  %v2261 = vunpack.c.h.b16 %v316
  %v2262 = vunpack.c.l.b16 %v317
  %v2263 = vunpack.c.h.b16 %v317
  %v2264 = vunpack.c.l.b16 %v318
  %v2265 = vunpack.c.h.b16 %v318
  %v2266 = vunpack.c.l.b16 %v319
  %v2267 = vunpack.c.h.b16 %v319
  %v2268 = vunpack.c.l.b16 %v320
  %v2269 = vunpack.c.h.b16 %v320
  %v2270 = vunpack.c.l.b16 %v321
  %v2271 = vunpack.c.h.b16 %v321
  %v2272 = vunpack.c.l.b16 %v322
  %v2273 = vunpack.c.h.b16 %v322
  %v2274 = vunpack.c.l.b16 %v323
  %v2275 = vunpack.c.h.b16 %v323
  %v2276 = vunpack.c.l.b16 %v324
  %v2277 = vunpack.c.h.b16 %v324
  %v2278 = vunpack.c.l.b16 %v325
  %v2279 = vunpack.c.h.b16 %v325
  %v2280 = vunpack.c.l.b16 %v326
  %v2281 = vunpack.c.h.b16 %v326
  %v2282 = vunpack.c.l.b16 %v327
  %v2283 = vunpack.c.h.b16 %v327
  %v2284 = vunpack.c.l.b16 %v328
  %v2285 = vunpack.c.h.b16 %v328
  %v2286 = vunpack.c.l.b16 %v329
  %v2287 = vunpack.c.h.b16 %v329
  %v2288 = vunpack.c.l.b16 %v330
  %v2289 = vunpack.c.h.b16 %v330
  %v2290 = vunpack.c.l.b16 %v331
  %v2291 = vunpack.c.h.b16 %v331
  %v2292 = vunpack.c.l.b16 %v332
  %v2293 = vunpack.c.h.b16 %v332
  %v2294 = vunpack.c.l.b16 %v333
  %v2295 = vunpack.c.h.b16 %v333
  %v2296 = vunpack.c.l.b16 %v334
  %v2297 = vunpack.c.h.b16 %v334
  %v2298 = vunpack.c.l.b16 %v335
  %v2299 = vunpack.c.h.b16 %v335
  %v2300 = vunpack.c.l.b16 %v336
  %v2301 = vunpack.c.h.b16 %v336
  %v2302 = vunpack.c.l.b16 %v337
  %v2303 = vunpack.c.h.b16 %v337
  %v2304 = vunpack.c.l.b16 %v338
  %v2305 = vunpack.c.h.b16 %v338
  %v2306 = vunpack.c.l.b16 %v339
  %v2307 = vunpack.c.h.b16 %v339
  %v2308 = vunpack.c.l.b16 %v340
  %v2309 = vunpack.c.h.b16 %v340
  %v2310 = vunpack.c.l.b16 %v341
  %v2311 = vunpack.c.h.b16 %v341
  %v2312 = vunpack.c.l.b16 %v342
  %v2313 = vunpack.c.h.b16 %v342
  %v2314 = vunpack.c.l.b16 %v343
  %v2315 = vunpack.c.h.b16 %v343
  %v2316 = vunpack.c.l.b16 %v344
  %v2317 = vunpack.c.h.b16 %v344
  %v2318 = vunpack.c.l.b16 %v345
  %v2319 = vunpack.c.h.b16 %v345
  %v2320 = vunpack.c.l.b16 %v346
  %v2321 = vunpack.c.h.b16 %v346
  %v2322 = vunpack.c.l.b16 %v347
  %v2323 = vunpack.c.h.b16 %v347
  %v2324 = vunpack.c.l.b16 %v348
  %v2325 = vunpack.c.h.b16 %v348
  %v2326 = vunpack.c.l.b16 %v349
  %v2327 = vunpack.c.h.b16 %v349
  %v2328 = vunpack.c.l.b16 %v350
  %v2329 = vunpack.c.h.b16 %v350
  %v2330 = vunpack.c.l.b16 %v351
  %v2331 = vunpack.c.h.b16 %v351
  %v2332 = vunpack.c.l.b16 %v352
  %v2333 = vunpack.c.h.b16 %v352
  %v2334 = vunpack.c.l.b16 %v353
  %v2335 = vunpack.c.h.b16 %v353
  %v2336 = vunpack.c.l.b16 %v354
  %v2337 = vunpack.c.h.b16 %v354
  %v2338 = vunpack.c.l.b16 %v355
  %v2339 = vunpack.c.h.b16 %v355
  %v2340 = vunpack.c.l.b16 %v356
  %v2341 = vunpack.c.h.b16 %v356
  %v2342 = vunpack.c.l.b16 %v357
  %v2343 = vunpack.c.h.b16 %v357
  %v2344 = vunpack.c.l.b16 %v358
  %v2345 = vunpack.c.h.b16 %v358
  %v2346 = vunpack.c.l.b16 %v359
  %v2347 = vunpack.c.h.b16 %v359
  %v2348 = vunpack.c.l.b16 %v360
  %v2349 = vunpack.c.h.b16 %v360
  %v2350 = vunpack.c.l.b16 %v361
  %v2351 = vunpack.c.h.b16 %v361
  %v2352 = vunpack.c.l.b16 %v362
  %v2353 = vunpack.c.h.b16 %v362
  %v2354 = vunpack.c.l.b16 %v363
  %v2355 = vunpack.c.h.b16 %v363
  %v2356 = vunpack.c.l.b16 %v364
  %v2357 = vunpack.c.h.b16 %v364
  %v2358 = vunpack.c.l.b16 %v365
  %v2359 = vunpack.c.h.b16 %v365
  %v2360 = vunpack.c.l.b16 %v366
  %v2361 = vunpack.c.h.b16 %v366
  %v2362 = vunpack.c.l.b16 %v367
  %v2363 = vunpack.c.h.b16 %v367
  %v2364 = vunpack.c.l.b16 %v368
  %v2365 = vunpack.c.h.b16 %v368
  %v2366 = vunpack.c.l.b16 %v369
  %v2367 = vunpack.c.h.b16 %v369
  %v2368 = vunpack.c.l.b16 %v370
  %v2369 = vunpack.c.h.b16 %v370
  %v2370 = vunpack.c.l.b16 %v371
  %v2371 = vunpack.c.h.b16 %v371
  %v2372 = vunpack.c.l.b16 %v372
  %v2373 = vunpack.c.h.b16 %v372
  %v2374 = vunpack.c.l.b16 %v373
  %v2375 = vunpack.c.h.b16 %v373
  %v2376 = vunpack.c.l.b16 %v374
  %v2377 = vunpack.c.h.b16 %v374
  %v2378 = vunpack.c.l.b16 %v375
  %v2379 = vunpack.c.h.b16 %v375
  %v2380 = vunpack.c.l.b16 %v376
  %v2381 = vunpack.c.h.b16 %v376
  %v2382 = vunpack.c.l.b16 %v377
  %v2383 = vunpack.c.h.b16 %v377
  %v2384 = vunpack.c.l.b16 %v378
  %v2385 = vunpack.c.h.b16 %v378
  %v2386 = vunpack.c.l.b16 %v379
  %v2387 = vunpack.c.h.b16 %v379
  %v2388 = vunpack.c.l.b16 %v380
  %v2389 = vunpack.c.h.b16 %v380
  %v2390 = vunpack.c.l.b16 %v381
  %v2391 = vunpack.c.h.b16 %v381
  %v2392 = vunpack.c.l.b16 %v382
  %v2393 = vunpack.c.h.b16 %v382
  %v2394 = vunpack.c.l.b16 %v383
  %v2395 = vunpack.c.h.b16 %v383
  %v2396 = vunpack.c.l.b16 %v384
  %v2397 = vunpack.c.h.b16 %v384
  %v2398 = vunpack.c.l.b16 %v385
  %v2399 = vunpack.c.h.b16 %v385
  %v2400 = vunpack.c.l.b16 %v386
  %v2401 = vunpack.c.h.b16 %v386
  %v2402 = vunpack.c.l.b16 %v387
  %v2403 = vunpack.c.h.b16 %v387
  %v2404 = vunpack.c.l.b16 %v388
  %v2405 = vunpack.c.h.b16 %v388
  %v2406 = vunpack.c.l.b16 %v389
  %v2407 = vunpack.c.h.b16 %v389
  %v2408 = vunpack.c.l.b16 %v390
  %v2409 = vunpack.c.h.b16 %v390
  %v2410 = vunpack.c.l.b16 %v391
  %v2411 = vunpack.c.h.b16 %v391
  %v2412 = vunpack.c.l.b16 %v392
  %v2413 = vunpack.c.h.b16 %v392
  %v2414 = vunpack.c.l.b16 %v393
  %v2415 = vunpack.c.h.b16 %v393
  %v2416 = vunpack.c.l.b16 %v394
  %v2417 = vunpack.c.h.b16 %v394
  %v2418 = vunpack.c.l.b16 %v395
  %v2419 = vunpack.c.h.b16 %v395
  %v2420 = vunpack.c.l.b16 %v396
  %v2421 = vunpack.c.h.b16 %v396
  %v2422 = vunpack.c.l.b16 %v397
  %v2423 = vunpack.c.h.b16 %v397
  %v2424 = vunpack.c.l.b16 %v398
  %v2425 = vunpack.c.h.b16 %v398
  %v2426 = vunpack.c.l.b16 %v399
  %v2427 = vunpack.c.h.b16 %v399
  %v2428 = vunpack.c.l.b16 %v400
  %v2429 = vunpack.c.h.b16 %v400
  %v2430 = vunpack.c.l.b16 %v401
  %v2431 = vunpack.c.h.b16 %v401
  %v2432 = vunpack.c.l.b16 %v402
  %v2433 = vunpack.c.h.b16 %v402
  %v2434 = vunpack.c.l.b16 %v403
  %v2435 = vunpack.c.h.b16 %v403
  %v2436 = vunpack.c.l.b16 %v404
  %v2437 = vunpack.c.h.b16 %v404
  %v2438 = vunpack.c.l.b16 %v405
  %v2439 = vunpack.c.h.b16 %v405
  %v2440 = vunpack.c.l.b16 %v406
  %v2441 = vunpack.c.h.b16 %v406
  %v2442 = vunpack.c.l.b16 %v407
  %v2443 = vunpack.c.h.b16 %v407
  %v2444 = vunpack.c.l.b16 %v408
  %v2445 = vunpack.c.h.b16 %v408
  %v2446 = vunpack.c.l.b16 %v409
  %v2447 = vunpack.c.h.b16 %v409
  %v2448 = vunpack.c.l.b16 %v410
  %v2449 = vunpack.c.h.b16 %v410
  %v2450 = vunpack.c.l.b16 %v411
  %v2451 = vunpack.c.h.b16 %v411
  %v2452 = vunpack.c.l.b16 %v412
  %v2453 = vunpack.c.h.b16 %v412
  %v2454 = vunpack.c.l.b16 %v413
  %v2455 = vunpack.c.h.b16 %v413
  %v2456 = vunpack.c.l.b16 %v414
  %v2457 = vunpack.c.h.b16 %v414
  %v2458 = vunpack.c.l.b16 %v415
  %v2459 = vunpack.c.h.b16 %v415
  %v2460 = vunpack.c.l.b16 %v416
  %v2461 = vunpack.c.h.b16 %v416
  %v2462 = vunpack.c.l.b16 %v417
  %v2463 = vunpack.c.h.b16 %v417
  %v2464 = vunpack.c.l.b16 %v418
  %v2465 = vunpack.c.h.b16 %v418
  %v2466 = vunpack.c.l.b16 %v419
  %v2467 = vunpack.c.h.b16 %v419
  %v2468 = vunpack.c.l.b16 %v420
  %v2469 = vunpack.c.h.b16 %v420
  %v2470 = vunpack.c.l.b16 %v421
  %v2471 = vunpack.c.h.b16 %v421
  %v2472 = vunpack.c.l.b16 %v422
  %v2473 = vunpack.c.h.b16 %v422
  %v2474 = vunpack.c.l.b16 %v423
  %v2475 = vunpack.c.h.b16 %v423
  %v2476 = vunpack.c.l.b16 %v424
  %v2477 = vunpack.c.h.b16 %v424
  %v2478 = vunpack.c.l.b16 %v425
  %v2479 = vunpack.c.h.b16 %v425
  %v2480 = vunpack.c.l.b16 %v426
  %v2481 = vunpack.c.h.b16 %v426
  %v2482 = vunpack.c.l.b16 %v427
  %v2483 = vunpack.c.h.b16 %v427
  %v2484 = vunpack.c.l.b16 %v428
  %v2485 = vunpack.c.h.b16 %v428
  %v2486 = vunpack.c.l.b16 %v429
  %v2487 = vunpack.c.h.b16 %v429
  %v2488 = vunpack.c.l.b16 %v430
  %v2489 = vunpack.c.h.b16 %v430
  %v2490 = vunpack.c.l.b16 %v431
  %v2491 = vunpack.c.h.b16 %v431
  %v2492 = vunpack.c.l.b16 %v432
  %v2493 = vunpack.c.h.b16 %v432
  %v2494 = vunpack.c.l.b16 %v433
  %v2495 = vunpack.c.h.b16 %v433
  %v2496 = vunpack.c.l.b16 %v434
  %v2497 = vunpack.c.h.b16 %v434
  %v2498 = vunpack.c.l.b16 %v435
  %v2499 = vunpack.c.h.b16 %v435
  %v2500 = vunpack.c.l.b16 %v436
  %v2501 = vunpack.c.h.b16 %v436
  %v2502 = vunpack.c.l.b16 %v437
  %v2503 = vunpack.c.h.b16 %v437
  %v2504 = vunpack.c.l.b16 %v438
  %v2505 = vunpack.c.h.b16 %v438
  %v2506 = vunpack.c.l.b16 %v439
  %v2507 = vunpack.c.h.b16 %v439
  %v2508 = vunpack.c.l.b16 %v440
  %v2509 = vunpack.c.h.b16 %v440
  %v2510 = vunpack.c.l.b16 %v441
  %v2511 = vunpack.c.h.b16 %v441
  %v2512 = vunpack.c.l.b16 %v442
  %v2513 = vunpack.c.h.b16 %v442
  %v2514 = vunpack.c.l.b16 %v443
  %v2515 = vunpack.c.h.b16 %v443
  %v2516 = vunpack.c.l.b16 %v444
  %v2517 = vunpack.c.h.b16 %v444
  %v2518 = vunpack.c.l.b16 %v445
  %v2519 = vunpack.c.h.b16 %v445
  %v2520 = vunpack.c.l.b16 %v446
  %v2521 = vunpack.c.h.b16 %v446
  %v2522 = vunpack.c.l.b16 %v447
  %v2523 = vunpack.c.h.b16 %v447
  %v2524 = vunpack.c.l.b16 %v448
  %v2525 = vunpack.c.h.b16 %v448
  %v2526 = vunpack.c.l.b16 %v449
  %v2527 = vunpack.c.h.b16 %v449
  %v2528 = vunpack.c.l.b16 %v450
  %v2529 = vunpack.c.h.b16 %v450
  %v2530 = vunpack.c.l.b16 %v451
  %v2531 = vunpack.c.h.b16 %v451
  %v2532 = vunpack.c.l.b16 %v452
  %v2533 = vunpack.c.h.b16 %v452
  %v2534 = vunpack.c.l.b16 %v453
  %v2535 = vunpack.c.h.b16 %v453
  %v2536 = vunpack.c.l.b16 %v454
  %v2537 = vunpack.c.h.b16 %v454
  %v2538 = vunpack.c.l.b16 %v455
  %v2539 = vunpack.c.h.b16 %v455
  %v2540 = vunpack.c.l.b16 %v456
  %v2541 = vunpack.c.h.b16 %v456
  %v2542 = vunpack.c.l.b16 %v457
  %v2543 = vunpack.c.h.b16 %v457
  %v2544 = vunpack.c.l.b16 %v458
  %v2545 = vunpack.c.h.b16 %v458
  %v2546 = vunpack.c.l.b16 %v459
  %v2547 = vunpack.c.h.b16 %v459
  %v2548 = vunpack.c.l.b16 %v460
  %v2549 = vunpack.c.h.b16 %v460
  %v2550 = vunpack.c.l.b16 %v461
  %v2551 = vunpack.c.h.b16 %v461
  %v2552 = vunpack.c.l.b16 %v462
  %v2553 = vunpack.c.h.b16 %v462
  %v2554 = vunpack.c.l.b16 %v463
  %v2555 = vunpack.c.h.b16 %v463
  %v2556 = vunpack.c.l.b16 %v464
  %v2557 = vunpack.c.h.b16 %v464
  %v2558 = vunpack.c.l.b16 %v465
  %v2559 = vunpack.c.h.b16 %v465
  %v2560 = vunpack.c.l.b16 %v466
  %v2561 = vunpack.c.h.b16 %v466
  %v2562 = vunpack.c.l.b16 %v467
  %v2563 = vunpack.c.h.b16 %v467
  %v2564 = vunpack.c.l.b16 %v468
  %v2565 = vunpack.c.h.b16 %v468
  %v2566 = vunpack.c.l.b16 %v469
  %v2567 = vunpack.c.h.b16 %v469
  %v2568 = vunpack.c.l.b16 %v470
  %v2569 = vunpack.c.h.b16 %v470
  %v2570 = vunpack.c.l.b16 %v471
  %v2571 = vunpack.c.h.b16 %v471
  %v2572 = vunpack.c.l.b16 %v472
  %v2573 = vunpack.c.h.b16 %v472
  %v2574 = vunpack.c.l.b16 %v473
  %v2575 = vunpack.c.h.b16 %v473
  %v2576 = vunpack.c.l.b16 %v474
  %v2577 = vunpack.c.h.b16 %v474
  %v2578 = vunpack.c.l.b16 %v475
  %v2579 = vunpack.c.h.b16 %v475
  %v2580 = vunpack.c.l.b16 %v476
  %v2581 = vunpack.c.h.b16 %v476
  %v2582 = vunpack.c.l.b16 %v477
  %v2583 = vunpack.c.h.b16 %v477
  %v2584 = vunpack.c.l.b16 %v478
  %v2585 = vunpack.c.h.b16 %v478
  %v2586 = vunpack.c.l.b16 %v479
  %v2587 = vunpack.c.h.b16 %v479
  %v2588 = vunpack.c.l.b16 %v480
  %v2589 = vunpack.c.h.b16 %v480
  %v2590 = vunpack.c.l.b16 %v481
  %v2591 = vunpack.c.h.b16 %v481
  %v2592 = vunpack.c.l.b16 %v482
  %v2593 = vunpack.c.h.b16 %v482
  %v2594 = vunpack.c.l.b16 %v483
  %v2595 = vunpack.c.h.b16 %v483
  %v2596 = vunpack.c.l.b16 %v484
  %v2597 = vunpack.c.h.b16 %v484
  %v2598 = vunpack.c.l.b16 %v485
  %v2599 = vunpack.c.h.b16 %v485
  %v2600 = vunpack.c.l.b16 %v486
  %v2601 = vunpack.c.h.b16 %v486
  %v2602 = vunpack.c.l.b16 %v487
  %v2603 = vunpack.c.h.b16 %v487
  %v2604 = vunpack.c.l.b16 %v488
  %v2605 = vunpack.c.h.b16 %v488
  %v2606 = vunpack.c.l.b16 %v489
  %v2607 = vunpack.c.h.b16 %v489
  %v2608 = vunpack.c.l.b16 %v490
  %v2609 = vunpack.c.h.b16 %v490
  %v2610 = vunpack.c.l.b16 %v491
  %v2611 = vunpack.c.h.b16 %v491
  %v2612 = vunpack.c.l.b16 %v492
  %v2613 = vunpack.c.h.b16 %v492
  %v2614 = vunpack.c.l.b16 %v493
  %v2615 = vunpack.c.h.b16 %v493
  %v2616 = vunpack.c.l.b16 %v494
  %v2617 = vunpack.c.h.b16 %v494
  %v2618 = vunpack.c.l.b16 %v495
  %v2619 = vunpack.c.h.b16 %v495
  %v2620 = vunpack.c.l.b16 %v496
  %v2621 = vunpack.c.h.b16 %v496
  %v2622 = vunpack.c.l.b16 %v497
  %v2623 = vunpack.c.h.b16 %v497
  %v2624 = vunpack.c.l.b16 %v498
  %v2625 = vunpack.c.h.b16 %v498
  %v2626 = vunpack.c.l.b16 %v499
  %v2627 = vunpack.c.h.b16 %v499
  %v2628 = vunpack.c.l.b16 %v500
  %v2629 = vunpack.c.h.b16 %v500
  %v2630 = vunpack.c.l.b16 %v501
  %v2631 = vunpack.c.h.b16 %v501
  %v2632 = vunpack.c.l.b16 %v502
  %v2633 = vunpack.c.h.b16 %v502
  %v2634 = vunpack.c.l.b16 %v503
  %v2635 = vunpack.c.h.b16 %v503
  %v2636 = vunpack.c.l.b16 %v504
  %v2637 = vunpack.c.h.b16 %v504
  %v2638 = vunpack.c.l.b16 %v505
  %v2639 = vunpack.c.h.b16 %v505
  %v2640 = vunpack.c.l.b16 %v506
  %v2641 = vunpack.c.h.b16 %v506
  %v2642 = vunpack.c.l.b16 %v507
  %v2643 = vunpack.c.h.b16 %v507
  %v2644 = vunpack.c.l.b16 %v508
  %v2645 = vunpack.c.h.b16 %v508
  %v2646 = vunpack.c.l.b16 %v509
  %v2647 = vunpack.c.h.b16 %v509
  %v2648 = vunpack.c.l.b16 %v510
  %v2649 = vunpack.c.h.b16 %v510
  %v2650 = vunpack.c.l.b16 %v511
  %v2651 = vunpack.c.h.b16 %v511
  %v2652 = vunpack.c.l.b16 %v512
  %v2653 = vunpack.c.h.b16 %v512
  %v2654 = vunpack.c.l.b16 %v513
  %v2655 = vunpack.c.h.b16 %v513
  %v2656 = vunpack.c.l.b16 %v514
  %v2657 = vunpack.c.h.b16 %v514
  %v2658 = vunpack.c.l.b16 %v515
  %v2659 = vunpack.c.h.b16 %v515
  %v2660 = vunpack.c.l.b16 %v516
  %v2661 = vunpack.c.h.b16 %v516
  %v2662 = vunpack.c.l.b16 %v517
  %v2663 = vunpack.c.h.b16 %v517
  %v2664 = vunpack.c.l.b16 %v518
  %v2665 = vunpack.c.h.b16 %v518
  %v2666 = vunpack.c.l.b16 %v519
  %v2667 = vunpack.c.h.b16 %v519
  %v2668 = vunpack.c.l.b16 %v520
  %v2669 = vunpack.c.h.b16 %v520
  %v2670 = vunpack.c.l.b16 %v521
  %v2671 = vunpack.c.h.b16 %v521
  %v2672 = vunpack.c.l.b16 %v522
  %v2673 = vunpack.c.h.b16 %v522
  %v2674 = vunpack.c.l.b16 %v523
  %v2675 = vunpack.c.h.b16 %v523
  %v2676 = vunpack.c.l.b16 %v524
  %v2677 = vunpack.c.h.b16 %v524
  %v2678 = vunpack.c.l.b16 %v525
  %v2679 = vunpack.c.h.b16 %v525
  %v2680 = vunpack.c.l.b16 %v526
  %v2681 = vunpack.c.h.b16 %v526
  %v2682 = vunpack.c.l.b16 %v527
  %v2683 = vunpack.c.h.b16 %v527
  %v2684 = vunpack.c.l.b16 %v528
  %v2685 = vunpack.c.h.b16 %v528
  %v2686 = vunpack.c.l.b16 %v529
  %v2687 = vunpack.c.h.b16 %v529
  %v2688 = vunpack.c.l.b16 %v530
  %v2689 = vunpack.c.h.b16 %v530
  %v2690 = vunpack.c.l.b16 %v531
  %v2691 = vunpack.c.h.b16 %v531
  %v2692 = vunpack.c.l.b16 %v532
  %v2693 = vunpack.c.h.b16 %v532
  %v2694 = vunpack.c.l.b16 %v533
  %v2695 = vunpack.c.h.b16 %v533
  %v2696 = vunpack.c.l.b16 %v534
  %v2697 = vunpack.c.h.b16 %v534
  %v2698 = vunpack.c.l.b16 %v535
  %v2699 = vunpack.c.h.b16 %v535
  %v2700 = vunpack.c.l.b16 %v536
  %v2701 = vunpack.c.h.b16 %v536
  %v2702 = vunpack.c.l.b16 %v537
  %v2703 = vunpack.c.h.b16 %v537
  %v2704 = vunpack.c.l.b16 %v538
  %v2705 = vunpack.c.h.b16 %v538
  %v2706 = vunpack.c.l.b16 %v539
  %v2707 = vunpack.c.h.b16 %v539
  %v2708 = vunpack.c.l.b16 %v540
  %v2709 = vunpack.c.h.b16 %v540
  %v2710 = vunpack.c.l.b16 %v541
  %v2711 = vunpack.c.h.b16 %v541
  %v2712 = vunpack.c.l.b16 %v542
  %v2713 = vunpack.c.h.b16 %v542
  %v2714 = vunpack.c.l.b16 %v543
  %v2715 = vunpack.c.h.b16 %v543
  %v2716 = vunpack.c.l.b16 %v544
  %v2717 = vunpack.c.h.b16 %v544
  %v2718 = vunpack.c.l.b16 %v545
  %v2719 = vunpack.c.h.b16 %v545
  %v2720 = vunpack.c.l.b16 %v546
  %v2721 = vunpack.c.h.b16 %v546
  %v2722 = vunpack.c.l.b16 %v547
  %v2723 = vunpack.c.h.b16 %v547
  %v2724 = vunpack.c.l.b16 %v548
  %v2725 = vunpack.c.h.b16 %v548
  %v2726 = vunpack.c.l.b16 %v549
  %v2727 = vunpack.c.h.b16 %v549
  %v2728 = vunpack.c.l.b16 %v550
  %v2729 = vunpack.c.h.b16 %v550
  %v2730 = vunpack.c.l.b16 %v551
  %v2731 = vunpack.c.h.b16 %v551
  %v2732 = vunpack.c.l.b16 %v552
  %v2733 = vunpack.c.h.b16 %v552
  %v2734 = vunpack.c.l.b16 %v553
  %v2735 = vunpack.c.h.b16 %v553
  %v2736 = vunpack.c.l.b16 %v554
  %v2737 = vunpack.c.h.b16 %v554
  %v2738 = vunpack.c.l.b16 %v555
  %v2739 = vunpack.c.h.b16 %v555
  %v2740 = vunpack.c.l.b16 %v556
  %v2741 = vunpack.c.h.b16 %v556
  %v2742 = vunpack.c.l.b16 %v557
  %v2743 = vunpack.c.h.b16 %v557
  %v2744 = vunpack.c.l.b16 %v558
  %v2745 = vunpack.c.h.b16 %v558
  %v2746 = vunpack.c.l.b16 %v559
  %v2747 = vunpack.c.h.b16 %v559
  %v2748 = vunpack.c.l.b16 %v560
  %v2749 = vunpack.c.h.b16 %v560
  %v2750 = vunpack.c.l.b16 %v561
  %v2751 = vunpack.c.h.b16 %v561
  %v2752 = vunpack.c.l.b16 %v562
  %v2753 = vunpack.c.h.b16 %v562
  %v2754 = vunpack.c.l.b16 %v563
  %v2755 = vunpack.c.h.b16 %v563
  %v2756 = vunpack.c.l.b16 %v564
  %v2757 = vunpack.c.h.b16 %v564
  %v2758 = vunpack.c.l.b16 %v565
  %v2759 = vunpack.c.h.b16 %v565
  %v2760 = vunpack.c.l.b16 %v566
  %v2761 = vunpack.c.h.b16 %v566
  %v2762 = vunpack.c.l.b16 %v567
  %v2763 = vunpack.c.h.b16 %v567
  %v2764 = vunpack.c.l.b16 %v568
  %v2765 = vunpack.c.h.b16 %v568
  %v2766 = vunpack.c.l.b16 %v569
  %v2767 = vunpack.c.h.b16 %v569
  %v2768 = vunpack.c.l.b16 %v570
  %v2769 = vunpack.c.h.b16 %v570
  %v2770 = vunpack.c.l.b16 %v571
  %v2771 = vunpack.c.h.b16 %v571
  %v2772 = vunpack.c.l.b16 %v572
  %v2773 = vunpack.c.h.b16 %v572
  %v2774 = vunpack.c.l.b16 %v573
  %v2775 = vunpack.c.h.b16 %v573
  %v2776 = vunpack.c.l.b16 %v574
  %v2777 = vunpack.c.h.b16 %v574
  %v2778 = vunpack.c.l.b16 %v575
  %v2779 = vunpack.c.h.b16 %v575
  %v2780 = vunpack.c.l.b16 %v576
  %v2781 = vunpack.c.h.b16 %v576
  %v2782 = vunpack.c.l.b16 %v577
  %v2783 = vunpack.c.h.b16 %v577
  %v2784 = vunpack.c.l.b16 %v578
  %v2785 = vunpack.c.h.b16 %v578
  %v2786 = vunpack.c.l.b16 %v579
  %v2787 = vunpack.c.h.b16 %v579
  %v2788 = vunpack.c.l.b16 %v580
  %v2789 = vunpack.c.h.b16 %v580
  %v2790 = vunpack.c.l.b16 %v581
  %v2791 = vunpack.c.h.b16 %v581
  %v2792 = vunpack.c.l.b16 %v582
  %v2793 = vunpack.c.h.b16 %v582
  %v2794 = vunpack.c.l.b16 %v583
  %v2795 = vunpack.c.h.b16 %v583
  %v2796 = vunpack.c.l.b16 %v584
  %v2797 = vunpack.c.h.b16 %v584
  %v2798 = vunpack.c.l.b16 %v585
  %v2799 = vunpack.c.h.b16 %v585
  %v2800 = vunpack.c.l.b16 %v586
  %v2801 = vunpack.c.h.b16 %v586
  %v2802 = vunpack.c.l.b16 %v587
  %v2803 = vunpack.c.h.b16 %v587
  %v2804 = vunpack.c.l.b16 %v588
  %v2805 = vunpack.c.h.b16 %v588
  %v2806 = vunpack.c.l.b16 %v589
  %v2807 = vunpack.c.h.b16 %v589
  %v2808 = vunpack.c.l.b16 %v590
  %v2809 = vunpack.c.h.b16 %v590
  %v2810 = vunpack.c.l.b16 %v591
  %v2811 = vunpack.c.h.b16 %v591
  %v2812 = vunpack.c.l.b16 %v592
  %v2813 = vunpack.c.h.b16 %v592
  %v2814 = vunpack.c.l.b16 %v593
  %v2815 = vunpack.c.h.b16 %v593
  %v2816 = vunpack.c.l.b16 %v594
  %v2817 = vunpack.c.h.b16 %v594
  %v2818 = vunpack.c.l.b16 %v595
  %v2819 = vunpack.c.h.b16 %v595
  %v2820 = vunpack.c.l.b16 %v596
  %v2821 = vunpack.c.h.b16 %v596
  %v2822 = vunpack.c.l.b16 %v597
  %v2823 = vunpack.c.h.b16 %v597
  %v2824 = vunpack.c.l.b16 %v598
  %v2825 = vunpack.c.h.b16 %v598
  %v2826 = vunpack.c.l.b16 %v599
  %v2827 = vunpack.c.h.b16 %v599
  %v2828 = vunpack.c.l.b16 %v600
  %v2829 = vunpack.c.h.b16 %v600
  %v2830 = vunpack.c.l.b16 %v601
  %v2831 = vunpack.c.h.b16 %v601
  %v2832 = vunpack.c.l.b16 %v602
  %v2833 = vunpack.c.h.b16 %v602
  %v2834 = vunpack.c.l.b16 %v603
  %v2835 = vunpack.c.h.b16 %v603
  %v2836 = vunpack.c.l.b16 %v604
  %v2837 = vunpack.c.h.b16 %v604
  %v2838 = vunpack.c.l.b16 %v605
  %v2839 = vunpack.c.h.b16 %v605
  %v2840 = vunpack.c.l.b16 %v606
  %v2841 = vunpack.c.h.b16 %v606
  %v2842 = vunpack.c.l.b16 %v607
  %v2843 = vunpack.c.h.b16 %v607
  %v2844 = vunpack.c.l.b16 %v608
  %v2845 = vunpack.c.h.b16 %v608
  %v2846 = vunpack.c.l.b16 %v609
  %v2847 = vunpack.c.h.b16 %v609
  %v2848 = vunpack.c.l.b16 %v610
  %v2849 = vunpack.c.h.b16 %v610
  %v2850 = vunpack.c.l.b16 %v611
  %v2851 = vunpack.c.h.b16 %v611
  %v2852 = vunpack.c.l.b16 %v612
  %v2853 = vunpack.c.h.b16 %v612
  %v2854 = vunpack.c.l.b16 %v613
  %v2855 = vunpack.c.h.b16 %v613
  %v2856 = vunpack.c.l.b16 %v614
  %v2857 = vunpack.c.h.b16 %v614
  %v2858 = vunpack.c.l.b16 %v615
  %v2859 = vunpack.c.h.b16 %v615
  %v2860 = vunpack.c.l.b16 %v616
  %v2861 = vunpack.c.h.b16 %v616
  %v2862 = vunpack.c.l.b16 %v617
  %v2863 = vunpack.c.h.b16 %v617
  %v2864 = vunpack.c.l.b16 %v618
  %v2865 = vunpack.c.h.b16 %v618
  %v2866 = vunpack.c.l.b16 %v619
  %v2867 = vunpack.c.h.b16 %v619
  %v2868 = vunpack.c.l.b16 %v620
  %v2869 = vunpack.c.h.b16 %v620
  %v2870 = vunpack.c.l.b16 %v621
  %v2871 = vunpack.c.h.b16 %v621
  %v2872 = vunpack.c.l.b16 %v622
  %v2873 = vunpack.c.h.b16 %v622
  %v2874 = vunpack.c.l.b16 %v623
  %v2875 = vunpack.c.h.b16 %v623
  %v2876 = vunpack.c.l.b16 %v624
  %v2877 = vunpack.c.h.b16 %v624
  %v2878 = vunpack.c.l.b16 %v625
  %v2879 = vunpack.c.h.b16 %v625
  %v2880 = vunpack.c.l.b16 %v626
  %v2881 = vunpack.c.h.b16 %v626
  %v2882 = vunpack.c.l.b16 %v627
  %v2883 = vunpack.c.h.b16 %v627
  %v2884 = vunpack.c.l.b16 %v628
  %v2885 = vunpack.c.h.b16 %v628
  %v2886 = vunpack.c.l.b16 %v629
  %v2887 = vunpack.c.h.b16 %v629
  %v2888 = vunpack.c.l.b16 %v630
  %v2889 = vunpack.c.h.b16 %v630
  %v2890 = vunpack.c.l.b16 %v631
  %v2891 = vunpack.c.h.b16 %v631
  %v2892 = vunpack.c.l.b16 %v632
  %v2893 = vunpack.c.h.b16 %v632
  %v2894 = vunpack.c.l.b16 %v633
  %v2895 = vunpack.c.h.b16 %v633
  %v2896 = vunpack.c.l.b16 %v634
  %v2897 = vunpack.c.h.b16 %v634
  %v2898 = vunpack.c.l.b16 %v635
  %v2899 = vunpack.c.h.b16 %v635
  %v2900 = vunpack.c.l.b16 %v636
  %v2901 = vunpack.c.h.b16 %v636
  %v2902 = vunpack.c.l.b16 %v637
  %v2903 = vunpack.c.h.b16 %v637
  %v2904 = vunpack.c.l.b16 %v638
  %v2905 = vunpack.c.h.b16 %v638
  %v2906 = vunpack.c.l.b16 %v639
  %v2907 = vunpack.c.h.b16 %v639
  %v2908 = vunpack.c.l.b16 %v640
  %v2909 = vunpack.c.h.b16 %v640
  %v2910 = vunpack.c.l.b16 %v641
  %v2911 = vunpack.c.h.b16 %v641
  %v2912 = vunpack.c.l.b16 %v642
  %v2913 = vunpack.c.h.b16 %v642
  %v2914 = vunpack.c.l.b16 %v643
  %v2915 = vunpack.c.h.b16 %v643
  %v2916 = vunpack.c.l.b16 %v644
  %v2917 = vunpack.c.h.b16 %v644
  %v2918 = vunpack.c.l.b16 %v645
  %v2919 = vunpack.c.h.b16 %v645
  %v2920 = vunpack.c.l.b16 %v646
  %v2921 = vunpack.c.h.b16 %v646
  %v2922 = vunpack.c.l.b16 %v647
  %v2923 = vunpack.c.h.b16 %v647
  %v2924 = vunpack.c.l.b16 %v648
  %v2925 = vunpack.c.h.b16 %v648
  %v2926 = vunpack.c.l.b16 %v649
  %v2927 = vunpack.c.h.b16 %v649
  %v2928 = vunpack.c.l.b16 %v650
  %v2929 = vunpack.c.h.b16 %v650
  %v2930 = vunpack.c.l.b16 %v651
  %v2931 = vunpack.c.h.b16 %v651
  %v2932 = vunpack.c.l.b16 %v652
  %v2933 = vunpack.c.h.b16 %v652
  %v2934 = vunpack.c.l.b16 %v653
  %v2935 = vunpack.c.h.b16 %v653
  %v2936 = vunpack.c.l.b16 %v654
  %v2937 = vunpack.c.h.b16 %v654
  %v2938 = vunpack.c.l.b16 %v655
  %v2939 = vunpack.c.h.b16 %v655
  %v2940 = vunpack.c.l.b16 %v656
  %v2941 = vunpack.c.h.b16 %v656
  %v2942 = vunpack.c.l.b16 %v657
  %v2943 = vunpack.c.h.b16 %v657
  %v2944 = vunpack.c.l.b16 %v658
  %v2945 = vunpack.c.h.b16 %v658
  %v2946 = vunpack.c.l.b16 %v659
  %v2947 = vunpack.c.h.b16 %v659
  %v2948 = vunpack.c.l.b16 %v660
  %v2949 = vunpack.c.h.b16 %v660
  %v2950 = vunpack.c.l.b16 %v661
  %v2951 = vunpack.c.h.b16 %v661
  %v2952 = vunpack.c.l.b16 %v662
  %v2953 = vunpack.c.h.b16 %v662
  %v2954 = vunpack.c.l.b16 %v663
  %v2955 = vunpack.c.h.b16 %v663
  %v2956 = vunpack.c.l.b16 %v664
  %v2957 = vunpack.c.h.b16 %v664
  %v2958 = vunpack.c.l.b16 %v665
  %v2959 = vunpack.c.h.b16 %v665
  %v2960 = vunpack.c.l.b16 %v666
  %v2961 = vunpack.c.h.b16 %v666
  %v2962 = vunpack.c.l.b16 %v667
  %v2963 = vunpack.c.h.b16 %v667
  %v2964 = vunpack.c.l.b16 %v668
  %v2965 = vunpack.c.h.b16 %v668
  %v2966 = vunpack.c.l.b16 %v669
  %v2967 = vunpack.c.h.b16 %v669
  %v2968 = vunpack.c.l.b16 %v670
  %v2969 = vunpack.c.h.b16 %v670
  %v2970 = vunpack.c.l.b16 %v671
  %v2971 = vunpack.c.h.b16 %v671
  %v2972 = vunpack.c.l.b16 %v672
  %v2973 = vunpack.c.h.b16 %v672
  %v2974 = vunpack.c.l.b16 %v673
  %v2975 = vunpack.c.h.b16 %v673
  %v2976 = vunpack.c.l.b16 %v674
  %v2977 = vunpack.c.h.b16 %v674
  %v2978 = vunpack.c.l.b16 %v675
  %v2979 = vunpack.c.h.b16 %v675
  %v2980 = vunpack.c.l.b16 %v676
  %v2981 = vunpack.c.h.b16 %v676
  %v2982 = vunpack.c.l.b16 %v677
  %v2983 = vunpack.c.h.b16 %v677
  %v2984 = vunpack.c.l.b16 %v678
  %v2985 = vunpack.c.h.b16 %v678
  %v2986 = vunpack.c.l.b16 %v679
  %v2987 = vunpack.c.h.b16 %v679
  %v2988 = vunpack.c.l.b16 %v680
  %v2989 = vunpack.c.h.b16 %v680
  %v2990 = vunpack.c.l.b16 %v681
  %v2991 = vunpack.c.h.b16 %v681
  %v2992 = vunpack.c.l.b16 %v682
  %v2993 = vunpack.c.h.b16 %v682
  %v2994 = vunpack.c.l.b16 %v683
  %v2995 = vunpack.c.h.b16 %v683
  %v2996 = vunpack.c.l.b16 %v684
  %v2997 = vunpack.c.h.b16 %v684
  %v2998 = vunpack.c.l.b16 %v685
  %v2999 = vunpack.c.h.b16 %v685
  %v3000 = vunpack.c.l.b16 %v686
  %v3001 = vunpack.c.h.b16 %v686
  %v3002 = vunpack.c.l.b16 %v687
  %v3003 = vunpack.c.h.b16 %v687
  %v3004 = vunpack.c.l.b16 %v688
  %v3005 = vunpack.c.h.b16 %v688
  %v3006 = vunpack.c.l.b16 %v689
  %v3007 = vunpack.c.h.b16 %v689
  %v3008 = vunpack.c.l.b16 %v690
  %v3009 = vunpack.c.h.b16 %v690
  %v3010 = vunpack.c.l.b16 %v691
  %v3011 = vunpack.c.h.b16 %v691
  %v3012 = vunpack.c.l.b16 %v692
  %v3013 = vunpack.c.h.b16 %v692
  %v3014 = vunpack.c.l.b16 %v693
  %v3015 = vunpack.c.h.b16 %v693
  %v3016 = vunpack.c.l.b16 %v694
  %v3017 = vunpack.c.h.b16 %v694
  %v3018 = vunpack.c.l.b16 %v695
  %v3019 = vunpack.c.h.b16 %v695
  %v3020 = vunpack.c.l.b16 %v696
  %v3021 = vunpack.c.h.b16 %v696
  %v3022 = vunpack.c.l.b16 %v697
  %v3023 = vunpack.c.h.b16 %v697
  %v3024 = vunpack.c.l.b16 %v698
  %v3025 = vunpack.c.h.b16 %v698
  %v3026 = vunpack.c.l.b16 %v699
  %v3027 = vunpack.c.h.b16 %v699
  %v3028 = vunpack.c.l.b16 %v700
  %v3029 = vunpack.c.h.b16 %v700
  %v3030 = vunpack.c.l.b16 %v701
  %v3031 = vunpack.c.h.b16 %v701
  %v3032 = vunpack.c.l.b16 %v702
  %v3033 = vunpack.c.h.b16 %v702
  %v3034 = vunpack.c.l.b16 %v703
  %v3035 = vunpack.c.h.b16 %v703
  %v3036 = vunpack.c.l.b16 %v704
  %v3037 = vunpack.c.h.b16 %v704
  %v3038 = vunpack.c.l.b16 %v705
  %v3039 = vunpack.c.h.b16 %v705
  %v3040 = vunpack.c.l.b16 %v706
  %v3041 = vunpack.c.h.b16 %v706
  %v3042 = vunpack.c.l.b16 %v707
  %v3043 = vunpack.c.h.b16 %v707
  %v3044 = vunpack.c.l.b16 %v708
  %v3045 = vunpack.c.h.b16 %v708
  %v3046 = vunpack.c.l.b16 %v709
  %v3047 = vunpack.c.h.b16 %v709
  %v3048 = vunpack.c.l.b16 %v710
  %v3049 = vunpack.c.h.b16 %v710
  %v3050 = vunpack.c.l.b16 %v711
  %v3051 = vunpack.c.h.b16 %v711
  %v3052 = vunpack.c.l.b16 %v712
  %v3053 = vunpack.c.h.b16 %v712
  %v3054 = vunpack.c.l.b16 %v713
  %v3055 = vunpack.c.h.b16 %v713
  %v3056 = vunpack.c.l.b16 %v714
  %v3057 = vunpack.c.h.b16 %v714
  %v3058 = vunpack.c.l.b16 %v715
  %v3059 = vunpack.c.h.b16 %v715
  %v3060 = vunpack.c.l.b16 %v716
  %v3061 = vunpack.c.h.b16 %v716
  %v3062 = vunpack.c.l.b16 %v717
  %v3063 = vunpack.c.h.b16 %v717
  %v3064 = vunpack.c.l.b16 %v718
  %v3065 = vunpack.c.h.b16 %v718
  %v3066 = vunpack.c.l.b16 %v719
  %v3067 = vunpack.c.h.b16 %v719
  %v3068 = vunpack.c.l.b16 %v720
  %v3069 = vunpack.c.h.b16 %v720
  %v3070 = vunpack.c.l.b16 %v721
  %v3071 = vunpack.c.h.b16 %v721
  %v3072 = vunpack.c.l.b16 %v722
  %v3073 = vunpack.c.h.b16 %v722
  %v3074 = vunpack.c.l.b16 %v723
  %v3075 = vunpack.c.h.b16 %v723
  %v3076 = vunpack.c.l.b16 %v724
  %v3077 = vunpack.c.h.b16 %v724
  %v3078 = vunpack.c.l.b16 %v725
  %v3079 = vunpack.c.h.b16 %v725
  %v3080 = vunpack.c.l.b16 %v726
  %v3081 = vunpack.c.h.b16 %v726
  %v3082 = vunpack.c.l.b16 %v727
  %v3083 = vunpack.c.h.b16 %v727
  %v3084 = vunpack.c.l.b16 %v728
  %v3085 = vunpack.c.h.b16 %v728
  %v3086 = vunpack.c.l.b16 %v729
  %v3087 = vunpack.c.h.b16 %v729
  %v3088 = vunpack.c.l.b16 %v730
  %v3089 = vunpack.c.h.b16 %v730
  %v3090 = vunpack.c.l.b16 %v731
  %v3091 = vunpack.c.h.b16 %v731
  %v3092 = vunpack.c.l.b16 %v732
  %v3093 = vunpack.c.h.b16 %v732
  %v3094 = vunpack.c.l.b16 %v733
  %v3095 = vunpack.c.h.b16 %v733
  %v3096 = vunpack.c.l.b16 %v734
  %v3097 = vunpack.c.h.b16 %v734
  %v3098 = vunpack.c.l.b16 %v735
  %v3099 = vunpack.c.h.b16 %v735
  %v3100 = vunpack.c.l.b16 %v736
  %v3101 = vunpack.c.h.b16 %v736
  %v3102 = vunpack.c.l.b16 %v737
  %v3103 = vunpack.c.h.b16 %v737
  %v3104 = vunpack.c.l.b16 %v738
  %v3105 = vunpack.c.h.b16 %v738
  %v3106 = vunpack.c.l.b16 %v739
  %v3107 = vunpack.c.h.b16 %v739
  %v3108 = vunpack.c.l.b16 %v740
  %v3109 = vunpack.c.h.b16 %v740
  %v3110 = vunpack.c.l.b16 %v741
  %v3111 = vunpack.c.h.b16 %v741
  %v3112 = vunpack.c.l.b16 %v742
  %v3113 = vunpack.c.h.b16 %v742
  %v3114 = vunpack.c.l.b16 %v743
  %v3115 = vunpack.c.h.b16 %v743
  %v3116 = vunpack.c.l.b16 %v744
  %v3117 = vunpack.c.h.b16 %v744
  %v3118 = vunpack.c.l.b16 %v745
  %v3119 = vunpack.c.h.b16 %v745
  %v3120 = vunpack.c.l.b16 %v746
  %v3121 = vunpack.c.h.b16 %v746
  %v3122 = vunpack.c.l.b16 %v747
  %v3123 = vunpack.c.h.b16 %v747
  %v3124 = vunpack.c.l.b16 %v748
  %v3125 = vunpack.c.h.b16 %v748
  %v3126 = vunpack.c.l.b16 %v749
  %v3127 = vunpack.c.h.b16 %v749
  %v3128 = vunpack.c.l.b16 %v750
  %v3129 = vunpack.c.h.b16 %v750
  %v3130 = vunpack.c.l.b16 %v751
  %v3131 = vunpack.c.h.b16 %v751
  %v3132 = vunpack.c.l.b16 %v752
  %v3133 = vunpack.c.h.b16 %v752
  %v3134 = vunpack.c.l.b16 %v753
  %v3135 = vunpack.c.h.b16 %v753
  %v3136 = vunpack.c.l.b16 %v754
  %v3137 = vunpack.c.h.b16 %v754
  %v3138 = vunpack.c.l.b16 %v755
  %v3139 = vunpack.c.h.b16 %v755
  %v3140 = vunpack.c.l.b16 %v756
  %v3141 = vunpack.c.h.b16 %v756
  %v3142 = vunpack.c.l.b16 %v757
  %v3143 = vunpack.c.h.b16 %v757
  %v3144 = vunpack.c.l.b16 %v758
  %v3145 = vunpack.c.h.b16 %v758
  %v3146 = vunpack.c.l.b16 %v759
  %v3147 = vunpack.c.h.b16 %v759
  %v3148 = vunpack.c.l.b16 %v760
  %v3149 = vunpack.c.h.b16 %v760
  %v3150 = vunpack.c.l.b16 %v761
  %v3151 = vunpack.c.h.b16 %v761
  %v3152 = vunpack.c.l.b16 %v762
  %v3153 = vunpack.c.h.b16 %v762
  %v3154 = vunpack.c.l.b16 %v763
  %v3155 = vunpack.c.h.b16 %v763
  %v3156 = vunpack.c.l.b16 %v764
  %v3157 = vunpack.c.h.b16 %v764
  %v3158 = vunpack.c.l.b16 %v765
  %v3159 = vunpack.c.h.b16 %v765
  %v3160 = vunpack.c.l.b16 %v766
  %v3161 = vunpack.c.h.b16 %v766
  %v3162 = vunpack.c.l.b16 %v767
  %v3163 = vunpack.c.h.b16 %v767
  %v3164 = vunpack.c.l.b16 %v768
  %v3165 = vunpack.c.h.b16 %v768
  %v3166 = vunpack.c.l.b16 %v769
  %v3167 = vunpack.c.h.b16 %v769
  %v3168 = vunpack.c.l.b16 %v770
  %v3169 = vunpack.c.h.b16 %v770
  %v3170 = vunpack.c.l.b16 %v771
  %v3171 = vunpack.c.h.b16 %v771
  %v3172 = vunpack.c.l.b16 %v772
  %v3173 = vunpack.c.h.b16 %v772
  %v3174 = vunpack.c.l.b16 %v773
  %v3175 = vunpack.c.h.b16 %v773
  %v3176 = vunpack.c.l.b16 %v774
  %v3177 = vunpack.c.h.b16 %v774
  %v3178 = vunpack.c.l.b16 %v775
  %v3179 = vunpack.c.h.b16 %v775
  %v3180 = vunpack.c.l.b16 %v776
  %v3181 = vunpack.c.h.b16 %v776
  %v3182 = vunpack.c.l.b16 %v777
  %v3183 = vunpack.c.h.b16 %v777
  %v3184 = vunpack.c.l.b16 %v778
  %v3185 = vunpack.c.h.b16 %v778
  %v3186 = vunpack.c.l.b16 %v779
  %v3187 = vunpack.c.h.b16 %v779
  %v3188 = vunpack.c.l.b16 %v780
  %v3189 = vunpack.c.h.b16 %v780
  %v3190 = vunpack.c.l.b16 %v781
  %v3191 = vunpack.c.h.b16 %v781
  %v3192 = vunpack.c.l.b16 %v782
  %v3193 = vunpack.c.h.b16 %v782
  %v3194 = vunpack.c.l.b16 %v783
  %v3195 = vunpack.c.h.b16 %v783
  %v3196 = vunpack.c.l.b16 %v784
  %v3197 = vunpack.c.h.b16 %v784
  %v3198 = vunpack.c.l.b16 %v785
  %v3199 = vunpack.c.h.b16 %v785
  %v3200 = vunpack.c.l.b16 %v786
  %v3201 = vunpack.c.h.b16 %v786
  %v3202 = vunpack.c.l.b16 %v787
  %v3203 = vunpack.c.h.b16 %v787
  %v3204 = vunpack.c.l.b16 %v788
  %v3205 = vunpack.c.h.b16 %v788
  %v3206 = vunpack.c.l.b16 %v789
  %v3207 = vunpack.c.h.b16 %v789
  %v3208 = vunpack.c.l.b16 %v790
  %v3209 = vunpack.c.h.b16 %v790
  %v3210 = vunpack.c.l.b16 %v791
  %v3211 = vunpack.c.h.b16 %v791
  %v3212 = vunpack.c.l.b16 %v792
  %v3213 = vunpack.c.h.b16 %v792
  %v3214 = vunpack.c.l.b16 %v793
  %v3215 = vunpack.c.h.b16 %v793
  %v3216 = vunpack.c.l.b16 %v794
  %v3217 = vunpack.c.h.b16 %v794
  %v3218 = vunpack.c.l.b16 %v795
  %v3219 = vunpack.c.h.b16 %v795
  %v3220 = vunpack.c.l.b16 %v796
  %v3221 = vunpack.c.h.b16 %v796
  %v3222 = vunpack.c.l.b16 %v797
  %v3223 = vunpack.c.h.b16 %v797
  %v3224 = vunpack.c.l.b16 %v798
  %v3225 = vunpack.c.h.b16 %v798
  %v3226 = vunpack.c.l.b16 %v799
  %v3227 = vunpack.c.h.b16 %v799
  %v3228 = vunpack.c.l.b16 %v800
  %v3229 = vunpack.c.h.b16 %v800
  %v3230 = vunpack.c.l.b16 %v801
  %v3231 = vunpack.c.h.b16 %v801
  %v3232 = vunpack.c.l.b16 %v802
  %v3233 = vunpack.c.h.b16 %v802
  %v3234 = vunpack.c.l.b16 %v803
  %v3235 = vunpack.c.h.b16 %v803
  %v3236 = vunpack.c.l.b16 %v804
  %v3237 = vunpack.c.h.b16 %v804
  %v3238 = vpack.c.b16 %v1710, %v1702
  %v3239 = vpack.c.b16 %v1711, %v1703
  %v3240 = vpack.c.b16 %v1712, %v1704
  %v3241 = vpack.c.b16 %v1713, %v1705
  %v3242 = vpack.c.b16 %v1714, %v1706
  %v3243 = vpack.c.b16 %v1715, %v1707
  %v3244 = vpack.c.b16 %v1716, %v1708
  %v3245 = vpack.c.b16 %v1717, %v1709
  %v3246 = vpack.c.b16 %v1726, %v1718
  %v3247 = vpack.c.b16 %v1727, %v1719
  %v3248 = vpack.c.b16 %v1728, %v1720
  %v3249 = vpack.c.b16 %v1729, %v1721
  %v3250 = vpack.c.b16 %v1730, %v1722
  %v3251 = vpack.c.b16 %v1731, %v1723
  %v3252 = vpack.c.b16 %v1732, %v1724
  %v3253 = vpack.c.b16 %v1733, %v1725
  %v3254 = vpack.c.b16 %v1742, %v1734
  %v3255 = vpack.c.b16 %v1743, %v1735
  %v3256 = vpack.c.b16 %v1744, %v1736
  %v3257 = vpack.c.b16 %v1745, %v1737
  %v3258 = vpack.c.b16 %v1746, %v1738
  %v3259 = vpack.c.b16 %v1747, %v1739
  %v3260 = vpack.c.b16 %v1748, %v1740
  %v3261 = vpack.c.b16 %v1749, %v1741
  %v3262 = vpack.c.b16 %v1758, %v1750
  %v3263 = vpack.c.b16 %v1759, %v1751
  %v3264 = vpack.c.b16 %v1760, %v1752
  %v3265 = vpack.c.b16 %v1761, %v1753
  %v3266 = vpack.c.b16 %v1762, %v1754
  %v3267 = vpack.c.b16 %v1763, %v1755
  %v3268 = vpack.c.b16 %v1764, %v1756
  %v3269 = vpack.c.b16 %v1765, %v1757
  %v3270 = vpack.c.b16 %v1774, %v1766
  %v3271 = vpack.c.b16 %v1775, %v1767
  %v3272 = vpack.c.b16 %v1776, %v1768
  %v3273 = vpack.c.b16 %v1777, %v1769
  %v3274 = vpack.c.b16 %v1778, %v1770
  %v3275 = vpack.c.b16 %v1779, %v1771
  %v3276 = vpack.c.b16 %v1780, %v1772
  %v3277 = vpack.c.b16 %v1781, %v1773
  %v3278 = vpack.c.b16 %v1790, %v1782
  %v3279 = vpack.c.b16 %v1791, %v1783
  %v3280 = vpack.c.b16 %v1792, %v1784
  %v3281 = vpack.c.b16 %v1793, %v1785
  %v3282 = vpack.c.b16 %v1794, %v1786
  %v3283 = vpack.c.b16 %v1795, %v1787
  %v3284 = vpack.c.b16 %v1796, %v1788
  %v3285 = vpack.c.b16 %v1797, %v1789
  %v3286 = vpack.c.b16 %v1806, %v1798
  %v3287 = vpack.c.b16 %v1807, %v1799
  %v3288 = vpack.c.b16 %v1808, %v1800
  %v3289 = vpack.c.b16 %v1809, %v1801
  %v3290 = vpack.c.b16 %v1810, %v1802
  %v3291 = vpack.c.b16 %v1811, %v1803
  %v3292 = vpack.c.b16 %v1812, %v1804
  %v3293 = vpack.c.b16 %v1813, %v1805
  %v3294 = vpack.c.b16 %v1822, %v1814
  %v3295 = vpack.c.b16 %v1823, %v1815
  %v3296 = vpack.c.b16 %v1824, %v1816
  %v3297 = vpack.c.b16 %v1825, %v1817
  %v3298 = vpack.c.b16 %v1826, %v1818
  %v3299 = vpack.c.b16 %v1827, %v1819
  %v3300 = vpack.c.b16 %v1828, %v1820
  %v3301 = vpack.c.b16 %v1829, %v1821
  %v3302 = vpack.c.b16 %v1838, %v1830
  %v3303 = vpack.c.b16 %v1839, %v1831
  %v3304 = vpack.c.b16 %v1840, %v1832
  %v3305 = vpack.c.b16 %v1841, %v1833
  %v3306 = vpack.c.b16 %v1842, %v1834
  %v3307 = vpack.c.b16 %v1843, %v1835
  %v3308 = vpack.c.b16 %v1844, %v1836
  %v3309 = vpack.c.b16 %v1845, %v1837
  %v3310 = vpack.c.b16 %v1854, %v1846
  %v3311 = vpack.c.b16 %v1855, %v1847
  %v3312 = vpack.c.b16 %v1856, %v1848
  %v3313 = vpack.c.b16 %v1857, %v1849
  %v3314 = vpack.c.b16 %v1858, %v1850
  %v3315 = vpack.c.b16 %v1859, %v1851
  %v3316 = vpack.c.b16 %v1860, %v1852
  %v3317 = vpack.c.b16 %v1861, %v1853
  %v3318 = vpack.c.b16 %v1870, %v1862
  %v3319 = vpack.c.b16 %v1871, %v1863
  %v3320 = vpack.c.b16 %v1872, %v1864
  %v3321 = vpack.c.b16 %v1873, %v1865
  %v3322 = vpack.c.b16 %v1874, %v1866
  %v3323 = vpack.c.b16 %v1875, %v1867
  %v3324 = vpack.c.b16 %v1876, %v1868
  %v3325 = vpack.c.b16 %v1877, %v1869
  %v3326 = vpack.c.b16 %v1886, %v1878
  %v3327 = vpack.c.b16 %v1887, %v1879
  %v3328 = vpack.c.b16 %v1888, %v1880
  %v3329 = vpack.c.b16 %v1889, %v1881
  %v3330 = vpack.c.b16 %v1890, %v1882
  %v3331 = vpack.c.b16 %v1891, %v1883
  %v3332 = vpack.c.b16 %v1892, %v1884
  %v3333 = vpack.c.b16 %v1893, %v1885
  %v3334 = vpack.c.b16 %v1902, %v1894
  %v3335 = vpack.c.b16 %v1903, %v1895
  %v3336 = vpack.c.b16 %v1904, %v1896
  %v3337 = vpack.c.b16 %v1905, %v1897
  %v3338 = vpack.c.b16 %v1906, %v1898
  %v3339 = vpack.c.b16 %v1907, %v1899
  %v3340 = vpack.c.b16 %v1908, %v1900
  %v3341 = vpack.c.b16 %v1909, %v1901
  %v3342 = vpack.c.b16 %v1918, %v1910
  %v3343 = vpack.c.b16 %v1919, %v1911
  %v3344 = vpack.c.b16 %v1920, %v1912
  %v3345 = vpack.c.b16 %v1921, %v1913
  %v3346 = vpack.c.b16 %v1922, %v1914
  %v3347 = vpack.c.b16 %v1923, %v1915
  %v3348 = vpack.c.b16 %v1924, %v1916
  %v3349 = vpack.c.b16 %v1925, %v1917
  %v3350 = vpack.c.b16 %v1934, %v1926
  %v3351 = vpack.c.b16 %v1935, %v1927
  %v3352 = vpack.c.b16 %v1936, %v1928
  %v3353 = vpack.c.b16 %v1937, %v1929
  %v3354 = vpack.c.b16 %v1938, %v1930
  %v3355 = vpack.c.b16 %v1939, %v1931
  %v3356 = vpack.c.b16 %v1940, %v1932
  %v3357 = vpack.c.b16 %v1941, %v1933
  %v3358 = vpack.c.b16 %v1950, %v1942
  %v3359 = vpack.c.b16 %v1951, %v1943
  %v3360 = vpack.c.b16 %v1952, %v1944
  %v3361 = vpack.c.b16 %v1953, %v1945
  %v3362 = vpack.c.b16 %v1954, %v1946
  %v3363 = vpack.c.b16 %v1955, %v1947
  %v3364 = vpack.c.b16 %v1956, %v1948
  %v3365 = vpack.c.b16 %v1957, %v1949
  %v3366 = vpack.c.b16 %v1966, %v1958
  %v3367 = vpack.c.b16 %v1967, %v1959
  %v3368 = vpack.c.b16 %v1968, %v1960
  %v3369 = vpack.c.b16 %v1969, %v1961
  %v3370 = vpack.c.b16 %v1970, %v1962
  %v3371 = vpack.c.b16 %v1971, %v1963
  %v3372 = vpack.c.b16 %v1972, %v1964
  %v3373 = vpack.c.b16 %v1973, %v1965
  %v3374 = vpack.c.b16 %v1982, %v1974
  %v3375 = vpack.c.b16 %v1983, %v1975
  %v3376 = vpack.c.b16 %v1984, %v1976
  %v3377 = vpack.c.b16 %v1985, %v1977
  %v3378 = vpack.c.b16 %v1986, %v1978
  %v3379 = vpack.c.b16 %v1987, %v1979
  %v3380 = vpack.c.b16 %v1988, %v1980
  %v3381 = vpack.c.b16 %v1989, %v1981
  %v3382 = vpack.c.b16 %v1998, %v1990
  %v3383 = vpack.c.b16 %v1999, %v1991
  %v3384 = vpack.c.b16 %v2000, %v1992
  %v3385 = vpack.c.b16 %v2001, %v1993
  %v3386 = vpack.c.b16 %v2002, %v1994
  %v3387 = vpack.c.b16 %v2003, %v1995
  %v3388 = vpack.c.b16 %v2004, %v1996
  %v3389 = vpack.c.b16 %v2005, %v1997
  %v3390 = vpack.c.b16 %v2014, %v2006
  %v3391 = vpack.c.b16 %v2015, %v2007
  %v3392 = vpack.c.b16 %v2016, %v2008
  %v3393 = vpack.c.b16 %v2017, %v2009
  %v3394 = vpack.c.b16 %v2018, %v2010
  %v3395 = vpack.c.b16 %v2019, %v2011
  %v3396 = vpack.c.b16 %v2020, %v2012
  %v3397 = vpack.c.b16 %v2021, %v2013
  %v3398 = vpack.c.b16 %v2030, %v2022
  %v3399 = vpack.c.b16 %v2031, %v2023
  %v3400 = vpack.c.b16 %v2032, %v2024
  %v3401 = vpack.c.b16 %v2033, %v2025
  %v3402 = vpack.c.b16 %v2034, %v2026
  %v3403 = vpack.c.b16 %v2035, %v2027
  %v3404 = vpack.c.b16 %v2036, %v2028
  %v3405 = vpack.c.b16 %v2037, %v2029
  %v3406 = vpack.c.b16 %v2046, %v2038
  %v3407 = vpack.c.b16 %v2047, %v2039
  %v3408 = vpack.c.b16 %v2048, %v2040
  %v3409 = vpack.c.b16 %v2049, %v2041
  %v3410 = vpack.c.b16 %v2050, %v2042
  %v3411 = vpack.c.b16 %v2051, %v2043
  %v3412 = vpack.c.b16 %v2052, %v2044
  %v3413 = vpack.c.b16 %v2053, %v2045
  %v3414 = vpack.c.b16 %v2062, %v2054
  %v3415 = vpack.c.b16 %v2063, %v2055
  %v3416 = vpack.c.b16 %v2064, %v2056
  %v3417 = vpack.c.b16 %v2065, %v2057
  %v3418 = vpack.c.b16 %v2066, %v2058
  %v3419 = vpack.c.b16 %v2067, %v2059
  %v3420 = vpack.c.b16 %v2068, %v2060
  %v3421 = vpack.c.b16 %v2069, %v2061
  %v3422 = vpack.c.b16 %v2078, %v2070
  %v3423 = vpack.c.b16 %v2079, %v2071
  %v3424 = vpack.c.b16 %v2080, %v2072
  %v3425 = vpack.c.b16 %v2081, %v2073
  %v3426 = vpack.c.b16 %v2082, %v2074
  %v3427 = vpack.c.b16 %v2083, %v2075
  %v3428 = vpack.c.b16 %v2084, %v2076
  %v3429 = vpack.c.b16 %v2085, %v2077
  %v3430 = vpack.c.b16 %v2094, %v2086
  %v3431 = vpack.c.b16 %v2095, %v2087
  %v3432 = vpack.c.b16 %v2096, %v2088
  %v3433 = vpack.c.b16 %v2097, %v2089
  %v3434 = vpack.c.b16 %v2098, %v2090
  %v3435 = vpack.c.b16 %v2099, %v2091
  %v3436 = vpack.c.b16 %v2100, %v2092
  %v3437 = vpack.c.b16 %v2101, %v2093
  %v3438 = vpack.c.b16 %v2110, %v2102
  %v3439 = vpack.c.b16 %v2111, %v2103
  %v3440 = vpack.c.b16 %v2112, %v2104
  %v3441 = vpack.c.b16 %v2113, %v2105
  %v3442 = vpack.c.b16 %v2114, %v2106
  %v3443 = vpack.c.b16 %v2115, %v2107
  %v3444 = vpack.c.b16 %v2116, %v2108
  %v3445 = vpack.c.b16 %v2117, %v2109
  %v3446 = vpack.c.b16 %v2126, %v2118
  %v3447 = vpack.c.b16 %v2127, %v2119
  %v3448 = vpack.c.b16 %v2128, %v2120
  %v3449 = vpack.c.b16 %v2129, %v2121
  %v3450 = vpack.c.b16 %v2130, %v2122
  %v3451 = vpack.c.b16 %v2131, %v2123
  %v3452 = vpack.c.b16 %v2132, %v2124
  %v3453 = vpack.c.b16 %v2133, %v2125
  %v3454 = vpack.c.b16 %v2142, %v2134
  %v3455 = vpack.c.b16 %v2143, %v2135
  %v3456 = vpack.c.b16 %v2144, %v2136
  %v3457 = vpack.c.b16 %v2145, %v2137
  %v3458 = vpack.c.b16 %v2146, %v2138
  %v3459 = vpack.c.b16 %v2147, %v2139
  %v3460 = vpack.c.b16 %v2148, %v2140
  %v3461 = vpack.c.b16 %v2149, %v2141
  %v3462 = vpack.c.b16 %v2158, %v2150
  %v3463 = vpack.c.b16 %v2159, %v2151
  %v3464 = vpack.c.b16 %v2160, %v2152
  %v3465 = vpack.c.b16 %v2161, %v2153
  %v3466 = vpack.c.b16 %v2162, %v2154
  %v3467 = vpack.c.b16 %v2163, %v2155
  %v3468 = vpack.c.b16 %v2164, %v2156
  %v3469 = vpack.c.b16 %v2165, %v2157
  %v3470 = vpack.c.b16 %v2174, %v2166
  %v3471 = vpack.c.b16 %v2175, %v2167
  %v3472 = vpack.c.b16 %v2176, %v2168
  %v3473 = vpack.c.b16 %v2177, %v2169
  %v3474 = vpack.c.b16 %v2178, %v2170
  %v3475 = vpack.c.b16 %v2179, %v2171
  %v3476 = vpack.c.b16 %v2180, %v2172
  %v3477 = vpack.c.b16 %v2181, %v2173
  %v3478 = vpack.c.b16 %v2190, %v2182
  %v3479 = vpack.c.b16 %v2191, %v2183
  %v3480 = vpack.c.b16 %v2192, %v2184
  %v3481 = vpack.c.b16 %v2193, %v2185
  %v3482 = vpack.c.b16 %v2194, %v2186
  %v3483 = vpack.c.b16 %v2195, %v2187
  %v3484 = vpack.c.b16 %v2196, %v2188
  %v3485 = vpack.c.b16 %v2197, %v2189
  %v3486 = vpack.c.b16 %v2206, %v2198
  %v3487 = vpack.c.b16 %v2207, %v2199
  %v3488 = vpack.c.b16 %v2208, %v2200
  %v3489 = vpack.c.b16 %v2209, %v2201
  %v3490 = vpack.c.b16 %v2210, %v2202
  %v3491 = vpack.c.b16 %v2211, %v2203
  %v3492 = vpack.c.b16 %v2212, %v2204
  %v3493 = vpack.c.b16 %v2213, %v2205
  %v3494 = vpack.c.b16 %v2222, %v2214
  %v3495 = vpack.c.b16 %v2223, %v2215
  %v3496 = vpack.c.b16 %v2224, %v2216
  %v3497 = vpack.c.b16 %v2225, %v2217
  %v3498 = vpack.c.b16 %v2226, %v2218
  %v3499 = vpack.c.b16 %v2227, %v2219
  %v3500 = vpack.c.b16 %v2228, %v2220
  %v3501 = vpack.c.b16 %v2229, %v2221
  %v3502 = vpack.c.b16 %v2238, %v2230
  %v3503 = vpack.c.b16 %v2239, %v2231
  %v3504 = vpack.c.b16 %v2240, %v2232
  %v3505 = vpack.c.b16 %v2241, %v2233
  %v3506 = vpack.c.b16 %v2242, %v2234
  %v3507 = vpack.c.b16 %v2243, %v2235
  %v3508 = vpack.c.b16 %v2244, %v2236
  %v3509 = vpack.c.b16 %v2245, %v2237
  %v3510 = vpack.c.b16 %v2254, %v2246
  %v3511 = vpack.c.b16 %v2255, %v2247
  %v3512 = vpack.c.b16 %v2256, %v2248
  %v3513 = vpack.c.b16 %v2257, %v2249
  %v3514 = vpack.c.b16 %v2258, %v2250
  %v3515 = vpack.c.b16 %v2259, %v2251
  %v3516 = vpack.c.b16 %v2260, %v2252
  %v3517 = vpack.c.b16 %v2261, %v2253
  %v3518 = vpack.c.b16 %v2270, %v2262
  %v3519 = vpack.c.b16 %v2271, %v2263
  %v3520 = vpack.c.b16 %v2272, %v2264
  %v3521 = vpack.c.b16 %v2273, %v2265
  %v3522 = vpack.c.b16 %v2274, %v2266
  %v3523 = vpack.c.b16 %v2275, %v2267
  %v3524 = vpack.c.b16 %v2276, %v2268
  %v3525 = vpack.c.b16 %v2277, %v2269
  %v3526 = vpack.c.b16 %v2286, %v2278
  %v3527 = vpack.c.b16 %v2287, %v2279
  %v3528 = vpack.c.b16 %v2288, %v2280
  %v3529 = vpack.c.b16 %v2289, %v2281
  %v3530 = vpack.c.b16 %v2290, %v2282
  %v3531 = vpack.c.b16 %v2291, %v2283
  %v3532 = vpack.c.b16 %v2292, %v2284
  %v3533 = vpack.c.b16 %v2293, %v2285
  %v3534 = vpack.c.b16 %v2302, %v2294
  %v3535 = vpack.c.b16 %v2303, %v2295
  %v3536 = vpack.c.b16 %v2304, %v2296
  %v3537 = vpack.c.b16 %v2305, %v2297
  %v3538 = vpack.c.b16 %v2306, %v2298
  %v3539 = vpack.c.b16 %v2307, %v2299
  %v3540 = vpack.c.b16 %v2308, %v2300
  %v3541 = vpack.c.b16 %v2309, %v2301
  %v3542 = vpack.c.b16 %v2318, %v2310
  %v3543 = vpack.c.b16 %v2319, %v2311
  %v3544 = vpack.c.b16 %v2320, %v2312
  %v3545 = vpack.c.b16 %v2321, %v2313
  %v3546 = vpack.c.b16 %v2322, %v2314
  %v3547 = vpack.c.b16 %v2323, %v2315
  %v3548 = vpack.c.b16 %v2324, %v2316
  %v3549 = vpack.c.b16 %v2325, %v2317
  %v3550 = vpack.c.b16 %v2334, %v2326
  %v3551 = vpack.c.b16 %v2335, %v2327
  %v3552 = vpack.c.b16 %v2336, %v2328
  %v3553 = vpack.c.b16 %v2337, %v2329
  %v3554 = vpack.c.b16 %v2338, %v2330
  %v3555 = vpack.c.b16 %v2339, %v2331
  %v3556 = vpack.c.b16 %v2340, %v2332
  %v3557 = vpack.c.b16 %v2341, %v2333
  %v3558 = vpack.c.b16 %v2350, %v2342
  %v3559 = vpack.c.b16 %v2351, %v2343
  %v3560 = vpack.c.b16 %v2352, %v2344
  %v3561 = vpack.c.b16 %v2353, %v2345
  %v3562 = vpack.c.b16 %v2354, %v2346
  %v3563 = vpack.c.b16 %v2355, %v2347
  %v3564 = vpack.c.b16 %v2356, %v2348
  %v3565 = vpack.c.b16 %v2357, %v2349
  %v3566 = vpack.c.b16 %v2366, %v2358
  %v3567 = vpack.c.b16 %v2367, %v2359
  %v3568 = vpack.c.b16 %v2368, %v2360
  %v3569 = vpack.c.b16 %v2369, %v2361
  %v3570 = vpack.c.b16 %v2370, %v2362
  %v3571 = vpack.c.b16 %v2371, %v2363
  %v3572 = vpack.c.b16 %v2372, %v2364
  %v3573 = vpack.c.b16 %v2373, %v2365
  %v3574 = vpack.c.b16 %v2382, %v2374
  %v3575 = vpack.c.b16 %v2383, %v2375
  %v3576 = vpack.c.b16 %v2384, %v2376
  %v3577 = vpack.c.b16 %v2385, %v2377
  %v3578 = vpack.c.b16 %v2386, %v2378
  %v3579 = vpack.c.b16 %v2387, %v2379
  %v3580 = vpack.c.b16 %v2388, %v2380
  %v3581 = vpack.c.b16 %v2389, %v2381
  %v3582 = vpack.c.b16 %v2398, %v2390
  %v3583 = vpack.c.b16 %v2399, %v2391
  %v3584 = vpack.c.b16 %v2400, %v2392
  %v3585 = vpack.c.b16 %v2401, %v2393
  %v3586 = vpack.c.b16 %v2402, %v2394
  %v3587 = vpack.c.b16 %v2403, %v2395
  %v3588 = vpack.c.b16 %v2404, %v2396
  %v3589 = vpack.c.b16 %v2405, %v2397
  %v3590 = vpack.c.b16 %v2414, %v2406
  %v3591 = vpack.c.b16 %v2415, %v2407
  %v3592 = vpack.c.b16 %v2416, %v2408
  %v3593 = vpack.c.b16 %v2417, %v2409
  %v3594 = vpack.c.b16 %v2418, %v2410
  %v3595 = vpack.c.b16 %v2419, %v2411
  %v3596 = vpack.c.b16 %v2420, %v2412
  %v3597 = vpack.c.b16 %v2421, %v2413
  %v3598 = vpack.c.b16 %v2430, %v2422
  %v3599 = vpack.c.b16 %v2431, %v2423
  %v3600 = vpack.c.b16 %v2432, %v2424
  %v3601 = vpack.c.b16 %v2433, %v2425
  %v3602 = vpack.c.b16 %v2434, %v2426
  %v3603 = vpack.c.b16 %v2435, %v2427
  %v3604 = vpack.c.b16 %v2436, %v2428
  %v3605 = vpack.c.b16 %v2437, %v2429
  %v3606 = vpack.c.b16 %v2446, %v2438
  %v3607 = vpack.c.b16 %v2447, %v2439
  %v3608 = vpack.c.b16 %v2448, %v2440
  %v3609 = vpack.c.b16 %v2449, %v2441
  %v3610 = vpack.c.b16 %v2450, %v2442
  %v3611 = vpack.c.b16 %v2451, %v2443
  %v3612 = vpack.c.b16 %v2452, %v2444
  %v3613 = vpack.c.b16 %v2453, %v2445
  %v3614 = vpack.c.b16 %v2462, %v2454
  %v3615 = vpack.c.b16 %v2463, %v2455
  %v3616 = vpack.c.b16 %v2464, %v2456
  %v3617 = vpack.c.b16 %v2465, %v2457
  %v3618 = vpack.c.b16 %v2466, %v2458
  %v3619 = vpack.c.b16 %v2467, %v2459
  %v3620 = vpack.c.b16 %v2468, %v2460
  %v3621 = vpack.c.b16 %v2469, %v2461
  %v3622 = vpack.c.b16 %v2478, %v2470
  %v3623 = vpack.c.b16 %v2479, %v2471
  %v3624 = vpack.c.b16 %v2480, %v2472
  %v3625 = vpack.c.b16 %v2481, %v2473
  %v3626 = vpack.c.b16 %v2482, %v2474
  %v3627 = vpack.c.b16 %v2483, %v2475
  %v3628 = vpack.c.b16 %v2484, %v2476
  %v3629 = vpack.c.b16 %v2485, %v2477
  %v3630 = vpack.c.b16 %v2494, %v2486
  %v3631 = vpack.c.b16 %v2495, %v2487
  %v3632 = vpack.c.b16 %v2496, %v2488
  %v3633 = vpack.c.b16 %v2497, %v2489
  %v3634 = vpack.c.b16 %v2498, %v2490
  %v3635 = vpack.c.b16 %v2499, %v2491
  %v3636 = vpack.c.b16 %v2500, %v2492
  %v3637 = vpack.c.b16 %v2501, %v2493
  %v3638 = vpack.c.b16 %v2510, %v2502
  %v3639 = vpack.c.b16 %v2511, %v2503
  %v3640 = vpack.c.b16 %v2512, %v2504
  %v3641 = vpack.c.b16 %v2513, %v2505
  %v3642 = vpack.c.b16 %v2514, %v2506
  %v3643 = vpack.c.b16 %v2515, %v2507
  %v3644 = vpack.c.b16 %v2516, %v2508
  %v3645 = vpack.c.b16 %v2517, %v2509
  %v3646 = vpack.c.b16 %v2526, %v2518
  %v3647 = vpack.c.b16 %v2527, %v2519
  %v3648 = vpack.c.b16 %v2528, %v2520
  %v3649 = vpack.c.b16 %v2529, %v2521
  %v3650 = vpack.c.b16 %v2530, %v2522
  %v3651 = vpack.c.b16 %v2531, %v2523
  %v3652 = vpack.c.b16 %v2532, %v2524
  %v3653 = vpack.c.b16 %v2533, %v2525
  %v3654 = vpack.c.b16 %v2542, %v2534
  %v3655 = vpack.c.b16 %v2543, %v2535
  %v3656 = vpack.c.b16 %v2544, %v2536
  %v3657 = vpack.c.b16 %v2545, %v2537
  %v3658 = vpack.c.b16 %v2546, %v2538
  %v3659 = vpack.c.b16 %v2547, %v2539
  %v3660 = vpack.c.b16 %v2548, %v2540
  %v3661 = vpack.c.b16 %v2549, %v2541
  %v3662 = vpack.c.b16 %v2558, %v2550
  %v3663 = vpack.c.b16 %v2559, %v2551
  %v3664 = vpack.c.b16 %v2560, %v2552
  %v3665 = vpack.c.b16 %v2561, %v2553
  %v3666 = vpack.c.b16 %v2562, %v2554
  %v3667 = vpack.c.b16 %v2563, %v2555
  %v3668 = vpack.c.b16 %v2564, %v2556
  %v3669 = vpack.c.b16 %v2565, %v2557
  %v3670 = vpack.c.b16 %v2574, %v2566
  %v3671 = vpack.c.b16 %v2575, %v2567
  %v3672 = vpack.c.b16 %v2576, %v2568
  %v3673 = vpack.c.b16 %v2577, %v2569
  %v3674 = vpack.c.b16 %v2578, %v2570
  %v3675 = vpack.c.b16 %v2579, %v2571
  %v3676 = vpack.c.b16 %v2580, %v2572
  %v3677 = vpack.c.b16 %v2581, %v2573
  %v3678 = vpack.c.b16 %v2590, %v2582
  %v3679 = vpack.c.b16 %v2591, %v2583
  %v3680 = vpack.c.b16 %v2592, %v2584
  %v3681 = vpack.c.b16 %v2593, %v2585
  %v3682 = vpack.c.b16 %v2594, %v2586
  %v3683 = vpack.c.b16 %v2595, %v2587
  %v3684 = vpack.c.b16 %v2596, %v2588
  %v3685 = vpack.c.b16 %v2597, %v2589
  %v3686 = vpack.c.b16 %v2606, %v2598
  %v3687 = vpack.c.b16 %v2607, %v2599
  %v3688 = vpack.c.b16 %v2608, %v2600
  %v3689 = vpack.c.b16 %v2609, %v2601
  %v3690 = vpack.c.b16 %v2610, %v2602
  %v3691 = vpack.c.b16 %v2611, %v2603
  %v3692 = vpack.c.b16 %v2612, %v2604
  %v3693 = vpack.c.b16 %v2613, %v2605
  %v3694 = vpack.c.b16 %v2622, %v2614
  %v3695 = vpack.c.b16 %v2623, %v2615
  %v3696 = vpack.c.b16 %v2624, %v2616
  %v3697 = vpack.c.b16 %v2625, %v2617
  %v3698 = vpack.c.b16 %v2626, %v2618
  %v3699 = vpack.c.b16 %v2627, %v2619
  %v3700 = vpack.c.b16 %v2628, %v2620
  %v3701 = vpack.c.b16 %v2629, %v2621
  %v3702 = vpack.c.b16 %v2638, %v2630
  %v3703 = vpack.c.b16 %v2639, %v2631
  %v3704 = vpack.c.b16 %v2640, %v2632
  %v3705 = vpack.c.b16 %v2641, %v2633
  %v3706 = vpack.c.b16 %v2642, %v2634
  %v3707 = vpack.c.b16 %v2643, %v2635
  %v3708 = vpack.c.b16 %v2644, %v2636
  %v3709 = vpack.c.b16 %v2645, %v2637
  %v3710 = vpack.c.b16 %v2654, %v2646
  %v3711 = vpack.c.b16 %v2655, %v2647
  %v3712 = vpack.c.b16 %v2656, %v2648
  %v3713 = vpack.c.b16 %v2657, %v2649
  %v3714 = vpack.c.b16 %v2658, %v2650
  %v3715 = vpack.c.b16 %v2659, %v2651
  %v3716 = vpack.c.b16 %v2660, %v2652
  %v3717 = vpack.c.b16 %v2661, %v2653
  %v3718 = vpack.c.b16 %v2670, %v2662
  %v3719 = vpack.c.b16 %v2671, %v2663
  %v3720 = vpack.c.b16 %v2672, %v2664
  %v3721 = vpack.c.b16 %v2673, %v2665
  %v3722 = vpack.c.b16 %v2674, %v2666
  %v3723 = vpack.c.b16 %v2675, %v2667
  %v3724 = vpack.c.b16 %v2676, %v2668
  %v3725 = vpack.c.b16 %v2677, %v2669
  %v3726 = vpack.c.b16 %v2686, %v2678
  %v3727 = vpack.c.b16 %v2687, %v2679
  %v3728 = vpack.c.b16 %v2688, %v2680
  %v3729 = vpack.c.b16 %v2689, %v2681
  %v3730 = vpack.c.b16 %v2690, %v2682
  %v3731 = vpack.c.b16 %v2691, %v2683
  %v3732 = vpack.c.b16 %v2692, %v2684
  %v3733 = vpack.c.b16 %v2693, %v2685
  %v3734 = vpack.c.b16 %v2702, %v2694
  %v3735 = vpack.c.b16 %v2703, %v2695
  %v3736 = vpack.c.b16 %v2704, %v2696
  %v3737 = vpack.c.b16 %v2705, %v2697
  %v3738 = vpack.c.b16 %v2706, %v2698
  %v3739 = vpack.c.b16 %v2707, %v2699
  %v3740 = vpack.c.b16 %v2708, %v2700
  %v3741 = vpack.c.b16 %v2709, %v2701
  %v3742 = vpack.c.b16 %v2718, %v2710
  %v3743 = vpack.c.b16 %v2719, %v2711
  %v3744 = vpack.c.b16 %v2720, %v2712
  %v3745 = vpack.c.b16 %v2721, %v2713
  %v3746 = vpack.c.b16 %v2722, %v2714
  %v3747 = vpack.c.b16 %v2723, %v2715
  %v3748 = vpack.c.b16 %v2724, %v2716
  %v3749 = vpack.c.b16 %v2725, %v2717
  %v3750 = vpack.c.b16 %v2734, %v2726
  %v3751 = vpack.c.b16 %v2735, %v2727
  %v3752 = vpack.c.b16 %v2736, %v2728
  %v3753 = vpack.c.b16 %v2737, %v2729
  %v3754 = vpack.c.b16 %v2738, %v2730
  %v3755 = vpack.c.b16 %v2739, %v2731
  %v3756 = vpack.c.b16 %v2740, %v2732
  %v3757 = vpack.c.b16 %v2741, %v2733
  %v3758 = vpack.c.b16 %v2750, %v2742
  %v3759 = vpack.c.b16 %v2751, %v2743
  %v3760 = vpack.c.b16 %v2752, %v2744
  %v3761 = vpack.c.b16 %v2753, %v2745
  %v3762 = vpack.c.b16 %v2754, %v2746
  %v3763 = vpack.c.b16 %v2755, %v2747
  %v3764 = vpack.c.b16 %v2756, %v2748
  %v3765 = vpack.c.b16 %v2757, %v2749
  %v3766 = vpack.c.b16 %v2766, %v2758
  %v3767 = vpack.c.b16 %v2767, %v2759
  %v3768 = vpack.c.b16 %v2768, %v2760
  %v3769 = vpack.c.b16 %v2769, %v2761
  %v3770 = vpack.c.b16 %v2770, %v2762
  %v3771 = vpack.c.b16 %v2771, %v2763
  %v3772 = vpack.c.b16 %v2772, %v2764
  %v3773 = vpack.c.b16 %v2773, %v2765
  %v3774 = vpack.c.b16 %v2782, %v2774
  %v3775 = vpack.c.b16 %v2783, %v2775
  %v3776 = vpack.c.b16 %v2784, %v2776
  %v3777 = vpack.c.b16 %v2785, %v2777
  %v3778 = vpack.c.b16 %v2786, %v2778
  %v3779 = vpack.c.b16 %v2787, %v2779
  %v3780 = vpack.c.b16 %v2788, %v2780
  %v3781 = vpack.c.b16 %v2789, %v2781
  %v3782 = vpack.c.b16 %v2798, %v2790
  %v3783 = vpack.c.b16 %v2799, %v2791
  %v3784 = vpack.c.b16 %v2800, %v2792
  %v3785 = vpack.c.b16 %v2801, %v2793
  %v3786 = vpack.c.b16 %v2802, %v2794
  %v3787 = vpack.c.b16 %v2803, %v2795
  %v3788 = vpack.c.b16 %v2804, %v2796
  %v3789 = vpack.c.b16 %v2805, %v2797
  %v3790 = vpack.c.b16 %v2814, %v2806
  %v3791 = vpack.c.b16 %v2815, %v2807
  %v3792 = vpack.c.b16 %v2816, %v2808
  %v3793 = vpack.c.b16 %v2817, %v2809
  %v3794 = vpack.c.b16 %v2818, %v2810
  %v3795 = vpack.c.b16 %v2819, %v2811
  %v3796 = vpack.c.b16 %v2820, %v2812
  %v3797 = vpack.c.b16 %v2821, %v2813
  %v3798 = vpack.c.b16 %v2830, %v2822
  %v3799 = vpack.c.b16 %v2831, %v2823
  %v3800 = vpack.c.b16 %v2832, %v2824
  %v3801 = vpack.c.b16 %v2833, %v2825
  %v3802 = vpack.c.b16 %v2834, %v2826
  %v3803 = vpack.c.b16 %v2835, %v2827
  %v3804 = vpack.c.b16 %v2836, %v2828
  %v3805 = vpack.c.b16 %v2837, %v2829
  %v3806 = vpack.c.b16 %v2846, %v2838
  %v3807 = vpack.c.b16 %v2847, %v2839
  %v3808 = vpack.c.b16 %v2848, %v2840
  %v3809 = vpack.c.b16 %v2849, %v2841
  %v3810 = vpack.c.b16 %v2850, %v2842
  %v3811 = vpack.c.b16 %v2851, %v2843
  %v3812 = vpack.c.b16 %v2852, %v2844
  %v3813 = vpack.c.b16 %v2853, %v2845
  %v3814 = vpack.c.b16 %v2862, %v2854
  %v3815 = vpack.c.b16 %v2863, %v2855
  %v3816 = vpack.c.b16 %v2864, %v2856
  %v3817 = vpack.c.b16 %v2865, %v2857
  %v3818 = vpack.c.b16 %v2866, %v2858
  %v3819 = vpack.c.b16 %v2867, %v2859
  %v3820 = vpack.c.b16 %v2868, %v2860
  %v3821 = vpack.c.b16 %v2869, %v2861
  %v3822 = vpack.c.b16 %v2878, %v2870
  %v3823 = vpack.c.b16 %v2879, %v2871
  %v3824 = vpack.c.b16 %v2880, %v2872
  %v3825 = vpack.c.b16 %v2881, %v2873
  %v3826 = vpack.c.b16 %v2882, %v2874
  %v3827 = vpack.c.b16 %v2883, %v2875
  %v3828 = vpack.c.b16 %v2884, %v2876
  %v3829 = vpack.c.b16 %v2885, %v2877
  %v3830 = vpack.c.b16 %v2894, %v2886
  %v3831 = vpack.c.b16 %v2895, %v2887
  %v3832 = vpack.c.b16 %v2896, %v2888
  %v3833 = vpack.c.b16 %v2897, %v2889
  %v3834 = vpack.c.b16 %v2898, %v2890
  %v3835 = vpack.c.b16 %v2899, %v2891
  %v3836 = vpack.c.b16 %v2900, %v2892
  %v3837 = vpack.c.b16 %v2901, %v2893
  %v3838 = vpack.c.b16 %v2910, %v2902
  %v3839 = vpack.c.b16 %v2911, %v2903
  %v3840 = vpack.c.b16 %v2912, %v2904
  %v3841 = vpack.c.b16 %v2913, %v2905
  %v3842 = vpack.c.b16 %v2914, %v2906
  %v3843 = vpack.c.b16 %v2915, %v2907
  %v3844 = vpack.c.b16 %v2916, %v2908
  %v3845 = vpack.c.b16 %v2917, %v2909
  %v3846 = vpack.c.b16 %v2926, %v2918
  %v3847 = vpack.c.b16 %v2927, %v2919
  %v3848 = vpack.c.b16 %v2928, %v2920
  %v3849 = vpack.c.b16 %v2929, %v2921
  %v3850 = vpack.c.b16 %v2930, %v2922
  %v3851 = vpack.c.b16 %v2931, %v2923
  %v3852 = vpack.c.b16 %v2932, %v2924
  %v3853 = vpack.c.b16 %v2933, %v2925
  %v3854 = vpack.c.b16 %v2942, %v2934
  %v3855 = vpack.c.b16 %v2943, %v2935
  %v3856 = vpack.c.b16 %v2944, %v2936
  %v3857 = vpack.c.b16 %v2945, %v2937
  %v3858 = vpack.c.b16 %v2946, %v2938
  %v3859 = vpack.c.b16 %v2947, %v2939
  %v3860 = vpack.c.b16 %v2948, %v2940
  %v3861 = vpack.c.b16 %v2949, %v2941
  %v3862 = vpack.c.b16 %v2958, %v2950
  %v3863 = vpack.c.b16 %v2959, %v2951
  %v3864 = vpack.c.b16 %v2960, %v2952
  %v3865 = vpack.c.b16 %v2961, %v2953
  %v3866 = vpack.c.b16 %v2962, %v2954
  %v3867 = vpack.c.b16 %v2963, %v2955
  %v3868 = vpack.c.b16 %v2964, %v2956
  %v3869 = vpack.c.b16 %v2965, %v2957
  %v3870 = vpack.c.b16 %v2974, %v2966
  %v3871 = vpack.c.b16 %v2975, %v2967
  %v3872 = vpack.c.b16 %v2976, %v2968
  %v3873 = vpack.c.b16 %v2977, %v2969
  %v3874 = vpack.c.b16 %v2978, %v2970
  %v3875 = vpack.c.b16 %v2979, %v2971
  %v3876 = vpack.c.b16 %v2980, %v2972
  %v3877 = vpack.c.b16 %v2981, %v2973
  %v3878 = vpack.c.b16 %v2990, %v2982
  %v3879 = vpack.c.b16 %v2991, %v2983
  %v3880 = vpack.c.b16 %v2992, %v2984
  %v3881 = vpack.c.b16 %v2993, %v2985
  %v3882 = vpack.c.b16 %v2994, %v2986
  %v3883 = vpack.c.b16 %v2995, %v2987
  %v3884 = vpack.c.b16 %v2996, %v2988
  %v3885 = vpack.c.b16 %v2997, %v2989
  %v3886 = vpack.c.b16 %v3006, %v2998
  %v3887 = vpack.c.b16 %v3007, %v2999
  %v3888 = vpack.c.b16 %v3008, %v3000
  %v3889 = vpack.c.b16 %v3009, %v3001
  %v3890 = vpack.c.b16 %v3010, %v3002
  %v3891 = vpack.c.b16 %v3011, %v3003
  %v3892 = vpack.c.b16 %v3012, %v3004
  %v3893 = vpack.c.b16 %v3013, %v3005
  %v3894 = vpack.c.b16 %v3022, %v3014
  %v3895 = vpack.c.b16 %v3023, %v3015
  %v3896 = vpack.c.b16 %v3024, %v3016
  %v3897 = vpack.c.b16 %v3025, %v3017
  %v3898 = vpack.c.b16 %v3026, %v3018
  %v3899 = vpack.c.b16 %v3027, %v3019
  %v3900 = vpack.c.b16 %v3028, %v3020
  %v3901 = vpack.c.b16 %v3029, %v3021
  %v3902 = vpack.c.b16 %v3038, %v3030
  %v3903 = vpack.c.b16 %v3039, %v3031
  %v3904 = vpack.c.b16 %v3040, %v3032
  %v3905 = vpack.c.b16 %v3041, %v3033
  %v3906 = vpack.c.b16 %v3042, %v3034
  %v3907 = vpack.c.b16 %v3043, %v3035
  %v3908 = vpack.c.b16 %v3044, %v3036
  %v3909 = vpack.c.b16 %v3045, %v3037
  %v3910 = vpack.c.b16 %v3054, %v3046
  %v3911 = vpack.c.b16 %v3055, %v3047
  %v3912 = vpack.c.b16 %v3056, %v3048
  %v3913 = vpack.c.b16 %v3057, %v3049
  %v3914 = vpack.c.b16 %v3058, %v3050
  %v3915 = vpack.c.b16 %v3059, %v3051
  %v3916 = vpack.c.b16 %v3060, %v3052
  %v3917 = vpack.c.b16 %v3061, %v3053
  %v3918 = vpack.c.b16 %v3070, %v3062
  %v3919 = vpack.c.b16 %v3071, %v3063
  %v3920 = vpack.c.b16 %v3072, %v3064
  %v3921 = vpack.c.b16 %v3073, %v3065
  %v3922 = vpack.c.b16 %v3074, %v3066
  %v3923 = vpack.c.b16 %v3075, %v3067
  %v3924 = vpack.c.b16 %v3076, %v3068
  %v3925 = vpack.c.b16 %v3077, %v3069
  %v3926 = vpack.c.b16 %v3086, %v3078
  %v3927 = vpack.c.b16 %v3087, %v3079
  %v3928 = vpack.c.b16 %v3088, %v3080
  %v3929 = vpack.c.b16 %v3089, %v3081
  %v3930 = vpack.c.b16 %v3090, %v3082
  %v3931 = vpack.c.b16 %v3091, %v3083
  %v3932 = vpack.c.b16 %v3092, %v3084
  %v3933 = vpack.c.b16 %v3093, %v3085
  %v3934 = vpack.c.b16 %v3102, %v3094
  %v3935 = vpack.c.b16 %v3103, %v3095
  %v3936 = vpack.c.b16 %v3104, %v3096
  %v3937 = vpack.c.b16 %v3105, %v3097
  %v3938 = vpack.c.b16 %v3106, %v3098
  %v3939 = vpack.c.b16 %v3107, %v3099
  %v3940 = vpack.c.b16 %v3108, %v3100
  %v3941 = vpack.c.b16 %v3109, %v3101
  %v3942 = vpack.c.b16 %v3118, %v3110
  %v3943 = vpack.c.b16 %v3119, %v3111
  %v3944 = vpack.c.b16 %v3120, %v3112
  %v3945 = vpack.c.b16 %v3121, %v3113
  %v3946 = vpack.c.b16 %v3122, %v3114
  %v3947 = vpack.c.b16 %v3123, %v3115
  %v3948 = vpack.c.b16 %v3124, %v3116
  %v3949 = vpack.c.b16 %v3125, %v3117
  %v3950 = vpack.c.b16 %v3134, %v3126
  %v3951 = vpack.c.b16 %v3135, %v3127
  %v3952 = vpack.c.b16 %v3136, %v3128
  %v3953 = vpack.c.b16 %v3137, %v3129
  %v3954 = vpack.c.b16 %v3138, %v3130
  %v3955 = vpack.c.b16 %v3139, %v3131
  %v3956 = vpack.c.b16 %v3140, %v3132
  %v3957 = vpack.c.b16 %v3141, %v3133
  %v3958 = vpack.c.b16 %v3150, %v3142
  %v3959 = vpack.c.b16 %v3151, %v3143
  %v3960 = vpack.c.b16 %v3152, %v3144
  %v3961 = vpack.c.b16 %v3153, %v3145
  %v3962 = vpack.c.b16 %v3154, %v3146
  %v3963 = vpack.c.b16 %v3155, %v3147
  %v3964 = vpack.c.b16 %v3156, %v3148
  %v3965 = vpack.c.b16 %v3157, %v3149
  %v3966 = vpack.c.b16 %v3166, %v3158
  %v3967 = vpack.c.b16 %v3167, %v3159
  %v3968 = vpack.c.b16 %v3168, %v3160
  %v3969 = vpack.c.b16 %v3169, %v3161
  %v3970 = vpack.c.b16 %v3170, %v3162
  %v3971 = vpack.c.b16 %v3171, %v3163
  %v3972 = vpack.c.b16 %v3172, %v3164
  %v3973 = vpack.c.b16 %v3173, %v3165
  %v3974 = vpack.c.b16 %v3182, %v3174
  %v3975 = vpack.c.b16 %v3183, %v3175
  %v3976 = vpack.c.b16 %v3184, %v3176
  %v3977 = vpack.c.b16 %v3185, %v3177
  %v3978 = vpack.c.b16 %v3186, %v3178
  %v3979 = vpack.c.b16 %v3187, %v3179
  %v3980 = vpack.c.b16 %v3188, %v3180
  %v3981 = vpack.c.b16 %v3189, %v3181
  %v3982 = vpack.c.b16 %v3198, %v3190
  %v3983 = vpack.c.b16 %v3199, %v3191
  %v3984 = vpack.c.b16 %v3200, %v3192
  %v3985 = vpack.c.b16 %v3201, %v3193
  %v3986 = vpack.c.b16 %v3202, %v3194
  %v3987 = vpack.c.b16 %v3203, %v3195
  %v3988 = vpack.c.b16 %v3204, %v3196
  %v3989 = vpack.c.b16 %v3205, %v3197
  %v3990 = vpack.c.b16 %v3214, %v3206
  %v3991 = vpack.c.b16 %v3215, %v3207
  %v3992 = vpack.c.b16 %v3216, %v3208
  %v3993 = vpack.c.b16 %v3217, %v3209
  %v3994 = vpack.c.b16 %v3218, %v3210
  %v3995 = vpack.c.b16 %v3219, %v3211
  %v3996 = vpack.c.b16 %v3220, %v3212
  %v3997 = vpack.c.b16 %v3221, %v3213
  %v3998 = vpack.c.b16 %v3230, %v3222
  %v3999 = vpack.c.b16 %v3231, %v3223
  %v4000 = vpack.c.b16 %v3232, %v3224
  %v4001 = vpack.c.b16 %v3233, %v3225
  %v4002 = vpack.c.b16 %v3234, %v3226
  %v4003 = vpack.c.b16 %v3235, %v3227
  %v4004 = vpack.c.b16 %v3236, %v3228
  %v4005 = vpack.c.b16 %v3237, %v3229
  %4774 = vmatprep.subr.bf16.mxu0 %v3239
  %4775 = vmatpush1.bf16.msra.mxu0 %v3238
  %4776 = vmatprep.subr.bf16.mxu0 %v3247
  %4777 = vmatpush1.bf16.msra.mxu0 %v3246
  %4778 = vmatprep.subr.bf16.mxu0 %v3255
  %4779 = vmatpush1.bf16.msra.mxu0 %v3254
  %4780 = vmatprep.subr.bf16.mxu0 %v3263
  %4781 = vmatpush1.bf16.msra.mxu0 %v3262
  %4782 = vmatprep.subr.bf16.mxu0 %v3271
  %4783 = vmatpush1.bf16.msra.mxu0 %v3270
  %4784 = vmatprep.subr.bf16.mxu0 %v3279
  %4785 = vmatpush1.bf16.msra.mxu0 %v3278
  %4786 = vmatprep.subr.bf16.mxu0 %v3287
  %4787 = vmatpush1.bf16.msra.mxu0 %v3286
  %4788 = vmatprep.subr.bf16.mxu0 %v3295
  %4789 = vmatpush1.bf16.msra.mxu0 %v3294
  %4790 = vmatprep.subr.bf16.mxu0 %v3303
  %4791 = vmatpush1.bf16.msra.mxu0 %v3302
  %4792 = vmatprep.subr.bf16.mxu0 %v3311
  %4793 = vmatpush1.bf16.msra.mxu0 %v3310
  %4794 = vmatprep.subr.bf16.mxu0 %v3319
  %4795 = vmatpush1.bf16.msra.mxu0 %v3318
  %4796 = vmatprep.subr.bf16.mxu0 %v3327
  %4797 = vmatpush1.bf16.msra.mxu0 %v3326
  %4798 = vmatprep.subr.bf16.mxu0 %v3335
  %4799 = vmatpush1.bf16.msra.mxu0 %v3334
  %4800 = vmatprep.subr.bf16.mxu0 %v3343
  %4801 = vmatpush1.bf16.msra.mxu0 %v3342
  %4802 = vmatprep.subr.bf16.mxu0 %v3351
  %4803 = vmatpush1.bf16.msra.mxu0 %v3350
  %4804 = vmatprep.subr.bf16.mxu0 %v3359
  %4805 = vmatpush1.bf16.msra.mxu0 %v3358
  %4806 = vmatprep.mubr.bf16.mxu0 %v886
  %4807 = vmatmul.mubr.bf16.gmra.mrb[0].mxu0 %v872
  %v4808 = vpop.f32.mrb[0].mxu0
  %v4809 = vadd.f32 %v810, %v4808
  %v4810 = vpop.f32.mrb[0].mxu0
  %v4811 = vadd.f32 %v814, %v4810
  %v4812 = vpop.f32.mrb[0].mxu0
  %v4813 = vpop.f32.mrb[0].mxu0
  %4814 = vdwg.mxu0
  %4815 = vmatprep.subr.bf16.mxu0 %v3367
  %4816 = vmatpush1.bf16.msra.mxu0 %v3366
  %4817 = vmatprep.subr.bf16.mxu0 %v3375
  %4818 = vmatpush1.bf16.msra.mxu0 %v3374
  %4819 = vmatprep.subr.bf16.mxu0 %v3383
  %4820 = vmatpush1.bf16.msra.mxu0 %v3382
  %4821 = vmatprep.subr.bf16.mxu0 %v3391
  %4822 = vmatpush1.bf16.msra.mxu0 %v3390
  %4823 = vmatprep.subr.bf16.mxu0 %v3399
  %4824 = vmatpush1.bf16.msra.mxu0 %v3398
  %4825 = vmatprep.subr.bf16.mxu0 %v3407
  %4826 = vmatpush1.bf16.msra.mxu0 %v3406
  %4827 = vmatprep.subr.bf16.mxu0 %v3415
  %4828 = vmatpush1.bf16.msra.mxu0 %v3414
  %4829 = vmatprep.subr.bf16.mxu0 %v3423
  %4830 = vmatpush1.bf16.msra.mxu0 %v3422
  %4831 = vmatprep.subr.bf16.mxu0 %v3431
  %4832 = vmatpush1.bf16.msra.mxu0 %v3430
  %4833 = vmatprep.subr.bf16.mxu0 %v3439
  %4834 = vmatpush1.bf16.msra.mxu0 %v3438
  %4835 = vmatprep.subr.bf16.mxu0 %v3447
  %4836 = vmatpush1.bf16.msra.mxu0 %v3446
  %4837 = vmatprep.subr.bf16.mxu0 %v3455
  %4838 = vmatpush1.bf16.msra.mxu0 %v3454
  %4839 = vmatprep.subr.bf16.mxu0 %v3463
  %4840 = vmatpush1.bf16.msra.mxu0 %v3462
  %4841 = vmatprep.subr.bf16.mxu0 %v3471
  %4842 = vmatpush1.bf16.msra.mxu0 %v3470
  %4843 = vmatprep.subr.bf16.mxu0 %v3479
  %4844 = vmatpush1.bf16.msra.mxu0 %v3478
  %4845 = vmatprep.subr.bf16.mxu0 %v3487
  %4846 = vmatpush1.bf16.msra.mxu0 %v3486
  %4847 = vmatprep.mubr.bf16.mxu0 %v896
  %4848 = vmatmul.mubr.bf16.gmra.mrb[0].mxu0 %v894
  %v4849 = vpop.f32.mrb[0].mxu0
  %v4850 = vadd.f32 %v4809, %v4849
  %v4851 = vpop.f32.mrb[0].mxu0
  %v4852 = vadd.f32 %v4811, %v4851
  %v4853 = vpop.f32.mrb[0].mxu0
  %v4854 = vpop.f32.mrb[0].mxu0
  %4855 = vdwg.mxu0
  %4856 = vmatprep.subr.bf16.mxu0 %v3495
  %4857 = vmatpush1.bf16.msra.mxu0 %v3494
  %4858 = vmatprep.subr.bf16.mxu0 %v3503
  %4859 = vmatpush1.bf16.msra.mxu0 %v3502
  %4860 = vmatprep.subr.bf16.mxu0 %v3511
  %4861 = vmatpush1.bf16.msra.mxu0 %v3510
  %4862 = vmatprep.subr.bf16.mxu0 %v3519
  %4863 = vmatpush1.bf16.msra.mxu0 %v3518
  %4864 = vmatprep.subr.bf16.mxu0 %v3527
  %4865 = vmatpush1.bf16.msra.mxu0 %v3526
  %4866 = vmatprep.subr.bf16.mxu0 %v3535
  %4867 = vmatpush1.bf16.msra.mxu0 %v3534
  %4868 = vmatprep.subr.bf16.mxu0 %v3543
  %4869 = vmatpush1.bf16.msra.mxu0 %v3542
  %4870 = vmatprep.subr.bf16.mxu0 %v3551
  %4871 = vmatpush1.bf16.msra.mxu0 %v3550
  %4872 = vmatprep.subr.bf16.mxu0 %v3559
  %4873 = vmatpush1.bf16.msra.mxu0 %v3558
  %4874 = vmatprep.subr.bf16.mxu0 %v3567
  %4875 = vmatpush1.bf16.msra.mxu0 %v3566
  %4876 = vmatprep.subr.bf16.mxu0 %v3575
  %4877 = vmatpush1.bf16.msra.mxu0 %v3574
  %4878 = vmatprep.subr.bf16.mxu0 %v3583
  %4879 = vmatpush1.bf16.msra.mxu0 %v3582
  %4880 = vmatprep.subr.bf16.mxu0 %v3591
  %4881 = vmatpush1.bf16.msra.mxu0 %v3590
  %4882 = vmatprep.subr.bf16.mxu0 %v3599
  %4883 = vmatpush1.bf16.msra.mxu0 %v3598
  %4884 = vmatprep.subr.bf16.mxu0 %v3607
  %4885 = vmatpush1.bf16.msra.mxu0 %v3606
  %4886 = vmatprep.subr.bf16.mxu0 %v3615
  %4887 = vmatpush1.bf16.msra.mxu0 %v3614
  %4888 = vmatprep.mubr.bf16.mxu0 %v893
  %4889 = vmatmul.mubr.bf16.gmra.mrb[0].mxu0 %v879
  %v4890 = vpop.f32.mrb[0].mxu0
  %v4891 = vadd.f32 %v4850, %v4890
  %v4892 = vpop.f32.mrb[0].mxu0
  %v4893 = vadd.f32 %v4852, %v4892
  %v4894 = vpop.f32.mrb[0].mxu0
  %v4895 = vpop.f32.mrb[0].mxu0
  %4896 = vdwg.mxu0
  %4897 = vmatprep.subr.bf16.mxu0 %v3623
  %4898 = vmatpush1.bf16.msra.mxu0 %v3622
  %4899 = vmatprep.subr.bf16.mxu0 %v3631
  %4900 = vmatpush1.bf16.msra.mxu0 %v3630
  %4901 = vmatprep.subr.bf16.mxu0 %v3639
  %4902 = vmatpush1.bf16.msra.mxu0 %v3638
  %4903 = vmatprep.subr.bf16.mxu0 %v3647
  %4904 = vmatpush1.bf16.msra.mxu0 %v3646
  %4905 = vmatprep.subr.bf16.mxu0 %v3655
  %4906 = vmatpush1.bf16.msra.mxu0 %v3654
  %4907 = vmatprep.subr.bf16.mxu0 %v3663
  %4908 = vmatpush1.bf16.msra.mxu0 %v3662
  %4909 = vmatprep.subr.bf16.mxu0 %v3671
  %4910 = vmatpush1.bf16.msra.mxu0 %v3670
  %4911 = vmatprep.subr.bf16.mxu0 %v3679
  %4912 = vmatpush1.bf16.msra.mxu0 %v3678
  %4913 = vmatprep.subr.bf16.mxu0 %v3687
  %4914 = vmatpush1.bf16.msra.mxu0 %v3686
  %4915 = vmatprep.subr.bf16.mxu0 %v3695
  %4916 = vmatpush1.bf16.msra.mxu0 %v3694
  %4917 = vmatprep.subr.bf16.mxu0 %v3703
  %4918 = vmatpush1.bf16.msra.mxu0 %v3702
  %4919 = vmatprep.subr.bf16.mxu0 %v3711
  %4920 = vmatpush1.bf16.msra.mxu0 %v3710
  %4921 = vmatprep.subr.bf16.mxu0 %v3719
  %4922 = vmatpush1.bf16.msra.mxu0 %v3718
  %4923 = vmatprep.subr.bf16.mxu0 %v3727
  %4924 = vmatpush1.bf16.msra.mxu0 %v3726
  %4925 = vmatprep.subr.bf16.mxu0 %v3735
  %4926 = vmatpush1.bf16.msra.mxu0 %v3734
  %4927 = vmatprep.subr.bf16.mxu0 %v3743
  %4928 = vmatpush1.bf16.msra.mxu0 %v3742
  %4929 = vmatprep.mubr.bf16.mxu0 %v897
  %4930 = vmatmul.mubr.bf16.gmra.mrb[0].mxu0 %v895
  %v4931 = vpop.f32.mrb[0].mxu0
  %v4932 = vadd.f32 %v4891, %v4931
  %v4933 = vpop.f32.mrb[0].mxu0
  %v4934 = vadd.f32 %v4893, %v4933
  %v4935 = vpop.f32.mrb[0].mxu0
  %v4936 = vpop.f32.mrb[0].mxu0
  %4937 = vdwg.mxu0
  %4938 = vmatprep.subr.bf16.mxu0 %v3751
  %4939 = vmatpush1.bf16.msra.mxu0 %v3750
  %4940 = vmatprep.subr.bf16.mxu0 %v3759
  %4941 = vmatpush1.bf16.msra.mxu0 %v3758
  %4942 = vmatprep.subr.bf16.mxu0 %v3767
  %4943 = vmatpush1.bf16.msra.mxu0 %v3766
  %4944 = vmatprep.subr.bf16.mxu0 %v3775
  %4945 = vmatpush1.bf16.msra.mxu0 %v3774
  %4946 = vmatprep.subr.bf16.mxu0 %v3783
  %4947 = vmatpush1.bf16.msra.mxu0 %v3782
  %4948 = vmatprep.subr.bf16.mxu0 %v3791
  %4949 = vmatpush1.bf16.msra.mxu0 %v3790
  %4950 = vmatprep.subr.bf16.mxu0 %v3799
  %4951 = vmatpush1.bf16.msra.mxu0 %v3798
  %4952 = vmatprep.subr.bf16.mxu0 %v3807
  %4953 = vmatpush1.bf16.msra.mxu0 %v3806
  %4954 = vmatprep.subr.bf16.mxu0 %v3815
  %4955 = vmatpush1.bf16.msra.mxu0 %v3814
  %4956 = vmatprep.subr.bf16.mxu0 %v3823
  %4957 = vmatpush1.bf16.msra.mxu0 %v3822
  %4958 = vmatprep.subr.bf16.mxu0 %v3831
  %4959 = vmatpush1.bf16.msra.mxu0 %v3830
  %4960 = vmatprep.subr.bf16.mxu0 %v3839
  %4961 = vmatpush1.bf16.msra.mxu0 %v3838
  %4962 = vmatprep.subr.bf16.mxu0 %v3847
  %4963 = vmatpush1.bf16.msra.mxu0 %v3846
  %4964 = vmatprep.subr.bf16.mxu0 %v3855
  %4965 = vmatpush1.bf16.msra.mxu0 %v3854
  %4966 = vmatprep.subr.bf16.mxu0 %v3863
  %4967 = vmatpush1.bf16.msra.mxu0 %v3862
  %4968 = vmatprep.subr.bf16.mxu0 %v3871
  %4969 = vmatpush1.bf16.msra.mxu0 %v3870
  %4970 = vmatprep.mubr.bf16.mxu0 %v919
  %4971 = vmatmul.mubr.bf16.gmra.mrb[0].mxu0 %v912
  %v4972 = vpop.f32.mrb[0].mxu0
  %v4973 = vadd.f32 %v4932, %v4972
  %v4974 = vpop.f32.mrb[0].mxu0
  %v4975 = vadd.f32 %v4934, %v4974
  %v4976 = vpop.f32.mrb[0].mxu0
  %v4977 = vpop.f32.mrb[0].mxu0
  %4978 = vdwg.mxu0
  %4979 = vmatprep.subr.bf16.mxu0 %v3879
  %4980 = vmatpush1.bf16.msra.mxu0 %v3878
  %4981 = vmatprep.subr.bf16.mxu0 %v3887
  %4982 = vmatpush1.bf16.msra.mxu0 %v3886
  %4983 = vmatprep.subr.bf16.mxu0 %v3895
  %4984 = vmatpush1.bf16.msra.mxu0 %v3894
  %4985 = vmatprep.subr.bf16.mxu0 %v3903
  %4986 = vmatpush1.bf16.msra.mxu0 %v3902
  %4987 = vmatprep.subr.bf16.mxu0 %v3911
  %4988 = vmatpush1.bf16.msra.mxu0 %v3910
  %4989 = vmatprep.subr.bf16.mxu0 %v3919
  %4990 = vmatpush1.bf16.msra.mxu0 %v3918
  %4991 = vmatprep.subr.bf16.mxu0 %v3927
  %4992 = vmatpush1.bf16.msra.mxu0 %v3926
  %4993 = vmatprep.subr.bf16.mxu0 %v3935
  %4994 = vmatpush1.bf16.msra.mxu0 %v3934
  %4995 = vmatprep.subr.bf16.mxu0 %v3943
  %4996 = vmatpush1.bf16.msra.mxu0 %v3942
  %4997 = vmatprep.subr.bf16.mxu0 %v3951
  %4998 = vmatpush1.bf16.msra.mxu0 %v3950
  %4999 = vmatprep.subr.bf16.mxu0 %v3959
  %5000 = vmatpush1.bf16.msra.mxu0 %v3958
  %5001 = vmatprep.subr.bf16.mxu0 %v3967
  %5002 = vmatpush1.bf16.msra.mxu0 %v3966
  %5003 = vmatprep.subr.bf16.mxu0 %v3975
  %5004 = vmatpush1.bf16.msra.mxu0 %v3974
  %5005 = vmatprep.subr.bf16.mxu0 %v3983
  %5006 = vmatpush1.bf16.msra.mxu0 %v3982
  %5007 = vmatprep.subr.bf16.mxu0 %v3991
  %5008 = vmatpush1.bf16.msra.mxu0 %v3990
  %5009 = vmatprep.subr.bf16.mxu0 %v3999
  %5010 = vmatpush1.bf16.msra.mxu0 %v3998
  %5011 = vmatprep.mubr.bf16.mxu0 %v921
  %5012 = vmatmul.mubr.bf16.gmra.mrb[0].mxu0 %v920
  %v5013 = vpop.f32.mrb[0].mxu0
  %v5014 = vadd.f32 %v4973, %v5013
  %v5015 = vpop.f32.mrb[0].mxu0
  %v5016 = vadd.f32 %v4975, %v5015
  %v5017 = vpop.f32.mrb[0].mxu0
  %v5018 = vpop.f32.mrb[0].mxu0
  %5019 = vdwg.mxu0
  %5020 = vmatprep.subr.bf16.mxu0 %v3241
  %5021 = vmatpush1.bf16.msra.mxu0 %v3240
  %5022 = vmatprep.subr.bf16.mxu0 %v3249
  %5023 = vmatpush1.bf16.msra.mxu0 %v3248
  %5024 = vmatprep.subr.bf16.mxu0 %v3257
  %5025 = vmatpush1.bf16.msra.mxu0 %v3256
  %5026 = vmatprep.subr.bf16.mxu0 %v3265
  %5027 = vmatpush1.bf16.msra.mxu0 %v3264
  %5028 = vmatprep.subr.bf16.mxu0 %v3273
  %5029 = vmatpush1.bf16.msra.mxu0 %v3272
  %5030 = vmatprep.subr.bf16.mxu0 %v3281
  %5031 = vmatpush1.bf16.msra.mxu0 %v3280
  %5032 = vmatprep.subr.bf16.mxu0 %v3289
  %5033 = vmatpush1.bf16.msra.mxu0 %v3288
  %5034 = vmatprep.subr.bf16.mxu0 %v3297
  %5035 = vmatpush1.bf16.msra.mxu0 %v3296
  %5036 = vmatprep.subr.bf16.mxu0 %v3305
  %5037 = vmatpush1.bf16.msra.mxu0 %v3304
  %5038 = vmatprep.subr.bf16.mxu0 %v3313
  %5039 = vmatpush1.bf16.msra.mxu0 %v3312
  %5040 = vmatprep.subr.bf16.mxu0 %v3321
  %5041 = vmatpush1.bf16.msra.mxu0 %v3320
  %5042 = vmatprep.subr.bf16.mxu0 %v3329
  %5043 = vmatpush1.bf16.msra.mxu0 %v3328
  %5044 = vmatprep.subr.bf16.mxu0 %v3337
  %5045 = vmatpush1.bf16.msra.mxu0 %v3336
  %5046 = vmatprep.subr.bf16.mxu0 %v3345
  %5047 = vmatpush1.bf16.msra.mxu0 %v3344
  %5048 = vmatprep.subr.bf16.mxu0 %v3353
  %5049 = vmatpush1.bf16.msra.mxu0 %v3352
  %5050 = vmatprep.subr.bf16.mxu0 %v3361
  %5051 = vmatpush1.bf16.msra.mxu0 %v3360
  %5052 = vmatprep.mubr.bf16.mxu0 %v886
  %5053 = vmatmul.mubr.bf16.gmra.mrb[0].mxu0 %v872
  %v5054 = vpop.f32.mrb[0].mxu0
  %v5055 = vadd.f32 %v818, %v5054
  %v5056 = vpop.f32.mrb[0].mxu0
  %v5057 = vadd.f32 %v822, %v5056
  %v5058 = vpop.f32.mrb[0].mxu0
  %v5059 = vpop.f32.mrb[0].mxu0
  %5060 = vdwg.mxu0
  %5061 = vmatprep.subr.bf16.mxu0 %v3369
  %5062 = vmatpush1.bf16.msra.mxu0 %v3368
  %5063 = vmatprep.subr.bf16.mxu0 %v3377
  %5064 = vmatpush1.bf16.msra.mxu0 %v3376
  %5065 = vmatprep.subr.bf16.mxu0 %v3385
  %5066 = vmatpush1.bf16.msra.mxu0 %v3384
  %5067 = vmatprep.subr.bf16.mxu0 %v3393
  %5068 = vmatpush1.bf16.msra.mxu0 %v3392
  %5069 = vmatprep.subr.bf16.mxu0 %v3401
  %5070 = vmatpush1.bf16.msra.mxu0 %v3400
  %5071 = vmatprep.subr.bf16.mxu0 %v3409
  %5072 = vmatpush1.bf16.msra.mxu0 %v3408
  %5073 = vmatprep.subr.bf16.mxu0 %v3417
  %5074 = vmatpush1.bf16.msra.mxu0 %v3416
  %5075 = vmatprep.subr.bf16.mxu0 %v3425
  %5076 = vmatpush1.bf16.msra.mxu0 %v3424
  %5077 = vmatprep.subr.bf16.mxu0 %v3433
  %5078 = vmatpush1.bf16.msra.mxu0 %v3432
  %5079 = vmatprep.subr.bf16.mxu0 %v3441
  %5080 = vmatpush1.bf16.msra.mxu0 %v3440
  %5081 = vmatprep.subr.bf16.mxu0 %v3449
  %5082 = vmatpush1.bf16.msra.mxu0 %v3448
  %5083 = vmatprep.subr.bf16.mxu0 %v3457
  %5084 = vmatpush1.bf16.msra.mxu0 %v3456
  %5085 = vmatprep.subr.bf16.mxu0 %v3465
  %5086 = vmatpush1.bf16.msra.mxu0 %v3464
  %5087 = vmatprep.subr.bf16.mxu0 %v3473
  %5088 = vmatpush1.bf16.msra.mxu0 %v3472
  %5089 = vmatprep.subr.bf16.mxu0 %v3481
  %5090 = vmatpush1.bf16.msra.mxu0 %v3480
  %5091 = vmatprep.subr.bf16.mxu0 %v3489
  %5092 = vmatpush1.bf16.msra.mxu0 %v3488
  %5093 = vmatprep.mubr.bf16.mxu0 %v896
  %5094 = vmatmul.mubr.bf16.gmra.mrb[0].mxu0 %v894
  %v5095 = vpop.f32.mrb[0].mxu0
  %v5096 = vadd.f32 %v5055, %v5095
  %v5097 = vpop.f32.mrb[0].mxu0
  %v5098 = vadd.f32 %v5057, %v5097
  %v5099 = vpop.f32.mrb[0].mxu0
  %v5100 = vpop.f32.mrb[0].mxu0
  %5101 = vdwg.mxu0
  %5102 = vmatprep.subr.bf16.mxu0 %v3497
  %5103 = vmatpush1.bf16.msra.mxu0 %v3496
  %5104 = vmatprep.subr.bf16.mxu0 %v3505
  %5105 = vmatpush1.bf16.msra.mxu0 %v3504
  %5106 = vmatprep.subr.bf16.mxu0 %v3513
  %5107 = vmatpush1.bf16.msra.mxu0 %v3512
  %5108 = vmatprep.subr.bf16.mxu0 %v3521
  %5109 = vmatpush1.bf16.msra.mxu0 %v3520
  %5110 = vmatprep.subr.bf16.mxu0 %v3529
  %5111 = vmatpush1.bf16.msra.mxu0 %v3528
  %5112 = vmatprep.subr.bf16.mxu0 %v3537
  %5113 = vmatpush1.bf16.msra.mxu0 %v3536
  %5114 = vmatprep.subr.bf16.mxu0 %v3545
  %5115 = vmatpush1.bf16.msra.mxu0 %v3544
  %5116 = vmatprep.subr.bf16.mxu0 %v3553
  %5117 = vmatpush1.bf16.msra.mxu0 %v3552
  %5118 = vmatprep.subr.bf16.mxu0 %v3561
  %5119 = vmatpush1.bf16.msra.mxu0 %v3560
  %5120 = vmatprep.subr.bf16.mxu0 %v3569
  %5121 = vmatpush1.bf16.msra.mxu0 %v3568
  %5122 = vmatprep.subr.bf16.mxu0 %v3577
  %5123 = vmatpush1.bf16.msra.mxu0 %v3576
  %5124 = vmatprep.subr.bf16.mxu0 %v3585
  %5125 = vmatpush1.bf16.msra.mxu0 %v3584
  %5126 = vmatprep.subr.bf16.mxu0 %v3593
  %5127 = vmatpush1.bf16.msra.mxu0 %v3592
  %5128 = vmatprep.subr.bf16.mxu0 %v3601
  %5129 = vmatpush1.bf16.msra.mxu0 %v3600
  %5130 = vmatprep.subr.bf16.mxu0 %v3609
  %5131 = vmatpush1.bf16.msra.mxu0 %v3608
  %5132 = vmatprep.subr.bf16.mxu0 %v3617
  %5133 = vmatpush1.bf16.msra.mxu0 %v3616
  %5134 = vmatprep.mubr.bf16.mxu0 %v893
  %5135 = vmatmul.mubr.bf16.gmra.mrb[0].mxu0 %v879
  %v5136 = vpop.f32.mrb[0].mxu0
  %v5137 = vadd.f32 %v5096, %v5136
  %v5138 = vpop.f32.mrb[0].mxu0
  %v5139 = vadd.f32 %v5098, %v5138
  %v5140 = vpop.f32.mrb[0].mxu0
  %v5141 = vpop.f32.mrb[0].mxu0
  %5142 = vdwg.mxu0
  %5143 = vmatprep.subr.bf16.mxu0 %v3625
  %5144 = vmatpush1.bf16.msra.mxu0 %v3624
  %5145 = vmatprep.subr.bf16.mxu0 %v3633
  %5146 = vmatpush1.bf16.msra.mxu0 %v3632
  %5147 = vmatprep.subr.bf16.mxu0 %v3641
  %5148 = vmatpush1.bf16.msra.mxu0 %v3640
  %5149 = vmatprep.subr.bf16.mxu0 %v3649
  %5150 = vmatpush1.bf16.msra.mxu0 %v3648
  %5151 = vmatprep.subr.bf16.mxu0 %v3657
  %5152 = vmatpush1.bf16.msra.mxu0 %v3656
  %5153 = vmatprep.subr.bf16.mxu0 %v3665
  %5154 = vmatpush1.bf16.msra.mxu0 %v3664
  %5155 = vmatprep.subr.bf16.mxu0 %v3673
  %5156 = vmatpush1.bf16.msra.mxu0 %v3672
  %5157 = vmatprep.subr.bf16.mxu0 %v3681
  %5158 = vmatpush1.bf16.msra.mxu0 %v3680
  %5159 = vmatprep.subr.bf16.mxu0 %v3689
  %5160 = vmatpush1.bf16.msra.mxu0 %v3688
  %5161 = vmatprep.subr.bf16.mxu0 %v3697
  %5162 = vmatpush1.bf16.msra.mxu0 %v3696
  %5163 = vmatprep.subr.bf16.mxu0 %v3705
  %5164 = vmatpush1.bf16.msra.mxu0 %v3704
  %5165 = vmatprep.subr.bf16.mxu0 %v3713
  %5166 = vmatpush1.bf16.msra.mxu0 %v3712
  %5167 = vmatprep.subr.bf16.mxu0 %v3721
  %5168 = vmatpush1.bf16.msra.mxu0 %v3720
  %5169 = vmatprep.subr.bf16.mxu0 %v3729
  %5170 = vmatpush1.bf16.msra.mxu0 %v3728
  %5171 = vmatprep.subr.bf16.mxu0 %v3737
  %5172 = vmatpush1.bf16.msra.mxu0 %v3736
  %5173 = vmatprep.subr.bf16.mxu0 %v3745
  %5174 = vmatpush1.bf16.msra.mxu0 %v3744
  %5175 = vmatprep.mubr.bf16.mxu0 %v897
  %5176 = vmatmul.mubr.bf16.gmra.mrb[0].mxu0 %v895
  %v5177 = vpop.f32.mrb[0].mxu0
  %v5178 = vadd.f32 %v5137, %v5177
  %v5179 = vpop.f32.mrb[0].mxu0
  %v5180 = vadd.f32 %v5139, %v5179
  %v5181 = vpop.f32.mrb[0].mxu0
  %v5182 = vpop.f32.mrb[0].mxu0
  %5183 = vdwg.mxu0
  %5184 = vmatprep.subr.bf16.mxu0 %v3753
  %5185 = vmatpush1.bf16.msra.mxu0 %v3752
  %5186 = vmatprep.subr.bf16.mxu0 %v3761
  %5187 = vmatpush1.bf16.msra.mxu0 %v3760
  %5188 = vmatprep.subr.bf16.mxu0 %v3769
  %5189 = vmatpush1.bf16.msra.mxu0 %v3768
  %5190 = vmatprep.subr.bf16.mxu0 %v3777
  %5191 = vmatpush1.bf16.msra.mxu0 %v3776
  %5192 = vmatprep.subr.bf16.mxu0 %v3785
  %5193 = vmatpush1.bf16.msra.mxu0 %v3784
  %5194 = vmatprep.subr.bf16.mxu0 %v3793
  %5195 = vmatpush1.bf16.msra.mxu0 %v3792
  %5196 = vmatprep.subr.bf16.mxu0 %v3801
  %5197 = vmatpush1.bf16.msra.mxu0 %v3800
  %5198 = vmatprep.subr.bf16.mxu0 %v3809
  %5199 = vmatpush1.bf16.msra.mxu0 %v3808
  %5200 = vmatprep.subr.bf16.mxu0 %v3817
  %5201 = vmatpush1.bf16.msra.mxu0 %v3816
  %5202 = vmatprep.subr.bf16.mxu0 %v3825
  %5203 = vmatpush1.bf16.msra.mxu0 %v3824
  %5204 = vmatprep.subr.bf16.mxu0 %v3833
  %5205 = vmatpush1.bf16.msra.mxu0 %v3832
  %5206 = vmatprep.subr.bf16.mxu0 %v3841
  %5207 = vmatpush1.bf16.msra.mxu0 %v3840
  %5208 = vmatprep.subr.bf16.mxu0 %v3849
  %5209 = vmatpush1.bf16.msra.mxu0 %v3848
  %5210 = vmatprep.subr.bf16.mxu0 %v3857
  %5211 = vmatpush1.bf16.msra.mxu0 %v3856
  %5212 = vmatprep.subr.bf16.mxu0 %v3865
  %5213 = vmatpush1.bf16.msra.mxu0 %v3864
  %5214 = vmatprep.subr.bf16.mxu0 %v3873
  %5215 = vmatpush1.bf16.msra.mxu0 %v3872
  %5216 = vmatprep.mubr.bf16.mxu0 %v919
  %5217 = vmatmul.mubr.bf16.gmra.mrb[0].mxu0 %v912
  %v5218 = vpop.f32.mrb[0].mxu0
  %v5219 = vadd.f32 %v5178, %v5218
  %v5220 = vpop.f32.mrb[0].mxu0
  %v5221 = vadd.f32 %v5180, %v5220
  %v5222 = vpop.f32.mrb[0].mxu0
  %v5223 = vpop.f32.mrb[0].mxu0
  %5224 = vdwg.mxu0
  %5225 = vmatprep.subr.bf16.mxu0 %v3881
  %5226 = vmatpush1.bf16.msra.mxu0 %v3880
  %5227 = vmatprep.subr.bf16.mxu0 %v3889
  %5228 = vmatpush1.bf16.msra.mxu0 %v3888
  %5229 = vmatprep.subr.bf16.mxu0 %v3897
  %5230 = vmatpush1.bf16.msra.mxu0 %v3896
  %5231 = vmatprep.subr.bf16.mxu0 %v3905
  %5232 = vmatpush1.bf16.msra.mxu0 %v3904
  %5233 = vmatprep.subr.bf16.mxu0 %v3913
  %5234 = vmatpush1.bf16.msra.mxu0 %v3912
  %5235 = vmatprep.subr.bf16.mxu0 %v3921
  %5236 = vmatpush1.bf16.msra.mxu0 %v3920
  %5237 = vmatprep.subr.bf16.mxu0 %v3929
  %5238 = vmatpush1.bf16.msra.mxu0 %v3928
  %5239 = vmatprep.subr.bf16.mxu0 %v3937
  %5240 = vmatpush1.bf16.msra.mxu0 %v3936
  %5241 = vmatprep.subr.bf16.mxu0 %v3945
  %5242 = vmatpush1.bf16.msra.mxu0 %v3944
  %5243 = vmatprep.subr.bf16.mxu0 %v3953
  %5244 = vmatpush1.bf16.msra.mxu0 %v3952
  %5245 = vmatprep.subr.bf16.mxu0 %v3961
  %5246 = vmatpush1.bf16.msra.mxu0 %v3960
  %5247 = vmatprep.subr.bf16.mxu0 %v3969
  %5248 = vmatpush1.bf16.msra.mxu0 %v3968
  %5249 = vmatprep.subr.bf16.mxu0 %v3977
  %5250 = vmatpush1.bf16.msra.mxu0 %v3976
  %5251 = vmatprep.subr.bf16.mxu0 %v3985
  %5252 = vmatpush1.bf16.msra.mxu0 %v3984
  %5253 = vmatprep.subr.bf16.mxu0 %v3993
  %5254 = vmatpush1.bf16.msra.mxu0 %v3992
  %5255 = vmatprep.subr.bf16.mxu0 %v4001
  %5256 = vmatpush1.bf16.msra.mxu0 %v4000
  %5257 = vmatprep.mubr.bf16.mxu0 %v921
  %5258 = vmatmul.mubr.bf16.gmra.mrb[0].mxu0 %v920
  %v5259 = vpop.f32.mrb[0].mxu0
  %v5260 = vadd.f32 %v5219, %v5259
  %v5261 = vpop.f32.mrb[0].mxu0
  %v5262 = vadd.f32 %v5221, %v5261
  %v5263 = vpop.f32.mrb[0].mxu0
  %v5264 = vpop.f32.mrb[0].mxu0
  %5265 = vdwg.mxu0
  %5266 = vmatprep.subr.bf16.mxu0 %v3243
  %5267 = vmatpush1.bf16.msra.mxu0 %v3242
  %5268 = vmatprep.subr.bf16.mxu0 %v3251
  %5269 = vmatpush1.bf16.msra.mxu0 %v3250
  %5270 = vmatprep.subr.bf16.mxu0 %v3259
  %5271 = vmatpush1.bf16.msra.mxu0 %v3258
  %5272 = vmatprep.subr.bf16.mxu0 %v3267
  %5273 = vmatpush1.bf16.msra.mxu0 %v3266
  %5274 = vmatprep.subr.bf16.mxu0 %v3275
  %5275 = vmatpush1.bf16.msra.mxu0 %v3274
  %5276 = vmatprep.subr.bf16.mxu0 %v3283
  %5277 = vmatpush1.bf16.msra.mxu0 %v3282
  %5278 = vmatprep.subr.bf16.mxu0 %v3291
  %5279 = vmatpush1.bf16.msra.mxu0 %v3290
  %5280 = vmatprep.subr.bf16.mxu0 %v3299
  %5281 = vmatpush1.bf16.msra.mxu0 %v3298
  %5282 = vmatprep.subr.bf16.mxu0 %v3307
  %5283 = vmatpush1.bf16.msra.mxu0 %v3306
  %5284 = vmatprep.subr.bf16.mxu0 %v3315
  %5285 = vmatpush1.bf16.msra.mxu0 %v3314
  %5286 = vmatprep.subr.bf16.mxu0 %v3323
  %5287 = vmatpush1.bf16.msra.mxu0 %v3322
  %5288 = vmatprep.subr.bf16.mxu0 %v3331
  %5289 = vmatpush1.bf16.msra.mxu0 %v3330
  %5290 = vmatprep.subr.bf16.mxu0 %v3339
  %5291 = vmatpush1.bf16.msra.mxu0 %v3338
  %5292 = vmatprep.subr.bf16.mxu0 %v3347
  %5293 = vmatpush1.bf16.msra.mxu0 %v3346
  %5294 = vmatprep.subr.bf16.mxu0 %v3355
  %5295 = vmatpush1.bf16.msra.mxu0 %v3354
  %5296 = vmatprep.subr.bf16.mxu0 %v3363
  %5297 = vmatpush1.bf16.msra.mxu0 %v3362
  %5298 = vmatprep.mubr.bf16.mxu0 %v886
  %5299 = vmatmul.mubr.bf16.gmra.mrb[0].mxu0 %v872
  %v5300 = vpop.f32.mrb[0].mxu0
  %v5301 = vadd.f32 %v826, %v5300
  %v5302 = vpop.f32.mrb[0].mxu0
  %v5303 = vadd.f32 %v830, %v5302
  %v5304 = vpop.f32.mrb[0].mxu0
  %v5305 = vpop.f32.mrb[0].mxu0
  %5306 = vdwg.mxu0
  %5307 = vmatprep.subr.bf16.mxu0 %v3371
  %5308 = vmatpush1.bf16.msra.mxu0 %v3370
  %5309 = vmatprep.subr.bf16.mxu0 %v3379
  %5310 = vmatpush1.bf16.msra.mxu0 %v3378
  %5311 = vmatprep.subr.bf16.mxu0 %v3387
  %5312 = vmatpush1.bf16.msra.mxu0 %v3386
  %5313 = vmatprep.subr.bf16.mxu0 %v3395
  %5314 = vmatpush1.bf16.msra.mxu0 %v3394
  %5315 = vmatprep.subr.bf16.mxu0 %v3403
  %5316 = vmatpush1.bf16.msra.mxu0 %v3402
  %5317 = vmatprep.subr.bf16.mxu0 %v3411
  %5318 = vmatpush1.bf16.msra.mxu0 %v3410
  %5319 = vmatprep.subr.bf16.mxu0 %v3419
  %5320 = vmatpush1.bf16.msra.mxu0 %v3418
  %5321 = vmatprep.subr.bf16.mxu0 %v3427
  %5322 = vmatpush1.bf16.msra.mxu0 %v3426
  %5323 = vmatprep.subr.bf16.mxu0 %v3435
  %5324 = vmatpush1.bf16.msra.mxu0 %v3434
  %5325 = vmatprep.subr.bf16.mxu0 %v3443
  %5326 = vmatpush1.bf16.msra.mxu0 %v3442
  %5327 = vmatprep.subr.bf16.mxu0 %v3451
  %5328 = vmatpush1.bf16.msra.mxu0 %v3450
  %5329 = vmatprep.subr.bf16.mxu0 %v3459
  %5330 = vmatpush1.bf16.msra.mxu0 %v3458
  %5331 = vmatprep.subr.bf16.mxu0 %v3467
  %5332 = vmatpush1.bf16.msra.mxu0 %v3466
  %5333 = vmatprep.subr.bf16.mxu0 %v3475
  %5334 = vmatpush1.bf16.msra.mxu0 %v3474
  %5335 = vmatprep.subr.bf16.mxu0 %v3483
  %5336 = vmatpush1.bf16.msra.mxu0 %v3482
  %5337 = vmatprep.subr.bf16.mxu0 %v3491
  %5338 = vmatpush1.bf16.msra.mxu0 %v3490
  %5339 = vmatprep.mubr.bf16.mxu0 %v896
  %5340 = vmatmul.mubr.bf16.gmra.mrb[0].mxu0 %v894
  %v5341 = vpop.f32.mrb[0].mxu0
  %v5342 = vadd.f32 %v5301, %v5341
  %v5343 = vpop.f32.mrb[0].mxu0
  %v5344 = vadd.f32 %v5303, %v5343
  %v5345 = vpop.f32.mrb[0].mxu0
  %v5346 = vpop.f32.mrb[0].mxu0
  %5347 = vdwg.mxu0
  %5348 = vmatprep.subr.bf16.mxu0 %v3499
  %5349 = vmatpush1.bf16.msra.mxu0 %v3498
  %5350 = vmatprep.subr.bf16.mxu0 %v3507
  %5351 = vmatpush1.bf16.msra.mxu0 %v3506
  %5352 = vmatprep.subr.bf16.mxu0 %v3515
  %5353 = vmatpush1.bf16.msra.mxu0 %v3514
  %5354 = vmatprep.subr.bf16.mxu0 %v3523
  %5355 = vmatpush1.bf16.msra.mxu0 %v3522
  %5356 = vmatprep.subr.bf16.mxu0 %v3531
  %5357 = vmatpush1.bf16.msra.mxu0 %v3530
  %5358 = vmatprep.subr.bf16.mxu0 %v3539
  %5359 = vmatpush1.bf16.msra.mxu0 %v3538
  %5360 = vmatprep.subr.bf16.mxu0 %v3547
  %5361 = vmatpush1.bf16.msra.mxu0 %v3546
  %5362 = vmatprep.subr.bf16.mxu0 %v3555
  %5363 = vmatpush1.bf16.msra.mxu0 %v3554
  %5364 = vmatprep.subr.bf16.mxu0 %v3563
  %5365 = vmatpush1.bf16.msra.mxu0 %v3562
  %5366 = vmatprep.subr.bf16.mxu0 %v3571
  %5367 = vmatpush1.bf16.msra.mxu0 %v3570
  %5368 = vmatprep.subr.bf16.mxu0 %v3579
  %5369 = vmatpush1.bf16.msra.mxu0 %v3578
  %5370 = vmatprep.subr.bf16.mxu0 %v3587
  %5371 = vmatpush1.bf16.msra.mxu0 %v3586
  %5372 = vmatprep.subr.bf16.mxu0 %v3595
  %5373 = vmatpush1.bf16.msra.mxu0 %v3594
  %5374 = vmatprep.subr.bf16.mxu0 %v3603
  %5375 = vmatpush1.bf16.msra.mxu0 %v3602
  %5376 = vmatprep.subr.bf16.mxu0 %v3611
  %5377 = vmatpush1.bf16.msra.mxu0 %v3610
  %5378 = vmatprep.subr.bf16.mxu0 %v3619
  %5379 = vmatpush1.bf16.msra.mxu0 %v3618
  %5380 = vmatprep.mubr.bf16.mxu0 %v893
  %5381 = vmatmul.mubr.bf16.gmra.mrb[0].mxu0 %v879
  %v5382 = vpop.f32.mrb[0].mxu0
  %v5383 = vadd.f32 %v5342, %v5382
  %v5384 = vpop.f32.mrb[0].mxu0
  %v5385 = vadd.f32 %v5344, %v5384
  %v5386 = vpop.f32.mrb[0].mxu0
  %v5387 = vpop.f32.mrb[0].mxu0
  %5388 = vdwg.mxu0
  %5389 = vmatprep.subr.bf16.mxu0 %v3627
  %5390 = vmatpush1.bf16.msra.mxu0 %v3626
  %5391 = vmatprep.subr.bf16.mxu0 %v3635
  %5392 = vmatpush1.bf16.msra.mxu0 %v3634
  %5393 = vmatprep.subr.bf16.mxu0 %v3643
  %5394 = vmatpush1.bf16.msra.mxu0 %v3642
  %5395 = vmatprep.subr.bf16.mxu0 %v3651
  %5396 = vmatpush1.bf16.msra.mxu0 %v3650
  %5397 = vmatprep.subr.bf16.mxu0 %v3659
  %5398 = vmatpush1.bf16.msra.mxu0 %v3658
  %5399 = vmatprep.subr.bf16.mxu0 %v3667
  %5400 = vmatpush1.bf16.msra.mxu0 %v3666
  %5401 = vmatprep.subr.bf16.mxu0 %v3675
  %5402 = vmatpush1.bf16.msra.mxu0 %v3674
  %5403 = vmatprep.subr.bf16.mxu0 %v3683
  %5404 = vmatpush1.bf16.msra.mxu0 %v3682
  %5405 = vmatprep.subr.bf16.mxu0 %v3691
  %5406 = vmatpush1.bf16.msra.mxu0 %v3690
  %5407 = vmatprep.subr.bf16.mxu0 %v3699
  %5408 = vmatpush1.bf16.msra.mxu0 %v3698
  %5409 = vmatprep.subr.bf16.mxu0 %v3707
  %5410 = vmatpush1.bf16.msra.mxu0 %v3706
  %5411 = vmatprep.subr.bf16.mxu0 %v3715
  %5412 = vmatpush1.bf16.msra.mxu0 %v3714
  %5413 = vmatprep.subr.bf16.mxu0 %v3723
  %5414 = vmatpush1.bf16.msra.mxu0 %v3722
  %5415 = vmatprep.subr.bf16.mxu0 %v3731
  %5416 = vmatpush1.bf16.msra.mxu0 %v3730
  %5417 = vmatprep.subr.bf16.mxu0 %v3739
  %5418 = vmatpush1.bf16.msra.mxu0 %v3738
  %5419 = vmatprep.subr.bf16.mxu0 %v3747
  %5420 = vmatpush1.bf16.msra.mxu0 %v3746
  %5421 = vmatprep.mubr.bf16.mxu0 %v897
  %5422 = vmatmul.mubr.bf16.gmra.mrb[0].mxu0 %v895
  %v5423 = vpop.f32.mrb[0].mxu0
  %v5424 = vadd.f32 %v5383, %v5423
  %v5425 = vpop.f32.mrb[0].mxu0
  %v5426 = vadd.f32 %v5385, %v5425
  %v5427 = vpop.f32.mrb[0].mxu0
  %v5428 = vpop.f32.mrb[0].mxu0
  %5429 = vdwg.mxu0
  %5430 = vmatprep.subr.bf16.mxu0 %v3755
  %5431 = vmatpush1.bf16.msra.mxu0 %v3754
  %5432 = vmatprep.subr.bf16.mxu0 %v3763
  %5433 = vmatpush1.bf16.msra.mxu0 %v3762
  %5434 = vmatprep.subr.bf16.mxu0 %v3771
  %5435 = vmatpush1.bf16.msra.mxu0 %v3770
  %5436 = vmatprep.subr.bf16.mxu0 %v3779
  %5437 = vmatpush1.bf16.msra.mxu0 %v3778
  %5438 = vmatprep.subr.bf16.mxu0 %v3787
  %5439 = vmatpush1.bf16.msra.mxu0 %v3786
  %5440 = vmatprep.subr.bf16.mxu0 %v3795
  %5441 = vmatpush1.bf16.msra.mxu0 %v3794
  %5442 = vmatprep.subr.bf16.mxu0 %v3803
  %5443 = vmatpush1.bf16.msra.mxu0 %v3802
  %5444 = vmatprep.subr.bf16.mxu0 %v3811
  %5445 = vmatpush1.bf16.msra.mxu0 %v3810
  %5446 = vmatprep.subr.bf16.mxu0 %v3819
  %5447 = vmatpush1.bf16.msra.mxu0 %v3818
  %5448 = vmatprep.subr.bf16.mxu0 %v3827
  %5449 = vmatpush1.bf16.msra.mxu0 %v3826
  %5450 = vmatprep.subr.bf16.mxu0 %v3835
  %5451 = vmatpush1.bf16.msra.mxu0 %v3834
  %5452 = vmatprep.subr.bf16.mxu0 %v3843
  %5453 = vmatpush1.bf16.msra.mxu0 %v3842
  %5454 = vmatprep.subr.bf16.mxu0 %v3851
  %5455 = vmatpush1.bf16.msra.mxu0 %v3850
  %5456 = vmatprep.subr.bf16.mxu0 %v3859
  %5457 = vmatpush1.bf16.msra.mxu0 %v3858
  %5458 = vmatprep.subr.bf16.mxu0 %v3867
  %5459 = vmatpush1.bf16.msra.mxu0 %v3866
  %5460 = vmatprep.subr.bf16.mxu0 %v3875
  %5461 = vmatpush1.bf16.msra.mxu0 %v3874
  %5462 = vmatprep.mubr.bf16.mxu0 %v919
  %5463 = vmatmul.mubr.bf16.gmra.mrb[0].mxu0 %v912
  %v5464 = vpop.f32.mrb[0].mxu0
  %v5465 = vadd.f32 %v5424, %v5464
  %v5466 = vpop.f32.mrb[0].mxu0
  %v5467 = vadd.f32 %v5426, %v5466
  %v5468 = vpop.f32.mrb[0].mxu0
  %v5469 = vpop.f32.mrb[0].mxu0
  %5470 = vdwg.mxu0
  %5471 = vmatprep.subr.bf16.mxu0 %v3883
  %5472 = vmatpush1.bf16.msra.mxu0 %v3882
  %5473 = vmatprep.subr.bf16.mxu0 %v3891
  %5474 = vmatpush1.bf16.msra.mxu0 %v3890
  %5475 = vmatprep.subr.bf16.mxu0 %v3899
  %5476 = vmatpush1.bf16.msra.mxu0 %v3898
  %5477 = vmatprep.subr.bf16.mxu0 %v3907
  %5478 = vmatpush1.bf16.msra.mxu0 %v3906
  %5479 = vmatprep.subr.bf16.mxu0 %v3915
  %5480 = vmatpush1.bf16.msra.mxu0 %v3914
  %5481 = vmatprep.subr.bf16.mxu0 %v3923
  %5482 = vmatpush1.bf16.msra.mxu0 %v3922
  %5483 = vmatprep.subr.bf16.mxu0 %v3931
  %5484 = vmatpush1.bf16.msra.mxu0 %v3930
  %5485 = vmatprep.subr.bf16.mxu0 %v3939
  %5486 = vmatpush1.bf16.msra.mxu0 %v3938
  %5487 = vmatprep.subr.bf16.mxu0 %v3947
  %5488 = vmatpush1.bf16.msra.mxu0 %v3946
  %5489 = vmatprep.subr.bf16.mxu0 %v3955
  %5490 = vmatpush1.bf16.msra.mxu0 %v3954
  %5491 = vmatprep.subr.bf16.mxu0 %v3963
  %5492 = vmatpush1.bf16.msra.mxu0 %v3962
  %5493 = vmatprep.subr.bf16.mxu0 %v3971
  %5494 = vmatpush1.bf16.msra.mxu0 %v3970
  %5495 = vmatprep.subr.bf16.mxu0 %v3979
  %5496 = vmatpush1.bf16.msra.mxu0 %v3978
  %5497 = vmatprep.subr.bf16.mxu0 %v3987
  %5498 = vmatpush1.bf16.msra.mxu0 %v3986
  %5499 = vmatprep.subr.bf16.mxu0 %v3995
  %5500 = vmatpush1.bf16.msra.mxu0 %v3994
  %5501 = vmatprep.subr.bf16.mxu0 %v4003
  %5502 = vmatpush1.bf16.msra.mxu0 %v4002
  %5503 = vmatprep.mubr.bf16.mxu0 %v921
  %5504 = vmatmul.mubr.bf16.gmra.mrb[0].mxu0 %v920
  %v5505 = vpop.f32.mrb[0].mxu0
  %v5506 = vadd.f32 %v5465, %v5505
  %v5507 = vpop.f32.mrb[0].mxu0
  %v5508 = vadd.f32 %v5467, %v5507
  %v5509 = vpop.f32.mrb[0].mxu0
  %v5510 = vpop.f32.mrb[0].mxu0
  %5511 = vdwg.mxu0
  %5512 = vmatprep.subr.bf16.mxu0 %v3245
  %5513 = vmatpush1.bf16.msra.mxu0 %v3244
  %5514 = vmatprep.subr.bf16.mxu0 %v3253
  %5515 = vmatpush1.bf16.msra.mxu0 %v3252
  %5516 = vmatprep.subr.bf16.mxu0 %v3261
  %5517 = vmatpush1.bf16.msra.mxu0 %v3260
  %5518 = vmatprep.subr.bf16.mxu0 %v3269
  %5519 = vmatpush1.bf16.msra.mxu0 %v3268
  %5520 = vmatprep.subr.bf16.mxu0 %v3277
  %5521 = vmatpush1.bf16.msra.mxu0 %v3276
  %5522 = vmatprep.subr.bf16.mxu0 %v3285
  %5523 = vmatpush1.bf16.msra.mxu0 %v3284
  %5524 = vmatprep.subr.bf16.mxu0 %v3293
  %5525 = vmatpush1.bf16.msra.mxu0 %v3292
  %5526 = vmatprep.subr.bf16.mxu0 %v3301
  %5527 = vmatpush1.bf16.msra.mxu0 %v3300
  %5528 = vmatprep.subr.bf16.mxu0 %v3309
  %5529 = vmatpush1.bf16.msra.mxu0 %v3308
  %5530 = vmatprep.subr.bf16.mxu0 %v3317
  %5531 = vmatpush1.bf16.msra.mxu0 %v3316
  %5532 = vmatprep.subr.bf16.mxu0 %v3325
  %5533 = vmatpush1.bf16.msra.mxu0 %v3324
  %5534 = vmatprep.subr.bf16.mxu0 %v3333
  %5535 = vmatpush1.bf16.msra.mxu0 %v3332
  %5536 = vmatprep.subr.bf16.mxu0 %v3341
  %5537 = vmatpush1.bf16.msra.mxu0 %v3340
  %5538 = vmatprep.subr.bf16.mxu0 %v3349
  %5539 = vmatpush1.bf16.msra.mxu0 %v3348
  %5540 = vmatprep.subr.bf16.mxu0 %v3357
  %5541 = vmatpush1.bf16.msra.mxu0 %v3356
  %5542 = vmatprep.subr.bf16.mxu0 %v3365
  %5543 = vmatpush1.bf16.msra.mxu0 %v3364
  %5544 = vmatprep.mubr.bf16.mxu0 %v886
  %5545 = vmatmul.mubr.bf16.gmra.mrb[0].mxu0 %v872
  %v5546 = vpop.f32.mrb[0].mxu0
  %v5547 = vadd.f32 %v834, %v5546
  %v5548 = vpop.f32.mrb[0].mxu0
  %v5549 = vadd.f32 %v838, %v5548
  %v5550 = vpop.f32.mrb[0].mxu0
  %v5551 = vpop.f32.mrb[0].mxu0
  %5552 = vdwg.mxu0
  %5553 = vmatprep.subr.bf16.mxu0 %v3373
  %5554 = vmatpush1.bf16.msra.mxu0 %v3372
  %5555 = vmatprep.subr.bf16.mxu0 %v3381
  %5556 = vmatpush1.bf16.msra.mxu0 %v3380
  %5557 = vmatprep.subr.bf16.mxu0 %v3389
  %5558 = vmatpush1.bf16.msra.mxu0 %v3388
  %5559 = vmatprep.subr.bf16.mxu0 %v3397
  %5560 = vmatpush1.bf16.msra.mxu0 %v3396
  %5561 = vmatprep.subr.bf16.mxu0 %v3405
  %5562 = vmatpush1.bf16.msra.mxu0 %v3404
  %5563 = vmatprep.subr.bf16.mxu0 %v3413
  %5564 = vmatpush1.bf16.msra.mxu0 %v3412
  %5565 = vmatprep.subr.bf16.mxu0 %v3421
  %5566 = vmatpush1.bf16.msra.mxu0 %v3420
  %5567 = vmatprep.subr.bf16.mxu0 %v3429
  %5568 = vmatpush1.bf16.msra.mxu0 %v3428
  %5569 = vmatprep.subr.bf16.mxu0 %v3437
  %5570 = vmatpush1.bf16.msra.mxu0 %v3436
  %5571 = vmatprep.subr.bf16.mxu0 %v3445
  %5572 = vmatpush1.bf16.msra.mxu0 %v3444
  %5573 = vmatprep.subr.bf16.mxu0 %v3453
  %5574 = vmatpush1.bf16.msra.mxu0 %v3452
  %5575 = vmatprep.subr.bf16.mxu0 %v3461
  %5576 = vmatpush1.bf16.msra.mxu0 %v3460
  %5577 = vmatprep.subr.bf16.mxu0 %v3469
  %5578 = vmatpush1.bf16.msra.mxu0 %v3468
  %5579 = vmatprep.subr.bf16.mxu0 %v3477
  %5580 = vmatpush1.bf16.msra.mxu0 %v3476
  %5581 = vmatprep.subr.bf16.mxu0 %v3485
  %5582 = vmatpush1.bf16.msra.mxu0 %v3484
  %5583 = vmatprep.subr.bf16.mxu0 %v3493
  %5584 = vmatpush1.bf16.msra.mxu0 %v3492
  %5585 = vmatprep.mubr.bf16.mxu0 %v896
  %5586 = vmatmul.mubr.bf16.gmra.mrb[0].mxu0 %v894
  %v5587 = vpop.f32.mrb[0].mxu0
  %v5588 = vadd.f32 %v5547, %v5587
  %v5589 = vpop.f32.mrb[0].mxu0
  %v5590 = vadd.f32 %v5549, %v5589
  %v5591 = vpop.f32.mrb[0].mxu0
  %v5592 = vpop.f32.mrb[0].mxu0
  %5593 = vdwg.mxu0
  %5594 = vmatprep.subr.bf16.mxu0 %v3501
  %5595 = vmatpush1.bf16.msra.mxu0 %v3500
  %5596 = vmatprep.subr.bf16.mxu0 %v3509
  %5597 = vmatpush1.bf16.msra.mxu0 %v3508
  %5598 = vmatprep.subr.bf16.mxu0 %v3517
  %5599 = vmatpush1.bf16.msra.mxu0 %v3516
  %5600 = vmatprep.subr.bf16.mxu0 %v3525
  %5601 = vmatpush1.bf16.msra.mxu0 %v3524
  %5602 = vmatprep.subr.bf16.mxu0 %v3533
  %5603 = vmatpush1.bf16.msra.mxu0 %v3532
  %5604 = vmatprep.subr.bf16.mxu0 %v3541
  %5605 = vmatpush1.bf16.msra.mxu0 %v3540
  %5606 = vmatprep.subr.bf16.mxu0 %v3549
  %5607 = vmatpush1.bf16.msra.mxu0 %v3548
  %5608 = vmatprep.subr.bf16.mxu0 %v3557
  %5609 = vmatpush1.bf16.msra.mxu0 %v3556
  %5610 = vmatprep.subr.bf16.mxu0 %v3565
  %5611 = vmatpush1.bf16.msra.mxu0 %v3564
  %5612 = vmatprep.subr.bf16.mxu0 %v3573
  %5613 = vmatpush1.bf16.msra.mxu0 %v3572
  %5614 = vmatprep.subr.bf16.mxu0 %v3581
  %5615 = vmatpush1.bf16.msra.mxu0 %v3580
  %5616 = vmatprep.subr.bf16.mxu0 %v3589
  %5617 = vmatpush1.bf16.msra.mxu0 %v3588
  %5618 = vmatprep.subr.bf16.mxu0 %v3597
  %5619 = vmatpush1.bf16.msra.mxu0 %v3596
  %5620 = vmatprep.subr.bf16.mxu0 %v3605
  %5621 = vmatpush1.bf16.msra.mxu0 %v3604
  %5622 = vmatprep.subr.bf16.mxu0 %v3613
  %5623 = vmatpush1.bf16.msra.mxu0 %v3612
  %5624 = vmatprep.subr.bf16.mxu0 %v3621
  %5625 = vmatpush1.bf16.msra.mxu0 %v3620
  %5626 = vmatprep.mubr.bf16.mxu0 %v893
  %5627 = vmatmul.mubr.bf16.gmra.mrb[0].mxu0 %v879
  %v5628 = vpop.f32.mrb[0].mxu0
  %v5629 = vadd.f32 %v5588, %v5628
  %v5630 = vpop.f32.mrb[0].mxu0
  %v5631 = vadd.f32 %v5590, %v5630
  %v5632 = vpop.f32.mrb[0].mxu0
  %v5633 = vpop.f32.mrb[0].mxu0
  %5634 = vdwg.mxu0
  %5635 = vmatprep.subr.bf16.mxu0 %v3629
  %5636 = vmatpush1.bf16.msra.mxu0 %v3628
  %5637 = vmatprep.subr.bf16.mxu0 %v3637
  %5638 = vmatpush1.bf16.msra.mxu0 %v3636
  %5639 = vmatprep.subr.bf16.mxu0 %v3645
  %5640 = vmatpush1.bf16.msra.mxu0 %v3644
  %5641 = vmatprep.subr.bf16.mxu0 %v3653
  %5642 = vmatpush1.bf16.msra.mxu0 %v3652
  %5643 = vmatprep.subr.bf16.mxu0 %v3661
  %5644 = vmatpush1.bf16.msra.mxu0 %v3660
  %5645 = vmatprep.subr.bf16.mxu0 %v3669
  %5646 = vmatpush1.bf16.msra.mxu0 %v3668
  %5647 = vmatprep.subr.bf16.mxu0 %v3677
  %5648 = vmatpush1.bf16.msra.mxu0 %v3676
  %5649 = vmatprep.subr.bf16.mxu0 %v3685
  %5650 = vmatpush1.bf16.msra.mxu0 %v3684
  %5651 = vmatprep.subr.bf16.mxu0 %v3693
  %5652 = vmatpush1.bf16.msra.mxu0 %v3692
  %5653 = vmatprep.subr.bf16.mxu0 %v3701
  %5654 = vmatpush1.bf16.msra.mxu0 %v3700
  %5655 = vmatprep.subr.bf16.mxu0 %v3709
  %5656 = vmatpush1.bf16.msra.mxu0 %v3708
  %5657 = vmatprep.subr.bf16.mxu0 %v3717
  %5658 = vmatpush1.bf16.msra.mxu0 %v3716
  %5659 = vmatprep.subr.bf16.mxu0 %v3725
  %5660 = vmatpush1.bf16.msra.mxu0 %v3724
  %5661 = vmatprep.subr.bf16.mxu0 %v3733
  %5662 = vmatpush1.bf16.msra.mxu0 %v3732
  %5663 = vmatprep.subr.bf16.mxu0 %v3741
  %5664 = vmatpush1.bf16.msra.mxu0 %v3740
  %5665 = vmatprep.subr.bf16.mxu0 %v3749
  %5666 = vmatpush1.bf16.msra.mxu0 %v3748
  %5667 = vmatprep.mubr.bf16.mxu0 %v897
  %5668 = vmatmul.mubr.bf16.gmra.mrb[0].mxu0 %v895
  %v5669 = vpop.f32.mrb[0].mxu0
  %v5670 = vadd.f32 %v5629, %v5669
  %v5671 = vpop.f32.mrb[0].mxu0
  %v5672 = vadd.f32 %v5631, %v5671
  %v5673 = vpop.f32.mrb[0].mxu0
  %v5674 = vpop.f32.mrb[0].mxu0
  %5675 = vdwg.mxu0
  %5676 = vmatprep.subr.bf16.mxu0 %v3757
  %5677 = vmatpush1.bf16.msra.mxu0 %v3756
  %5678 = vmatprep.subr.bf16.mxu0 %v3765
  %5679 = vmatpush1.bf16.msra.mxu0 %v3764
  %5680 = vmatprep.subr.bf16.mxu0 %v3773
  %5681 = vmatpush1.bf16.msra.mxu0 %v3772
  %5682 = vmatprep.subr.bf16.mxu0 %v3781
  %5683 = vmatpush1.bf16.msra.mxu0 %v3780
  %5684 = vmatprep.subr.bf16.mxu0 %v3789
  %5685 = vmatpush1.bf16.msra.mxu0 %v3788
  %5686 = vmatprep.subr.bf16.mxu0 %v3797
  %5687 = vmatpush1.bf16.msra.mxu0 %v3796
  %5688 = vmatprep.subr.bf16.mxu0 %v3805
  %5689 = vmatpush1.bf16.msra.mxu0 %v3804
  %5690 = vmatprep.subr.bf16.mxu0 %v3813
  %5691 = vmatpush1.bf16.msra.mxu0 %v3812
  %5692 = vmatprep.subr.bf16.mxu0 %v3821
  %5693 = vmatpush1.bf16.msra.mxu0 %v3820
  %5694 = vmatprep.subr.bf16.mxu0 %v3829
  %5695 = vmatpush1.bf16.msra.mxu0 %v3828
  %5696 = vmatprep.subr.bf16.mxu0 %v3837
  %5697 = vmatpush1.bf16.msra.mxu0 %v3836
  %5698 = vmatprep.subr.bf16.mxu0 %v3845
  %5699 = vmatpush1.bf16.msra.mxu0 %v3844
  %5700 = vmatprep.subr.bf16.mxu0 %v3853
  %5701 = vmatpush1.bf16.msra.mxu0 %v3852
  %5702 = vmatprep.subr.bf16.mxu0 %v3861
  %5703 = vmatpush1.bf16.msra.mxu0 %v3860
  %5704 = vmatprep.subr.bf16.mxu0 %v3869
  %5705 = vmatpush1.bf16.msra.mxu0 %v3868
  %5706 = vmatprep.subr.bf16.mxu0 %v3877
  %5707 = vmatpush1.bf16.msra.mxu0 %v3876
  %5708 = vmatprep.mubr.bf16.mxu0 %v919
  %5709 = vmatmul.mubr.bf16.gmra.mrb[0].mxu0 %v912
  %v5710 = vpop.f32.mrb[0].mxu0
  %v5711 = vadd.f32 %v5670, %v5710
  %v5712 = vpop.f32.mrb[0].mxu0
  %v5713 = vadd.f32 %v5672, %v5712
  %v5714 = vpop.f32.mrb[0].mxu0
  %v5715 = vpop.f32.mrb[0].mxu0
  %5716 = vdwg.mxu0
  %5717 = vmatprep.subr.bf16.mxu0 %v3885
  %5718 = vmatpush1.bf16.msra.mxu0 %v3884
  %5719 = vmatprep.subr.bf16.mxu0 %v3893
  %5720 = vmatpush1.bf16.msra.mxu0 %v3892
  %5721 = vmatprep.subr.bf16.mxu0 %v3901
  %5722 = vmatpush1.bf16.msra.mxu0 %v3900
  %5723 = vmatprep.subr.bf16.mxu0 %v3909
  %5724 = vmatpush1.bf16.msra.mxu0 %v3908
  %5725 = vmatprep.subr.bf16.mxu0 %v3917
  %5726 = vmatpush1.bf16.msra.mxu0 %v3916
  %5727 = vmatprep.subr.bf16.mxu0 %v3925
  %5728 = vmatpush1.bf16.msra.mxu0 %v3924
  %5729 = vmatprep.subr.bf16.mxu0 %v3933
  %5730 = vmatpush1.bf16.msra.mxu0 %v3932
  %5731 = vmatprep.subr.bf16.mxu0 %v3941
  %5732 = vmatpush1.bf16.msra.mxu0 %v3940
  %5733 = vmatprep.subr.bf16.mxu0 %v3949
  %5734 = vmatpush1.bf16.msra.mxu0 %v3948
  %5735 = vmatprep.subr.bf16.mxu0 %v3957
  %5736 = vmatpush1.bf16.msra.mxu0 %v3956
  %5737 = vmatprep.subr.bf16.mxu0 %v3965
  %5738 = vmatpush1.bf16.msra.mxu0 %v3964
  %5739 = vmatprep.subr.bf16.mxu0 %v3973
  %5740 = vmatpush1.bf16.msra.mxu0 %v3972
  %5741 = vmatprep.subr.bf16.mxu0 %v3981
  %5742 = vmatpush1.bf16.msra.mxu0 %v3980
  %5743 = vmatprep.subr.bf16.mxu0 %v3989
  %5744 = vmatpush1.bf16.msra.mxu0 %v3988
  %5745 = vmatprep.subr.bf16.mxu0 %v3997
  %5746 = vmatpush1.bf16.msra.mxu0 %v3996
  %5747 = vmatprep.subr.bf16.mxu0 %v4005
  %5748 = vmatpush1.bf16.msra.mxu0 %v4004
  %5749 = vmatprep.mubr.bf16.mxu0 %v921
  %5750 = vmatmul.mubr.bf16.gmra.mrb[0].mxu0 %v920
  %v5751 = vpop.f32.mrb[0].mxu0
  %v5752 = vadd.f32 %v5711, %v5751
  %v5753 = vpop.f32.mrb[0].mxu0
  %v5754 = vadd.f32 %v5713, %v5753
  %v5755 = vpop.f32.mrb[0].mxu0
  %v5756 = vpop.f32.mrb[0].mxu0
  %5757 = vdwg.mxu0
  %v5758 = vmax.f32 %v5014, 0.0
  %v5759 = vmax.f32 %v5016, 0.0
  %v5760 = vmax.f32 %v5260, 0.0
  %v5761 = vmax.f32 %v5262, 0.0
  %v5762 = vmax.f32 %v5506, 0.0
  %v5763 = vmax.f32 %v5508, 0.0
  %v5764 = vmax.f32 %v5752, 0.0
  %v5765 = vmax.f32 %v5754, 0.0
  %v5766 = vpack.c.bf16 %v5758, %v5758
  %v5767 = vpack.c.bf16 %v5759, %v5759
  %v5768 = vpack.c.bf16 %v5760, %v5760
  %v5769 = vpack.c.bf16 %v5761, %v5761
  %v5770 = vpack.c.bf16 %v5762, %v5762
  %v5771 = vpack.c.bf16 %v5763, %v5763
  %v5772 = vpack.c.bf16 %v5764, %v5764
  %v5773 = vpack.c.bf16 %v5765, %v5765
  %v5774 = vld [vmem:[%s3] sm:$0xf]
  %v5775 = vld [vmem:[%s3 + $0x4] sm:$0xf]
  %v5776 = vld [vmem:[%s3 + $0x8] sm:$0xf]
  %v5777 = vld [vmem:[%s3 + $0xc] sm:$0xf]
  %v5778 = vld [vmem:[%s3 + $0x10] sm:$0xf]
  %v5779 = vld [vmem:[%s3 + $0x14] sm:$0xf]
  %v5780 = vld [vmem:[%s3 + $0x18] sm:$0xf]
  %v5781 = vld [vmem:[%s3 + $0x1c] sm:$0xf]
  %v5782 = vld [vmem:[%s3 + $0x20] sm:$0xf]
  %v5783 = vld [vmem:[%s3 + $0x24] sm:$0xf]
  %v5784 = vld [vmem:[%s3 + $0x28] sm:$0xf]
  %v5785 = vld [vmem:[%s3 + $0x2c] sm:$0xf]
  %v5786 = vld [vmem:[%s3 + $0x30] sm:$0xf]
  %v5787 = vld [vmem:[%s3 + $0x34] sm:$0xf]
  %v5788 = vld [vmem:[%s3 + $0x38] sm:$0xf]
  %v5789 = vld [vmem:[%s3 + $0x3c] sm:$0xf]
  %v5790 = vld [vmem:[%s3 + $0x40] sm:$0xf]
  %v5791 = vld [vmem:[%s3 + $0x44] sm:$0xf]
  %v5792 = vld [vmem:[%s3 + $0x48] sm:$0xf]
  %v5793 = vld [vmem:[%s3 + $0x4c] sm:$0xf]
  %v5794 = vld [vmem:[%s3 + $0x50] sm:$0xf]
  %v5795 = vld [vmem:[%s3 + $0x54] sm:$0xf]
  %v5796 = vld [vmem:[%s3 + $0x58] sm:$0xf]
  %v5797 = vld [vmem:[%s3 + $0x5c] sm:$0xf]
  %v5798 = vld [vmem:[%s3 + $0x60] sm:$0xf]
  %v5799 = vld [vmem:[%s3 + $0x64] sm:$0xf]
  %v5800 = vld [vmem:[%s3 + $0x68] sm:$0xf]
  %v5801 = vld [vmem:[%s3 + $0x6c] sm:$0xf]
  %v5802 = vld [vmem:[%s3 + $0x70] sm:$0xf]
  %v5803 = vld [vmem:[%s3 + $0x74] sm:$0xf]
  %v5804 = vld [vmem:[%s3 + $0x78] sm:$0xf]
  %v5805 = vld [vmem:[%s3 + $0x7c] sm:$0xf]
  %v5806 = vld [vmem:[%s3 + $0x80] sm:$0xf]
  %v5807 = vld [vmem:[%s3 + $0x84] sm:$0xf]
  %v5808 = vld [vmem:[%s3 + $0x88] sm:$0xf]
  %v5809 = vld [vmem:[%s3 + $0x8c] sm:$0xf]
  %v5810 = vld [vmem:[%s3 + $0x90] sm:$0xf]
  %v5811 = vld [vmem:[%s3 + $0x94] sm:$0xf]
  %v5812 = vld [vmem:[%s3 + $0x98] sm:$0xf]
  %v5813 = vld [vmem:[%s3 + $0x9c] sm:$0xf]
  %v5814 = vld [vmem:[%s3 + $0xa0] sm:$0xf]
  %v5815 = vld [vmem:[%s3 + $0xa4] sm:$0xf]
  %v5816 = vld [vmem:[%s3 + $0xa8] sm:$0xf]
  %v5817 = vld [vmem:[%s3 + $0xac] sm:$0xf]
  %v5818 = vld [vmem:[%s3 + $0xb0] sm:$0xf]
  %v5819 = vld [vmem:[%s3 + $0xb4] sm:$0xf]
  %v5820 = vld [vmem:[%s3 + $0xb8] sm:$0xf]
  %v5821 = vld [vmem:[%s3 + $0xbc] sm:$0xf]
  %v5822 = vld [vmem:[%s3 + $0xc0] sm:$0xf]
  %v5823 = vld [vmem:[%s3 + $0xc4] sm:$0xf]
  %v5824 = vld [vmem:[%s3 + $0xc8] sm:$0xf]
  %v5825 = vld [vmem:[%s3 + $0xcc] sm:$0xf]
  %v5826 = vld [vmem:[%s3 + $0xd0] sm:$0xf]
  %v5827 = vld [vmem:[%s3 + $0xd4] sm:$0xf]
  %v5828 = vld [vmem:[%s3 + $0xd8] sm:$0xf]
  %v5829 = vld [vmem:[%s3 + $0xdc] sm:$0xf]
  %v5830 = vld [vmem:[%s3 + $0xe0] sm:$0xf]
  %v5831 = vld [vmem:[%s3 + $0xe4] sm:$0xf]
  %v5832 = vld [vmem:[%s3 + $0xe8] sm:$0xf]
  %v5833 = vld [vmem:[%s3 + $0xec] sm:$0xf]
  %v5834 = vld [vmem:[%s3 + $0xf0] sm:$0xf]
  %v5835 = vld [vmem:[%s3 + $0xf4] sm:$0xf]
  %v5836 = vld [vmem:[%s3 + $0xf8] sm:$0xf]
  %v5837 = vld [vmem:[%s3 + $0xfc] sm:$0xf]
  %v5838 = vld [vmem:[%s3 + $0x100] sm:$0xf]
  %v5839 = vld [vmem:[%s3 + $0x104] sm:$0xf]
  %v5840 = vld [vmem:[%s3 + $0x108] sm:$0xf]
  %v5841 = vld [vmem:[%s3 + $0x10c] sm:$0xf]
  %v5842 = vld [vmem:[%s3 + $0x110] sm:$0xf]
  %v5843 = vld [vmem:[%s3 + $0x114] sm:$0xf]
  %v5844 = vld [vmem:[%s3 + $0x118] sm:$0xf]
  %v5845 = vld [vmem:[%s3 + $0x11c] sm:$0xf]
  %v5846 = vld [vmem:[%s3 + $0x120] sm:$0xf]
  %v5847 = vld [vmem:[%s3 + $0x124] sm:$0xf]
  %v5848 = vld [vmem:[%s3 + $0x128] sm:$0xf]
  %v5849 = vld [vmem:[%s3 + $0x12c] sm:$0xf]
  %v5850 = vld [vmem:[%s3 + $0x130] sm:$0xf]
  %v5851 = vld [vmem:[%s3 + $0x134] sm:$0xf]
  %v5852 = vld [vmem:[%s3 + $0x138] sm:$0xf]
  %v5853 = vld [vmem:[%s3 + $0x13c] sm:$0xf]
  %v5854 = vld [vmem:[%s3 + $0x140] sm:$0xf]
  %v5855 = vld [vmem:[%s3 + $0x144] sm:$0xf]
  %v5856 = vld [vmem:[%s3 + $0x148] sm:$0xf]
  %v5857 = vld [vmem:[%s3 + $0x14c] sm:$0xf]
  %v5858 = vld [vmem:[%s3 + $0x150] sm:$0xf]
  %v5859 = vld [vmem:[%s3 + $0x154] sm:$0xf]
  %v5860 = vld [vmem:[%s3 + $0x158] sm:$0xf]
  %v5861 = vld [vmem:[%s3 + $0x15c] sm:$0xf]
  %v5862 = vld [vmem:[%s3 + $0x160] sm:$0xf]
  %v5863 = vld [vmem:[%s3 + $0x164] sm:$0xf]
  %v5864 = vld [vmem:[%s3 + $0x168] sm:$0xf]
  %v5865 = vld [vmem:[%s3 + $0x16c] sm:$0xf]
  %v5866 = vld [vmem:[%s3 + $0x170] sm:$0xf]
  %v5867 = vld [vmem:[%s3 + $0x174] sm:$0xf]
  %v5868 = vld [vmem:[%s3 + $0x178] sm:$0xf]
  %v5869 = vld [vmem:[%s3 + $0x17c] sm:$0xf]
  %v5870 = vld [vmem:[%s3 + $0x180] sm:$0xf]
  %v5871 = vld [vmem:[%s3 + $0x184] sm:$0xf]
  %v5872 = vld [vmem:[%s3 + $0x188] sm:$0xf]
  %v5873 = vld [vmem:[%s3 + $0x18c] sm:$0xf]
  %v5874 = vld [vmem:[%s3 + $0x190] sm:$0xf]
  %v5875 = vld [vmem:[%s3 + $0x194] sm:$0xf]
  %v5876 = vld [vmem:[%s3 + $0x198] sm:$0xf]
  %v5877 = vld [vmem:[%s3 + $0x19c] sm:$0xf]
  %v5878 = vld [vmem:[%s3 + $0x1a0] sm:$0xf]
  %v5879 = vld [vmem:[%s3 + $0x1a4] sm:$0xf]
  %v5880 = vld [vmem:[%s3 + $0x1a8] sm:$0xf]
  %v5881 = vld [vmem:[%s3 + $0x1ac] sm:$0xf]
  %v5882 = vld [vmem:[%s3 + $0x1b0] sm:$0xf]
  %v5883 = vld [vmem:[%s3 + $0x1b4] sm:$0xf]
  %v5884 = vld [vmem:[%s3 + $0x1b8] sm:$0xf]
  %v5885 = vld [vmem:[%s3 + $0x1bc] sm:$0xf]
  %v5886 = vld [vmem:[%s3 + $0x1c0] sm:$0xf]
  %v5887 = vld [vmem:[%s3 + $0x1c4] sm:$0xf]
  %v5888 = vld [vmem:[%s3 + $0x1c8] sm:$0xf]
  %v5889 = vld [vmem:[%s3 + $0x1cc] sm:$0xf]
  %v5890 = vld [vmem:[%s3 + $0x1d0] sm:$0xf]
  %v5891 = vld [vmem:[%s3 + $0x1d4] sm:$0xf]
  %v5892 = vld [vmem:[%s3 + $0x1d8] sm:$0xf]
  %v5893 = vld [vmem:[%s3 + $0x1dc] sm:$0xf]
  %v5894 = vld [vmem:[%s3 + $0x1e0] sm:$0xf]
  %v5895 = vld [vmem:[%s3 + $0x1e4] sm:$0xf]
  %v5896 = vld [vmem:[%s3 + $0x1e8] sm:$0xf]
  %v5897 = vld [vmem:[%s3 + $0x1ec] sm:$0xf]
  %v5898 = vld [vmem:[%s3 + $0x1f0] sm:$0xf]
  %v5899 = vld [vmem:[%s3 + $0x1f4] sm:$0xf]
  %v5900 = vld [vmem:[%s3 + $0x1f8] sm:$0xf]
  %v5901 = vld [vmem:[%s3 + $0x1fc] sm:$0xf]
  %v5902 = vld [vmem:[%s4] sm:$0x1]
  %v5904 = vlaneseq
  %v5905 = vshrl.u32 %v5904, 7
  %v5906 = vsub.s32 0, %v5905
  %v5907 = vrot.slane %v5902, %v5906
  %v6037 = vunpack.c.l.b16 %v5774
  %v6038 = vunpack.c.l.b16 %v5775
  %v6039 = vunpack.c.l.b16 %v5776
  %v6040 = vunpack.c.l.b16 %v5777
  %v6041 = vunpack.c.l.b16 %v5778
  %v6042 = vunpack.c.l.b16 %v5779
  %v6043 = vunpack.c.l.b16 %v5780
  %v6044 = vunpack.c.l.b16 %v5781
  %v6045 = vunpack.c.l.b16 %v5782
  %v6046 = vunpack.c.l.b16 %v5783
  %v6047 = vunpack.c.l.b16 %v5784
  %v6048 = vunpack.c.l.b16 %v5785
  %v6049 = vunpack.c.l.b16 %v5786
  %v6050 = vunpack.c.l.b16 %v5787
  %v6051 = vunpack.c.l.b16 %v5788
  %v6052 = vunpack.c.l.b16 %v5789
  %v6053 = vunpack.c.l.b16 %v5790
  %v6054 = vunpack.c.l.b16 %v5791
  %v6055 = vunpack.c.l.b16 %v5792
  %v6056 = vunpack.c.l.b16 %v5793
  %v6057 = vunpack.c.l.b16 %v5794
  %v6058 = vunpack.c.l.b16 %v5795
  %v6059 = vunpack.c.l.b16 %v5796
  %v6060 = vunpack.c.l.b16 %v5797
  %v6061 = vunpack.c.l.b16 %v5798
  %v6062 = vunpack.c.l.b16 %v5799
  %v6063 = vunpack.c.l.b16 %v5800
  %v6064 = vunpack.c.l.b16 %v5801
  %v6065 = vunpack.c.l.b16 %v5802
  %v6066 = vunpack.c.l.b16 %v5803
  %v6067 = vunpack.c.l.b16 %v5804
  %v6068 = vunpack.c.l.b16 %v5805
  %v6069 = vunpack.c.l.b16 %v5806
  %v6070 = vunpack.c.l.b16 %v5807
  %v6071 = vunpack.c.l.b16 %v5808
  %v6072 = vunpack.c.l.b16 %v5809
  %v6073 = vunpack.c.l.b16 %v5810
  %v6074 = vunpack.c.l.b16 %v5811
  %v6075 = vunpack.c.l.b16 %v5812
  %v6076 = vunpack.c.l.b16 %v5813
  %v6077 = vunpack.c.l.b16 %v5814
  %v6078 = vunpack.c.l.b16 %v5815
  %v6079 = vunpack.c.l.b16 %v5816
  %v6080 = vunpack.c.l.b16 %v5817
  %v6081 = vunpack.c.l.b16 %v5818
  %v6082 = vunpack.c.l.b16 %v5819
  %v6083 = vunpack.c.l.b16 %v5820
  %v6084 = vunpack.c.l.b16 %v5821
  %v6085 = vunpack.c.l.b16 %v5822
  %v6086 = vunpack.c.l.b16 %v5823
  %v6087 = vunpack.c.l.b16 %v5824
  %v6088 = vunpack.c.l.b16 %v5825
  %v6089 = vunpack.c.l.b16 %v5826
  %v6090 = vunpack.c.l.b16 %v5827
  %v6091 = vunpack.c.l.b16 %v5828
  %v6092 = vunpack.c.l.b16 %v5829
  %v6093 = vunpack.c.l.b16 %v5830
  %v6094 = vunpack.c.l.b16 %v5831
  %v6095 = vunpack.c.l.b16 %v5832
  %v6096 = vunpack.c.l.b16 %v5833
  %v6097 = vunpack.c.l.b16 %v5834
  %v6098 = vunpack.c.l.b16 %v5835
  %v6099 = vunpack.c.l.b16 %v5836
  %v6100 = vunpack.c.l.b16 %v5837
  %v6101 = vunpack.c.l.b16 %v5838
  %v6102 = vunpack.c.l.b16 %v5839
  %v6103 = vunpack.c.l.b16 %v5840
  %v6104 = vunpack.c.l.b16 %v5841
  %v6105 = vunpack.c.l.b16 %v5842
  %v6106 = vunpack.c.l.b16 %v5843
  %v6107 = vunpack.c.l.b16 %v5844
  %v6108 = vunpack.c.l.b16 %v5845
  %v6109 = vunpack.c.l.b16 %v5846
  %v6110 = vunpack.c.l.b16 %v5847
  %v6111 = vunpack.c.l.b16 %v5848
  %v6112 = vunpack.c.l.b16 %v5849
  %v6113 = vunpack.c.l.b16 %v5850
  %v6114 = vunpack.c.l.b16 %v5851
  %v6115 = vunpack.c.l.b16 %v5852
  %v6116 = vunpack.c.l.b16 %v5853
  %v6117 = vunpack.c.l.b16 %v5854
  %v6118 = vunpack.c.l.b16 %v5855
  %v6119 = vunpack.c.l.b16 %v5856
  %v6120 = vunpack.c.l.b16 %v5857
  %v6121 = vunpack.c.l.b16 %v5858
  %v6122 = vunpack.c.l.b16 %v5859
  %v6123 = vunpack.c.l.b16 %v5860
  %v6124 = vunpack.c.l.b16 %v5861
  %v6125 = vunpack.c.l.b16 %v5862
  %v6126 = vunpack.c.l.b16 %v5863
  %v6127 = vunpack.c.l.b16 %v5864
  %v6128 = vunpack.c.l.b16 %v5865
  %v6129 = vunpack.c.l.b16 %v5866
  %v6130 = vunpack.c.l.b16 %v5867
  %v6131 = vunpack.c.l.b16 %v5868
  %v6132 = vunpack.c.l.b16 %v5869
  %v6133 = vunpack.c.l.b16 %v5870
  %v6134 = vunpack.c.l.b16 %v5871
  %v6135 = vunpack.c.l.b16 %v5872
  %v6136 = vunpack.c.l.b16 %v5873
  %v6137 = vunpack.c.l.b16 %v5874
  %v6138 = vunpack.c.l.b16 %v5875
  %v6139 = vunpack.c.l.b16 %v5876
  %v6140 = vunpack.c.l.b16 %v5877
  %v6141 = vunpack.c.l.b16 %v5878
  %v6142 = vunpack.c.l.b16 %v5879
  %v6143 = vunpack.c.l.b16 %v5880
  %v6144 = vunpack.c.l.b16 %v5881
  %v6145 = vunpack.c.l.b16 %v5882
  %v6146 = vunpack.c.l.b16 %v5883
  %v6147 = vunpack.c.l.b16 %v5884
  %v6148 = vunpack.c.l.b16 %v5885
  %v6149 = vunpack.c.l.b16 %v5886
  %v6150 = vunpack.c.l.b16 %v5887
  %v6151 = vunpack.c.l.b16 %v5888
  %v6152 = vunpack.c.l.b16 %v5889
  %v6153 = vunpack.c.l.b16 %v5890
  %v6154 = vunpack.c.l.b16 %v5891
  %v6155 = vunpack.c.l.b16 %v5892
  %v6156 = vunpack.c.l.b16 %v5893
  %v6157 = vunpack.c.l.b16 %v5894
  %v6158 = vunpack.c.l.b16 %v5895
  %v6159 = vunpack.c.l.b16 %v5896
  %v6160 = vunpack.c.l.b16 %v5897
  %v6161 = vunpack.c.l.b16 %v5898
  %v6162 = vunpack.c.l.b16 %v5899
  %v6163 = vunpack.c.l.b16 %v5900
  %v6164 = vunpack.c.l.b16 %v5901
  %v6165 = vpack.c.b16 %v6038, %v6037
  %v6166 = vpack.c.b16 %v6040, %v6039
  %v6167 = vpack.c.b16 %v6042, %v6041
  %v6168 = vpack.c.b16 %v6044, %v6043
  %v6169 = vpack.c.b16 %v6046, %v6045
  %v6170 = vpack.c.b16 %v6048, %v6047
  %v6171 = vpack.c.b16 %v6050, %v6049
  %v6172 = vpack.c.b16 %v6052, %v6051
  %v6173 = vpack.c.b16 %v6054, %v6053
  %v6174 = vpack.c.b16 %v6056, %v6055
  %v6175 = vpack.c.b16 %v6058, %v6057
  %v6176 = vpack.c.b16 %v6060, %v6059
  %v6177 = vpack.c.b16 %v6062, %v6061
  %v6178 = vpack.c.b16 %v6064, %v6063
  %v6179 = vpack.c.b16 %v6066, %v6065
  %v6180 = vpack.c.b16 %v6068, %v6067
  %v6181 = vpack.c.b16 %v6070, %v6069
  %v6182 = vpack.c.b16 %v6072, %v6071
  %v6183 = vpack.c.b16 %v6074, %v6073
  %v6184 = vpack.c.b16 %v6076, %v6075
  %v6185 = vpack.c.b16 %v6078, %v6077
  %v6186 = vpack.c.b16 %v6080, %v6079
  %v6187 = vpack.c.b16 %v6082, %v6081
  %v6188 = vpack.c.b16 %v6084, %v6083
  %v6189 = vpack.c.b16 %v6086, %v6085
  %v6190 = vpack.c.b16 %v6088, %v6087
  %v6191 = vpack.c.b16 %v6090, %v6089
  %v6192 = vpack.c.b16 %v6092, %v6091
  %v6193 = vpack.c.b16 %v6094, %v6093
  %v6194 = vpack.c.b16 %v6096, %v6095
  %v6195 = vpack.c.b16 %v6098, %v6097
  %v6196 = vpack.c.b16 %v6100, %v6099
  %v6197 = vpack.c.b16 %v6102, %v6101
  %v6198 = vpack.c.b16 %v6104, %v6103
  %v6199 = vpack.c.b16 %v6106, %v6105
  %v6200 = vpack.c.b16 %v6108, %v6107
  %v6201 = vpack.c.b16 %v6110, %v6109
  %v6202 = vpack.c.b16 %v6112, %v6111
  %v6203 = vpack.c.b16 %v6114, %v6113
  %v6204 = vpack.c.b16 %v6116, %v6115
  %v6205 = vpack.c.b16 %v6118, %v6117
  %v6206 = vpack.c.b16 %v6120, %v6119
  %v6207 = vpack.c.b16 %v6122, %v6121
  %v6208 = vpack.c.b16 %v6124, %v6123
  %v6209 = vpack.c.b16 %v6126, %v6125
  %v6210 = vpack.c.b16 %v6128, %v6127
  %v6211 = vpack.c.b16 %v6130, %v6129
  %v6212 = vpack.c.b16 %v6132, %v6131
  %v6213 = vpack.c.b16 %v6134, %v6133
  %v6214 = vpack.c.b16 %v6136, %v6135
  %v6215 = vpack.c.b16 %v6138, %v6137
  %v6216 = vpack.c.b16 %v6140, %v6139
  %v6217 = vpack.c.b16 %v6142, %v6141
  %v6218 = vpack.c.b16 %v6144, %v6143
  %v6219 = vpack.c.b16 %v6146, %v6145
  %v6220 = vpack.c.b16 %v6148, %v6147
  %v6221 = vpack.c.b16 %v6150, %v6149
  %v6222 = vpack.c.b16 %v6152, %v6151
  %v6223 = vpack.c.b16 %v6154, %v6153
  %v6224 = vpack.c.b16 %v6156, %v6155
  %v6225 = vpack.c.b16 %v6158, %v6157
  %v6226 = vpack.c.b16 %v6160, %v6159
  %v6227 = vpack.c.b16 %v6162, %v6161
  %v6228 = vpack.c.b16 %v6164, %v6163
  %6293 = vmatprep.subr.bf16.mxu0 0
  %6294 = vmatpush1.bf16.msra.mxu0 %v6165
  %6295 = vmatprep.subr.bf16.mxu0 0
  %6296 = vmatpush1.bf16.msra.mxu0 %v6166
  %6297 = vmatprep.subr.bf16.mxu0 0
  %6298 = vmatpush1.bf16.msra.mxu0 %v6167
  %6299 = vmatprep.subr.bf16.mxu0 0
  %6300 = vmatpush1.bf16.msra.mxu0 %v6168
  %6301 = vmatprep.subr.bf16.mxu0 0
  %6302 = vmatpush1.bf16.msra.mxu0 %v6169
  %6303 = vmatprep.subr.bf16.mxu0 0
  %6304 = vmatpush1.bf16.msra.mxu0 %v6170
  %6305 = vmatprep.subr.bf16.mxu0 0
  %6306 = vmatpush1.bf16.msra.mxu0 %v6171
  %6307 = vmatprep.subr.bf16.mxu0 0
  %6308 = vmatpush1.bf16.msra.mxu0 %v6172
  %6309 = vmatprep.subr.bf16.mxu0 0
  %6310 = vmatpush1.bf16.msra.mxu0 %v6173
  %6311 = vmatprep.subr.bf16.mxu0 0
  %6312 = vmatpush1.bf16.msra.mxu0 %v6174
  %6313 = vmatprep.subr.bf16.mxu0 0
  %6314 = vmatpush1.bf16.msra.mxu0 %v6175
  %6315 = vmatprep.subr.bf16.mxu0 0
  %6316 = vmatpush1.bf16.msra.mxu0 %v6176
  %6317 = vmatprep.subr.bf16.mxu0 0
  %6318 = vmatpush1.bf16.msra.mxu0 %v6177
  %6319 = vmatprep.subr.bf16.mxu0 0
  %6320 = vmatpush1.bf16.msra.mxu0 %v6178
  %6321 = vmatprep.subr.bf16.mxu0 0
  %6322 = vmatpush1.bf16.msra.mxu0 %v6179
  %6323 = vmatprep.subr.bf16.mxu0 0
  %6324 = vmatpush1.bf16.msra.mxu0 %v6180
  %6325 = vmatprep.mubr.bf16.mxu0 %v5767
  %6326 = vmatmul.mubr.bf16.gmra.mrb[0].mxu0 %v5766
  %v6327 = vpop.f32.mrb[0].mxu0
  %v6328 = vadd.f32 %v5907, %v6327
  %v6329 = vpop.f32.mrb[0].mxu0
  %v6330 = vpop.f32.mrb[0].mxu0
  %v6331 = vpop.f32.mrb[0].mxu0
  %6332 = vdwg.mxu0
  %6333 = vmatprep.subr.bf16.mxu0 0
  %6334 = vmatpush1.bf16.msra.mxu0 %v6181
  %6335 = vmatprep.subr.bf16.mxu0 0
  %6336 = vmatpush1.bf16.msra.mxu0 %v6182
  %6337 = vmatprep.subr.bf16.mxu0 0
  %6338 = vmatpush1.bf16.msra.mxu0 %v6183
  %6339 = vmatprep.subr.bf16.mxu0 0
  %6340 = vmatpush1.bf16.msra.mxu0 %v6184
  %6341 = vmatprep.subr.bf16.mxu0 0
  %6342 = vmatpush1.bf16.msra.mxu0 %v6185
  %6343 = vmatprep.subr.bf16.mxu0 0
  %6344 = vmatpush1.bf16.msra.mxu0 %v6186
  %6345 = vmatprep.subr.bf16.mxu0 0
  %6346 = vmatpush1.bf16.msra.mxu0 %v6187
  %6347 = vmatprep.subr.bf16.mxu0 0
  %6348 = vmatpush1.bf16.msra.mxu0 %v6188
  %6349 = vmatprep.subr.bf16.mxu0 0
  %6350 = vmatpush1.bf16.msra.mxu0 %v6189
  %6351 = vmatprep.subr.bf16.mxu0 0
  %6352 = vmatpush1.bf16.msra.mxu0 %v6190
  %6353 = vmatprep.subr.bf16.mxu0 0
  %6354 = vmatpush1.bf16.msra.mxu0 %v6191
  %6355 = vmatprep.subr.bf16.mxu0 0
  %6356 = vmatpush1.bf16.msra.mxu0 %v6192
  %6357 = vmatprep.subr.bf16.mxu0 0
  %6358 = vmatpush1.bf16.msra.mxu0 %v6193
  %6359 = vmatprep.subr.bf16.mxu0 0
  %6360 = vmatpush1.bf16.msra.mxu0 %v6194
  %6361 = vmatprep.subr.bf16.mxu0 0
  %6362 = vmatpush1.bf16.msra.mxu0 %v6195
  %6363 = vmatprep.subr.bf16.mxu0 0
  %6364 = vmatpush1.bf16.msra.mxu0 %v6196
  %6365 = vmatprep.mubr.bf16.mxu0 %v5769
  %6366 = vmatmul.mubr.bf16.gmra.mrb[0].mxu0 %v5768
  %v6367 = vpop.f32.mrb[0].mxu0
  %v6368 = vadd.f32 %v6328, %v6367
  %v6369 = vpop.f32.mrb[0].mxu0
  %v6370 = vpop.f32.mrb[0].mxu0
  %v6371 = vpop.f32.mrb[0].mxu0
  %6372 = vdwg.mxu0
  %6373 = vmatprep.subr.bf16.mxu0 0
  %6374 = vmatpush1.bf16.msra.mxu0 %v6197
  %6375 = vmatprep.subr.bf16.mxu0 0
  %6376 = vmatpush1.bf16.msra.mxu0 %v6198
  %6377 = vmatprep.subr.bf16.mxu0 0
  %6378 = vmatpush1.bf16.msra.mxu0 %v6199
  %6379 = vmatprep.subr.bf16.mxu0 0
  %6380 = vmatpush1.bf16.msra.mxu0 %v6200
  %6381 = vmatprep.subr.bf16.mxu0 0
  %6382 = vmatpush1.bf16.msra.mxu0 %v6201
  %6383 = vmatprep.subr.bf16.mxu0 0
  %6384 = vmatpush1.bf16.msra.mxu0 %v6202
  %6385 = vmatprep.subr.bf16.mxu0 0
  %6386 = vmatpush1.bf16.msra.mxu0 %v6203
  %6387 = vmatprep.subr.bf16.mxu0 0
  %6388 = vmatpush1.bf16.msra.mxu0 %v6204
  %6389 = vmatprep.subr.bf16.mxu0 0
  %6390 = vmatpush1.bf16.msra.mxu0 %v6205
  %6391 = vmatprep.subr.bf16.mxu0 0
  %6392 = vmatpush1.bf16.msra.mxu0 %v6206
  %6393 = vmatprep.subr.bf16.mxu0 0
  %6394 = vmatpush1.bf16.msra.mxu0 %v6207
  %6395 = vmatprep.subr.bf16.mxu0 0
  %6396 = vmatpush1.bf16.msra.mxu0 %v6208
  %6397 = vmatprep.subr.bf16.mxu0 0
  %6398 = vmatpush1.bf16.msra.mxu0 %v6209
  %6399 = vmatprep.subr.bf16.mxu0 0
  %6400 = vmatpush1.bf16.msra.mxu0 %v6210
  %6401 = vmatprep.subr.bf16.mxu0 0
  %6402 = vmatpush1.bf16.msra.mxu0 %v6211
  %6403 = vmatprep.subr.bf16.mxu0 0
  %6404 = vmatpush1.bf16.msra.mxu0 %v6212
  %6405 = vmatprep.mubr.bf16.mxu0 %v5771
  %6406 = vmatmul.mubr.bf16.gmra.mrb[0].mxu0 %v5770
  %v6407 = vpop.f32.mrb[0].mxu0
  %v6408 = vadd.f32 %v6368, %v6407
  %v6409 = vpop.f32.mrb[0].mxu0
  %v6410 = vpop.f32.mrb[0].mxu0
  %v6411 = vpop.f32.mrb[0].mxu0
  %6412 = vdwg.mxu0
  %6413 = vmatprep.subr.bf16.mxu0 0
  %6414 = vmatpush1.bf16.msra.mxu0 %v6213
  %6415 = vmatprep.subr.bf16.mxu0 0
  %6416 = vmatpush1.bf16.msra.mxu0 %v6214
  %6417 = vmatprep.subr.bf16.mxu0 0
  %6418 = vmatpush1.bf16.msra.mxu0 %v6215
  %6419 = vmatprep.subr.bf16.mxu0 0
  %6420 = vmatpush1.bf16.msra.mxu0 %v6216
  %6421 = vmatprep.subr.bf16.mxu0 0
  %6422 = vmatpush1.bf16.msra.mxu0 %v6217
  %6423 = vmatprep.subr.bf16.mxu0 0
  %6424 = vmatpush1.bf16.msra.mxu0 %v6218
  %6425 = vmatprep.subr.bf16.mxu0 0
  %6426 = vmatpush1.bf16.msra.mxu0 %v6219
  %6427 = vmatprep.subr.bf16.mxu0 0
  %6428 = vmatpush1.bf16.msra.mxu0 %v6220
  %6429 = vmatprep.subr.bf16.mxu0 0
  %6430 = vmatpush1.bf16.msra.mxu0 %v6221
  %6431 = vmatprep.subr.bf16.mxu0 0
  %6432 = vmatpush1.bf16.msra.mxu0 %v6222
  %6433 = vmatprep.subr.bf16.mxu0 0
  %6434 = vmatpush1.bf16.msra.mxu0 %v6223
  %6435 = vmatprep.subr.bf16.mxu0 0
  %6436 = vmatpush1.bf16.msra.mxu0 %v6224
  %6437 = vmatprep.subr.bf16.mxu0 0
  %6438 = vmatpush1.bf16.msra.mxu0 %v6225
  %6439 = vmatprep.subr.bf16.mxu0 0
  %6440 = vmatpush1.bf16.msra.mxu0 %v6226
  %6441 = vmatprep.subr.bf16.mxu0 0
  %6442 = vmatpush1.bf16.msra.mxu0 %v6227
  %6443 = vmatprep.subr.bf16.mxu0 0
  %6444 = vmatpush1.bf16.msra.mxu0 %v6228
  %6445 = vmatprep.mubr.bf16.mxu0 %v5773
  %6446 = vmatmul.mubr.bf16.gmra.mrb[0].mxu0 %v5772
  %v6447 = vpop.f32.mrb[0].mxu0
  %v6448 = vadd.f32 %v6408, %v6447
  %v6449 = vpop.f32.mrb[0].mxu0
  %v6450 = vpop.f32.mrb[0].mxu0
  %v6451 = vpop.f32.mrb[0].mxu0
  %6452 = vdwg.mxu0
  %v6453 = vmax.f32 %v6448, 0.0
  %v6454 = vpack.c.bf16 %v6453, %v6453
  %v6455 = vld [vmem:[%s5] sm:$0xf]
  %v6456 = vld [vmem:[%s5 + $0x4] sm:$0xf]
  %v6457 = vld [vmem:[%s5 + $0x8] sm:$0xf]
  %v6458 = vld [vmem:[%s5 + $0xc] sm:$0xf]
  %v6459 = vld [vmem:[%s5 + $0x10] sm:$0xf]
  %v6460 = vld [vmem:[%s5 + $0x14] sm:$0xf]
  %v6461 = vld [vmem:[%s5 + $0x18] sm:$0xf]
  %v6462 = vld [vmem:[%s5 + $0x1c] sm:$0xf]
  %v6463 = vld [vmem:[%s5 + $0x20] sm:$0xf]
  %v6464 = vld [vmem:[%s5 + $0x24] sm:$0xf]
  %v6465 = vld [vmem:[%s5 + $0x28] sm:$0xf]
  %v6466 = vld [vmem:[%s5 + $0x2c] sm:$0xf]
  %v6467 = vld [vmem:[%s5 + $0x30] sm:$0xf]
  %v6468 = vld [vmem:[%s5 + $0x34] sm:$0xf]
  %v6469 = vld [vmem:[%s5 + $0x38] sm:$0xf]
  %v6470 = vld [vmem:[%s5 + $0x3c] sm:$0xf]
  %v6471 = vld [vmem:[%s6] sm:$0x1]
  %v6473 = vlaneseq
  %v6474 = vshrl.u32 %v6473, 7
  %v6475 = vsub.s32 0, %v6474
  %v6476 = vrot.slane %v6471, %v6475
  %v6494 = vunpack.c.l.b16 %v6455
  %v6495 = vunpack.c.l.b16 %v6456
  %v6496 = vunpack.c.l.b16 %v6457
  %v6497 = vunpack.c.l.b16 %v6458
  %v6498 = vunpack.c.l.b16 %v6459
  %v6499 = vunpack.c.l.b16 %v6460
  %v6500 = vunpack.c.l.b16 %v6461
  %v6501 = vunpack.c.l.b16 %v6462
  %v6502 = vunpack.c.l.b16 %v6463
  %v6503 = vunpack.c.l.b16 %v6464
  %v6504 = vunpack.c.l.b16 %v6465
  %v6505 = vunpack.c.l.b16 %v6466
  %v6506 = vunpack.c.l.b16 %v6467
  %v6507 = vunpack.c.l.b16 %v6468
  %v6508 = vunpack.c.l.b16 %v6469
  %v6509 = vunpack.c.l.b16 %v6470
  %v6510 = vpack.c.b16 %v6495, %v6494
  %v6511 = vpack.c.b16 %v6497, %v6496
  %v6512 = vpack.c.b16 %v6499, %v6498
  %v6513 = vpack.c.b16 %v6501, %v6500
  %v6514 = vpack.c.b16 %v6503, %v6502
  %v6515 = vpack.c.b16 %v6505, %v6504
  %v6516 = vpack.c.b16 %v6507, %v6506
  %v6517 = vpack.c.b16 %v6509, %v6508
  %6526 = vmatprep.subr.bf16.mxu0 0
  %6527 = vmatpush1.bf16.msra.mxu0 %v6510
  %6528 = vmatprep.subr.bf16.mxu0 0
  %6529 = vmatpush1.bf16.msra.mxu0 %v6511
  %6530 = vmatprep.subr.bf16.mxu0 0
  %6531 = vmatpush1.bf16.msra.mxu0 %v6512
  %6532 = vmatprep.subr.bf16.mxu0 0
  %6533 = vmatpush1.bf16.msra.mxu0 %v6513
  %6534 = vmatprep.subr.bf16.mxu0 0
  %6535 = vmatpush1.bf16.msra.mxu0 %v6514
  %6536 = vmatprep.subr.bf16.mxu0 0
  %6537 = vmatpush1.bf16.msra.mxu0 %v6515
  %6538 = vmatprep.subr.bf16.mxu0 0
  %6539 = vmatpush1.bf16.msra.mxu0 %v6516
  %6540 = vmatprep.subr.bf16.mxu0 0
  %6541 = vmatpush1.bf16.msra.mxu0 %v6517
  %6542 = vmatprep.subr.bf16.mxu0 0
  %6543 = vmatpush1.bf16.msra.mxu0 0
  %6544 = vmatprep.subr.bf16.mxu0 0
  %6545 = vmatpush1.bf16.msra.mxu0 0
  %6546 = vmatprep.subr.bf16.mxu0 0
  %6547 = vmatpush1.bf16.msra.mxu0 0
  %6548 = vmatprep.subr.bf16.mxu0 0
  %6549 = vmatpush1.bf16.msra.mxu0 0
  %6550 = vmatprep.subr.bf16.mxu0 0
  %6551 = vmatpush1.bf16.msra.mxu0 0
  %6552 = vmatprep.subr.bf16.mxu0 0
  %6553 = vmatpush1.bf16.msra.mxu0 0
  %6554 = vmatprep.subr.bf16.mxu0 0
  %6555 = vmatpush1.bf16.msra.mxu0 0
  %6556 = vmatprep.subr.bf16.mxu0 0
  %6557 = vmatpush1.bf16.msra.mxu0 0
  %6558 = vmatprep.mubr.bf16.mxu0 0
  %6559 = vmatmul.mubr.bf16.gmra.mrb[0].mxu0 %v6454
  %v6560 = vpop.f32.mrb[0].mxu0
  %v6561 = vadd.f32 %v6476, %v6560
  %v6562 = vpop.f32.mrb[0].mxu0
  %v6563 = vpop.f32.mrb[0].mxu0
  %v6564 = vpop.f32.mrb[0].mxu0
  %6565 = vdwg.mxu0
  %v6566 = vmax.f32 %v6561, 0.0
  %v6567 = vpack.c.bf16 %v6566, %v6566
  %v6568 = vld [vmem:[%s7] sm:$0xf]
  %v6569 = vld [vmem:[%s7 + $0x4] sm:$0xf]
  %v6570 = vld [vmem:[%s7 + $0x8] sm:$0xf]
  %v6571 = vld [vmem:[%s7 + $0xc] sm:$0xf]
  %v6572 = vld [vmem:[%s7 + $0x10] sm:$0xf]
  %v6573 = vld [vmem:[%s7 + $0x14] sm:$0xf]
  %v6574 = vld [vmem:[%s7 + $0x18] sm:$0xf]
  %v6575 = vld [vmem:[%s7 + $0x1c] sm:$0xf]
  %v6576 = vld [vmem:[%s7 + $0x20] sm:$0xf]
  %v6577 = vld [vmem:[%s7 + $0x24] sm:$0xf]
  %v6578 = vld [vmem:[%s7 + $0x28] sm:$0xf]
  %v6579 = vld [vmem:[%s7 + $0x2c] sm:$0xf]
  %v6580 = vld [vmem:[%s7 + $0x30] sm:$0xf]
  %v6581 = vld [vmem:[%s7 + $0x34] sm:$0xf]
  %v6582 = vld [vmem:[%s7 + $0x38] sm:$0xf]
  %v6583 = vld [vmem:[%s7 + $0x3c] sm:$0xf]
  %v6584 = vld [vmem:[#allocation2] sm:$0x1]
  %v6586 = vlaneseq
  %v6587 = vshrl.u32 %v6586, 7
  %v6588 = vsub.s32 0, %v6587
  %v6589 = vrot.slane %v6584, %v6588
  %v6607 = vunpack.c.l.b16 %v6568
  %v6608 = vunpack.c.l.b16 %v6569
  %v6609 = vunpack.c.l.b16 %v6570
  %v6610 = vunpack.c.l.b16 %v6571
  %v6611 = vunpack.c.l.b16 %v6572
  %v6612 = vunpack.c.l.b16 %v6573
  %v6613 = vunpack.c.l.b16 %v6574
  %v6614 = vunpack.c.l.b16 %v6575
  %v6615 = vunpack.c.l.b16 %v6576
  %v6616 = vunpack.c.l.b16 %v6577
  %v6617 = vunpack.c.l.b16 %v6578
  %v6618 = vunpack.c.l.b16 %v6579
  %v6619 = vunpack.c.l.b16 %v6580
  %v6620 = vunpack.c.l.b16 %v6581
  %v6621 = vunpack.c.l.b16 %v6582
  %v6622 = vunpack.c.l.b16 %v6583
  %v6623 = vpack.c.b16 %v6608, %v6607
  %v6624 = vpack.c.b16 %v6610, %v6609
  %v6625 = vpack.c.b16 %v6612, %v6611
  %v6626 = vpack.c.b16 %v6614, %v6613
  %v6627 = vpack.c.b16 %v6616, %v6615
  %v6628 = vpack.c.b16 %v6618, %v6617
  %v6629 = vpack.c.b16 %v6620, %v6619
  %v6630 = vpack.c.b16 %v6622, %v6621
  %6639 = vmatprep.subr.bf16.mxu0 0
  %6640 = vmatpush1.bf16.msra.mxu0 %v6623
  %6641 = vmatprep.subr.bf16.mxu0 0
  %6642 = vmatpush1.bf16.msra.mxu0 %v6624
  %6643 = vmatprep.subr.bf16.mxu0 0
  %6644 = vmatpush1.bf16.msra.mxu0 %v6625
  %6645 = vmatprep.subr.bf16.mxu0 0
  %6646 = vmatpush1.bf16.msra.mxu0 %v6626
  %6647 = vmatprep.subr.bf16.mxu0 0
  %6648 = vmatpush1.bf16.msra.mxu0 %v6627
  %6649 = vmatprep.subr.bf16.mxu0 0
  %6650 = vmatpush1.bf16.msra.mxu0 %v6628
  %6651 = vmatprep.subr.bf16.mxu0 0
  %6652 = vmatpush1.bf16.msra.mxu0 %v6629
  %6653 = vmatprep.subr.bf16.mxu0 0
  %6654 = vmatpush1.bf16.msra.mxu0 %v6630
  %6655 = vmatprep.subr.bf16.mxu0 0
  %6656 = vmatpush1.bf16.msra.mxu0 0
  %6657 = vmatprep.subr.bf16.mxu0 0
  %6658 = vmatpush1.bf16.msra.mxu0 0
  %6659 = vmatprep.subr.bf16.mxu0 0
  %6660 = vmatpush1.bf16.msra.mxu0 0
  %6661 = vmatprep.subr.bf16.mxu0 0
  %6662 = vmatpush1.bf16.msra.mxu0 0
  %6663 = vmatprep.subr.bf16.mxu0 0
  %6664 = vmatpush1.bf16.msra.mxu0 0
  %6665 = vmatprep.subr.bf16.mxu0 0
  %6666 = vmatpush1.bf16.msra.mxu0 0
  %6667 = vmatprep.subr.bf16.mxu0 0
  %6668 = vmatpush1.bf16.msra.mxu0 0
  %6669 = vmatprep.subr.bf16.mxu0 0
  %6670 = vmatpush1.bf16.msra.mxu0 0
  %6671 = vmatprep.mubr.bf16.mxu0 0
  %6672 = vmatmul.mubr.bf16.gmra.mrb[0].mxu0 %v6567
  %v6673 = vpop.f32.mrb[0].mxu0
  %v6674 = vadd.f32 %v6589, %v6673
  %v6675 = vpop.f32.mrb[0].mxu0
  %v6676 = vpop.f32.mrb[0].mxu0
  %v6677 = vpop.f32.mrb[0].mxu0
  %6678 = vdwg.mxu0
  %vm6679 = vcmask 1024
  %6680 = vst.msk [vmem:[%s9] sm:$0x3] %vm6679, %v6674
  // Predicated region
  $region38: #{small_data_classifier_forward.3} parent=0 // pred_check
    _
  $region39: #{small_data_classifier_forward.3} parent=0 // pred_check_branch
    %6682 = sbr.rel (0) target = $region41
  $region40: #{small_data_classifier_forward.3} parent=0 // pred_region
    _
  $region41: #{small_data_classifier_forward.3} parent=0 // pred_fallthru
    _
  // Predicated region
  $region42: #{small_data_classifier_forward.3} parent=0 // pred_check
    _
  $region43: #{small_data_classifier_forward.3} parent=0 // pred_check_branch
    %6684 = sbr.rel (0) target = $region45
  $region44: #{small_data_classifier_forward.3} parent=0 // pred_region
    _
  $region45: #{small_data_classifier_forward.3} parent=0 // pred_fallthru
    _

</llo_original>
